<compile_context>
chip_gen: v7x
topology: tpu7x:2x2x1
jax: 0.10.0
libtpu: 0.0.40
codegen_flags: <defaults>
</compile_context>

<pallas_src>
import functools

import jax
import jax.numpy as jnp
from jax.experimental import pallas as pl
from jax.experimental.pallas import tpu as pltpu

BN_EPS = 1e-5
_COL0 = 8   # sublane-aligned column offset of the unpadded image inside the padded
            # VMEM scratch (keeps the scratch *store* tile-aligned; the shifted
            # window *loads* may be unaligned, which is cheap).


# -----------------------------------------------------------------------------
# Pallas kernel: one fused ResNetBlock (conv+BN+ReLU, conv+BN+ReLU, + residual)
# -----------------------------------------------------------------------------
def _resnet_block_kernel(*refs, KH, KW, H, W, pad, has_res):
    if has_res:
        (x_ref, w1_ref, s1_ref, b1_ref, w2_ref, s2_ref, b2_ref, rw_ref, rb_ref,
         out_ref, xp_ref, yp_ref, c1_ref, c2_ref, o_ref) = refs
    else:
        (x_ref, w1_ref, s1_ref, b1_ref, w2_ref, s2_ref, b2_ref,
         out_ref, xp_ref, yp_ref, c1_ref, c2_ref, o_ref) = refs
        rw_ref = rb_ref = None

    Cin = x_ref.shape[-1]
    Cout = s1_ref.shape[-1]
    HW = H * W

    def conv_bn_relu(pad_ref, col_ref, w_ref, scale_ref, shift_ref, src_hwc, C):
        # Zero-pad into a VMEM scratch (halo stays zero, interior is overwritten).
        pad_ref[...] = jnp.zeros_like(pad_ref)
        pad_ref[pad:pad + H, _COL0:_COL0 + W, :] = src_hwc
        xp = pad_ref[...]
        # im2col: build one (H*W, KH*KW*C) bf16 slab -> a single MXU matmul with
        # contraction depth KH*KW*C instead of KH*KW tiny K=C matmuls.
        for kh in range(KH):
            for kw in range(KW):
                k = kh * KW + kw
                c0 = _COL0 - pad + kw
                col_ref[:, k * C:(k + 1) * C] = (
                    xp[kh:kh + H, c0:c0 + W, :].reshape(HW, C).astype(jnp.bfloat16))
        acc = jnp.dot(col_ref[...], w_ref[...], preferred_element_type=jnp.float32)
        # Folded conv-bias + eval-mode BN + ReLU (elementwise kept in f32).
        return jnp.maximum(acc * scale_ref[...] + shift_ref[...], 0.0)

    x_f32 = x_ref[0].astype(jnp.float32)                         # (H, W, Cin)

    y = conv_bn_relu(xp_ref, c1_ref, w1_ref, s1_ref, b1_ref, x_f32, Cin)
    z = conv_bn_relu(yp_ref, c2_ref, w2_ref, s2_ref, b2_ref,
                     y.reshape(H, W, Cout), Cout)

    x2d = x_f32.reshape(HW, Cin)
    if has_res:                                                  # 1x1 res_conv
        r = jnp.dot(x2d.astype(jnp.bfloat16), rw_ref[...],
                    preferred_element_type=jnp.float32) + rb_ref[...]
    else:                                                        # identity (Cin == Cout)
        r = x2d

    # Lane-dense store: out block is (1, H, W*Cout).  Rearrange (H*W, Cout) ->
    # (H, W*Cout) through a small f32 scratch using strided sublane reads so the
    # HBM write-back is a dense >=128-lane slab instead of masked partial stores.
    o_ref[...] = z + r
    for w in range(W):
        out_ref[0, :, w * Cout:(w + 1) * Cout] = (
            o_ref[pl.ds(w, H, stride=W), :].astype(out_ref.dtype))


def resnet_block(x, w1, s1, b1, w2, s2, b2, res, *, KH, KW):
    """x: (N,H,W,Cin) bf16.  w1:(KH*KW*Cin,Cout), w2:(KH*KW*Cout,Cout) bf16 slabs.
    s*/b*: folded BN (scale, shift), f32 (1,Cout).  res: None or (rw,(1,Cout) rb)."""
    N, H, W, Cin = x.shape
    Cout = w1.shape[-1]
    pad = KH // 2
    has_res = res is not None

    Hp = H + 2 * pad
    Wp_s = _COL0 + W + _COL0          # padded-scratch width (sublane aligned)

    kernel = functools.partial(_resnet_block_kernel, KH=KH, KW=KW, H=H, W=W,
                               pad=pad, has_res=has_res)

    in_specs = [
        pl.BlockSpec((1, H, W, Cin), lambda n: (n, 0, 0, 0)),
        pl.BlockSpec((KH * KW * Cin, Cout), lambda n: (0, 0)),
        pl.BlockSpec((1, Cout), lambda n: (0, 0)),
        pl.BlockSpec((1, Cout), lambda n: (0, 0)),
        pl.BlockSpec((KH * KW * Cout, Cout), lambda n: (0, 0)),
        pl.BlockSpec((1, Cout), lambda n: (0, 0)),
        pl.BlockSpec((1, Cout), lambda n: (0, 0)),
    ]
    args = [x, w1, s1, b1, w2, s2, b2]
    if has_res:
        rw, rb = res
        in_specs += [pl.BlockSpec((Cin, Cout), lambda n: (0, 0)),
                     pl.BlockSpec((1, Cout), lambda n: (0, 0))]
        args += [rw, rb]

    out = pl.pallas_call(
        kernel,
        out_shape=jax.ShapeDtypeStruct((N, H, W * Cout), jnp.bfloat16),
        grid_spec=pltpu.PrefetchScalarGridSpec(
            num_scalar_prefetch=0,
            grid=(N,),                              # one image per grid step
            in_specs=in_specs,
            out_specs=pl.BlockSpec((1, H, W * Cout), lambda n: (n, 0, 0)),
            scratch_shapes=[
                pltpu.VMEM((Hp, Wp_s, Cin), jnp.float32),            # padded conv1 input
                pltpu.VMEM((Hp, Wp_s, Cout), jnp.float32),           # padded conv2 input
                pltpu.VMEM((H * W, KH * KW * Cin), jnp.bfloat16),    # im2col slab, conv1
                pltpu.VMEM((H * W, KH * KW * Cout), jnp.bfloat16),   # im2col slab, conv2
                pltpu.VMEM((H * W, Cout), jnp.float32),              # pre-store relayout
            ],
        ),
        compiler_params=pltpu.CompilerParams(
            dimension_semantics=("parallel",)),
    )(*args)
    # (N, H, W*Cout) is byte-identical to NHWC -> free reshape for the next block.
    return out.reshape(N, H, W, Cout)


# -----------------------------------------------------------------------------
# Parameter setup (deterministic, synthetic) and model composition (glue)
# -----------------------------------------------------------------------------
def init_block_params(key, dim_in, dim_out, KH, KW):
    kw_, kb, kg, kbt, km, kv = jax.random.split(key, 6)
    fan_in = dim_in * KH * KW
    return dict(
        w=jax.random.normal(kw_, (dim_out, dim_in, KH, KW), jnp.float32) * (1.0 / fan_in) ** 0.5,
        b=0.1 * jax.random.normal(kb, (dim_out,), jnp.float32),
        gamma=1.0 + 0.1 * jax.random.normal(kg, (dim_out,), jnp.float32),
        beta=0.1 * jax.random.normal(kbt, (dim_out,), jnp.float32),
        mean=0.1 * jax.random.normal(km, (dim_out,), jnp.float32),
        var=1.0 + 0.1 * jnp.abs(jax.random.normal(kv, (dim_out,), jnp.float32)),
    )


def fold_bn(p):
    """Fold conv bias + eval-mode BN into a packed bf16 weight slab + f32 affine."""
    cout, cin, kh, kw = p["w"].shape
    scale = p["gamma"] / jnp.sqrt(p["var"] + BN_EPS)
    shift = p["beta"] + (p["b"] - p["mean"]) * scale
    # (Cout,Cin,KH,KW) -> (KH*KW*Cin, Cout): single 2-D slab, tap-major, channel-minor.
    w = jnp.transpose(p["w"], (2, 3, 1, 0)).reshape(kh * kw * cin, cout)
    return (w.astype(jnp.bfloat16),
            scale[None, :].astype(jnp.float32),
            shift[None, :].astype(jnp.float32))


def resnet_forward(x_nhwc, params, *, KH, KW):
    x = x_nhwc.astype(jnp.bfloat16)
    for bp in params:
        w1, s1, b1 = fold_bn(bp["block1"])
        w2, s2, b2 = fold_bn(bp["block2"])
        res = None
        if bp["res"] is not None:                                # 1x1 res_conv weights
            cout, cin = bp["res"]["w"].shape[:2]
            rw = jnp.transpose(bp["res"]["w"], (2, 3, 1, 0)).reshape(cin, cout)
            res = (rw.astype(jnp.bfloat16),
                   bp["res"]["b"][None, :].astype(jnp.float32))
        x = resnet_block(x, w1, s1, b1, w2, s2, b2, res, KH=KH, KW=KW)
    return x.astype(jnp.float32)


# -----------------------------------------------------------------------------
# Pure-JAX reference (for correctness check)
# -----------------------------------------------------------------------------
def reference_forward(x_nhwc, params, KH, KW):
    pad = KH // 2

    def conv(x, w_oihw, b, p):
        w_hwio = jnp.transpose(w_oihw, (2, 3, 1, 0))
        y = jax.lax.conv_general_dilated(
            x, w_hwio, window_strides=(1, 1), padding=[(p, p), (p, p)],
            dimension_numbers=("NHWC", "HWIO", "NHWC"))
        return y + b[None, None, None, :]

    def block(x, p):
        y = conv(x, p["w"], p["b"], pad)
        y = (y - p["mean"]) / jnp.sqrt(p["var"] + BN_EPS) * p["gamma"] + p["beta"]
        return jnp.maximum(y, 0.0)

    for bp in params:
        y = block(x_nhwc, bp["block1"])
        y = block(y, bp["block2"])
        r = conv(x_nhwc, bp["res"]["w"], bp["res"]["b"], 0) if bp["res"] is not None else x_nhwc
        x_nhwc = y + r
    return x_nhwc


if __name__ == "__main__":
    key = jax.random.PRNGKey(0)
    dims = [4, 8, 8]          # two ResNetBlocks: (4->8 with res_conv), (8->8 identity res)
    ksize = 3
    N, H, W = 2, 16, 16

    kx, kp = jax.random.split(key)
    x_nchw = jax.random.normal(kx, (N, dims[0], H, W), jnp.float32)   # PyTorch-style NCHW input
    x_nhwc = jnp.transpose(x_nchw, (0, 2, 3, 1))

    params = []
    keys = jax.random.split(kp, len(dims) - 1)
    for k, (din, dout) in zip(keys, zip(dims[:-1], dims[1:])):
        k1, k2, k3 = jax.random.split(k, 3)
        bp = dict(block1=init_block_params(k1, din, dout, ksize, ksize),
                  block2=init_block_params(k2, dout, dout, ksize, ksize),
                  res=None)
        if din != dout:
            krw, krb = jax.random.split(k3)
            bp["res"] = dict(
                w=jax.random.normal(krw, (dout, din, 1, 1), jnp.float32) * (1.0 / din) ** 0.5,
                b=0.1 * jax.random.normal(krb, (dout,), jnp.float32))
        params.append(bp)

    fwd = jax.jit(functools.partial(resnet_forward, KH=ksize, KW=ksize))
    out = jax.block_until_ready(fwd(x_nhwc, params))
    ref = reference_forward(x_nhwc, params, ksize, ksize)

    err = float(jnp.max(jnp.abs(out - ref)))
    scale = float(jnp.max(jnp.abs(ref)))
    rel = err / (scale + 1e-6)
    # bf16 activations/weights with f32 accumulation: allow a few-percent deviation.
    assert rel < 6e-2, f"Pallas output mismatch vs reference: max abs err = {err}, rel = {rel}"
    print("KERNEL_OK")
</pallas_src>

<mosaic_0001>
module attributes {stable_mosaic.version = 11 : i64} {
  func.func @_resnet_block_kernel(%arg0: i32, %arg1: memref<1x16x16x4xbf16, #tpu.memory_space<vmem>>, %arg2: memref<36x8xbf16, #tpu.memory_space<vmem>>, %arg3: memref<1x8xf32, #tpu.memory_space<vmem>>, %arg4: memref<1x8xf32, #tpu.memory_space<vmem>>, %arg5: memref<72x8xbf16, #tpu.memory_space<vmem>>, %arg6: memref<1x8xf32, #tpu.memory_space<vmem>>, %arg7: memref<1x8xf32, #tpu.memory_space<vmem>>, %arg8: memref<4x8xbf16, #tpu.memory_space<vmem>>, %arg9: memref<1x8xf32, #tpu.memory_space<vmem>>, %arg10: memref<1x16x128xbf16, #tpu.memory_space<vmem>>, %arg11: memref<18x32x4xf32, #tpu.memory_space<vmem>>, %arg12: memref<18x32x8xf32, #tpu.memory_space<vmem>>, %arg13: memref<256x36xbf16, #tpu.memory_space<vmem>>, %arg14: memref<256x72xbf16, #tpu.memory_space<vmem>>, %arg15: memref<256x8xf32, #tpu.memory_space<vmem>>) attributes {dimension_semantics = [#tpu.dimension_semantics<parallel>], iteration_bounds = array<i64: 2>, scalar_prefetch = 0 : i64, scratch_operands = 5 : i64, tpu.core_type = #tpu.core_type<tc>, window_params = [{transform_indices = @transform_0, window_bounds = array<i64: 1, 16, 16, 4>}, {pipeline_mode = #tpu.pipeline_mode<synchronous>, transform_indices = @transform_1, window_bounds = array<i64: 36, 8>}, {pipeline_mode = #tpu.pipeline_mode<synchronous>, transform_indices = @transform_2, window_bounds = array<i64: 1, 8>}, {pipeline_mode = #tpu.pipeline_mode<synchronous>, transform_indices = @transform_3, window_bounds = array<i64: 1, 8>}, {pipeline_mode = #tpu.pipeline_mode<synchronous>, transform_indices = @transform_4, window_bounds = array<i64: 72, 8>}, {pipeline_mode = #tpu.pipeline_mode<synchronous>, transform_indices = @transform_5, window_bounds = array<i64: 1, 8>}, {pipeline_mode = #tpu.pipeline_mode<synchronous>, transform_indices = @transform_6, window_bounds = array<i64: 1, 8>}, {pipeline_mode = #tpu.pipeline_mode<synchronous>, transform_indices = @transform_7, window_bounds = array<i64: 4, 8>}, {pipeline_mode = #tpu.pipeline_mode<synchronous>, transform_indices = @transform_8, window_bounds = array<i64: 1, 8>}, {transform_indices = @transform_9, window_bounds = array<i64: 1, 16, 128>}]} {
    %c0 = arith.constant 0 : index
    %c0_0 = arith.constant 0 : index
    %c0_1 = arith.constant 0 : index
    %c0_2 = arith.constant 0 : index
    %0 = vector.load %arg1[%c0, %c0_0, %c0_1, %c0_2] : memref<1x16x16x4xbf16, #tpu.memory_space<vmem>>, vector<1x16x16x4xbf16>
    %1 = vector.shape_cast %0 : vector<1x16x16x4xbf16> to vector<16x16x4xbf16>
    %2 = arith.extf %1 : vector<16x16x4xbf16> to vector<16x16x4xf32>
    %cst = arith.constant 0.000000e+00 : f32
    %3 = vector.broadcast %cst : f32 to vector<18x32x4xf32>
    %c0_3 = arith.constant 0 : index
    %c0_4 = arith.constant 0 : index
    %c0_5 = arith.constant 0 : index
    %4 = vector.load %arg11[%c0_3, %c0_4, %c0_5] : memref<18x32x4xf32, #tpu.memory_space<vmem>>, vector<18x32x4xf32>
    tpu.vector_store %arg11[%c0_3, %c0_4, %c0_5], %3 {strides = array<i32>} : memref<18x32x4xf32, #tpu.memory_space<vmem>>, vector<18x32x4xf32>,
    %c1 = arith.constant 1 : index
    %c8 = arith.constant 8 : index
    %c0_6 = arith.constant 0 : index
    %5 = vector.load %arg11[%c1, %c8, %c0_6] : memref<18x32x4xf32, #tpu.memory_space<vmem>>, vector<16x16x4xf32>
    tpu.vector_store %arg11[%c1, %c8, %c0_6], %2 {strides = array<i32>} : memref<18x32x4xf32, #tpu.memory_space<vmem>>, vector<16x16x4xf32>,
    %c0_7 = arith.constant 0 : index
    %c0_8 = arith.constant 0 : index
    %c0_9 = arith.constant 0 : index
    %6 = vector.load %arg11[%c0_7, %c0_8, %c0_9] : memref<18x32x4xf32, #tpu.memory_space<vmem>>, vector<18x32x4xf32>
    %7 = vector.extract_strided_slice %6 {offsets = [0, 7, 0], sizes = [16, 16, 4], strides = [1, 1, 1]} : vector<18x32x4xf32> to vector<16x16x4xf32>
    %8 = vector.shape_cast %7 : vector<16x16x4xf32> to vector<256x4xf32>
    %9 = arith.truncf %8 : vector<256x4xf32> to vector<256x4xbf16>
    %c0_10 = arith.constant 0 : index
    %c0_11 = arith.constant 0 : index
    %10 = vector.load %arg13[%c0_10, %c0_11] : memref<256x36xbf16, #tpu.memory_space<vmem>>, vector<256x4xbf16>
    tpu.vector_store %arg13[%c0_10, %c0_11], %9 {strides = array<i32>} : memref<256x36xbf16, #tpu.memory_space<vmem>>, vector<256x4xbf16>,
    %11 = vector.extract_strided_slice %6 {offsets = [0, 8, 0], sizes = [16, 16, 4], strides = [1, 1, 1]} : vector<18x32x4xf32> to vector<16x16x4xf32>
    %12 = vector.shape_cast %11 : vector<16x16x4xf32> to vector<256x4xf32>
    %13 = arith.truncf %12 : vector<256x4xf32> to vector<256x4xbf16>
    %c0_12 = arith.constant 0 : index
    %c4 = arith.constant 4 : index
    %14 = vector.load %arg13[%c0_12, %c4] : memref<256x36xbf16, #tpu.memory_space<vmem>>, vector<256x4xbf16>
    tpu.vector_store %arg13[%c0_12, %c4], %13 {strides = array<i32>} : memref<256x36xbf16, #tpu.memory_space<vmem>>, vector<256x4xbf16>,
    %15 = vector.extract_strided_slice %6 {offsets = [0, 9, 0], sizes = [16, 16, 4], strides = [1, 1, 1]} : vector<18x32x4xf32> to vector<16x16x4xf32>
    %16 = vector.shape_cast %15 : vector<16x16x4xf32> to vector<256x4xf32>
    %17 = arith.truncf %16 : vector<256x4xf32> to vector<256x4xbf16>
    %c0_13 = arith.constant 0 : index
    %c8_14 = arith.constant 8 : index
    %18 = vector.load %arg13[%c0_13, %c8_14] : memref<256x36xbf16, #tpu.memory_space<vmem>>, vector<256x4xbf16>
    tpu.vector_store %arg13[%c0_13, %c8_14], %17 {strides = array<i32>} : memref<256x36xbf16, #tpu.memory_space<vmem>>, vector<256x4xbf16>,
    %19 = vector.extract_strided_slice %6 {offsets = [1, 7, 0], sizes = [16, 16, 4], strides = [1, 1, 1]} : vector<18x32x4xf32> to vector<16x16x4xf32>
    %20 = vector.shape_cast %19 : vector<16x16x4xf32> to vector<256x4xf32>
    %21 = arith.truncf %20 : vector<256x4xf32> to vector<256x4xbf16>
    %c0_15 = arith.constant 0 : index
    %c12 = arith.constant 12 : index
    %22 = vector.load %arg13[%c0_15, %c12] : memref<256x36xbf16, #tpu.memory_space<vmem>>, vector<256x4xbf16>
    tpu.vector_store %arg13[%c0_15, %c12], %21 {strides = array<i32>} : memref<256x36xbf16, #tpu.memory_space<vmem>>, vector<256x4xbf16>,
    %23 = vector.extract_strided_slice %6 {offsets = [1, 8, 0], sizes = [16, 16, 4], strides = [1, 1, 1]} : vector<18x32x4xf32> to vector<16x16x4xf32>
    %24 = vector.shape_cast %23 : vector<16x16x4xf32> to vector<256x4xf32>
    %25 = arith.truncf %24 : vector<256x4xf32> to vector<256x4xbf16>
    %c0_16 = arith.constant 0 : index
    %c16 = arith.constant 16 : index
    %26 = vector.load %arg13[%c0_16, %c16] : memref<256x36xbf16, #tpu.memory_space<vmem>>, vector<256x4xbf16>
    tpu.vector_store %arg13[%c0_16, %c16], %25 {strides = array<i32>} : memref<256x36xbf16, #tpu.memory_space<vmem>>, vector<256x4xbf16>,
    %27 = vector.extract_strided_slice %6 {offsets = [1, 9, 0], sizes = [16, 16, 4], strides = [1, 1, 1]} : vector<18x32x4xf32> to vector<16x16x4xf32>
    %28 = vector.shape_cast %27 : vector<16x16x4xf32> to vector<256x4xf32>
    %29 = arith.truncf %28 : vector<256x4xf32> to vector<256x4xbf16>
    %c0_17 = arith.constant 0 : index
    %c20 = arith.constant 20 : index
    %30 = vector.load %arg13[%c0_17, %c20] : memref<256x36xbf16, #tpu.memory_space<vmem>>, vector<256x4xbf16>
    tpu.vector_store %arg13[%c0_17, %c20], %29 {strides = array<i32>} : memref<256x36xbf16, #tpu.memory_space<vmem>>, vector<256x4xbf16>,
    %31 = vector.extract_strided_slice %6 {offsets = [2, 7, 0], sizes = [16, 16, 4], strides = [1, 1, 1]} : vector<18x32x4xf32> to vector<16x16x4xf32>
    %32 = vector.shape_cast %31 : vector<16x16x4xf32> to vector<256x4xf32>
    %33 = arith.truncf %32 : vector<256x4xf32> to vector<256x4xbf16>
    %c0_18 = arith.constant 0 : index
    %c24 = arith.constant 24 : index
    %34 = vector.load %arg13[%c0_18, %c24] : memref<256x36xbf16, #tpu.memory_space<vmem>>, vector<256x4xbf16>
    tpu.vector_store %arg13[%c0_18, %c24], %33 {strides = array<i32>} : memref<256x36xbf16, #tpu.memory_space<vmem>>, vector<256x4xbf16>,
    %35 = vector.extract_strided_slice %6 {offsets = [2, 8, 0], sizes = [16, 16, 4], strides = [1, 1, 1]} : vector<18x32x4xf32> to vector<16x16x4xf32>
    %36 = vector.shape_cast %35 : vector<16x16x4xf32> to vector<256x4xf32>
    %37 = arith.truncf %36 : vector<256x4xf32> to vector<256x4xbf16>
    %c0_19 = arith.constant 0 : index
    %c28 = arith.constant 28 : index
    %38 = vector.load %arg13[%c0_19, %c28] : memref<256x36xbf16, #tpu.memory_space<vmem>>, vector<256x4xbf16>
    tpu.vector_store %arg13[%c0_19, %c28], %37 {strides = array<i32>} : memref<256x36xbf16, #tpu.memory_space<vmem>>, vector<256x4xbf16>,
    %39 = vector.extract_strided_slice %6 {offsets = [2, 9, 0], sizes = [16, 16, 4], strides = [1, 1, 1]} : vector<18x32x4xf32> to vector<16x16x4xf32>
    %40 = vector.shape_cast %39 : vector<16x16x4xf32> to vector<256x4xf32>
    %41 = arith.truncf %40 : vector<256x4xf32> to vector<256x4xbf16>
    %c0_20 = arith.constant 0 : index
    %c32 = arith.constant 32 : index
    %42 = vector.load %arg13[%c0_20, %c32] : memref<256x36xbf16, #tpu.memory_space<vmem>>, vector<256x4xbf16>
    tpu.vector_store %arg13[%c0_20, %c32], %41 {strides = array<i32>} : memref<256x36xbf16, #tpu.memory_space<vmem>>, vector<256x4xbf16>,
    %c0_21 = arith.constant 0 : index
    %c0_22 = arith.constant 0 : index
    %43 = vector.load %arg13[%c0_21, %c0_22] : memref<256x36xbf16, #tpu.memory_space<vmem>>, vector<256x36xbf16>
    %c0_23 = arith.constant 0 : index
    %c0_24 = arith.constant 0 : index
    %44 = vector.load %arg2[%c0_23, %c0_24] : memref<36x8xbf16, #tpu.memory_space<vmem>>, vector<36x8xbf16>
    %cst_25 = arith.constant dense<0.000000e+00> : vector<256x8xf32>
    %45 = tpu.matmul %43, %44, %cst_25 {dimension_numbers = #tpu.dot_dimension_numbers<[1], [0], [0], [1], [0, 0, 1, 1], [], []>} : vector<256x36xbf16>, vector<36x8xbf16>, vector<256x8xf32> -> vector<256x8xf32>
    %c0_26 = arith.constant 0 : index
    %c0_27 = arith.constant 0 : index
    %46 = vector.load %arg3[%c0_26, %c0_27] : memref<1x8xf32, #tpu.memory_space<vmem>>, vector<1x8xf32>
    %47 = vector.broadcast %46 : vector<1x8xf32> to vector<256x8xf32>
    %48 = arith.mulf %45, %47 : vector<256x8xf32>
    %c0_28 = arith.constant 0 : index
    %c0_29 = arith.constant 0 : index
    %49 = vector.load %arg4[%c0_28, %c0_29] : memref<1x8xf32, #tpu.memory_space<vmem>>, vector<1x8xf32>
    %50 = vector.broadcast %49 : vector<1x8xf32> to vector<256x8xf32>
    %51 = arith.addf %48, %50 : vector<256x8xf32>
    %cst_30 = arith.constant 0.000000e+00 : f32
    %52 = vector.broadcast %cst_30 : f32 to vector<256x8xf32>
    %53 = arith.maximumf %51, %52 : vector<256x8xf32>
    %54 = vector.shape_cast %53 : vector<256x8xf32> to vector<16x16x8xf32>
    %cst_31 = arith.constant 0.000000e+00 : f32
    %55 = vector.broadcast %cst_31 : f32 to vector<18x32x8xf32>
    %c0_32 = arith.constant 0 : index
    %c0_33 = arith.constant 0 : index
    %c0_34 = arith.constant 0 : index
    %56 = vector.load %arg12[%c0_32, %c0_33, %c0_34] : memref<18x32x8xf32, #tpu.memory_space<vmem>>, vector<18x32x8xf32>
    tpu.vector_store %arg12[%c0_32, %c0_33, %c0_34], %55 {strides = array<i32>} : memref<18x32x8xf32, #tpu.memory_space<vmem>>, vector<18x32x8xf32>,
    %c1_35 = arith.constant 1 : index
    %c8_36 = arith.constant 8 : index
    %c0_37 = arith.constant 0 : index
    %57 = vector.load %arg12[%c1_35, %c8_36, %c0_37] : memref<18x32x8xf32, #tpu.memory_space<vmem>>, vector<16x16x8xf32>
    tpu.vector_store %arg12[%c1_35, %c8_36, %c0_37], %54 {strides = array<i32>} : memref<18x32x8xf32, #tpu.memory_space<vmem>>, vector<16x16x8xf32>,
    %c0_38 = arith.constant 0 : index
    %c0_39 = arith.constant 0 : index
    %c0_40 = arith.constant 0 : index
    %58 = vector.load %arg12[%c0_38, %c0_39, %c0_40] : memref<18x32x8xf32, #tpu.memory_space<vmem>>, vector<18x32x8xf32>
    %59 = vector.extract_strided_slice %58 {offsets = [0, 7, 0], sizes = [16, 16, 8], strides = [1, 1, 1]} : vector<18x32x8xf32> to vector<16x16x8xf32>
    %60 = vector.shape_cast %59 : vector<16x16x8xf32> to vector<256x8xf32>
    %61 = arith.truncf %60 : vector<256x8xf32> to vector<256x8xbf16>
    %c0_41 = arith.constant 0 : index
    %c0_42 = arith.constant 0 : index
    %62 = vector.load %arg14[%c0_41, %c0_42] : memref<256x72xbf16, #tpu.memory_space<vmem>>, vector<256x8xbf16>
    tpu.vector_store %arg14[%c0_41, %c0_42], %61 {strides = array<i32>} : memref<256x72xbf16, #tpu.memory_space<vmem>>, vector<256x8xbf16>,
    %63 = vector.extract_strided_slice %58 {offsets = [0, 8, 0], sizes = [16, 16, 8], strides = [1, 1, 1]} : vector<18x32x8xf32> to vector<16x16x8xf32>
    %64 = vector.shape_cast %63 : vector<16x16x8xf32> to vector<256x8xf32>
    %65 = arith.truncf %64 : vector<256x8xf32> to vector<256x8xbf16>
    %c0_43 = arith.constant 0 : index
    %c8_44 = arith.constant 8 : index
    %66 = vector.load %arg14[%c0_43, %c8_44] : memref<256x72xbf16, #tpu.memory_space<vmem>>, vector<256x8xbf16>
    tpu.vector_store %arg14[%c0_43, %c8_44], %65 {strides = array<i32>} : memref<256x72xbf16, #tpu.memory_space<vmem>>, vector<256x8xbf16>,
    %67 = vector.extract_strided_slice %58 {offsets = [0, 9, 0], sizes = [16, 16, 8], strides = [1, 1, 1]} : vector<18x32x8xf32> to vector<16x16x8xf32>
    %68 = vector.shape_cast %67 : vector<16x16x8xf32> to vector<256x8xf32>
    %69 = arith.truncf %68 : vector<256x8xf32> to vector<256x8xbf16>
    %c0_45 = arith.constant 0 : index
    %c16_46 = arith.constant 16 : index
    %70 = vector.load %arg14[%c0_45, %c16_46] : memref<256x72xbf16, #tpu.memory_space<vmem>>, vector<256x8xbf16>
    tpu.vector_store %arg14[%c0_45, %c16_46], %69 {strides = array<i32>} : memref<256x72xbf16, #tpu.memory_space<vmem>>, vector<256x8xbf16>,
    %71 = vector.extract_strided_slice %58 {offsets = [1, 7, 0], sizes = [16, 16, 8], strides = [1, 1, 1]} : vector<18x32x8xf32> to vector<16x16x8xf32>
    %72 = vector.shape_cast %71 : vector<16x16x8xf32> to vector<256x8xf32>
    %73 = arith.truncf %72 : vector<256x8xf32> to vector<256x8xbf16>
    %c0_47 = arith.constant 0 : index
    %c24_48 = arith.constant 24 : index
    %74 = vector.load %arg14[%c0_47, %c24_48] : memref<256x72xbf16, #tpu.memory_space<vmem>>, vector<256x8xbf16>
    tpu.vector_store %arg14[%c0_47, %c24_48], %73 {strides = array<i32>} : memref<256x72xbf16, #tpu.memory_space<vmem>>, vector<256x8xbf16>,
    %75 = vector.extract_strided_slice %58 {offsets = [1, 8, 0], sizes = [16, 16, 8], strides = [1, 1, 1]} : vector<18x32x8xf32> to vector<16x16x8xf32>
    %76 = vector.shape_cast %75 : vector<16x16x8xf32> to vector<256x8xf32>
    %77 = arith.truncf %76 : vector<256x8xf32> to vector<256x8xbf16>
    %c0_49 = arith.constant 0 : index
    %c32_50 = arith.constant 32 : index
    %78 = vector.load %arg14[%c0_49, %c32_50] : memref<256x72xbf16, #tpu.memory_space<vmem>>, vector<256x8xbf16>
    tpu.vector_store %arg14[%c0_49, %c32_50], %77 {strides = array<i32>} : memref<256x72xbf16, #tpu.memory_space<vmem>>, vector<256x8xbf16>,
    %79 = vector.extract_strided_slice %58 {offsets = [1, 9, 0], sizes = [16, 16, 8], strides = [1, 1, 1]} : vector<18x32x8xf32> to vector<16x16x8xf32>
    %80 = vector.shape_cast %79 : vector<16x16x8xf32> to vector<256x8xf32>
    %81 = arith.truncf %80 : vector<256x8xf32> to vector<256x8xbf16>
    %c0_51 = arith.constant 0 : index
    %c40 = arith.constant 40 : index
    %82 = vector.load %arg14[%c0_51, %c40] : memref<256x72xbf16, #tpu.memory_space<vmem>>, vector<256x8xbf16>
    tpu.vector_store %arg14[%c0_51, %c40], %81 {strides = array<i32>} : memref<256x72xbf16, #tpu.memory_space<vmem>>, vector<256x8xbf16>,
    %83 = vector.extract_strided_slice %58 {offsets = [2, 7, 0], sizes = [16, 16, 8], strides = [1, 1, 1]} : vector<18x32x8xf32> to vector<16x16x8xf32>
    %84 = vector.shape_cast %83 : vector<16x16x8xf32> to vector<256x8xf32>
    %85 = arith.truncf %84 : vector<256x8xf32> to vector<256x8xbf16>
    %c0_52 = arith.constant 0 : index
    %c48 = arith.constant 48 : index
    %86 = vector.load %arg14[%c0_52, %c48] : memref<256x72xbf16, #tpu.memory_space<vmem>>, vector<256x8xbf16>
    tpu.vector_store %arg14[%c0_52, %c48], %85 {strides = array<i32>} : memref<256x72xbf16, #tpu.memory_space<vmem>>, vector<256x8xbf16>,
    %87 = vector.extract_strided_slice %58 {offsets = [2, 8, 0], sizes = [16, 16, 8], strides = [1, 1, 1]} : vector<18x32x8xf32> to vector<16x16x8xf32>
    %88 = vector.shape_cast %87 : vector<16x16x8xf32> to vector<256x8xf32>
    %89 = arith.truncf %88 : vector<256x8xf32> to vector<256x8xbf16>
    %c0_53 = arith.constant 0 : index
    %c56 = arith.constant 56 : index
    %90 = vector.load %arg14[%c0_53, %c56] : memref<256x72xbf16, #tpu.memory_space<vmem>>, vector<256x8xbf16>
    tpu.vector_store %arg14[%c0_53, %c56], %89 {strides = array<i32>} : memref<256x72xbf16, #tpu.memory_space<vmem>>, vector<256x8xbf16>,
    %91 = vector.extract_strided_slice %58 {offsets = [2, 9, 0], sizes = [16, 16, 8], strides = [1, 1, 1]} : vector<18x32x8xf32> to vector<16x16x8xf32>
    %92 = vector.shape_cast %91 : vector<16x16x8xf32> to vector<256x8xf32>
    %93 = arith.truncf %92 : vector<256x8xf32> to vector<256x8xbf16>
    %c0_54 = arith.constant 0 : index
    %c64 = arith.constant 64 : index
    %94 = vector.load %arg14[%c0_54, %c64] : memref<256x72xbf16, #tpu.memory_space<vmem>>, vector<256x8xbf16>
    tpu.vector_store %arg14[%c0_54, %c64], %93 {strides = array<i32>} : memref<256x72xbf16, #tpu.memory_space<vmem>>, vector<256x8xbf16>,
    %c0_55 = arith.constant 0 : index
    %c0_56 = arith.constant 0 : index
    %95 = vector.load %arg14[%c0_55, %c0_56] : memref<256x72xbf16, #tpu.memory_space<vmem>>, vector<256x72xbf16>
    %c0_57 = arith.constant 0 : index
    %c0_58 = arith.constant 0 : index
    %96 = vector.load %arg5[%c0_57, %c0_58] : memref<72x8xbf16, #tpu.memory_space<vmem>>, vector<72x8xbf16>
    %cst_59 = arith.constant dense<0.000000e+00> : vector<256x8xf32>
    %97 = tpu.matmul %95, %96, %cst_59 {dimension_numbers = #tpu.dot_dimension_numbers<[1], [0], [0], [1], [0, 0, 1, 1], [], []>} : vector<256x72xbf16>, vector<72x8xbf16>, vector<256x8xf32> -> vector<256x8xf32>
    %c0_60 = arith.constant 0 : index
    %c0_61 = arith.constant 0 : index
    %98 = vector.load %arg6[%c0_60, %c0_61] : memref<1x8xf32, #tpu.memory_space<vmem>>, vector<1x8xf32>
    %99 = vector.broadcast %98 : vector<1x8xf32> to vector<256x8xf32>
    %100 = arith.mulf %97, %99 : vector<256x8xf32>
    %c0_62 = arith.constant 0 : index
    %c0_63 = arith.constant 0 : index
    %101 = vector.load %arg7[%c0_62, %c0_63] : memref<1x8xf32, #tpu.memory_space<vmem>>, vector<1x8xf32>
    %102 = vector.broadcast %101 : vector<1x8xf32> to vector<256x8xf32>
    %103 = arith.addf %100, %102 : vector<256x8xf32>
    %cst_64 = arith.constant 0.000000e+00 : f32
    %104 = vector.broadcast %cst_64 : f32 to vector<256x8xf32>
    %105 = arith.maximumf %103, %104 : vector<256x8xf32>
    %106 = vector.shape_cast %2 : vector<16x16x4xf32> to vector<256x4xf32>
    %107 = arith.truncf %106 : vector<256x4xf32> to vector<256x4xbf16>
    %c0_65 = arith.constant 0 : index
    %c0_66 = arith.constant 0 : index
    %108 = vector.load %arg8[%c0_65, %c0_66] : memref<4x8xbf16, #tpu.memory_space<vmem>>, vector<4x8xbf16>
    %cst_67 = arith.constant dense<0.000000e+00> : vector<256x8xf32>
    %109 = tpu.matmul %107, %108, %cst_67 {dimension_numbers = #tpu.dot_dimension_numbers<[1], [0], [0], [1], [0, 0, 1, 1], [], []>} : vector<256x4xbf16>, vector<4x8xbf16>, vector<256x8xf32> -> vector<256x8xf32>
    %c0_68 = arith.constant 0 : index
    %c0_69 = arith.constant 0 : index
    %110 = vector.load %arg9[%c0_68, %c0_69] : memref<1x8xf32, #tpu.memory_space<vmem>>, vector<1x8xf32>
    %111 = vector.broadcast %110 : vector<1x8xf32> to vector<256x8xf32>
    %112 = arith.addf %109, %111 : vector<256x8xf32>
    %113 = arith.addf %105, %112 : vector<256x8xf32>
    %c0_70 = arith.constant 0 : index
    %c0_71 = arith.constant 0 : index
    %114 = vector.load %arg15[%c0_70, %c0_71] : memref<256x8xf32, #tpu.memory_space<vmem>>, vector<256x8xf32>
    tpu.vector_store %arg15[%c0_70, %c0_71], %113 {strides = array<i32>} : memref<256x8xf32, #tpu.memory_space<vmem>>, vector<256x8xf32>,
    %c0_72 = arith.constant 0 : index
    %c0_73 = arith.constant 0 : index
    %115 = tpu.strided_load %arg15[%c0_72, %c0_73] {strides = array<i32: 16, 1>} : memref<256x8xf32, #tpu.memory_space<vmem>>, vector<16x8xf32>
    %116 = arith.truncf %115 : vector<16x8xf32> to vector<16x8xbf16>
    %c0_74 = arith.constant 0 : index
    %c0_75 = arith.constant 0 : index
    %c0_76 = arith.constant 0 : index
    %117 = vector.load %arg10[%c0_74, %c0_75, %c0_76] : memref<1x16x128xbf16, #tpu.memory_space<vmem>>, vector<1x16x8xbf16>
    %118 = vector.shape_cast %117 : vector<1x16x8xbf16> to vector<16x8xbf16>
    %119 = vector.shape_cast %116 : vector<16x8xbf16> to vector<1x16x8xbf16>
    tpu.vector_store %arg10[%c0_74, %c0_75, %c0_76], %119 {strides = array<i32>} : memref<1x16x128xbf16, #tpu.memory_space<vmem>>, vector<1x16x8xbf16>,
    %c1_77 = arith.constant 1 : index
    %c0_78 = arith.constant 0 : index
    %120 = tpu.strided_load %arg15[%c1_77, %c0_78] {strides = array<i32: 16, 1>} : memref<256x8xf32, #tpu.memory_space<vmem>>, vector<16x8xf32>
    %121 = arith.truncf %120 : vector<16x8xf32> to vector<16x8xbf16>
    %c0_79 = arith.constant 0 : index
    %c0_80 = arith.constant 0 : index
    %c8_81 = arith.constant 8 : index
    %122 = vector.load %arg10[%c0_79, %c0_80, %c8_81] : memref<1x16x128xbf16, #tpu.memory_space<vmem>>, vector<1x16x8xbf16>
    %123 = vector.shape_cast %122 : vector<1x16x8xbf16> to vector<16x8xbf16>
    %124 = vector.shape_cast %121 : vector<16x8xbf16> to vector<1x16x8xbf16>
    tpu.vector_store %arg10[%c0_79, %c0_80, %c8_81], %124 {strides = array<i32>} : memref<1x16x128xbf16, #tpu.memory_space<vmem>>, vector<1x16x8xbf16>,
    %c2 = arith.constant 2 : index
    %c0_82 = arith.constant 0 : index
    %125 = tpu.strided_load %arg15[%c2, %c0_82] {strides = array<i32: 16, 1>} : memref<256x8xf32, #tpu.memory_space<vmem>>, vector<16x8xf32>
    %126 = arith.truncf %125 : vector<16x8xf32> to vector<16x8xbf16>
    %c0_83 = arith.constant 0 : index
    %c0_84 = arith.constant 0 : index
    %c16_85 = arith.constant 16 : index
    %127 = vector.load %arg10[%c0_83, %c0_84, %c16_85] : memref<1x16x128xbf16, #tpu.memory_space<vmem>>, vector<1x16x8xbf16>
    %128 = vector.shape_cast %127 : vector<1x16x8xbf16> to vector<16x8xbf16>
    %129 = vector.shape_cast %126 : vector<16x8xbf16> to vector<1x16x8xbf16>
    tpu.vector_store %arg10[%c0_83, %c0_84, %c16_85], %129 {strides = array<i32>} : memref<1x16x128xbf16, #tpu.memory_space<vmem>>, vector<1x16x8xbf16>,
    %c3 = arith.constant 3 : index
    %c0_86 = arith.constant 0 : index
    %130 = tpu.strided_load %arg15[%c3, %c0_86] {strides = array<i32: 16, 1>} : memref<256x8xf32, #tpu.memory_space<vmem>>, vector<16x8xf32>
    %131 = arith.truncf %130 : vector<16x8xf32> to vector<16x8xbf16>
    %c0_87 = arith.constant 0 : index
    %c0_88 = arith.constant 0 : index
    %c24_89 = arith.constant 24 : index
    %132 = vector.load %arg10[%c0_87, %c0_88, %c24_89] : memref<1x16x128xbf16, #tpu.memory_space<vmem>>, vector<1x16x8xbf16>
    %133 = vector.shape_cast %132 : vector<1x16x8xbf16> to vector<16x8xbf16>
    %134 = vector.shape_cast %131 : vector<16x8xbf16> to vector<1x16x8xbf16>
    tpu.vector_store %arg10[%c0_87, %c0_88, %c24_89], %134 {strides = array<i32>} : memref<1x16x128xbf16, #tpu.memory_space<vmem>>, vector<1x16x8xbf16>,
    %c4_90 = arith.constant 4 : index
    %c0_91 = arith.constant 0 : index
    %135 = tpu.strided_load %arg15[%c4_90, %c0_91] {strides = array<i32: 16, 1>} : memref<256x8xf32, #tpu.memory_space<vmem>>, vector<16x8xf32>
    %136 = arith.truncf %135 : vector<16x8xf32> to vector<16x8xbf16>
    %c0_92 = arith.constant 0 : index
    %c0_93 = arith.constant 0 : index
    %c32_94 = arith.constant 32 : index
    %137 = vector.load %arg10[%c0_92, %c0_93, %c32_94] : memref<1x16x128xbf16, #tpu.memory_space<vmem>>, vector<1x16x8xbf16>
    %138 = vector.shape_cast %137 : vector<1x16x8xbf16> to vector<16x8xbf16>
    %139 = vector.shape_cast %136 : vector<16x8xbf16> to vector<1x16x8xbf16>
    tpu.vector_store %arg10[%c0_92, %c0_93, %c32_94], %139 {strides = array<i32>} : memref<1x16x128xbf16, #tpu.memory_space<vmem>>, vector<1x16x8xbf16>,
    %c5 = arith.constant 5 : index
    %c0_95 = arith.constant 0 : index
    %140 = tpu.strided_load %arg15[%c5, %c0_95] {strides = array<i32: 16, 1>} : memref<256x8xf32, #tpu.memory_space<vmem>>, vector<16x8xf32>
    %141 = arith.truncf %140 : vector<16x8xf32> to vector<16x8xbf16>
    %c0_96 = arith.constant 0 : index
    %c0_97 = arith.constant 0 : index
    %c40_98 = arith.constant 40 : index
    %142 = vector.load %arg10[%c0_96, %c0_97, %c40_98] : memref<1x16x128xbf16, #tpu.memory_space<vmem>>, vector<1x16x8xbf16>
    %143 = vector.shape_cast %142 : vector<1x16x8xbf16> to vector<16x8xbf16>
    %144 = vector.shape_cast %141 : vector<16x8xbf16> to vector<1x16x8xbf16>
    tpu.vector_store %arg10[%c0_96, %c0_97, %c40_98], %144 {strides = array<i32>} : memref<1x16x128xbf16, #tpu.memory_space<vmem>>, vector<1x16x8xbf16>,
    %c6 = arith.constant 6 : index
    %c0_99 = arith.constant 0 : index
    %145 = tpu.strided_load %arg15[%c6, %c0_99] {strides = array<i32: 16, 1>} : memref<256x8xf32, #tpu.memory_space<vmem>>, vector<16x8xf32>
    %146 = arith.truncf %145 : vector<16x8xf32> to vector<16x8xbf16>
    %c0_100 = arith.constant 0 : index
    %c0_101 = arith.constant 0 : index
    %c48_102 = arith.constant 48 : index
    %147 = vector.load %arg10[%c0_100, %c0_101, %c48_102] : memref<1x16x128xbf16, #tpu.memory_space<vmem>>, vector<1x16x8xbf16>
    %148 = vector.shape_cast %147 : vector<1x16x8xbf16> to vector<16x8xbf16>
    %149 = vector.shape_cast %146 : vector<16x8xbf16> to vector<1x16x8xbf16>
    tpu.vector_store %arg10[%c0_100, %c0_101, %c48_102], %149 {strides = array<i32>} : memref<1x16x128xbf16, #tpu.memory_space<vmem>>, vector<1x16x8xbf16>,
    %c7 = arith.constant 7 : index
    %c0_103 = arith.constant 0 : index
    %150 = tpu.strided_load %arg15[%c7, %c0_103] {strides = array<i32: 16, 1>} : memref<256x8xf32, #tpu.memory_space<vmem>>, vector<16x8xf32>
    %151 = arith.truncf %150 : vector<16x8xf32> to vector<16x8xbf16>
    %c0_104 = arith.constant 0 : index
    %c0_105 = arith.constant 0 : index
    %c56_106 = arith.constant 56 : index
    %152 = vector.load %arg10[%c0_104, %c0_105, %c56_106] : memref<1x16x128xbf16, #tpu.memory_space<vmem>>, vector<1x16x8xbf16>
    %153 = vector.shape_cast %152 : vector<1x16x8xbf16> to vector<16x8xbf16>
    %154 = vector.shape_cast %151 : vector<16x8xbf16> to vector<1x16x8xbf16>
    tpu.vector_store %arg10[%c0_104, %c0_105, %c56_106], %154 {strides = array<i32>} : memref<1x16x128xbf16, #tpu.memory_space<vmem>>, vector<1x16x8xbf16>,
    %c8_107 = arith.constant 8 : index
    %c0_108 = arith.constant 0 : index
    %155 = tpu.strided_load %arg15[%c8_107, %c0_108] {strides = array<i32: 16, 1>} : memref<256x8xf32, #tpu.memory_space<vmem>>, vector<16x8xf32>
    %156 = arith.truncf %155 : vector<16x8xf32> to vector<16x8xbf16>
    %c0_109 = arith.constant 0 : index
    %c0_110 = arith.constant 0 : index
    %c64_111 = arith.constant 64 : index
    %157 = vector.load %arg10[%c0_109, %c0_110, %c64_111] : memref<1x16x128xbf16, #tpu.memory_space<vmem>>, vector<1x16x8xbf16>
    %158 = vector.shape_cast %157 : vector<1x16x8xbf16> to vector<16x8xbf16>
    %159 = vector.shape_cast %156 : vector<16x8xbf16> to vector<1x16x8xbf16>
    tpu.vector_store %arg10[%c0_109, %c0_110, %c64_111], %159 {strides = array<i32>} : memref<1x16x128xbf16, #tpu.memory_space<vmem>>, vector<1x16x8xbf16>,
    %c9 = arith.constant 9 : index
    %c0_112 = arith.constant 0 : index
    %160 = tpu.strided_load %arg15[%c9, %c0_112] {strides = array<i32: 16, 1>} : memref<256x8xf32, #tpu.memory_space<vmem>>, vector<16x8xf32>
    %161 = arith.truncf %160 : vector<16x8xf32> to vector<16x8xbf16>
    %c0_113 = arith.constant 0 : index
    %c0_114 = arith.constant 0 : index
    %c72 = arith.constant 72 : index
    %162 = vector.load %arg10[%c0_113, %c0_114, %c72] : memref<1x16x128xbf16, #tpu.memory_space<vmem>>, vector<1x16x8xbf16>
    %163 = vector.shape_cast %162 : vector<1x16x8xbf16> to vector<16x8xbf16>
    %164 = vector.shape_cast %161 : vector<16x8xbf16> to vector<1x16x8xbf16>
    tpu.vector_store %arg10[%c0_113, %c0_114, %c72], %164 {strides = array<i32>} : memref<1x16x128xbf16, #tpu.memory_space<vmem>>, vector<1x16x8xbf16>,
    %c10 = arith.constant 10 : index
    %c0_115 = arith.constant 0 : index
    %165 = tpu.strided_load %arg15[%c10, %c0_115] {strides = array<i32: 16, 1>} : memref<256x8xf32, #tpu.memory_space<vmem>>, vector<16x8xf32>
    %166 = arith.truncf %165 : vector<16x8xf32> to vector<16x8xbf16>
    %c0_116 = arith.constant 0 : index
    %c0_117 = arith.constant 0 : index
    %c80 = arith.constant 80 : index
    %167 = vector.load %arg10[%c0_116, %c0_117, %c80] : memref<1x16x128xbf16, #tpu.memory_space<vmem>>, vector<1x16x8xbf16>
    %168 = vector.shape_cast %167 : vector<1x16x8xbf16> to vector<16x8xbf16>
    %169 = vector.shape_cast %166 : vector<16x8xbf16> to vector<1x16x8xbf16>
    tpu.vector_store %arg10[%c0_116, %c0_117, %c80], %169 {strides = array<i32>} : memref<1x16x128xbf16, #tpu.memory_space<vmem>>, vector<1x16x8xbf16>,
    %c11 = arith.constant 11 : index
    %c0_118 = arith.constant 0 : index
    %170 = tpu.strided_load %arg15[%c11, %c0_118] {strides = array<i32: 16, 1>} : memref<256x8xf32, #tpu.memory_space<vmem>>, vector<16x8xf32>
    %171 = arith.truncf %170 : vector<16x8xf32> to vector<16x8xbf16>
    %c0_119 = arith.constant 0 : index
    %c0_120 = arith.constant 0 : index
    %c88 = arith.constant 88 : index
    %172 = vector.load %arg10[%c0_119, %c0_120, %c88] : memref<1x16x128xbf16, #tpu.memory_space<vmem>>, vector<1x16x8xbf16>
    %173 = vector.shape_cast %172 : vector<1x16x8xbf16> to vector<16x8xbf16>
    %174 = vector.shape_cast %171 : vector<16x8xbf16> to vector<1x16x8xbf16>
    tpu.vector_store %arg10[%c0_119, %c0_120, %c88], %174 {strides = array<i32>} : memref<1x16x128xbf16, #tpu.memory_space<vmem>>, vector<1x16x8xbf16>,
    %c12_121 = arith.constant 12 : index
    %c0_122 = arith.constant 0 : index
    %175 = tpu.strided_load %arg15[%c12_121, %c0_122] {strides = array<i32: 16, 1>} : memref<256x8xf32, #tpu.memory_space<vmem>>, vector<16x8xf32>
    %176 = arith.truncf %175 : vector<16x8xf32> to vector<16x8xbf16>
    %c0_123 = arith.constant 0 : index
    %c0_124 = arith.constant 0 : index
    %c96 = arith.constant 96 : index
    %177 = vector.load %arg10[%c0_123, %c0_124, %c96] : memref<1x16x128xbf16, #tpu.memory_space<vmem>>, vector<1x16x8xbf16>
    %178 = vector.shape_cast %177 : vector<1x16x8xbf16> to vector<16x8xbf16>
    %179 = vector.shape_cast %176 : vector<16x8xbf16> to vector<1x16x8xbf16>
    tpu.vector_store %arg10[%c0_123, %c0_124, %c96], %179 {strides = array<i32>} : memref<1x16x128xbf16, #tpu.memory_space<vmem>>, vector<1x16x8xbf16>,
    %c13 = arith.constant 13 : index
    %c0_125 = arith.constant 0 : index
    %180 = tpu.strided_load %arg15[%c13, %c0_125] {strides = array<i32: 16, 1>} : memref<256x8xf32, #tpu.memory_space<vmem>>, vector<16x8xf32>
    %181 = arith.truncf %180 : vector<16x8xf32> to vector<16x8xbf16>
    %c0_126 = arith.constant 0 : index
    %c0_127 = arith.constant 0 : index
    %c104 = arith.constant 104 : index
    %182 = vector.load %arg10[%c0_126, %c0_127, %c104] : memref<1x16x128xbf16, #tpu.memory_space<vmem>>, vector<1x16x8xbf16>
    %183 = vector.shape_cast %182 : vector<1x16x8xbf16> to vector<16x8xbf16>
    %184 = vector.shape_cast %181 : vector<16x8xbf16> to vector<1x16x8xbf16>
    tpu.vector_store %arg10[%c0_126, %c0_127, %c104], %184 {strides = array<i32>} : memref<1x16x128xbf16, #tpu.memory_space<vmem>>, vector<1x16x8xbf16>,
    %c14 = arith.constant 14 : index
    %c0_128 = arith.constant 0 : index
    %185 = tpu.strided_load %arg15[%c14, %c0_128] {strides = array<i32: 16, 1>} : memref<256x8xf32, #tpu.memory_space<vmem>>, vector<16x8xf32>
    %186 = arith.truncf %185 : vector<16x8xf32> to vector<16x8xbf16>
    %c0_129 = arith.constant 0 : index
    %c0_130 = arith.constant 0 : index
    %c112 = arith.constant 112 : index
    %187 = vector.load %arg10[%c0_129, %c0_130, %c112] : memref<1x16x128xbf16, #tpu.memory_space<vmem>>, vector<1x16x8xbf16>
    %188 = vector.shape_cast %187 : vector<1x16x8xbf16> to vector<16x8xbf16>
    %189 = vector.shape_cast %186 : vector<16x8xbf16> to vector<1x16x8xbf16>
    tpu.vector_store %arg10[%c0_129, %c0_130, %c112], %189 {strides = array<i32>} : memref<1x16x128xbf16, #tpu.memory_space<vmem>>, vector<1x16x8xbf16>,
    %c15 = arith.constant 15 : index
    %c0_131 = arith.constant 0 : index
    %190 = tpu.strided_load %arg15[%c15, %c0_131] {strides = array<i32: 16, 1>} : memref<256x8xf32, #tpu.memory_space<vmem>>, vector<16x8xf32>
    %191 = arith.truncf %190 : vector<16x8xf32> to vector<16x8xbf16>
    %c0_132 = arith.constant 0 : index
    %c0_133 = arith.constant 0 : index
    %c120 = arith.constant 120 : index
    %192 = vector.load %arg10[%c0_132, %c0_133, %c120] : memref<1x16x128xbf16, #tpu.memory_space<vmem>>, vector<1x16x8xbf16>
    %193 = vector.shape_cast %192 : vector<1x16x8xbf16> to vector<16x8xbf16>
    %194 = vector.shape_cast %191 : vector<16x8xbf16> to vector<1x16x8xbf16>
    tpu.vector_store %arg10[%c0_132, %c0_133, %c120], %194 {strides = array<i32>} : memref<1x16x128xbf16, #tpu.memory_space<vmem>>, vector<1x16x8xbf16>,
    return
  }
  func.func @transform_0(%arg0: i32) -> (i32, i32, i32, i32) {
    %c0_i32 = arith.constant 0 : i32
    %c0_i32_0 = arith.constant 0 : i32
    %c0_i32_1 = arith.constant 0 : i32
    %c0_i32_2 = arith.constant 0 : i32
    return %arg0, %c0_i32, %c0_i32_0, %c0_i32_1 : i32, i32, i32, i32
  }
  func.func @transform_1(%arg0: i32) -> (i32, i32) {
    %c0_i32 = arith.constant 0 : i32
    %c0_i32_0 = arith.constant 0 : i32
    %c0_i32_1 = arith.constant 0 : i32
    return %c0_i32, %c0_i32_0 : i32, i32
  }
  func.func @transform_2(%arg0: i32) -> (i32, i32) {
    %c0_i32 = arith.constant 0 : i32
    %c0_i32_0 = arith.constant 0 : i32
    %c0_i32_1 = arith.constant 0 : i32
    return %c0_i32, %c0_i32_0 : i32, i32
  }
  func.func @transform_3(%arg0: i32) -> (i32, i32) {
    %c0_i32 = arith.constant 0 : i32
    %c0_i32_0 = arith.constant 0 : i32
    %c0_i32_1 = arith.constant 0 : i32
    return %c0_i32, %c0_i32_0 : i32, i32
  }
  func.func @transform_4(%arg0: i32) -> (i32, i32) {
    %c0_i32 = arith.constant 0 : i32
    %c0_i32_0 = arith.constant 0 : i32
    %c0_i32_1 = arith.constant 0 : i32
    return %c0_i32, %c0_i32_0 : i32, i32
  }
  func.func @transform_5(%arg0: i32) -> (i32, i32) {
    %c0_i32 = arith.constant 0 : i32
    %c0_i32_0 = arith.constant 0 : i32
    %c0_i32_1 = arith.constant 0 : i32
    return %c0_i32, %c0_i32_0 : i32, i32
  }
  func.func @transform_6(%arg0: i32) -> (i32, i32) {
    %c0_i32 = arith.constant 0 : i32
    %c0_i32_0 = arith.constant 0 : i32
    %c0_i32_1 = arith.constant 0 : i32
    return %c0_i32, %c0_i32_0 : i32, i32
  }
  func.func @transform_7(%arg0: i32) -> (i32, i32) {
    %c0_i32 = arith.constant 0 : i32
    %c0_i32_0 = arith.constant 0 : i32
    %c0_i32_1 = arith.constant 0 : i32
    return %c0_i32, %c0_i32_0 : i32, i32
  }
  func.func @transform_8(%arg0: i32) -> (i32, i32) {
    %c0_i32 = arith.constant 0 : i32
    %c0_i32_0 = arith.constant 0 : i32
    %c0_i32_1 = arith.constant 0 : i32
    return %c0_i32, %c0_i32_0 : i32, i32
  }
  func.func @transform_9(%arg0: i32) -> (i32, i32, i32) {
    %c0_i32 = arith.constant 0 : i32
    %c0_i32_0 = arith.constant 0 : i32
    %c0_i32_1 = arith.constant 0 : i32
    return %arg0, %c0_i32, %c0_i32_0 : i32, i32, i32
  }
}

module attributes {stable_mosaic.version = 11 : i64} {
  func.func @_resnet_block_kernel(%arg0: i32, %arg1: memref<1x16x16x8xbf16, #tpu.memory_space<vmem>>, %arg2: memref<72x8xbf16, #tpu.memory_space<vmem>>, %arg3: memref<1x8xf32, #tpu.memory_space<vmem>>, %arg4: memref<1x8xf32, #tpu.memory_space<vmem>>, %arg5: memref<72x8xbf16, #tpu.memory_space<vmem>>, %arg6: memref<1x8xf32, #tpu.memory_space<vmem>>, %arg7: memref<1x8xf32, #tpu.memory_space<vmem>>, %arg8: memref<1x16x128xbf16, #tpu.memory_space<vmem>>, %arg9: memref<18x32x8xf32, #tpu.memory_space<vmem>>, %arg10: memref<18x32x8xf32, #tpu.memory_space<vmem>>, %arg11: memref<256x72xbf16, #tpu.memory_space<vmem>>, %arg12: memref<256x72xbf16, #tpu.memory_space<vmem>>, %arg13: memref<256x8xf32, #tpu.memory_space<vmem>>) attributes {dimension_semantics = [#tpu.dimension_semantics<parallel>], iteration_bounds = array<i64: 2>, scalar_prefetch = 0 : i64, scratch_operands = 5 : i64, tpu.core_type = #tpu.core_type<tc>, window_params = [{transform_indices = @transform_0, window_bounds = array<i64: 1, 16, 16, 8>}, {pipeline_mode = #tpu.pipeline_mode<synchronous>, transform_indices = @transform_1, window_bounds = array<i64: 72, 8>}, {pipeline_mode = #tpu.pipeline_mode<synchronous>, transform_indices = @transform_2, window_bounds = array<i64: 1, 8>}, {pipeline_mode = #tpu.pipeline_mode<synchronous>, transform_indices = @transform_3, window_bounds = array<i64: 1, 8>}, {pipeline_mode = #tpu.pipeline_mode<synchronous>, transform_indices = @transform_4, window_bounds = array<i64: 72, 8>}, {pipeline_mode = #tpu.pipeline_mode<synchronous>, transform_indices = @transform_5, window_bounds = array<i64: 1, 8>}, {pipeline_mode = #tpu.pipeline_mode<synchronous>, transform_indices = @transform_6, window_bounds = array<i64: 1, 8>}, {transform_indices = @transform_7, window_bounds = array<i64: 1, 16, 128>}]} {
    %c0 = arith.constant 0 : index
    %c0_0 = arith.constant 0 : index
    %c0_1 = arith.constant 0 : index
    %c0_2 = arith.constant 0 : index
    %0 = vector.load %arg1[%c0, %c0_0, %c0_1, %c0_2] : memref<1x16x16x8xbf16, #tpu.memory_space<vmem>>, vector<1x16x16x8xbf16>
    %1 = vector.shape_cast %0 : vector<1x16x16x8xbf16> to vector<16x16x8xbf16>
    %2 = arith.extf %1 : vector<16x16x8xbf16> to vector<16x16x8xf32>
    %cst = arith.constant 0.000000e+00 : f32
    %3 = vector.broadcast %cst : f32 to vector<18x32x8xf32>
    %c0_3 = arith.constant 0 : index
    %c0_4 = arith.constant 0 : index
    %c0_5 = arith.constant 0 : index
    %4 = vector.load %arg9[%c0_3, %c0_4, %c0_5] : memref<18x32x8xf32, #tpu.memory_space<vmem>>, vector<18x32x8xf32>
    tpu.vector_store %arg9[%c0_3, %c0_4, %c0_5], %3 {strides = array<i32>} : memref<18x32x8xf32, #tpu.memory_space<vmem>>, vector<18x32x8xf32>,
    %c1 = arith.constant 1 : index
    %c8 = arith.constant 8 : index
    %c0_6 = arith.constant 0 : index
    %5 = vector.load %arg9[%c1, %c8, %c0_6] : memref<18x32x8xf32, #tpu.memory_space<vmem>>, vector<16x16x8xf32>
    tpu.vector_store %arg9[%c1, %c8, %c0_6], %2 {strides = array<i32>} : memref<18x32x8xf32, #tpu.memory_space<vmem>>, vector<16x16x8xf32>,
    %c0_7 = arith.constant 0 : index
    %c0_8 = arith.constant 0 : index
    %c0_9 = arith.constant 0 : index
    %6 = vector.load %arg9[%c0_7, %c0_8, %c0_9] : memref<18x32x8xf32, #tpu.memory_space<vmem>>, vector<18x32x8xf32>
    %7 = vector.extract_strided_slice %6 {offsets = [0, 7, 0], sizes = [16, 16, 8], strides = [1, 1, 1]} : vector<18x32x8xf32> to vector<16x16x8xf32>
    %8 = vector.shape_cast %7 : vector<16x16x8xf32> to vector<256x8xf32>
    %9 = arith.truncf %8 : vector<256x8xf32> to vector<256x8xbf16>
    %c0_10 = arith.constant 0 : index
    %c0_11 = arith.constant 0 : index
    %10 = vector.load %arg11[%c0_10, %c0_11] : memref<256x72xbf16, #tpu.memory_space<vmem>>, vector<256x8xbf16>
    tpu.vector_store %arg11[%c0_10, %c0_11], %9 {strides = array<i32>} : memref<256x72xbf16, #tpu.memory_space<vmem>>, vector<256x8xbf16>,
    %11 = vector.extract_strided_slice %6 {offsets = [0, 8, 0], sizes = [16, 16, 8], strides = [1, 1, 1]} : vector<18x32x8xf32> to vector<16x16x8xf32>
    %12 = vector.shape_cast %11 : vector<16x16x8xf32> to vector<256x8xf32>
    %13 = arith.truncf %12 : vector<256x8xf32> to vector<256x8xbf16>
    %c0_12 = arith.constant 0 : index
    %c8_13 = arith.constant 8 : index
    %14 = vector.load %arg11[%c0_12, %c8_13] : memref<256x72xbf16, #tpu.memory_space<vmem>>, vector<256x8xbf16>
    tpu.vector_store %arg11[%c0_12, %c8_13], %13 {strides = array<i32>} : memref<256x72xbf16, #tpu.memory_space<vmem>>, vector<256x8xbf16>,
    %15 = vector.extract_strided_slice %6 {offsets = [0, 9, 0], sizes = [16, 16, 8], strides = [1, 1, 1]} : vector<18x32x8xf32> to vector<16x16x8xf32>
    %16 = vector.shape_cast %15 : vector<16x16x8xf32> to vector<256x8xf32>
    %17 = arith.truncf %16 : vector<256x8xf32> to vector<256x8xbf16>
    %c0_14 = arith.constant 0 : index
    %c16 = arith.constant 16 : index
    %18 = vector.load %arg11[%c0_14, %c16] : memref<256x72xbf16, #tpu.memory_space<vmem>>, vector<256x8xbf16>
    tpu.vector_store %arg11[%c0_14, %c16], %17 {strides = array<i32>} : memref<256x72xbf16, #tpu.memory_space<vmem>>, vector<256x8xbf16>,
    %19 = vector.extract_strided_slice %6 {offsets = [1, 7, 0], sizes = [16, 16, 8], strides = [1, 1, 1]} : vector<18x32x8xf32> to vector<16x16x8xf32>
    %20 = vector.shape_cast %19 : vector<16x16x8xf32> to vector<256x8xf32>
    %21 = arith.truncf %20 : vector<256x8xf32> to vector<256x8xbf16>
    %c0_15 = arith.constant 0 : index
    %c24 = arith.constant 24 : index
    %22 = vector.load %arg11[%c0_15, %c24] : memref<256x72xbf16, #tpu.memory_space<vmem>>, vector<256x8xbf16>
    tpu.vector_store %arg11[%c0_15, %c24], %21 {strides = array<i32>} : memref<256x72xbf16, #tpu.memory_space<vmem>>, vector<256x8xbf16>,
    %23 = vector.extract_strided_slice %6 {offsets = [1, 8, 0], sizes = [16, 16, 8], strides = [1, 1, 1]} : vector<18x32x8xf32> to vector<16x16x8xf32>
    %24 = vector.shape_cast %23 : vector<16x16x8xf32> to vector<256x8xf32>
    %25 = arith.truncf %24 : vector<256x8xf32> to vector<256x8xbf16>
    %c0_16 = arith.constant 0 : index
    %c32 = arith.constant 32 : index
    %26 = vector.load %arg11[%c0_16, %c32] : memref<256x72xbf16, #tpu.memory_space<vmem>>, vector<256x8xbf16>
    tpu.vector_store %arg11[%c0_16, %c32], %25 {strides = array<i32>} : memref<256x72xbf16, #tpu.memory_space<vmem>>, vector<256x8xbf16>,
    %27 = vector.extract_strided_slice %6 {offsets = [1, 9, 0], sizes = [16, 16, 8], strides = [1, 1, 1]} : vector<18x32x8xf32> to vector<16x16x8xf32>
    %28 = vector.shape_cast %27 : vector<16x16x8xf32> to vector<256x8xf32>
    %29 = arith.truncf %28 : vector<256x8xf32> to vector<256x8xbf16>
    %c0_17 = arith.constant 0 : index
    %c40 = arith.constant 40 : index
    %30 = vector.load %arg11[%c0_17, %c40] : memref<256x72xbf16, #tpu.memory_space<vmem>>, vector<256x8xbf16>
    tpu.vector_store %arg11[%c0_17, %c40], %29 {strides = array<i32>} : memref<256x72xbf16, #tpu.memory_space<vmem>>, vector<256x8xbf16>,
    %31 = vector.extract_strided_slice %6 {offsets = [2, 7, 0], sizes = [16, 16, 8], strides = [1, 1, 1]} : vector<18x32x8xf32> to vector<16x16x8xf32>
    %32 = vector.shape_cast %31 : vector<16x16x8xf32> to vector<256x8xf32>
    %33 = arith.truncf %32 : vector<256x8xf32> to vector<256x8xbf16>
    %c0_18 = arith.constant 0 : index
    %c48 = arith.constant 48 : index
    %34 = vector.load %arg11[%c0_18, %c48] : memref<256x72xbf16, #tpu.memory_space<vmem>>, vector<256x8xbf16>
    tpu.vector_store %arg11[%c0_18, %c48], %33 {strides = array<i32>} : memref<256x72xbf16, #tpu.memory_space<vmem>>, vector<256x8xbf16>,
    %35 = vector.extract_strided_slice %6 {offsets = [2, 8, 0], sizes = [16, 16, 8], strides = [1, 1, 1]} : vector<18x32x8xf32> to vector<16x16x8xf32>
    %36 = vector.shape_cast %35 : vector<16x16x8xf32> to vector<256x8xf32>
    %37 = arith.truncf %36 : vector<256x8xf32> to vector<256x8xbf16>
    %c0_19 = arith.constant 0 : index
    %c56 = arith.constant 56 : index
    %38 = vector.load %arg11[%c0_19, %c56] : memref<256x72xbf16, #tpu.memory_space<vmem>>, vector<256x8xbf16>
    tpu.vector_store %arg11[%c0_19, %c56], %37 {strides = array<i32>} : memref<256x72xbf16, #tpu.memory_space<vmem>>, vector<256x8xbf16>,
    %39 = vector.extract_strided_slice %6 {offsets = [2, 9, 0], sizes = [16, 16, 8], strides = [1, 1, 1]} : vector<18x32x8xf32> to vector<16x16x8xf32>
    %40 = vector.shape_cast %39 : vector<16x16x8xf32> to vector<256x8xf32>
    %41 = arith.truncf %40 : vector<256x8xf32> to vector<256x8xbf16>
    %c0_20 = arith.constant 0 : index
    %c64 = arith.constant 64 : index
    %42 = vector.load %arg11[%c0_20, %c64] : memref<256x72xbf16, #tpu.memory_space<vmem>>, vector<256x8xbf16>
    tpu.vector_store %arg11[%c0_20, %c64], %41 {strides = array<i32>} : memref<256x72xbf16, #tpu.memory_space<vmem>>, vector<256x8xbf16>,
    %c0_21 = arith.constant 0 : index
    %c0_22 = arith.constant 0 : index
    %43 = vector.load %arg11[%c0_21, %c0_22] : memref<256x72xbf16, #tpu.memory_space<vmem>>, vector<256x72xbf16>
    %c0_23 = arith.constant 0 : index
    %c0_24 = arith.constant 0 : index
    %44 = vector.load %arg2[%c0_23, %c0_24] : memref<72x8xbf16, #tpu.memory_space<vmem>>, vector<72x8xbf16>
    %cst_25 = arith.constant dense<0.000000e+00> : vector<256x8xf32>
    %45 = tpu.matmul %43, %44, %cst_25 {dimension_numbers = #tpu.dot_dimension_numbers<[1], [0], [0], [1], [0, 0, 1, 1], [], []>} : vector<256x72xbf16>, vector<72x8xbf16>, vector<256x8xf32> -> vector<256x8xf32>
    %c0_26 = arith.constant 0 : index
    %c0_27 = arith.constant 0 : index
    %46 = vector.load %arg3[%c0_26, %c0_27] : memref<1x8xf32, #tpu.memory_space<vmem>>, vector<1x8xf32>
    %47 = vector.broadcast %46 : vector<1x8xf32> to vector<256x8xf32>
    %48 = arith.mulf %45, %47 : vector<256x8xf32>
    %c0_28 = arith.constant 0 : index
    %c0_29 = arith.constant 0 : index
    %49 = vector.load %arg4[%c0_28, %c0_29] : memref<1x8xf32, #tpu.memory_space<vmem>>, vector<1x8xf32>
    %50 = vector.broadcast %49 : vector<1x8xf32> to vector<256x8xf32>
    %51 = arith.addf %48, %50 : vector<256x8xf32>
    %cst_30 = arith.constant 0.000000e+00 : f32
    %52 = vector.broadcast %cst_30 : f32 to vector<256x8xf32>
    %53 = arith.maximumf %51, %52 : vector<256x8xf32>
    %54 = vector.shape_cast %53 : vector<256x8xf32> to vector<16x16x8xf32>
    %cst_31 = arith.constant 0.000000e+00 : f32
    %55 = vector.broadcast %cst_31 : f32 to vector<18x32x8xf32>
    %c0_32 = arith.constant 0 : index
    %c0_33 = arith.constant 0 : index
    %c0_34 = arith.constant 0 : index
    %56 = vector.load %arg10[%c0_32, %c0_33, %c0_34] : memref<18x32x8xf32, #tpu.memory_space<vmem>>, vector<18x32x8xf32>
    tpu.vector_store %arg10[%c0_32, %c0_33, %c0_34], %55 {strides = array<i32>} : memref<18x32x8xf32, #tpu.memory_space<vmem>>, vector<18x32x8xf32>,
    %c1_35 = arith.constant 1 : index
    %c8_36 = arith.constant 8 : index
    %c0_37 = arith.constant 0 : index
    %57 = vector.load %arg10[%c1_35, %c8_36, %c0_37] : memref<18x32x8xf32, #tpu.memory_space<vmem>>, vector<16x16x8xf32>
    tpu.vector_store %arg10[%c1_35, %c8_36, %c0_37], %54 {strides = array<i32>} : memref<18x32x8xf32, #tpu.memory_space<vmem>>, vector<16x16x8xf32>,
    %c0_38 = arith.constant 0 : index
    %c0_39 = arith.constant 0 : index
    %c0_40 = arith.constant 0 : index
    %58 = vector.load %arg10[%c0_38, %c0_39, %c0_40] : memref<18x32x8xf32, #tpu.memory_space<vmem>>, vector<18x32x8xf32>
    %59 = vector.extract_strided_slice %58 {offsets = [0, 7, 0], sizes = [16, 16, 8], strides = [1, 1, 1]} : vector<18x32x8xf32> to vector<16x16x8xf32>
    %60 = vector.shape_cast %59 : vector<16x16x8xf32> to vector<256x8xf32>
    %61 = arith.truncf %60 : vector<256x8xf32> to vector<256x8xbf16>
    %c0_41 = arith.constant 0 : index
    %c0_42 = arith.constant 0 : index
    %62 = vector.load %arg12[%c0_41, %c0_42] : memref<256x72xbf16, #tpu.memory_space<vmem>>, vector<256x8xbf16>
    tpu.vector_store %arg12[%c0_41, %c0_42], %61 {strides = array<i32>} : memref<256x72xbf16, #tpu.memory_space<vmem>>, vector<256x8xbf16>,
    %63 = vector.extract_strided_slice %58 {offsets = [0, 8, 0], sizes = [16, 16, 8], strides = [1, 1, 1]} : vector<18x32x8xf32> to vector<16x16x8xf32>
    %64 = vector.shape_cast %63 : vector<16x16x8xf32> to vector<256x8xf32>
    %65 = arith.truncf %64 : vector<256x8xf32> to vector<256x8xbf16>
    %c0_43 = arith.constant 0 : index
    %c8_44 = arith.constant 8 : index
    %66 = vector.load %arg12[%c0_43, %c8_44] : memref<256x72xbf16, #tpu.memory_space<vmem>>, vector<256x8xbf16>
    tpu.vector_store %arg12[%c0_43, %c8_44], %65 {strides = array<i32>} : memref<256x72xbf16, #tpu.memory_space<vmem>>, vector<256x8xbf16>,
    %67 = vector.extract_strided_slice %58 {offsets = [0, 9, 0], sizes = [16, 16, 8], strides = [1, 1, 1]} : vector<18x32x8xf32> to vector<16x16x8xf32>
    %68 = vector.shape_cast %67 : vector<16x16x8xf32> to vector<256x8xf32>
    %69 = arith.truncf %68 : vector<256x8xf32> to vector<256x8xbf16>
    %c0_45 = arith.constant 0 : index
    %c16_46 = arith.constant 16 : index
    %70 = vector.load %arg12[%c0_45, %c16_46] : memref<256x72xbf16, #tpu.memory_space<vmem>>, vector<256x8xbf16>
    tpu.vector_store %arg12[%c0_45, %c16_46], %69 {strides = array<i32>} : memref<256x72xbf16, #tpu.memory_space<vmem>>, vector<256x8xbf16>,
    %71 = vector.extract_strided_slice %58 {offsets = [1, 7, 0], sizes = [16, 16, 8], strides = [1, 1, 1]} : vector<18x32x8xf32> to vector<16x16x8xf32>
    %72 = vector.shape_cast %71 : vector<16x16x8xf32> to vector<256x8xf32>
    %73 = arith.truncf %72 : vector<256x8xf32> to vector<256x8xbf16>
    %c0_47 = arith.constant 0 : index
    %c24_48 = arith.constant 24 : index
    %74 = vector.load %arg12[%c0_47, %c24_48] : memref<256x72xbf16, #tpu.memory_space<vmem>>, vector<256x8xbf16>
    tpu.vector_store %arg12[%c0_47, %c24_48], %73 {strides = array<i32>} : memref<256x72xbf16, #tpu.memory_space<vmem>>, vector<256x8xbf16>,
    %75 = vector.extract_strided_slice %58 {offsets = [1, 8, 0], sizes = [16, 16, 8], strides = [1, 1, 1]} : vector<18x32x8xf32> to vector<16x16x8xf32>
    %76 = vector.shape_cast %75 : vector<16x16x8xf32> to vector<256x8xf32>
    %77 = arith.truncf %76 : vector<256x8xf32> to vector<256x8xbf16>
    %c0_49 = arith.constant 0 : index
    %c32_50 = arith.constant 32 : index
    %78 = vector.load %arg12[%c0_49, %c32_50] : memref<256x72xbf16, #tpu.memory_space<vmem>>, vector<256x8xbf16>
    tpu.vector_store %arg12[%c0_49, %c32_50], %77 {strides = array<i32>} : memref<256x72xbf16, #tpu.memory_space<vmem>>, vector<256x8xbf16>,
    %79 = vector.extract_strided_slice %58 {offsets = [1, 9, 0], sizes = [16, 16, 8], strides = [1, 1, 1]} : vector<18x32x8xf32> to vector<16x16x8xf32>
    %80 = vector.shape_cast %79 : vector<16x16x8xf32> to vector<256x8xf32>
    %81 = arith.truncf %80 : vector<256x8xf32> to vector<256x8xbf16>
    %c0_51 = arith.constant 0 : index
    %c40_52 = arith.constant 40 : index
    %82 = vector.load %arg12[%c0_51, %c40_52] : memref<256x72xbf16, #tpu.memory_space<vmem>>, vector<256x8xbf16>
    tpu.vector_store %arg12[%c0_51, %c40_52], %81 {strides = array<i32>} : memref<256x72xbf16, #tpu.memory_space<vmem>>, vector<256x8xbf16>,
    %83 = vector.extract_strided_slice %58 {offsets = [2, 7, 0], sizes = [16, 16, 8], strides = [1, 1, 1]} : vector<18x32x8xf32> to vector<16x16x8xf32>
    %84 = vector.shape_cast %83 : vector<16x16x8xf32> to vector<256x8xf32>
    %85 = arith.truncf %84 : vector<256x8xf32> to vector<256x8xbf16>
    %c0_53 = arith.constant 0 : index
    %c48_54 = arith.constant 48 : index
    %86 = vector.load %arg12[%c0_53, %c48_54] : memref<256x72xbf16, #tpu.memory_space<vmem>>, vector<256x8xbf16>
    tpu.vector_store %arg12[%c0_53, %c48_54], %85 {strides = array<i32>} : memref<256x72xbf16, #tpu.memory_space<vmem>>, vector<256x8xbf16>,
    %87 = vector.extract_strided_slice %58 {offsets = [2, 8, 0], sizes = [16, 16, 8], strides = [1, 1, 1]} : vector<18x32x8xf32> to vector<16x16x8xf32>
    %88 = vector.shape_cast %87 : vector<16x16x8xf32> to vector<256x8xf32>
    %89 = arith.truncf %88 : vector<256x8xf32> to vector<256x8xbf16>
    %c0_55 = arith.constant 0 : index
    %c56_56 = arith.constant 56 : index
    %90 = vector.load %arg12[%c0_55, %c56_56] : memref<256x72xbf16, #tpu.memory_space<vmem>>, vector<256x8xbf16>
    tpu.vector_store %arg12[%c0_55, %c56_56], %89 {strides = array<i32>} : memref<256x72xbf16, #tpu.memory_space<vmem>>, vector<256x8xbf16>,
    %91 = vector.extract_strided_slice %58 {offsets = [2, 9, 0], sizes = [16, 16, 8], strides = [1, 1, 1]} : vector<18x32x8xf32> to vector<16x16x8xf32>
    %92 = vector.shape_cast %91 : vector<16x16x8xf32> to vector<256x8xf32>
    %93 = arith.truncf %92 : vector<256x8xf32> to vector<256x8xbf16>
    %c0_57 = arith.constant 0 : index
    %c64_58 = arith.constant 64 : index
    %94 = vector.load %arg12[%c0_57, %c64_58] : memref<256x72xbf16, #tpu.memory_space<vmem>>, vector<256x8xbf16>
    tpu.vector_store %arg12[%c0_57, %c64_58], %93 {strides = array<i32>} : memref<256x72xbf16, #tpu.memory_space<vmem>>, vector<256x8xbf16>,
    %c0_59 = arith.constant 0 : index
    %c0_60 = arith.constant 0 : index
    %95 = vector.load %arg12[%c0_59, %c0_60] : memref<256x72xbf16, #tpu.memory_space<vmem>>, vector<256x72xbf16>
    %c0_61 = arith.constant 0 : index
    %c0_62 = arith.constant 0 : index
    %96 = vector.load %arg5[%c0_61, %c0_62] : memref<72x8xbf16, #tpu.memory_space<vmem>>, vector<72x8xbf16>
    %cst_63 = arith.constant dense<0.000000e+00> : vector<256x8xf32>
    %97 = tpu.matmul %95, %96, %cst_63 {dimension_numbers = #tpu.dot_dimension_numbers<[1], [0], [0], [1], [0, 0, 1, 1], [], []>} : vector<256x72xbf16>, vector<72x8xbf16>, vector<256x8xf32> -> vector<256x8xf32>
    %c0_64 = arith.constant 0 : index
    %c0_65 = arith.constant 0 : index
    %98 = vector.load %arg6[%c0_64, %c0_65] : memref<1x8xf32, #tpu.memory_space<vmem>>, vector<1x8xf32>
    %99 = vector.broadcast %98 : vector<1x8xf32> to vector<256x8xf32>
    %100 = arith.mulf %97, %99 : vector<256x8xf32>
    %c0_66 = arith.constant 0 : index
    %c0_67 = arith.constant 0 : index
    %101 = vector.load %arg7[%c0_66, %c0_67] : memref<1x8xf32, #tpu.memory_space<vmem>>, vector<1x8xf32>
    %102 = vector.broadcast %101 : vector<1x8xf32> to vector<256x8xf32>
    %103 = arith.addf %100, %102 : vector<256x8xf32>
    %cst_68 = arith.constant 0.000000e+00 : f32
    %104 = vector.broadcast %cst_68 : f32 to vector<256x8xf32>
    %105 = arith.maximumf %103, %104 : vector<256x8xf32>
    %106 = vector.shape_cast %2 : vector<16x16x8xf32> to vector<256x8xf32>
    %107 = arith.addf %105, %106 : vector<256x8xf32>
    %c0_69 = arith.constant 0 : index
    %c0_70 = arith.constant 0 : index
    %108 = vector.load %arg13[%c0_69, %c0_70] : memref<256x8xf32, #tpu.memory_space<vmem>>, vector<256x8xf32>
    tpu.vector_store %arg13[%c0_69, %c0_70], %107 {strides = array<i32>} : memref<256x8xf32, #tpu.memory_space<vmem>>, vector<256x8xf32>,
    %c0_71 = arith.constant 0 : index
    %c0_72 = arith.constant 0 : index
    %109 = tpu.strided_load %arg13[%c0_71, %c0_72] {strides = array<i32: 16, 1>} : memref<256x8xf32, #tpu.memory_space<vmem>>, vector<16x8xf32>
    %110 = arith.truncf %109 : vector<16x8xf32> to vector<16x8xbf16>
    %c0_73 = arith.constant 0 : index
    %c0_74 = arith.constant 0 : index
    %c0_75 = arith.constant 0 : index
    %111 = vector.load %arg8[%c0_73, %c0_74, %c0_75] : memref<1x16x128xbf16, #tpu.memory_space<vmem>>, vector<1x16x8xbf16>
    %112 = vector.shape_cast %111 : vector<1x16x8xbf16> to vector<16x8xbf16>
    %113 = vector.shape_cast %110 : vector<16x8xbf16> to vector<1x16x8xbf16>
    tpu.vector_store %arg8[%c0_73, %c0_74, %c0_75], %113 {strides = array<i32>} : memref<1x16x128xbf16, #tpu.memory_space<vmem>>, vector<1x16x8xbf16>,
    %c1_76 = arith.constant 1 : index
    %c0_77 = arith.constant 0 : index
    %114 = tpu.strided_load %arg13[%c1_76, %c0_77] {strides = array<i32: 16, 1>} : memref<256x8xf32, #tpu.memory_space<vmem>>, vector<16x8xf32>
    %115 = arith.truncf %114 : vector<16x8xf32> to vector<16x8xbf16>
    %c0_78 = arith.constant 0 : index
    %c0_79 = arith.constant 0 : index
    %c8_80 = arith.constant 8 : index
    %116 = vector.load %arg8[%c0_78, %c0_79, %c8_80] : memref<1x16x128xbf16, #tpu.memory_space<vmem>>, vector<1x16x8xbf16>
    %117 = vector.shape_cast %116 : vector<1x16x8xbf16> to vector<16x8xbf16>
    %118 = vector.shape_cast %115 : vector<16x8xbf16> to vector<1x16x8xbf16>
    tpu.vector_store %arg8[%c0_78, %c0_79, %c8_80], %118 {strides = array<i32>} : memref<1x16x128xbf16, #tpu.memory_space<vmem>>, vector<1x16x8xbf16>,
    %c2 = arith.constant 2 : index
    %c0_81 = arith.constant 0 : index
    %119 = tpu.strided_load %arg13[%c2, %c0_81] {strides = array<i32: 16, 1>} : memref<256x8xf32, #tpu.memory_space<vmem>>, vector<16x8xf32>
    %120 = arith.truncf %119 : vector<16x8xf32> to vector<16x8xbf16>
    %c0_82 = arith.constant 0 : index
    %c0_83 = arith.constant 0 : index
    %c16_84 = arith.constant 16 : index
    %121 = vector.load %arg8[%c0_82, %c0_83, %c16_84] : memref<1x16x128xbf16, #tpu.memory_space<vmem>>, vector<1x16x8xbf16>
    %122 = vector.shape_cast %121 : vector<1x16x8xbf16> to vector<16x8xbf16>
    %123 = vector.shape_cast %120 : vector<16x8xbf16> to vector<1x16x8xbf16>
    tpu.vector_store %arg8[%c0_82, %c0_83, %c16_84], %123 {strides = array<i32>} : memref<1x16x128xbf16, #tpu.memory_space<vmem>>, vector<1x16x8xbf16>,
    %c3 = arith.constant 3 : index
    %c0_85 = arith.constant 0 : index
    %124 = tpu.strided_load %arg13[%c3, %c0_85] {strides = array<i32: 16, 1>} : memref<256x8xf32, #tpu.memory_space<vmem>>, vector<16x8xf32>
    %125 = arith.truncf %124 : vector<16x8xf32> to vector<16x8xbf16>
    %c0_86 = arith.constant 0 : index
    %c0_87 = arith.constant 0 : index
    %c24_88 = arith.constant 24 : index
    %126 = vector.load %arg8[%c0_86, %c0_87, %c24_88] : memref<1x16x128xbf16, #tpu.memory_space<vmem>>, vector<1x16x8xbf16>
    %127 = vector.shape_cast %126 : vector<1x16x8xbf16> to vector<16x8xbf16>
    %128 = vector.shape_cast %125 : vector<16x8xbf16> to vector<1x16x8xbf16>
    tpu.vector_store %arg8[%c0_86, %c0_87, %c24_88], %128 {strides = array<i32>} : memref<1x16x128xbf16, #tpu.memory_space<vmem>>, vector<1x16x8xbf16>,
    %c4 = arith.constant 4 : index
    %c0_89 = arith.constant 0 : index
    %129 = tpu.strided_load %arg13[%c4, %c0_89] {strides = array<i32: 16, 1>} : memref<256x8xf32, #tpu.memory_space<vmem>>, vector<16x8xf32>
    %130 = arith.truncf %129 : vector<16x8xf32> to vector<16x8xbf16>
    %c0_90 = arith.constant 0 : index
    %c0_91 = arith.constant 0 : index
    %c32_92 = arith.constant 32 : index
    %131 = vector.load %arg8[%c0_90, %c0_91, %c32_92] : memref<1x16x128xbf16, #tpu.memory_space<vmem>>, vector<1x16x8xbf16>
    %132 = vector.shape_cast %131 : vector<1x16x8xbf16> to vector<16x8xbf16>
    %133 = vector.shape_cast %130 : vector<16x8xbf16> to vector<1x16x8xbf16>
    tpu.vector_store %arg8[%c0_90, %c0_91, %c32_92], %133 {strides = array<i32>} : memref<1x16x128xbf16, #tpu.memory_space<vmem>>, vector<1x16x8xbf16>,
    %c5 = arith.constant 5 : index
    %c0_93 = arith.constant 0 : index
    %134 = tpu.strided_load %arg13[%c5, %c0_93] {strides = array<i32: 16, 1>} : memref<256x8xf32, #tpu.memory_space<vmem>>, vector<16x8xf32>
    %135 = arith.truncf %134 : vector<16x8xf32> to vector<16x8xbf16>
    %c0_94 = arith.constant 0 : index
    %c0_95 = arith.constant 0 : index
    %c40_96 = arith.constant 40 : index
    %136 = vector.load %arg8[%c0_94, %c0_95, %c40_96] : memref<1x16x128xbf16, #tpu.memory_space<vmem>>, vector<1x16x8xbf16>
    %137 = vector.shape_cast %136 : vector<1x16x8xbf16> to vector<16x8xbf16>
    %138 = vector.shape_cast %135 : vector<16x8xbf16> to vector<1x16x8xbf16>
    tpu.vector_store %arg8[%c0_94, %c0_95, %c40_96], %138 {strides = array<i32>} : memref<1x16x128xbf16, #tpu.memory_space<vmem>>, vector<1x16x8xbf16>,
    %c6 = arith.constant 6 : index
    %c0_97 = arith.constant 0 : index
    %139 = tpu.strided_load %arg13[%c6, %c0_97] {strides = array<i32: 16, 1>} : memref<256x8xf32, #tpu.memory_space<vmem>>, vector<16x8xf32>
    %140 = arith.truncf %139 : vector<16x8xf32> to vector<16x8xbf16>
    %c0_98 = arith.constant 0 : index
    %c0_99 = arith.constant 0 : index
    %c48_100 = arith.constant 48 : index
    %141 = vector.load %arg8[%c0_98, %c0_99, %c48_100] : memref<1x16x128xbf16, #tpu.memory_space<vmem>>, vector<1x16x8xbf16>
    %142 = vector.shape_cast %141 : vector<1x16x8xbf16> to vector<16x8xbf16>
    %143 = vector.shape_cast %140 : vector<16x8xbf16> to vector<1x16x8xbf16>
    tpu.vector_store %arg8[%c0_98, %c0_99, %c48_100], %143 {strides = array<i32>} : memref<1x16x128xbf16, #tpu.memory_space<vmem>>, vector<1x16x8xbf16>,
    %c7 = arith.constant 7 : index
    %c0_101 = arith.constant 0 : index
    %144 = tpu.strided_load %arg13[%c7, %c0_101] {strides = array<i32: 16, 1>} : memref<256x8xf32, #tpu.memory_space<vmem>>, vector<16x8xf32>
    %145 = arith.truncf %144 : vector<16x8xf32> to vector<16x8xbf16>
    %c0_102 = arith.constant 0 : index
    %c0_103 = arith.constant 0 : index
    %c56_104 = arith.constant 56 : index
    %146 = vector.load %arg8[%c0_102, %c0_103, %c56_104] : memref<1x16x128xbf16, #tpu.memory_space<vmem>>, vector<1x16x8xbf16>
    %147 = vector.shape_cast %146 : vector<1x16x8xbf16> to vector<16x8xbf16>
    %148 = vector.shape_cast %145 : vector<16x8xbf16> to vector<1x16x8xbf16>
    tpu.vector_store %arg8[%c0_102, %c0_103, %c56_104], %148 {strides = array<i32>} : memref<1x16x128xbf16, #tpu.memory_space<vmem>>, vector<1x16x8xbf16>,
    %c8_105 = arith.constant 8 : index
    %c0_106 = arith.constant 0 : index
    %149 = tpu.strided_load %arg13[%c8_105, %c0_106] {strides = array<i32: 16, 1>} : memref<256x8xf32, #tpu.memory_space<vmem>>, vector<16x8xf32>
    %150 = arith.truncf %149 : vector<16x8xf32> to vector<16x8xbf16>
    %c0_107 = arith.constant 0 : index
    %c0_108 = arith.constant 0 : index
    %c64_109 = arith.constant 64 : index
    %151 = vector.load %arg8[%c0_107, %c0_108, %c64_109] : memref<1x16x128xbf16, #tpu.memory_space<vmem>>, vector<1x16x8xbf16>
    %152 = vector.shape_cast %151 : vector<1x16x8xbf16> to vector<16x8xbf16>
    %153 = vector.shape_cast %150 : vector<16x8xbf16> to vector<1x16x8xbf16>
    tpu.vector_store %arg8[%c0_107, %c0_108, %c64_109], %153 {strides = array<i32>} : memref<1x16x128xbf16, #tpu.memory_space<vmem>>, vector<1x16x8xbf16>,
    %c9 = arith.constant 9 : index
    %c0_110 = arith.constant 0 : index
    %154 = tpu.strided_load %arg13[%c9, %c0_110] {strides = array<i32: 16, 1>} : memref<256x8xf32, #tpu.memory_space<vmem>>, vector<16x8xf32>
    %155 = arith.truncf %154 : vector<16x8xf32> to vector<16x8xbf16>
    %c0_111 = arith.constant 0 : index
    %c0_112 = arith.constant 0 : index
    %c72 = arith.constant 72 : index
    %156 = vector.load %arg8[%c0_111, %c0_112, %c72] : memref<1x16x128xbf16, #tpu.memory_space<vmem>>, vector<1x16x8xbf16>
    %157 = vector.shape_cast %156 : vector<1x16x8xbf16> to vector<16x8xbf16>
    %158 = vector.shape_cast %155 : vector<16x8xbf16> to vector<1x16x8xbf16>
    tpu.vector_store %arg8[%c0_111, %c0_112, %c72], %158 {strides = array<i32>} : memref<1x16x128xbf16, #tpu.memory_space<vmem>>, vector<1x16x8xbf16>,
    %c10 = arith.constant 10 : index
    %c0_113 = arith.constant 0 : index
    %159 = tpu.strided_load %arg13[%c10, %c0_113] {strides = array<i32: 16, 1>} : memref<256x8xf32, #tpu.memory_space<vmem>>, vector<16x8xf32>
    %160 = arith.truncf %159 : vector<16x8xf32> to vector<16x8xbf16>
    %c0_114 = arith.constant 0 : index
    %c0_115 = arith.constant 0 : index
    %c80 = arith.constant 80 : index
    %161 = vector.load %arg8[%c0_114, %c0_115, %c80] : memref<1x16x128xbf16, #tpu.memory_space<vmem>>, vector<1x16x8xbf16>
    %162 = vector.shape_cast %161 : vector<1x16x8xbf16> to vector<16x8xbf16>
    %163 = vector.shape_cast %160 : vector<16x8xbf16> to vector<1x16x8xbf16>
    tpu.vector_store %arg8[%c0_114, %c0_115, %c80], %163 {strides = array<i32>} : memref<1x16x128xbf16, #tpu.memory_space<vmem>>, vector<1x16x8xbf16>,
    %c11 = arith.constant 11 : index
    %c0_116 = arith.constant 0 : index
    %164 = tpu.strided_load %arg13[%c11, %c0_116] {strides = array<i32: 16, 1>} : memref<256x8xf32, #tpu.memory_space<vmem>>, vector<16x8xf32>
    %165 = arith.truncf %164 : vector<16x8xf32> to vector<16x8xbf16>
    %c0_117 = arith.constant 0 : index
    %c0_118 = arith.constant 0 : index
    %c88 = arith.constant 88 : index
    %166 = vector.load %arg8[%c0_117, %c0_118, %c88] : memref<1x16x128xbf16, #tpu.memory_space<vmem>>, vector<1x16x8xbf16>
    %167 = vector.shape_cast %166 : vector<1x16x8xbf16> to vector<16x8xbf16>
    %168 = vector.shape_cast %165 : vector<16x8xbf16> to vector<1x16x8xbf16>
    tpu.vector_store %arg8[%c0_117, %c0_118, %c88], %168 {strides = array<i32>} : memref<1x16x128xbf16, #tpu.memory_space<vmem>>, vector<1x16x8xbf16>,
    %c12 = arith.constant 12 : index
    %c0_119 = arith.constant 0 : index
    %169 = tpu.strided_load %arg13[%c12, %c0_119] {strides = array<i32: 16, 1>} : memref<256x8xf32, #tpu.memory_space<vmem>>, vector<16x8xf32>
    %170 = arith.truncf %169 : vector<16x8xf32> to vector<16x8xbf16>
    %c0_120 = arith.constant 0 : index
    %c0_121 = arith.constant 0 : index
    %c96 = arith.constant 96 : index
    %171 = vector.load %arg8[%c0_120, %c0_121, %c96] : memref<1x16x128xbf16, #tpu.memory_space<vmem>>, vector<1x16x8xbf16>
    %172 = vector.shape_cast %171 : vector<1x16x8xbf16> to vector<16x8xbf16>
    %173 = vector.shape_cast %170 : vector<16x8xbf16> to vector<1x16x8xbf16>
    tpu.vector_store %arg8[%c0_120, %c0_121, %c96], %173 {strides = array<i32>} : memref<1x16x128xbf16, #tpu.memory_space<vmem>>, vector<1x16x8xbf16>,
    %c13 = arith.constant 13 : index
    %c0_122 = arith.constant 0 : index
    %174 = tpu.strided_load %arg13[%c13, %c0_122] {strides = array<i32: 16, 1>} : memref<256x8xf32, #tpu.memory_space<vmem>>, vector<16x8xf32>
    %175 = arith.truncf %174 : vector<16x8xf32> to vector<16x8xbf16>
    %c0_123 = arith.constant 0 : index
    %c0_124 = arith.constant 0 : index
    %c104 = arith.constant 104 : index
    %176 = vector.load %arg8[%c0_123, %c0_124, %c104] : memref<1x16x128xbf16, #tpu.memory_space<vmem>>, vector<1x16x8xbf16>
    %177 = vector.shape_cast %176 : vector<1x16x8xbf16> to vector<16x8xbf16>
    %178 = vector.shape_cast %175 : vector<16x8xbf16> to vector<1x16x8xbf16>
    tpu.vector_store %arg8[%c0_123, %c0_124, %c104], %178 {strides = array<i32>} : memref<1x16x128xbf16, #tpu.memory_space<vmem>>, vector<1x16x8xbf16>,
    %c14 = arith.constant 14 : index
    %c0_125 = arith.constant 0 : index
    %179 = tpu.strided_load %arg13[%c14, %c0_125] {strides = array<i32: 16, 1>} : memref<256x8xf32, #tpu.memory_space<vmem>>, vector<16x8xf32>
    %180 = arith.truncf %179 : vector<16x8xf32> to vector<16x8xbf16>
    %c0_126 = arith.constant 0 : index
    %c0_127 = arith.constant 0 : index
    %c112 = arith.constant 112 : index
    %181 = vector.load %arg8[%c0_126, %c0_127, %c112] : memref<1x16x128xbf16, #tpu.memory_space<vmem>>, vector<1x16x8xbf16>
    %182 = vector.shape_cast %181 : vector<1x16x8xbf16> to vector<16x8xbf16>
    %183 = vector.shape_cast %180 : vector<16x8xbf16> to vector<1x16x8xbf16>
    tpu.vector_store %arg8[%c0_126, %c0_127, %c112], %183 {strides = array<i32>} : memref<1x16x128xbf16, #tpu.memory_space<vmem>>, vector<1x16x8xbf16>,
    %c15 = arith.constant 15 : index
    %c0_128 = arith.constant 0 : index
    %184 = tpu.strided_load %arg13[%c15, %c0_128] {strides = array<i32: 16, 1>} : memref<256x8xf32, #tpu.memory_space<vmem>>, vector<16x8xf32>
    %185 = arith.truncf %184 : vector<16x8xf32> to vector<16x8xbf16>
    %c0_129 = arith.constant 0 : index
    %c0_130 = arith.constant 0 : index
    %c120 = arith.constant 120 : index
    %186 = vector.load %arg8[%c0_129, %c0_130, %c120] : memref<1x16x128xbf16, #tpu.memory_space<vmem>>, vector<1x16x8xbf16>
    %187 = vector.shape_cast %186 : vector<1x16x8xbf16> to vector<16x8xbf16>
    %188 = vector.shape_cast %185 : vector<16x8xbf16> to vector<1x16x8xbf16>
    tpu.vector_store %arg8[%c0_129, %c0_130, %c120], %188 {strides = array<i32>} : memref<1x16x128xbf16, #tpu.memory_space<vmem>>, vector<1x16x8xbf16>,
    return
  }
  func.func @transform_0(%arg0: i32) -> (i32, i32, i32, i32) {
    %c0_i32 = arith.constant 0 : i32
    %c0_i32_0 = arith.constant 0 : i32
    %c0_i32_1 = arith.constant 0 : i32
    %c0_i32_2 = arith.constant 0 : i32
    return %arg0, %c0_i32, %c0_i32_0, %c0_i32_1 : i32, i32, i32, i32
  }
  func.func @transform_1(%arg0: i32) -> (i32, i32) {
    %c0_i32 = arith.constant 0 : i32
    %c0_i32_0 = arith.constant 0 : i32
    %c0_i32_1 = arith.constant 0 : i32
    return %c0_i32, %c0_i32_0 : i32, i32
  }
  func.func @transform_2(%arg0: i32) -> (i32, i32) {
    %c0_i32 = arith.constant 0 : i32
    %c0_i32_0 = arith.constant 0 : i32
    %c0_i32_1 = arith.constant 0 : i32
    return %c0_i32, %c0_i32_0 : i32, i32
  }
  func.func @transform_3(%arg0: i32) -> (i32, i32) {
    %c0_i32 = arith.constant 0 : i32
    %c0_i32_0 = arith.constant 0 : i32
    %c0_i32_1 = arith.constant 0 : i32
    return %c0_i32, %c0_i32_0 : i32, i32
  }
  func.func @transform_4(%arg0: i32) -> (i32, i32) {
    %c0_i32 = arith.constant 0 : i32
    %c0_i32_0 = arith.constant 0 : i32
    %c0_i32_1 = arith.constant 0 : i32
    return %c0_i32, %c0_i32_0 : i32, i32
  }
  func.func @transform_5(%arg0: i32) -> (i32, i32) {
    %c0_i32 = arith.constant 0 : i32
    %c0_i32_0 = arith.constant 0 : i32
    %c0_i32_1 = arith.constant 0 : i32
    return %c0_i32, %c0_i32_0 : i32, i32
  }
  func.func @transform_6(%arg0: i32) -> (i32, i32) {
    %c0_i32 = arith.constant 0 : i32
    %c0_i32_0 = arith.constant 0 : i32
    %c0_i32_1 = arith.constant 0 : i32
    return %c0_i32, %c0_i32_0 : i32, i32
  }
  func.func @transform_7(%arg0: i32) -> (i32, i32, i32) {
    %c0_i32 = arith.constant 0 : i32
    %c0_i32_0 = arith.constant 0 : i32
    %c0_i32_1 = arith.constant 0 : i32
    return %arg0, %c0_i32, %c0_i32_0 : i32, i32, i32
  }
}

</mosaic_0001>

<llo_original>
// kernel: resnet_forward.2
$region0: #{resnet_forward.2}
  #allocation0 [shape = 'u32[]', space=smem, size = 0x4, offset = 0x4, fixed_abs, tag = 'smem constant byte address 0x4 - core index']
  #allocation1 [shape = 'u32[144,128]{1,0:T(1,128)}', space=vmem, size = 0x12000, scoped, tag = 'internal scratch']
  #allocation2 [shape = 'f32[18,32,4]{2,1,0:T(8,128)}', space=vmem, size = 0x48000, scoped, tag = 'scratch operand']
  #allocation3 [shape = 'f32[18,32,8]{2,1,0:T(8,128)}', space=vmem, size = 0x48000, scoped, tag = 'scratch operand']
  #allocation4 [shape = 'bf16[256,36]{1,0:T(16,128)(2,1)}', space=vmem, size = 0x10000, scoped, tag = 'scratch operand']
  #allocation5 [shape = 'bf16[256,72]{1,0:T(16,128)(2,1)}', space=vmem, size = 0x10000, scoped, tag = 'scratch operand']
  #allocation6 [shape = 'f32[256,8]{1,0:T(8,128)}', space=vmem, size = 0x20000, scoped, tag = 'scratch operand']
  %s0 = inlined_call_operand.vmem [shape: bf16[2,16,16,4], index: 0, kind: input, shape index: {}]
  %s1 = inlined_call_operand.vmem [shape: bf16[36,8], index: 1, kind: input, shape index: {}]
  %s2 = inlined_call_operand.vmem [shape: f32[1,8], index: 2, kind: input, shape index: {}]
  %s3 = inlined_call_operand.vmem [shape: f32[1,8], index: 3, kind: input, shape index: {}]
  %s4 = inlined_call_operand.vmem [shape: bf16[72,8], index: 4, kind: input, shape index: {}]
  %s5 = inlined_call_operand.vmem [shape: f32[1,8], index: 5, kind: input, shape index: {}]
  %s6 = inlined_call_operand.vmem [shape: f32[1,8], index: 6, kind: input, shape index: {}]
  %s7 = inlined_call_operand.vmem [shape: bf16[4,8], index: 7, kind: input, shape index: {}]
  %s8 = inlined_call_operand.vmem [shape: f32[1,8], index: 8, kind: input, shape index: {}]
  %s9 = inlined_call_operand.vmem [shape: bf16[2,16,128], index: 9, kind: output, shape index: {}]
  %s10 = sld [smem:[#allocation0]]
  $region69: #{resnet_forward.2} parent=0
    _
  %s12 = ssub.s32 1, %s10
  %s13 = scalar_select 0, %s12, %s10
  loop: start=0, step=1, limit=4
  $region2: #{resnet_forward.2} parent=0 // loop_pre_header
    _
  $region3: #{resnet_forward.2} parent=0 // loop_header
    %s15 = sphi 0, %s19
    %p16 = scmp.ge.s32.totalorder %s15, 4
    %s25 = sphi 0, %s27
    %s28 = sphi 0, %s25
    %s29 = sphi 0, %s28
    %s45 = sphi 0, %s29
    %s49 = sphi 0, %s49
    %s51 = sphi 0, %s49
    %s52 = sphi 0, %s51
    %s66 = sphi 0, %s52
    %s70 = sphi 0, %s70
    %s72 = sphi 0, %s70
    %s73 = sphi 0, %s72
    %s87 = sphi 0, %s73
    %s91 = sphi 0, %s91
    %s93 = sphi 0, %s91
    %s94 = sphi 0, %s93
    %s108 = sphi 0, %s94
    %s112 = sphi 0, %s112
    %s114 = sphi 0, %s112
    %s115 = sphi 0, %s114
    %s129 = sphi 0, %s115
    %s133 = sphi 0, %s133
    %s135 = sphi 0, %s133
    %s136 = sphi 0, %s135
    %s150 = sphi 0, %s136
    %s154 = sphi 0, %s154
    %s156 = sphi 0, %s154
    %s157 = sphi 0, %s156
    %s171 = sphi 0, %s157
    %s175 = sphi 0, %s175
    %s177 = sphi 0, %s175
    %s178 = sphi 0, %s177
    %s192 = sphi 0, %s178
    %s196 = sphi 0, %s196
    %s198 = sphi 0, %s196
    %s199 = sphi 0, %s198
    %s213 = sphi 0, %s199
    %s219 = sphi 0, %s221
    %s222 = sphi 0, %s219
    %s223 = sphi 0, %s222
    %s239 = sphi 0, %s223
  $region4: #{resnet_forward.2} parent=0 // loop_header_branch
    %18 = sbr.rel (%p16) target = $region8
  $region5: #{resnet_forward.2} parent=0 // loop_body
    %s20 = ssub.s32 %s15, 1
    %s21 = ssub.s32 %s15, 2
    %s22 = sadd.s32 %s15, 1
    %s23 = ssub.s32 %s15, %s22
    %p24 = scmp.eq.s32.totalorder %s23, 0
    %s26 = sadd.s32 %s25, 1
    %s27 = scalar_select %p24, %s25, %s26
    %p30 = pneg %p24
    %p31 = scmp.eq.s32.totalorder %s15, 1
    %p32 = por %p30, %p31
    %p33 = scmp.ne.s32.totalorder %s25, %s28
    %p34 = scmp.eq.s32.totalorder %s15, 0
    %p35 = por %p33, %p34
    %p36 = scmp.ne.s32.totalorder %s25, %s28
    %p37 = scmp.eq.s32.totalorder %s20, 1
    %p38 = por %p36, %p37
    %p39 = scmp.ne.s32.totalorder %s28, %s29
    %p40 = scmp.eq.s32.totalorder %s20, 0
    %p41 = por %p39, %p40
    %p42 = scmp.ne.s32.totalorder %s28, %s29
    %p43 = scmp.eq.s32.totalorder %s21, 1
    %p44 = por %p42, %p43
    %p46 = scmp.ne.s32.totalorder %s29, %s45
    %p47 = scmp.eq.s32.totalorder %s21, 0
    %p48 = por %p46, %p47
    %s50 = sadd.s32 %s49, 1
    %p53 = scmp.eq.s32.totalorder %s15, 1
    %p54 = scmp.ne.s32.totalorder %s49, %s51
    %p55 = scmp.eq.s32.totalorder %s15, 0
    %p56 = por %p54, %p55
    %p57 = scmp.ne.s32.totalorder %s49, %s51
    %p58 = scmp.eq.s32.totalorder %s20, 1
    %p59 = por %p57, %p58
    %p60 = scmp.ne.s32.totalorder %s51, %s52
    %p61 = scmp.eq.s32.totalorder %s20, 0
    %p62 = por %p60, %p61
    %p63 = scmp.ne.s32.totalorder %s51, %s52
    %p64 = scmp.eq.s32.totalorder %s21, 1
    %p65 = por %p63, %p64
    %p67 = scmp.ne.s32.totalorder %s52, %s66
    %p68 = scmp.eq.s32.totalorder %s21, 0
    %p69 = por %p67, %p68
    %s71 = sadd.s32 %s70, 1
    %p74 = scmp.eq.s32.totalorder %s15, 1
    %p75 = scmp.ne.s32.totalorder %s70, %s72
    %p76 = scmp.eq.s32.totalorder %s15, 0
    %p77 = por %p75, %p76
    %p78 = scmp.ne.s32.totalorder %s70, %s72
    %p79 = scmp.eq.s32.totalorder %s20, 1
    %p80 = por %p78, %p79
    %p81 = scmp.ne.s32.totalorder %s72, %s73
    %p82 = scmp.eq.s32.totalorder %s20, 0
    %p83 = por %p81, %p82
    %p84 = scmp.ne.s32.totalorder %s72, %s73
    %p85 = scmp.eq.s32.totalorder %s21, 1
    %p86 = por %p84, %p85
    %p88 = scmp.ne.s32.totalorder %s73, %s87
    %p89 = scmp.eq.s32.totalorder %s21, 0
    %p90 = por %p88, %p89
    %s92 = sadd.s32 %s91, 1
    %p95 = scmp.eq.s32.totalorder %s15, 1
    %p96 = scmp.ne.s32.totalorder %s91, %s93
    %p97 = scmp.eq.s32.totalorder %s15, 0
    %p98 = por %p96, %p97
    %p99 = scmp.ne.s32.totalorder %s91, %s93
    %p100 = scmp.eq.s32.totalorder %s20, 1
    %p101 = por %p99, %p100
    %p102 = scmp.ne.s32.totalorder %s93, %s94
    %p103 = scmp.eq.s32.totalorder %s20, 0
    %p104 = por %p102, %p103
    %p105 = scmp.ne.s32.totalorder %s93, %s94
    %p106 = scmp.eq.s32.totalorder %s21, 1
    %p107 = por %p105, %p106
    %p109 = scmp.ne.s32.totalorder %s94, %s108
    %p110 = scmp.eq.s32.totalorder %s21, 0
    %p111 = por %p109, %p110
    %s113 = sadd.s32 %s112, 1
    %p116 = scmp.eq.s32.totalorder %s15, 1
    %p117 = scmp.ne.s32.totalorder %s112, %s114
    %p118 = scmp.eq.s32.totalorder %s15, 0
    %p119 = por %p117, %p118
    %p120 = scmp.ne.s32.totalorder %s112, %s114
    %p121 = scmp.eq.s32.totalorder %s20, 1
    %p122 = por %p120, %p121
    %p123 = scmp.ne.s32.totalorder %s114, %s115
    %p124 = scmp.eq.s32.totalorder %s20, 0
    %p125 = por %p123, %p124
    %p126 = scmp.ne.s32.totalorder %s114, %s115
    %p127 = scmp.eq.s32.totalorder %s21, 1
    %p128 = por %p126, %p127
    %p130 = scmp.ne.s32.totalorder %s115, %s129
    %p131 = scmp.eq.s32.totalorder %s21, 0
    %p132 = por %p130, %p131
    %s134 = sadd.s32 %s133, 1
    %p137 = scmp.eq.s32.totalorder %s15, 1
    %p138 = scmp.ne.s32.totalorder %s133, %s135
    %p139 = scmp.eq.s32.totalorder %s15, 0
    %p140 = por %p138, %p139
    %p141 = scmp.ne.s32.totalorder %s133, %s135
    %p142 = scmp.eq.s32.totalorder %s20, 1
    %p143 = por %p141, %p142
    %p144 = scmp.ne.s32.totalorder %s135, %s136
    %p145 = scmp.eq.s32.totalorder %s20, 0
    %p146 = por %p144, %p145
    %p147 = scmp.ne.s32.totalorder %s135, %s136
    %p148 = scmp.eq.s32.totalorder %s21, 1
    %p149 = por %p147, %p148
    %p151 = scmp.ne.s32.totalorder %s136, %s150
    %p152 = scmp.eq.s32.totalorder %s21, 0
    %p153 = por %p151, %p152
    %s155 = sadd.s32 %s154, 1
    %p158 = scmp.eq.s32.totalorder %s15, 1
    %p159 = scmp.ne.s32.totalorder %s154, %s156
    %p160 = scmp.eq.s32.totalorder %s15, 0
    %p161 = por %p159, %p160
    %p162 = scmp.ne.s32.totalorder %s154, %s156
    %p163 = scmp.eq.s32.totalorder %s20, 1
    %p164 = por %p162, %p163
    %p165 = scmp.ne.s32.totalorder %s156, %s157
    %p166 = scmp.eq.s32.totalorder %s20, 0
    %p167 = por %p165, %p166
    %p168 = scmp.ne.s32.totalorder %s156, %s157
    %p169 = scmp.eq.s32.totalorder %s21, 1
    %p170 = por %p168, %p169
    %p172 = scmp.ne.s32.totalorder %s157, %s171
    %p173 = scmp.eq.s32.totalorder %s21, 0
    %p174 = por %p172, %p173
    %s176 = sadd.s32 %s175, 1
    %p179 = scmp.eq.s32.totalorder %s15, 1
    %p180 = scmp.ne.s32.totalorder %s175, %s177
    %p181 = scmp.eq.s32.totalorder %s15, 0
    %p182 = por %p180, %p181
    %p183 = scmp.ne.s32.totalorder %s175, %s177
    %p184 = scmp.eq.s32.totalorder %s20, 1
    %p185 = por %p183, %p184
    %p186 = scmp.ne.s32.totalorder %s177, %s178
    %p187 = scmp.eq.s32.totalorder %s20, 0
    %p188 = por %p186, %p187
    %p189 = scmp.ne.s32.totalorder %s177, %s178
    %p190 = scmp.eq.s32.totalorder %s21, 1
    %p191 = por %p189, %p190
    %p193 = scmp.ne.s32.totalorder %s178, %s192
    %p194 = scmp.eq.s32.totalorder %s21, 0
    %p195 = por %p193, %p194
    %s197 = sadd.s32 %s196, 1
    %p200 = scmp.eq.s32.totalorder %s15, 1
    %p201 = scmp.ne.s32.totalorder %s196, %s198
    %p202 = scmp.eq.s32.totalorder %s15, 0
    %p203 = por %p201, %p202
    %p204 = scmp.ne.s32.totalorder %s196, %s198
    %p205 = scmp.eq.s32.totalorder %s20, 1
    %p206 = por %p204, %p205
    %p207 = scmp.ne.s32.totalorder %s198, %s199
    %p208 = scmp.eq.s32.totalorder %s20, 0
    %p209 = por %p207, %p208
    %p210 = scmp.ne.s32.totalorder %s198, %s199
    %p211 = scmp.eq.s32.totalorder %s21, 1
    %p212 = por %p210, %p211
    %p214 = scmp.ne.s32.totalorder %s199, %s213
    %p215 = scmp.eq.s32.totalorder %s21, 0
    %p216 = por %p214, %p215
    %s217 = ssub.s32 %s15, %s22
    %p218 = scmp.eq.s32.totalorder %s217, 0
    %s220 = sadd.s32 %s219, 1
    %s221 = scalar_select %p218, %s219, %s220
    %p224 = pneg %p218
    %p225 = scmp.eq.s32.totalorder %s15, 1
    %p226 = por %p224, %p225
    %p227 = scmp.ne.s32.totalorder %s219, %s222
    %p228 = scmp.eq.s32.totalorder %s15, 0
    %p229 = por %p227, %p228
    %p230 = scmp.ne.s32.totalorder %s219, %s222
    %p231 = scmp.eq.s32.totalorder %s20, 1
    %p232 = por %p230, %p231
    %p233 = scmp.ne.s32.totalorder %s222, %s223
    %p234 = scmp.eq.s32.totalorder %s20, 0
    %p235 = por %p233, %p234
    %p236 = scmp.ne.s32.totalorder %s222, %s223
    %p237 = scmp.eq.s32.totalorder %s21, 1
    %p238 = por %p236, %p237
    %p240 = scmp.ne.s32.totalorder %s223, %s239
    %p241 = scmp.eq.s32.totalorder %s21, 0
    %p242 = por %p240, %p241
    %p243 = scmp.le.s32.totalorder 1, %s15
    %p244 = scmp.lt.s32.totalorder %s15, 3
    %p245 = pnand %p243, %p244
    %p246 = pneg %p245
    // Predicated region
    $region9: #{resnet_forward.2} parent=5 // pred_check
      _
    $region10: #{resnet_forward.2} parent=5 // pred_check_branch
      %248 = sbr.rel (%p245) target = $region12
    $region11: #{resnet_forward.2} parent=5 // pred_region
      %s249 = ssub.s32 %s15, 1
      // Predicated region
      $region13: #{resnet_forward.2} parent=11 // pred_check
        %p250 = pneg %p62
      $region14: #{resnet_forward.2} parent=11 // pred_check_branch
        %252 = sbr.rel (%p250) target = $region16
      $region15: #{resnet_forward.2} parent=11 // pred_region
        _
      $region16: #{resnet_forward.2} parent=11 // pred_fallthru
        _
      // Predicated region
      $region17: #{resnet_forward.2} parent=11 // pred_check
        %p253 = pneg %p83
      $region18: #{resnet_forward.2} parent=11 // pred_check_branch
        %255 = sbr.rel (%p253) target = $region20
      $region19: #{resnet_forward.2} parent=11 // pred_region
        _
      $region20: #{resnet_forward.2} parent=11 // pred_fallthru
        _
      // Predicated region
      $region21: #{resnet_forward.2} parent=11 // pred_check
        %p256 = pneg %p104
      $region22: #{resnet_forward.2} parent=11 // pred_check_branch
        %258 = sbr.rel (%p256) target = $region24
      $region23: #{resnet_forward.2} parent=11 // pred_region
        _
      $region24: #{resnet_forward.2} parent=11 // pred_fallthru
        _
      // Predicated region
      $region25: #{resnet_forward.2} parent=11 // pred_check
        %p259 = pneg %p125
      $region26: #{resnet_forward.2} parent=11 // pred_check_branch
        %261 = sbr.rel (%p259) target = $region28
      $region27: #{resnet_forward.2} parent=11 // pred_region
        _
      $region28: #{resnet_forward.2} parent=11 // pred_fallthru
        _
      // Predicated region
      $region29: #{resnet_forward.2} parent=11 // pred_check
        %p262 = pneg %p146
      $region30: #{resnet_forward.2} parent=11 // pred_check_branch
        %264 = sbr.rel (%p262) target = $region32
      $region31: #{resnet_forward.2} parent=11 // pred_region
        _
      $region32: #{resnet_forward.2} parent=11 // pred_fallthru
        _
      // Predicated region
      $region33: #{resnet_forward.2} parent=11 // pred_check
        %p265 = pneg %p167
      $region34: #{resnet_forward.2} parent=11 // pred_check_branch
        %267 = sbr.rel (%p265) target = $region36
      $region35: #{resnet_forward.2} parent=11 // pred_region
        _
      $region36: #{resnet_forward.2} parent=11 // pred_fallthru
        _
      // Predicated region
      $region37: #{resnet_forward.2} parent=11 // pred_check
        %p268 = pneg %p188
      $region38: #{resnet_forward.2} parent=11 // pred_check_branch
        %270 = sbr.rel (%p268) target = $region40
      $region39: #{resnet_forward.2} parent=11 // pred_region
        _
      $region40: #{resnet_forward.2} parent=11 // pred_fallthru
        _
      // Predicated region
      $region41: #{resnet_forward.2} parent=11 // pred_check
        %p271 = pneg %p209
      $region42: #{resnet_forward.2} parent=11 // pred_check_branch
        %273 = sbr.rel (%p271) target = $region44
      $region43: #{resnet_forward.2} parent=11 // pred_region
        _
      $region44: #{resnet_forward.2} parent=11 // pred_fallthru
        _
    $region12: #{resnet_forward.2} parent=5 // pred_fallthru
      _
    %p274 = scmp.lt.s32.totalorder %s15, 2
    // Predicated region
    $region45: #{resnet_forward.2} parent=5 // pred_check
      %p275 = pneg %p274
    $region46: #{resnet_forward.2} parent=5 // pred_check_branch
      %277 = sbr.rel (%p275) target = $region48
    $region47: #{resnet_forward.2} parent=5 // pred_region
      // Predicated region
      $region49: #{resnet_forward.2} parent=47 // pred_check
        %p278 = pneg %p35
      $region50: #{resnet_forward.2} parent=47 // pred_check_branch
        %280 = sbr.rel (%p278) target = $region52
      $region51: #{resnet_forward.2} parent=47 // pred_region
        %p281 = scmp.lt.s32.totalorder %s15, 1
        %s282 = scalar_select %p281, %s15, 1
        %s283 = smul.addr %s282, 32
        %s284 = smul.addr %s283, 4
        %s285 = scalar_lea.vmem %s0, %s284
      $region52: #{resnet_forward.2} parent=47 // pred_fallthru
        _
    $region48: #{resnet_forward.2} parent=5 // pred_fallthru
      _
    %p286 = scmp.le.s32.totalorder 1, %s15
    %p287 = scmp.lt.s32.totalorder %s15, 3
    %p288 = pnand %p286, %p287
    %p289 = pneg %p288
    // Predicated region
    $region53: #{resnet_forward.2} parent=5 // pred_check
      _
    $region54: #{resnet_forward.2} parent=5 // pred_check_branch
      %291 = sbr.rel (%p288) target = $region56
    $region55: #{resnet_forward.2} parent=5 // pred_region
      %s292 = ssub.s32 %s15, 1
      %p293 = scmp.lt.s32.totalorder %s20, 1
      %s294 = scalar_select %p293, %s20, 1
      %s295 = smul.addr %s294, 32
      %s296 = smul.addr %s295, 4
      %s297 = scalar_lea.vmem %s0, %s296
      %p298 = pneg %p41
      %p299 = pneg %p38
      %p300 = pneg %p62
      %p301 = pneg %p59
      %p302 = pneg %p83
      %p303 = pneg %p80
      %p304 = pneg %p104
      %p305 = pneg %p101
      %p306 = pneg %p125
      %p307 = pneg %p122
      %p308 = pneg %p146
      %p309 = pneg %p143
      %p310 = pneg %p167
      %p311 = pneg %p164
      %p312 = pneg %p188
      %p313 = pneg %p185
      %p314 = pneg %p209
      %p315 = pneg %p206
      %p316 = pneg %p235
      %p317 = pneg %p232
      %p318 = scmp.lt.s32.totalorder %s20, 1
      %s319 = scalar_select %p318, %s20, 1
      %s320 = smul.addr %s319, 2
      %s321 = smul.addr %s320, 4
      %s322 = scalar_lea.vmem %s9, %s321
      %p323 = scmp.lt.s32.totalorder %s20, 1
      %s324 = scalar_select %p323, %s20, 1
      %s325 = smul.addr %s324, 32
      %s326 = smul.addr %s325, 4
      %s327 = scalar_lea.vmem %s0, %s326
      %p328 = scmp.lt.s32.totalorder %s20, 1
      %s329 = scalar_select %p328, %s20, 1
      %s330 = smul.addr %s329, 2
      %s331 = smul.addr %s330, 4
      %s332 = scalar_lea.vmem %s9, %s331
      %v334 = vld [vmem:[%s327] sm:$0xf]
      %v335 = vld [vmem:[%s327 + $0x4] sm:$0xf]
      %v336 = vld [vmem:[%s327 + $0x8] sm:$0xf]
      %v337 = vld [vmem:[%s327 + $0xc] sm:$0xf]
      %v338 = vld [vmem:[%s327 + $0x10] sm:$0xf]
      %v339 = vld [vmem:[%s327 + $0x14] sm:$0xf]
      %v340 = vld [vmem:[%s327 + $0x18] sm:$0xf]
      %v341 = vld [vmem:[%s327 + $0x1c] sm:$0xf]
      %v342 = vld [vmem:[%s327 + $0x20] sm:$0xf]
      %v343 = vld [vmem:[%s327 + $0x24] sm:$0xf]
      %v344 = vld [vmem:[%s327 + $0x28] sm:$0xf]
      %v345 = vld [vmem:[%s327 + $0x2c] sm:$0xf]
      %v346 = vld [vmem:[%s327 + $0x30] sm:$0xf]
      %v347 = vld [vmem:[%s327 + $0x34] sm:$0xf]
      %v348 = vld [vmem:[%s327 + $0x38] sm:$0xf]
      %v349 = vld [vmem:[%s327 + $0x3c] sm:$0xf]
      %v350 = vld [vmem:[%s327 + $0x40] sm:$0xf]
      %v351 = vld [vmem:[%s327 + $0x44] sm:$0xf]
      %v352 = vld [vmem:[%s327 + $0x48] sm:$0xf]
      %v353 = vld [vmem:[%s327 + $0x4c] sm:$0xf]
      %v354 = vld [vmem:[%s327 + $0x50] sm:$0xf]
      %v355 = vld [vmem:[%s327 + $0x54] sm:$0xf]
      %v356 = vld [vmem:[%s327 + $0x58] sm:$0xf]
      %v357 = vld [vmem:[%s327 + $0x5c] sm:$0xf]
      %v358 = vld [vmem:[%s327 + $0x60] sm:$0xf]
      %v359 = vld [vmem:[%s327 + $0x64] sm:$0xf]
      %v360 = vld [vmem:[%s327 + $0x68] sm:$0xf]
      %v361 = vld [vmem:[%s327 + $0x6c] sm:$0xf]
      %v362 = vld [vmem:[%s327 + $0x70] sm:$0xf]
      %v363 = vld [vmem:[%s327 + $0x74] sm:$0xf]
      %v364 = vld [vmem:[%s327 + $0x78] sm:$0xf]
      %v365 = vld [vmem:[%s327 + $0x7c] sm:$0xf]
      %v366 = vunpack.c.l.bf16 %v334
      %v367 = vunpack.c.l.bf16 %v335
      %v368 = vunpack.c.l.bf16 %v336
      %v369 = vunpack.c.l.bf16 %v337
      %v370 = vunpack.c.l.bf16 %v338
      %v371 = vunpack.c.l.bf16 %v339
      %v372 = vunpack.c.l.bf16 %v340
      %v373 = vunpack.c.l.bf16 %v341
      %v374 = vunpack.c.l.bf16 %v342
      %v375 = vunpack.c.l.bf16 %v343
      %v376 = vunpack.c.l.bf16 %v344
      %v377 = vunpack.c.l.bf16 %v345
      %v378 = vunpack.c.l.bf16 %v346
      %v379 = vunpack.c.l.bf16 %v347
      %v380 = vunpack.c.l.bf16 %v348
      %v381 = vunpack.c.l.bf16 %v349
      %v382 = vunpack.c.l.bf16 %v350
      %v383 = vunpack.c.l.bf16 %v351
      %v384 = vunpack.c.l.bf16 %v352
      %v385 = vunpack.c.l.bf16 %v353
      %v386 = vunpack.c.l.bf16 %v354
      %v387 = vunpack.c.l.bf16 %v355
      %v388 = vunpack.c.l.bf16 %v356
      %v389 = vunpack.c.l.bf16 %v357
      %v390 = vunpack.c.l.bf16 %v358
      %v391 = vunpack.c.l.bf16 %v359
      %v392 = vunpack.c.l.bf16 %v360
      %v393 = vunpack.c.l.bf16 %v361
      %v394 = vunpack.c.l.bf16 %v362
      %v395 = vunpack.c.l.bf16 %v363
      %v396 = vunpack.c.l.bf16 %v364
      %v397 = vunpack.c.l.bf16 %v365
      %vm398 = vcmask 31744
      %399 = vst.msk [vmem:[#allocation2] sm:$0xff] %vm398, 0.0
      %400 = vst.msk [vmem:[#allocation2 + $0x8] sm:$0xff] %vm398, 0.0
      %401 = vst.msk [vmem:[#allocation2 + $0x10] sm:$0xff] %vm398, 0.0
      %402 = vst.msk [vmem:[#allocation2 + $0x18] sm:$0xff] %vm398, 0.0
      %403 = vst.msk [vmem:[#allocation2 + $0x20] sm:$0xff] %vm398, 0.0
      %404 = vst.msk [vmem:[#allocation2 + $0x28] sm:$0xff] %vm398, 0.0
      %405 = vst.msk [vmem:[#allocation2 + $0x30] sm:$0xff] %vm398, 0.0
      %406 = vst.msk [vmem:[#allocation2 + $0x38] sm:$0xff] %vm398, 0.0
      %407 = vst.msk [vmem:[#allocation2 + $0x40] sm:$0xff] %vm398, 0.0
      %408 = vst.msk [vmem:[#allocation2 + $0x48] sm:$0xff] %vm398, 0.0
      %409 = vst.msk [vmem:[#allocation2 + $0x50] sm:$0xff] %vm398, 0.0
      %410 = vst.msk [vmem:[#allocation2 + $0x58] sm:$0xff] %vm398, 0.0
      %411 = vst.msk [vmem:[#allocation2 + $0x60] sm:$0xff] %vm398, 0.0
      %412 = vst.msk [vmem:[#allocation2 + $0x68] sm:$0xff] %vm398, 0.0
      %413 = vst.msk [vmem:[#allocation2 + $0x70] sm:$0xff] %vm398, 0.0
      %414 = vst.msk [vmem:[#allocation2 + $0x78] sm:$0xff] %vm398, 0.0
      %415 = vst.msk [vmem:[#allocation2 + $0x80] sm:$0xff] %vm398, 0.0
      %416 = vst.msk [vmem:[#allocation2 + $0x88] sm:$0xff] %vm398, 0.0
      %417 = vst.msk [vmem:[#allocation2 + $0x90] sm:$0xff] %vm398, 0.0
      %418 = vst.msk [vmem:[#allocation2 + $0x98] sm:$0xff] %vm398, 0.0
      %419 = vst.msk [vmem:[#allocation2 + $0xa0] sm:$0xff] %vm398, 0.0
      %420 = vst.msk [vmem:[#allocation2 + $0xa8] sm:$0xff] %vm398, 0.0
      %421 = vst.msk [vmem:[#allocation2 + $0xb0] sm:$0xff] %vm398, 0.0
      %422 = vst.msk [vmem:[#allocation2 + $0xb8] sm:$0xff] %vm398, 0.0
      %423 = vst.msk [vmem:[#allocation2 + $0xc0] sm:$0xff] %vm398, 0.0
      %424 = vst.msk [vmem:[#allocation2 + $0xc8] sm:$0xff] %vm398, 0.0
      %425 = vst.msk [vmem:[#allocation2 + $0xd0] sm:$0xff] %vm398, 0.0
      %426 = vst.msk [vmem:[#allocation2 + $0xd8] sm:$0xff] %vm398, 0.0
      %427 = vst.msk [vmem:[#allocation2 + $0xe0] sm:$0xff] %vm398, 0.0
      %428 = vst.msk [vmem:[#allocation2 + $0xe8] sm:$0xff] %vm398, 0.0
      %429 = vst.msk [vmem:[#allocation2 + $0xf0] sm:$0xff] %vm398, 0.0
      %430 = vst.msk [vmem:[#allocation2 + $0xf8] sm:$0xff] %vm398, 0.0
      %431 = vst.msk [vmem:[#allocation2 + $0x100] sm:$0xff] %vm398, 0.0
      %432 = vst.msk [vmem:[#allocation2 + $0x108] sm:$0xff] %vm398, 0.0
      %433 = vst.msk [vmem:[#allocation2 + $0x110] sm:$0xff] %vm398, 0.0
      %434 = vst.msk [vmem:[#allocation2 + $0x118] sm:$0xff] %vm398, 0.0
      %435 = vst.msk [vmem:[#allocation2 + $0x120] sm:$0xff] %vm398, 0.0
      %436 = vst.msk [vmem:[#allocation2 + $0x128] sm:$0xff] %vm398, 0.0
      %437 = vst.msk [vmem:[#allocation2 + $0x130] sm:$0xff] %vm398, 0.0
      %438 = vst.msk [vmem:[#allocation2 + $0x138] sm:$0xff] %vm398, 0.0
      %439 = vst.msk [vmem:[#allocation2 + $0x140] sm:$0xff] %vm398, 0.0
      %440 = vst.msk [vmem:[#allocation2 + $0x148] sm:$0xff] %vm398, 0.0
      %441 = vst.msk [vmem:[#allocation2 + $0x150] sm:$0xff] %vm398, 0.0
      %442 = vst.msk [vmem:[#allocation2 + $0x158] sm:$0xff] %vm398, 0.0
      %443 = vst.msk [vmem:[#allocation2 + $0x160] sm:$0xff] %vm398, 0.0
      %444 = vst.msk [vmem:[#allocation2 + $0x168] sm:$0xff] %vm398, 0.0
      %445 = vst.msk [vmem:[#allocation2 + $0x170] sm:$0xff] %vm398, 0.0
      %446 = vst.msk [vmem:[#allocation2 + $0x178] sm:$0xff] %vm398, 0.0
      %447 = vst.msk [vmem:[#allocation2 + $0x180] sm:$0xff] %vm398, 0.0
      %448 = vst.msk [vmem:[#allocation2 + $0x188] sm:$0xff] %vm398, 0.0
      %449 = vst.msk [vmem:[#allocation2 + $0x190] sm:$0xff] %vm398, 0.0
      %450 = vst.msk [vmem:[#allocation2 + $0x198] sm:$0xff] %vm398, 0.0
      %451 = vst.msk [vmem:[#allocation2 + $0x1a0] sm:$0xff] %vm398, 0.0
      %452 = vst.msk [vmem:[#allocation2 + $0x1a8] sm:$0xff] %vm398, 0.0
      %453 = vst.msk [vmem:[#allocation2 + $0x1b0] sm:$0xff] %vm398, 0.0
      %454 = vst.msk [vmem:[#allocation2 + $0x1b8] sm:$0xff] %vm398, 0.0
      %455 = vst.msk [vmem:[#allocation2 + $0x1c0] sm:$0xff] %vm398, 0.0
      %456 = vst.msk [vmem:[#allocation2 + $0x1c8] sm:$0xff] %vm398, 0.0
      %457 = vst.msk [vmem:[#allocation2 + $0x1d0] sm:$0xff] %vm398, 0.0
      %458 = vst.msk [vmem:[#allocation2 + $0x1d8] sm:$0xff] %vm398, 0.0
      %459 = vst.msk [vmem:[#allocation2 + $0x1e0] sm:$0xff] %vm398, 0.0
      %460 = vst.msk [vmem:[#allocation2 + $0x1e8] sm:$0xff] %vm398, 0.0
      %461 = vst.msk [vmem:[#allocation2 + $0x1f0] sm:$0xff] %vm398, 0.0
      %462 = vst.msk [vmem:[#allocation2 + $0x1f8] sm:$0xff] %vm398, 0.0
      %463 = vst.msk [vmem:[#allocation2 + $0x200] sm:$0xff] %vm398, 0.0
      %464 = vst.msk [vmem:[#allocation2 + $0x208] sm:$0xff] %vm398, 0.0
      %465 = vst.msk [vmem:[#allocation2 + $0x210] sm:$0xff] %vm398, 0.0
      %466 = vst.msk [vmem:[#allocation2 + $0x218] sm:$0xff] %vm398, 0.0
      %467 = vst.msk [vmem:[#allocation2 + $0x220] sm:$0xff] %vm398, 0.0
      %468 = vst.msk [vmem:[#allocation2 + $0x228] sm:$0xff] %vm398, 0.0
      %469 = vst.msk [vmem:[#allocation2 + $0x230] sm:$0xff] %vm398, 0.0
      %470 = vst.msk [vmem:[#allocation2 + $0x238] sm:$0xff] %vm398, 0.0
      %s471 = scalar_lea.vmem [#allocation2], 32
      %472 = vst.msk [vmem:[%s471 + $0x8] sm:$0xff] %vm398, %v366
      %473 = vst.msk [vmem:[%s471 + $0x10] sm:$0xff] %vm398, %v367
      %474 = vst.msk [vmem:[%s471 + $0x28] sm:$0xff] %vm398, %v368
      %475 = vst.msk [vmem:[%s471 + $0x30] sm:$0xff] %vm398, %v369
      %476 = vst.msk [vmem:[%s471 + $0x48] sm:$0xff] %vm398, %v370
      %477 = vst.msk [vmem:[%s471 + $0x50] sm:$0xff] %vm398, %v371
      %478 = vst.msk [vmem:[%s471 + $0x68] sm:$0xff] %vm398, %v372
      %479 = vst.msk [vmem:[%s471 + $0x70] sm:$0xff] %vm398, %v373
      %480 = vst.msk [vmem:[%s471 + $0x88] sm:$0xff] %vm398, %v374
      %481 = vst.msk [vmem:[%s471 + $0x90] sm:$0xff] %vm398, %v375
      %482 = vst.msk [vmem:[%s471 + $0xa8] sm:$0xff] %vm398, %v376
      %483 = vst.msk [vmem:[%s471 + $0xb0] sm:$0xff] %vm398, %v377
      %484 = vst.msk [vmem:[%s471 + $0xc8] sm:$0xff] %vm398, %v378
      %485 = vst.msk [vmem:[%s471 + $0xd0] sm:$0xff] %vm398, %v379
      %486 = vst.msk [vmem:[%s471 + $0xe8] sm:$0xff] %vm398, %v380
      %487 = vst.msk [vmem:[%s471 + $0xf0] sm:$0xff] %vm398, %v381
      %488 = vst.msk [vmem:[%s471 + $0x108] sm:$0xff] %vm398, %v382
      %489 = vst.msk [vmem:[%s471 + $0x110] sm:$0xff] %vm398, %v383
      %490 = vst.msk [vmem:[%s471 + $0x128] sm:$0xff] %vm398, %v384
      %491 = vst.msk [vmem:[%s471 + $0x130] sm:$0xff] %vm398, %v385
      %492 = vst.msk [vmem:[%s471 + $0x148] sm:$0xff] %vm398, %v386
      %493 = vst.msk [vmem:[%s471 + $0x150] sm:$0xff] %vm398, %v387
      %494 = vst.msk [vmem:[%s471 + $0x168] sm:$0xff] %vm398, %v388
      %495 = vst.msk [vmem:[%s471 + $0x170] sm:$0xff] %vm398, %v389
      %496 = vst.msk [vmem:[%s471 + $0x188] sm:$0xff] %vm398, %v390
      %497 = vst.msk [vmem:[%s471 + $0x190] sm:$0xff] %vm398, %v391
      %498 = vst.msk [vmem:[%s471 + $0x1a8] sm:$0xff] %vm398, %v392
      %499 = vst.msk [vmem:[%s471 + $0x1b0] sm:$0xff] %vm398, %v393
      %500 = vst.msk [vmem:[%s471 + $0x1c8] sm:$0xff] %vm398, %v394
      %501 = vst.msk [vmem:[%s471 + $0x1d0] sm:$0xff] %vm398, %v395
      %502 = vst.msk [vmem:[%s471 + $0x1e8] sm:$0xff] %vm398, %v396
      %503 = vst.msk [vmem:[%s471 + $0x1f0] sm:$0xff] %vm398, %v397
      %v504 = vld [vmem:[#allocation2] sm:$0xff]
      %v505 = vld [vmem:[#allocation2 + $0x8] sm:$0xff]
      %v506 = vld [vmem:[#allocation2 + $0x10] sm:$0xff]
      %v507 = vld [vmem:[#allocation2 + $0x18] sm:$0xff]
      %v508 = vld [vmem:[#allocation2 + $0x20] sm:$0xff]
      %v509 = vld [vmem:[#allocation2 + $0x28] sm:$0xff]
      %v510 = vld [vmem:[#allocation2 + $0x30] sm:$0xff]
      %v511 = vld [vmem:[#allocation2 + $0x38] sm:$0xff]
      %v512 = vld [vmem:[#allocation2 + $0x40] sm:$0xff]
      %v513 = vld [vmem:[#allocation2 + $0x48] sm:$0xff]
      %v514 = vld [vmem:[#allocation2 + $0x50] sm:$0xff]
      %v515 = vld [vmem:[#allocation2 + $0x58] sm:$0xff]
      %v516 = vld [vmem:[#allocation2 + $0x60] sm:$0xff]
      %v517 = vld [vmem:[#allocation2 + $0x68] sm:$0xff]
      %v518 = vld [vmem:[#allocation2 + $0x70] sm:$0xff]
      %v519 = vld [vmem:[#allocation2 + $0x78] sm:$0xff]
      %v520 = vld [vmem:[#allocation2 + $0x80] sm:$0xff]
      %v521 = vld [vmem:[#allocation2 + $0x88] sm:$0xff]
      %v522 = vld [vmem:[#allocation2 + $0x90] sm:$0xff]
      %v523 = vld [vmem:[#allocation2 + $0x98] sm:$0xff]
      %v524 = vld [vmem:[#allocation2 + $0xa0] sm:$0xff]
      %v525 = vld [vmem:[#allocation2 + $0xa8] sm:$0xff]
      %v526 = vld [vmem:[#allocation2 + $0xb0] sm:$0xff]
      %v527 = vld [vmem:[#allocation2 + $0xb8] sm:$0xff]
      %v528 = vld [vmem:[#allocation2 + $0xc0] sm:$0xff]
      %v529 = vld [vmem:[#allocation2 + $0xc8] sm:$0xff]
      %v530 = vld [vmem:[#allocation2 + $0xd0] sm:$0xff]
      %v531 = vld [vmem:[#allocation2 + $0xd8] sm:$0xff]
      %v532 = vld [vmem:[#allocation2 + $0xe0] sm:$0xff]
      %v533 = vld [vmem:[#allocation2 + $0xe8] sm:$0xff]
      %v534 = vld [vmem:[#allocation2 + $0xf0] sm:$0xff]
      %v535 = vld [vmem:[#allocation2 + $0xf8] sm:$0xff]
      %v536 = vld [vmem:[#allocation2 + $0x100] sm:$0xff]
      %v537 = vld [vmem:[#allocation2 + $0x108] sm:$0xff]
      %v538 = vld [vmem:[#allocation2 + $0x110] sm:$0xff]
      %v539 = vld [vmem:[#allocation2 + $0x118] sm:$0xff]
      %v540 = vld [vmem:[#allocation2 + $0x120] sm:$0xff]
      %v541 = vld [vmem:[#allocation2 + $0x128] sm:$0xff]
      %v542 = vld [vmem:[#allocation2 + $0x130] sm:$0xff]
      %v543 = vld [vmem:[#allocation2 + $0x138] sm:$0xff]
      %v544 = vld [vmem:[#allocation2 + $0x140] sm:$0xff]
      %v545 = vld [vmem:[#allocation2 + $0x148] sm:$0xff]
      %v546 = vld [vmem:[#allocation2 + $0x150] sm:$0xff]
      %v547 = vld [vmem:[#allocation2 + $0x158] sm:$0xff]
      %v548 = vld [vmem:[#allocation2 + $0x160] sm:$0xff]
      %v549 = vld [vmem:[#allocation2 + $0x168] sm:$0xff]
      %v550 = vld [vmem:[#allocation2 + $0x170] sm:$0xff]
      %v551 = vld [vmem:[#allocation2 + $0x178] sm:$0xff]
      %v552 = vld [vmem:[#allocation2 + $0x180] sm:$0xff]
      %v553 = vld [vmem:[#allocation2 + $0x188] sm:$0xff]
      %v554 = vld [vmem:[#allocation2 + $0x190] sm:$0xff]
      %v555 = vld [vmem:[#allocation2 + $0x198] sm:$0xff]
      %v556 = vld [vmem:[#allocation2 + $0x1a0] sm:$0xff]
      %v557 = vld [vmem:[#allocation2 + $0x1a8] sm:$0xff]
      %v558 = vld [vmem:[#allocation2 + $0x1b0] sm:$0xff]
      %v559 = vld [vmem:[#allocation2 + $0x1b8] sm:$0xff]
      %v560 = vld [vmem:[#allocation2 + $0x1c0] sm:$0xff]
      %v561 = vld [vmem:[#allocation2 + $0x1c8] sm:$0xff]
      %v562 = vld [vmem:[#allocation2 + $0x1d0] sm:$0xff]
      %v563 = vld [vmem:[#allocation2 + $0x1d8] sm:$0xff]
      %v564 = vld [vmem:[#allocation2 + $0x1e0] sm:$0xff]
      %v565 = vld [vmem:[#allocation2 + $0x1e8] sm:$0xff]
      %v566 = vld [vmem:[#allocation2 + $0x1f0] sm:$0xff]
      %v567 = vld [vmem:[#allocation2 + $0x1f8] sm:$0xff]
      %v568 = vld [vmem:[#allocation2 + $0x200] sm:$0xff]
      %v569 = vld [vmem:[#allocation2 + $0x208] sm:$0xff]
      %v570 = vld [vmem:[#allocation2 + $0x210] sm:$0xff]
      %v571 = vld [vmem:[#allocation2 + $0x218] sm:$0xff]
      %v572 = vld [vmem:[#allocation2 + $0x220] sm:$0xff]
      %v573 = vld [vmem:[#allocation2 + $0x228] sm:$0xff]
      %v574 = vld [vmem:[#allocation2 + $0x230] sm:$0xff]
      %v575 = vld [vmem:[#allocation2 + $0x238] sm:$0xff]
      %vm624 = vcmask 1040384
      %v625 = vrot.slane %v504, 7
      %v626 = vrot.slane %v505, 7
      %v627 = vsel %vm624, %v625, %v626
      %v628 = vrot.slane %v506, 7
      %v629 = vsel %vm624, %v626, %v628
      %v630 = vrot.slane %v508, 7
      %v631 = vrot.slane %v509, 7
      %v632 = vsel %vm624, %v630, %v631
      %v633 = vrot.slane %v510, 7
      %v634 = vsel %vm624, %v631, %v633
      %v635 = vrot.slane %v512, 7
      %v636 = vrot.slane %v513, 7
      %v637 = vsel %vm624, %v635, %v636
      %v638 = vrot.slane %v514, 7
      %v639 = vsel %vm624, %v636, %v638
      %v640 = vrot.slane %v516, 7
      %v641 = vrot.slane %v517, 7
      %v642 = vsel %vm624, %v640, %v641
      %v643 = vrot.slane %v518, 7
      %v644 = vsel %vm624, %v641, %v643
      %v645 = vrot.slane %v520, 7
      %v646 = vrot.slane %v521, 7
      %v647 = vsel %vm624, %v645, %v646
      %v648 = vrot.slane %v522, 7
      %v649 = vsel %vm624, %v646, %v648
      %v650 = vrot.slane %v524, 7
      %v651 = vrot.slane %v525, 7
      %v652 = vsel %vm624, %v650, %v651
      %v653 = vrot.slane %v526, 7
      %v654 = vsel %vm624, %v651, %v653
      %v655 = vrot.slane %v528, 7
      %v656 = vrot.slane %v529, 7
      %v657 = vsel %vm624, %v655, %v656
      %v658 = vrot.slane %v530, 7
      %v659 = vsel %vm624, %v656, %v658
      %v660 = vrot.slane %v532, 7
      %v661 = vrot.slane %v533, 7
      %v662 = vsel %vm624, %v660, %v661
      %v663 = vrot.slane %v534, 7
      %v664 = vsel %vm624, %v661, %v663
      %v665 = vrot.slane %v536, 7
      %v666 = vrot.slane %v537, 7
      %v667 = vsel %vm624, %v665, %v666
      %v668 = vrot.slane %v538, 7
      %v669 = vsel %vm624, %v666, %v668
      %v670 = vrot.slane %v540, 7
      %v671 = vrot.slane %v541, 7
      %v672 = vsel %vm624, %v670, %v671
      %v673 = vrot.slane %v542, 7
      %v674 = vsel %vm624, %v671, %v673
      %v675 = vrot.slane %v544, 7
      %v676 = vrot.slane %v545, 7
      %v677 = vsel %vm624, %v675, %v676
      %v678 = vrot.slane %v546, 7
      %v679 = vsel %vm624, %v676, %v678
      %v680 = vrot.slane %v548, 7
      %v681 = vrot.slane %v549, 7
      %v682 = vsel %vm624, %v680, %v681
      %v683 = vrot.slane %v550, 7
      %v684 = vsel %vm624, %v681, %v683
      %v685 = vrot.slane %v552, 7
      %v686 = vrot.slane %v553, 7
      %v687 = vsel %vm624, %v685, %v686
      %v688 = vrot.slane %v554, 7
      %v689 = vsel %vm624, %v686, %v688
      %v690 = vrot.slane %v556, 7
      %v691 = vrot.slane %v557, 7
      %v692 = vsel %vm624, %v690, %v691
      %v693 = vrot.slane %v558, 7
      %v694 = vsel %vm624, %v691, %v693
      %v695 = vrot.slane %v560, 7
      %v696 = vrot.slane %v561, 7
      %v697 = vsel %vm624, %v695, %v696
      %v698 = vrot.slane %v562, 7
      %v699 = vsel %vm624, %v696, %v698
      %v700 = vrot.slane %v564, 7
      %v701 = vrot.slane %v565, 7
      %v702 = vsel %vm624, %v700, %v701
      %v703 = vrot.slane %v566, 7
      %v704 = vsel %vm624, %v701, %v703
      %v737 = vpack.c.bf16 %v629, %v627
      %v738 = vpack.c.bf16 %v634, %v632
      %v739 = vpack.c.bf16 %v639, %v637
      %v740 = vpack.c.bf16 %v644, %v642
      %v741 = vpack.c.bf16 %v649, %v647
      %v742 = vpack.c.bf16 %v654, %v652
      %v743 = vpack.c.bf16 %v659, %v657
      %v744 = vpack.c.bf16 %v664, %v662
      %v745 = vpack.c.bf16 %v669, %v667
      %v746 = vpack.c.bf16 %v674, %v672
      %v747 = vpack.c.bf16 %v679, %v677
      %v748 = vpack.c.bf16 %v684, %v682
      %v749 = vpack.c.bf16 %v689, %v687
      %v750 = vpack.c.bf16 %v694, %v692
      %v751 = vpack.c.bf16 %v699, %v697
      %v752 = vpack.c.bf16 %v704, %v702
      %753 = vst.msk [vmem:[#allocation4] sm:$0xff] %vm398, %v737
      %754 = vst.msk [vmem:[#allocation4 + $0x8] sm:$0xff] %vm398, %v738
      %755 = vst.msk [vmem:[#allocation4 + $0x10] sm:$0xff] %vm398, %v739
      %756 = vst.msk [vmem:[#allocation4 + $0x18] sm:$0xff] %vm398, %v740
      %757 = vst.msk [vmem:[#allocation4 + $0x20] sm:$0xff] %vm398, %v741
      %758 = vst.msk [vmem:[#allocation4 + $0x28] sm:$0xff] %vm398, %v742
      %759 = vst.msk [vmem:[#allocation4 + $0x30] sm:$0xff] %vm398, %v743
      %760 = vst.msk [vmem:[#allocation4 + $0x38] sm:$0xff] %vm398, %v744
      %761 = vst.msk [vmem:[#allocation4 + $0x40] sm:$0xff] %vm398, %v745
      %762 = vst.msk [vmem:[#allocation4 + $0x48] sm:$0xff] %vm398, %v746
      %763 = vst.msk [vmem:[#allocation4 + $0x50] sm:$0xff] %vm398, %v747
      %764 = vst.msk [vmem:[#allocation4 + $0x58] sm:$0xff] %vm398, %v748
      %765 = vst.msk [vmem:[#allocation4 + $0x60] sm:$0xff] %vm398, %v749
      %766 = vst.msk [vmem:[#allocation4 + $0x68] sm:$0xff] %vm398, %v750
      %767 = vst.msk [vmem:[#allocation4 + $0x70] sm:$0xff] %vm398, %v751
      %768 = vst.msk [vmem:[#allocation4 + $0x78] sm:$0xff] %vm398, %v752
      %v769 = vpack.c.bf16 %v506, %v505
      %v770 = vpack.c.bf16 %v510, %v509
      %v771 = vpack.c.bf16 %v514, %v513
      %v772 = vpack.c.bf16 %v518, %v517
      %v773 = vpack.c.bf16 %v522, %v521
      %v774 = vpack.c.bf16 %v526, %v525
      %v775 = vpack.c.bf16 %v530, %v529
      %v776 = vpack.c.bf16 %v534, %v533
      %v777 = vpack.c.bf16 %v538, %v537
      %v778 = vpack.c.bf16 %v542, %v541
      %v779 = vpack.c.bf16 %v546, %v545
      %v780 = vpack.c.bf16 %v550, %v549
      %v781 = vpack.c.bf16 %v554, %v553
      %v782 = vpack.c.bf16 %v558, %v557
      %v783 = vpack.c.bf16 %v562, %v561
      %v784 = vpack.c.bf16 %v566, %v565
      %801 = vrot.lane.b32.xlu0 %v769, 4
      %v802 = vpop.permute.xlu0 %801
      %803 = vrot.lane.b32.xlu0 %v770, 4
      %v804 = vpop.permute.xlu0 %803
      %805 = vrot.lane.b32.xlu0 %v771, 4
      %v806 = vpop.permute.xlu0 %805
      %807 = vrot.lane.b32.xlu0 %v772, 4
      %v808 = vpop.permute.xlu0 %807
      %809 = vrot.lane.b32.xlu0 %v773, 4
      %v810 = vpop.permute.xlu0 %809
      %811 = vrot.lane.b32.xlu0 %v774, 4
      %v812 = vpop.permute.xlu0 %811
      %813 = vrot.lane.b32.xlu0 %v775, 4
      %v814 = vpop.permute.xlu0 %813
      %815 = vrot.lane.b32.xlu0 %v776, 4
      %v816 = vpop.permute.xlu0 %815
      %817 = vrot.lane.b32.xlu0 %v777, 4
      %v818 = vpop.permute.xlu0 %817
      %819 = vrot.lane.b32.xlu0 %v778, 4
      %v820 = vpop.permute.xlu0 %819
      %821 = vrot.lane.b32.xlu0 %v779, 4
      %v822 = vpop.permute.xlu0 %821
      %823 = vrot.lane.b32.xlu0 %v780, 4
      %v824 = vpop.permute.xlu0 %823
      %825 = vrot.lane.b32.xlu0 %v781, 4
      %v826 = vpop.permute.xlu0 %825
      %827 = vrot.lane.b32.xlu0 %v782, 4
      %v828 = vpop.permute.xlu0 %827
      %829 = vrot.lane.b32.xlu0 %v783, 4
      %v830 = vpop.permute.xlu0 %829
      %831 = vrot.lane.b32.xlu0 %v784, 4
      %v832 = vpop.permute.xlu0 %831
      %vm849 = vcmask 64544
      %850 = vst.msk [vmem:[#allocation4] sm:$0xff] %vm849, %v802
      %851 = vst.msk [vmem:[#allocation4 + $0x8] sm:$0xff] %vm849, %v804
      %852 = vst.msk [vmem:[#allocation4 + $0x10] sm:$0xff] %vm849, %v806
      %853 = vst.msk [vmem:[#allocation4 + $0x18] sm:$0xff] %vm849, %v808
      %854 = vst.msk [vmem:[#allocation4 + $0x20] sm:$0xff] %vm849, %v810
      %855 = vst.msk [vmem:[#allocation4 + $0x28] sm:$0xff] %vm849, %v812
      %856 = vst.msk [vmem:[#allocation4 + $0x30] sm:$0xff] %vm849, %v814
      %857 = vst.msk [vmem:[#allocation4 + $0x38] sm:$0xff] %vm849, %v816
      %858 = vst.msk [vmem:[#allocation4 + $0x40] sm:$0xff] %vm849, %v818
      %859 = vst.msk [vmem:[#allocation4 + $0x48] sm:$0xff] %vm849, %v820
      %860 = vst.msk [vmem:[#allocation4 + $0x50] sm:$0xff] %vm849, %v822
      %861 = vst.msk [vmem:[#allocation4 + $0x58] sm:$0xff] %vm849, %v824
      %862 = vst.msk [vmem:[#allocation4 + $0x60] sm:$0xff] %vm849, %v826
      %863 = vst.msk [vmem:[#allocation4 + $0x68] sm:$0xff] %vm849, %v828
      %864 = vst.msk [vmem:[#allocation4 + $0x70] sm:$0xff] %vm849, %v830
      %865 = vst.msk [vmem:[#allocation4 + $0x78] sm:$0xff] %vm849, %v832
      %vm882 = vcmask 1046528
      %v883 = vrot.slane %v505, 1
      %v884 = vrot.slane %v506, 1
      %v885 = vsel %vm882, %v883, %v884
      %v886 = vrot.slane %v507, 1
      %v887 = vsel %vm882, %v884, %v886
      %v888 = vrot.slane %v509, 1
      %v889 = vrot.slane %v510, 1
      %v890 = vsel %vm882, %v888, %v889
      %v891 = vrot.slane %v511, 1
      %v892 = vsel %vm882, %v889, %v891
      %v893 = vrot.slane %v513, 1
      %v894 = vrot.slane %v514, 1
      %v895 = vsel %vm882, %v893, %v894
      %v896 = vrot.slane %v515, 1
      %v897 = vsel %vm882, %v894, %v896
      %v898 = vrot.slane %v517, 1
      %v899 = vrot.slane %v518, 1
      %v900 = vsel %vm882, %v898, %v899
      %v901 = vrot.slane %v519, 1
      %v902 = vsel %vm882, %v899, %v901
      %v903 = vrot.slane %v521, 1
      %v904 = vrot.slane %v522, 1
      %v905 = vsel %vm882, %v903, %v904
      %v906 = vrot.slane %v523, 1
      %v907 = vsel %vm882, %v904, %v906
      %v908 = vrot.slane %v525, 1
      %v909 = vrot.slane %v526, 1
      %v910 = vsel %vm882, %v908, %v909
      %v911 = vrot.slane %v527, 1
      %v912 = vsel %vm882, %v909, %v911
      %v913 = vrot.slane %v529, 1
      %v914 = vrot.slane %v530, 1
      %v915 = vsel %vm882, %v913, %v914
      %v916 = vrot.slane %v531, 1
      %v917 = vsel %vm882, %v914, %v916
      %v918 = vrot.slane %v533, 1
      %v919 = vrot.slane %v534, 1
      %v920 = vsel %vm882, %v918, %v919
      %v921 = vrot.slane %v535, 1
      %v922 = vsel %vm882, %v919, %v921
      %v923 = vrot.slane %v537, 1
      %v924 = vrot.slane %v538, 1
      %v925 = vsel %vm882, %v923, %v924
      %v926 = vrot.slane %v539, 1
      %v927 = vsel %vm882, %v924, %v926
      %v928 = vrot.slane %v541, 1
      %v929 = vrot.slane %v542, 1
      %v930 = vsel %vm882, %v928, %v929
      %v931 = vrot.slane %v543, 1
      %v932 = vsel %vm882, %v929, %v931
      %v933 = vrot.slane %v545, 1
      %v934 = vrot.slane %v546, 1
      %v935 = vsel %vm882, %v933, %v934
      %v936 = vrot.slane %v547, 1
      %v937 = vsel %vm882, %v934, %v936
      %v938 = vrot.slane %v549, 1
      %v939 = vrot.slane %v550, 1
      %v940 = vsel %vm882, %v938, %v939
      %v941 = vrot.slane %v551, 1
      %v942 = vsel %vm882, %v939, %v941
      %v943 = vrot.slane %v553, 1
      %v944 = vrot.slane %v554, 1
      %v945 = vsel %vm882, %v943, %v944
      %v946 = vrot.slane %v555, 1
      %v947 = vsel %vm882, %v944, %v946
      %v948 = vrot.slane %v557, 1
      %v949 = vrot.slane %v558, 1
      %v950 = vsel %vm882, %v948, %v949
      %v951 = vrot.slane %v559, 1
      %v952 = vsel %vm882, %v949, %v951
      %v953 = vrot.slane %v561, 1
      %v954 = vrot.slane %v562, 1
      %v955 = vsel %vm882, %v953, %v954
      %v956 = vrot.slane %v563, 1
      %v957 = vsel %vm882, %v954, %v956
      %v958 = vrot.slane %v565, 1
      %v959 = vrot.slane %v566, 1
      %v960 = vsel %vm882, %v958, %v959
      %v961 = vrot.slane %v567, 1
      %v962 = vsel %vm882, %v959, %v961
      %v995 = vpack.c.bf16 %v887, %v885
      %v996 = vpack.c.bf16 %v892, %v890
      %v997 = vpack.c.bf16 %v897, %v895
      %v998 = vpack.c.bf16 %v902, %v900
      %v999 = vpack.c.bf16 %v907, %v905
      %v1000 = vpack.c.bf16 %v912, %v910
      %v1001 = vpack.c.bf16 %v917, %v915
      %v1002 = vpack.c.bf16 %v922, %v920
      %v1003 = vpack.c.bf16 %v927, %v925
      %v1004 = vpack.c.bf16 %v932, %v930
      %v1005 = vpack.c.bf16 %v937, %v935
      %v1006 = vpack.c.bf16 %v942, %v940
      %v1007 = vpack.c.bf16 %v947, %v945
      %v1008 = vpack.c.bf16 %v952, %v950
      %v1009 = vpack.c.bf16 %v957, %v955
      %v1010 = vpack.c.bf16 %v962, %v960
      %1027 = vrot.lane.b32.xlu0 %v995, 8
      %v1028 = vpop.permute.xlu0 %1027
      %1029 = vrot.lane.b32.xlu0 %v996, 8
      %v1030 = vpop.permute.xlu0 %1029
      %1031 = vrot.lane.b32.xlu0 %v997, 8
      %v1032 = vpop.permute.xlu0 %1031
      %1033 = vrot.lane.b32.xlu0 %v998, 8
      %v1034 = vpop.permute.xlu0 %1033
      %1035 = vrot.lane.b32.xlu0 %v999, 8
      %v1036 = vpop.permute.xlu0 %1035
      %1037 = vrot.lane.b32.xlu0 %v1000, 8
      %v1038 = vpop.permute.xlu0 %1037
      %1039 = vrot.lane.b32.xlu0 %v1001, 8
      %v1040 = vpop.permute.xlu0 %1039
      %1041 = vrot.lane.b32.xlu0 %v1002, 8
      %v1042 = vpop.permute.xlu0 %1041
      %1043 = vrot.lane.b32.xlu0 %v1003, 8
      %v1044 = vpop.permute.xlu0 %1043
      %1045 = vrot.lane.b32.xlu0 %v1004, 8
      %v1046 = vpop.permute.xlu0 %1045
      %1047 = vrot.lane.b32.xlu0 %v1005, 8
      %v1048 = vpop.permute.xlu0 %1047
      %1049 = vrot.lane.b32.xlu0 %v1006, 8
      %v1050 = vpop.permute.xlu0 %1049
      %1051 = vrot.lane.b32.xlu0 %v1007, 8
      %v1052 = vpop.permute.xlu0 %1051
      %1053 = vrot.lane.b32.xlu0 %v1008, 8
      %v1054 = vpop.permute.xlu0 %1053
      %1055 = vrot.lane.b32.xlu0 %v1009, 8
      %v1056 = vpop.permute.xlu0 %1055
      %1057 = vrot.lane.b32.xlu0 %v1010, 8
      %v1058 = vpop.permute.xlu0 %1057
      %vm1075 = vcmask 97344
      %1076 = vst.msk [vmem:[#allocation4] sm:$0xff] %vm1075, %v1028
      %1077 = vst.msk [vmem:[#allocation4 + $0x8] sm:$0xff] %vm1075, %v1030
      %1078 = vst.msk [vmem:[#allocation4 + $0x10] sm:$0xff] %vm1075, %v1032
      %1079 = vst.msk [vmem:[#allocation4 + $0x18] sm:$0xff] %vm1075, %v1034
      %1080 = vst.msk [vmem:[#allocation4 + $0x20] sm:$0xff] %vm1075, %v1036
      %1081 = vst.msk [vmem:[#allocation4 + $0x28] sm:$0xff] %vm1075, %v1038
      %1082 = vst.msk [vmem:[#allocation4 + $0x30] sm:$0xff] %vm1075, %v1040
      %1083 = vst.msk [vmem:[#allocation4 + $0x38] sm:$0xff] %vm1075, %v1042
      %1084 = vst.msk [vmem:[#allocation4 + $0x40] sm:$0xff] %vm1075, %v1044
      %1085 = vst.msk [vmem:[#allocation4 + $0x48] sm:$0xff] %vm1075, %v1046
      %1086 = vst.msk [vmem:[#allocation4 + $0x50] sm:$0xff] %vm1075, %v1048
      %1087 = vst.msk [vmem:[#allocation4 + $0x58] sm:$0xff] %vm1075, %v1050
      %1088 = vst.msk [vmem:[#allocation4 + $0x60] sm:$0xff] %vm1075, %v1052
      %1089 = vst.msk [vmem:[#allocation4 + $0x68] sm:$0xff] %vm1075, %v1054
      %1090 = vst.msk [vmem:[#allocation4 + $0x70] sm:$0xff] %vm1075, %v1056
      %1091 = vst.msk [vmem:[#allocation4 + $0x78] sm:$0xff] %vm1075, %v1058
      %v1095 = vrot.slane %v568, 7
      %v1096 = vrot.slane %v569, 7
      %v1097 = vsel %vm624, %v1095, %v1096
      %v1098 = vrot.slane %v570, 7
      %v1099 = vsel %vm624, %v1096, %v1098
      %v1102 = vpack.c.bf16 %v1099, %v1097
      %1119 = vrot.lane.b32.xlu0 %v738, 12
      %v1120 = vpop.permute.xlu0 %1119
      %1121 = vrot.lane.b32.xlu0 %v739, 12
      %v1122 = vpop.permute.xlu0 %1121
      %1123 = vrot.lane.b32.xlu0 %v740, 12
      %v1124 = vpop.permute.xlu0 %1123
      %1125 = vrot.lane.b32.xlu0 %v741, 12
      %v1126 = vpop.permute.xlu0 %1125
      %1127 = vrot.lane.b32.xlu0 %v742, 12
      %v1128 = vpop.permute.xlu0 %1127
      %1129 = vrot.lane.b32.xlu0 %v743, 12
      %v1130 = vpop.permute.xlu0 %1129
      %1131 = vrot.lane.b32.xlu0 %v744, 12
      %v1132 = vpop.permute.xlu0 %1131
      %1133 = vrot.lane.b32.xlu0 %v745, 12
      %v1134 = vpop.permute.xlu0 %1133
      %1135 = vrot.lane.b32.xlu0 %v746, 12
      %v1136 = vpop.permute.xlu0 %1135
      %1137 = vrot.lane.b32.xlu0 %v747, 12
      %v1138 = vpop.permute.xlu0 %1137
      %1139 = vrot.lane.b32.xlu0 %v748, 12
      %v1140 = vpop.permute.xlu0 %1139
      %1141 = vrot.lane.b32.xlu0 %v749, 12
      %v1142 = vpop.permute.xlu0 %1141
      %1143 = vrot.lane.b32.xlu0 %v750, 12
      %v1144 = vpop.permute.xlu0 %1143
      %1145 = vrot.lane.b32.xlu0 %v751, 12
      %v1146 = vpop.permute.xlu0 %1145
      %1147 = vrot.lane.b32.xlu0 %v752, 12
      %v1148 = vpop.permute.xlu0 %1147
      %1149 = vrot.lane.b32.xlu0 %v1102, 12
      %v1150 = vpop.permute.xlu0 %1149
      %vm1167 = vcmask 130144
      %1168 = vst.msk [vmem:[#allocation4] sm:$0xff] %vm1167, %v1120
      %1169 = vst.msk [vmem:[#allocation4 + $0x8] sm:$0xff] %vm1167, %v1122
      %1170 = vst.msk [vmem:[#allocation4 + $0x10] sm:$0xff] %vm1167, %v1124
      %1171 = vst.msk [vmem:[#allocation4 + $0x18] sm:$0xff] %vm1167, %v1126
      %1172 = vst.msk [vmem:[#allocation4 + $0x20] sm:$0xff] %vm1167, %v1128
      %1173 = vst.msk [vmem:[#allocation4 + $0x28] sm:$0xff] %vm1167, %v1130
      %1174 = vst.msk [vmem:[#allocation4 + $0x30] sm:$0xff] %vm1167, %v1132
      %1175 = vst.msk [vmem:[#allocation4 + $0x38] sm:$0xff] %vm1167, %v1134
      %1176 = vst.msk [vmem:[#allocation4 + $0x40] sm:$0xff] %vm1167, %v1136
      %1177 = vst.msk [vmem:[#allocation4 + $0x48] sm:$0xff] %vm1167, %v1138
      %1178 = vst.msk [vmem:[#allocation4 + $0x50] sm:$0xff] %vm1167, %v1140
      %1179 = vst.msk [vmem:[#allocation4 + $0x58] sm:$0xff] %vm1167, %v1142
      %1180 = vst.msk [vmem:[#allocation4 + $0x60] sm:$0xff] %vm1167, %v1144
      %1181 = vst.msk [vmem:[#allocation4 + $0x68] sm:$0xff] %vm1167, %v1146
      %1182 = vst.msk [vmem:[#allocation4 + $0x70] sm:$0xff] %vm1167, %v1148
      %1183 = vst.msk [vmem:[#allocation4 + $0x78] sm:$0xff] %vm1167, %v1150
      %v1184 = vpack.c.bf16 %v570, %v569
      %1186 = vrot.lane.b32.xlu0 %v770, 16
      %v1187 = vpop.permute.xlu0 %1186
      %1188 = vrot.lane.b32.xlu0 %v771, 16
      %v1189 = vpop.permute.xlu0 %1188
      %1190 = vrot.lane.b32.xlu0 %v772, 16
      %v1191 = vpop.permute.xlu0 %1190
      %1192 = vrot.lane.b32.xlu0 %v773, 16
      %v1193 = vpop.permute.xlu0 %1192
      %1194 = vrot.lane.b32.xlu0 %v774, 16
      %v1195 = vpop.permute.xlu0 %1194
      %1196 = vrot.lane.b32.xlu0 %v775, 16
      %v1197 = vpop.permute.xlu0 %1196
      %1198 = vrot.lane.b32.xlu0 %v776, 16
      %v1199 = vpop.permute.xlu0 %1198
      %1200 = vrot.lane.b32.xlu0 %v777, 16
      %v1201 = vpop.permute.xlu0 %1200
      %1202 = vrot.lane.b32.xlu0 %v778, 16
      %v1203 = vpop.permute.xlu0 %1202
      %1204 = vrot.lane.b32.xlu0 %v779, 16
      %v1205 = vpop.permute.xlu0 %1204
      %1206 = vrot.lane.b32.xlu0 %v780, 16
      %v1207 = vpop.permute.xlu0 %1206
      %1208 = vrot.lane.b32.xlu0 %v781, 16
      %v1209 = vpop.permute.xlu0 %1208
      %1210 = vrot.lane.b32.xlu0 %v782, 16
      %v1211 = vpop.permute.xlu0 %1210
      %1212 = vrot.lane.b32.xlu0 %v783, 16
      %v1213 = vpop.permute.xlu0 %1212
      %1214 = vrot.lane.b32.xlu0 %v784, 16
      %v1215 = vpop.permute.xlu0 %1214
      %1216 = vrot.lane.b32.xlu0 %v1184, 16
      %v1217 = vpop.permute.xlu0 %1216
      %vm1234 = vcmask 162944
      %1235 = vst.msk [vmem:[#allocation4] sm:$0xff] %vm1234, %v1187
      %1236 = vst.msk [vmem:[#allocation4 + $0x8] sm:$0xff] %vm1234, %v1189
      %1237 = vst.msk [vmem:[#allocation4 + $0x10] sm:$0xff] %vm1234, %v1191
      %1238 = vst.msk [vmem:[#allocation4 + $0x18] sm:$0xff] %vm1234, %v1193
      %1239 = vst.msk [vmem:[#allocation4 + $0x20] sm:$0xff] %vm1234, %v1195
      %1240 = vst.msk [vmem:[#allocation4 + $0x28] sm:$0xff] %vm1234, %v1197
      %1241 = vst.msk [vmem:[#allocation4 + $0x30] sm:$0xff] %vm1234, %v1199
      %1242 = vst.msk [vmem:[#allocation4 + $0x38] sm:$0xff] %vm1234, %v1201
      %1243 = vst.msk [vmem:[#allocation4 + $0x40] sm:$0xff] %vm1234, %v1203
      %1244 = vst.msk [vmem:[#allocation4 + $0x48] sm:$0xff] %vm1234, %v1205
      %1245 = vst.msk [vmem:[#allocation4 + $0x50] sm:$0xff] %vm1234, %v1207
      %1246 = vst.msk [vmem:[#allocation4 + $0x58] sm:$0xff] %vm1234, %v1209
      %1247 = vst.msk [vmem:[#allocation4 + $0x60] sm:$0xff] %vm1234, %v1211
      %1248 = vst.msk [vmem:[#allocation4 + $0x68] sm:$0xff] %vm1234, %v1213
      %1249 = vst.msk [vmem:[#allocation4 + $0x70] sm:$0xff] %vm1234, %v1215
      %1250 = vst.msk [vmem:[#allocation4 + $0x78] sm:$0xff] %vm1234, %v1217
      %v1252 = vrot.slane %v569, 1
      %v1253 = vrot.slane %v570, 1
      %v1254 = vsel %vm882, %v1252, %v1253
      %v1255 = vrot.slane %v571, 1
      %v1256 = vsel %vm882, %v1253, %v1255
      %v1259 = vpack.c.bf16 %v1256, %v1254
      %1261 = vrot.lane.b32.xlu0 %v996, 20
      %v1262 = vpop.permute.xlu0 %1261
      %1263 = vrot.lane.b32.xlu0 %v997, 20
      %v1264 = vpop.permute.xlu0 %1263
      %1265 = vrot.lane.b32.xlu0 %v998, 20
      %v1266 = vpop.permute.xlu0 %1265
      %1267 = vrot.lane.b32.xlu0 %v999, 20
      %v1268 = vpop.permute.xlu0 %1267
      %1269 = vrot.lane.b32.xlu0 %v1000, 20
      %v1270 = vpop.permute.xlu0 %1269
      %1271 = vrot.lane.b32.xlu0 %v1001, 20
      %v1272 = vpop.permute.xlu0 %1271
      %1273 = vrot.lane.b32.xlu0 %v1002, 20
      %v1274 = vpop.permute.xlu0 %1273
      %1275 = vrot.lane.b32.xlu0 %v1003, 20
      %v1276 = vpop.permute.xlu0 %1275
      %1277 = vrot.lane.b32.xlu0 %v1004, 20
      %v1278 = vpop.permute.xlu0 %1277
      %1279 = vrot.lane.b32.xlu0 %v1005, 20
      %v1280 = vpop.permute.xlu0 %1279
      %1281 = vrot.lane.b32.xlu0 %v1006, 20
      %v1282 = vpop.permute.xlu0 %1281
      %1283 = vrot.lane.b32.xlu0 %v1007, 20
      %v1284 = vpop.permute.xlu0 %1283
      %1285 = vrot.lane.b32.xlu0 %v1008, 20
      %v1286 = vpop.permute.xlu0 %1285
      %1287 = vrot.lane.b32.xlu0 %v1009, 20
      %v1288 = vpop.permute.xlu0 %1287
      %1289 = vrot.lane.b32.xlu0 %v1010, 20
      %v1290 = vpop.permute.xlu0 %1289
      %1291 = vrot.lane.b32.xlu0 %v1259, 20
      %v1292 = vpop.permute.xlu0 %1291
      %vm1309 = vcmask 195744
      %1310 = vst.msk [vmem:[#allocation4] sm:$0xff] %vm1309, %v1262
      %1311 = vst.msk [vmem:[#allocation4 + $0x8] sm:$0xff] %vm1309, %v1264
      %1312 = vst.msk [vmem:[#allocation4 + $0x10] sm:$0xff] %vm1309, %v1266
      %1313 = vst.msk [vmem:[#allocation4 + $0x18] sm:$0xff] %vm1309, %v1268
      %1314 = vst.msk [vmem:[#allocation4 + $0x20] sm:$0xff] %vm1309, %v1270
      %1315 = vst.msk [vmem:[#allocation4 + $0x28] sm:$0xff] %vm1309, %v1272
      %1316 = vst.msk [vmem:[#allocation4 + $0x30] sm:$0xff] %vm1309, %v1274
      %1317 = vst.msk [vmem:[#allocation4 + $0x38] sm:$0xff] %vm1309, %v1276
      %1318 = vst.msk [vmem:[#allocation4 + $0x40] sm:$0xff] %vm1309, %v1278
      %1319 = vst.msk [vmem:[#allocation4 + $0x48] sm:$0xff] %vm1309, %v1280
      %1320 = vst.msk [vmem:[#allocation4 + $0x50] sm:$0xff] %vm1309, %v1282
      %1321 = vst.msk [vmem:[#allocation4 + $0x58] sm:$0xff] %vm1309, %v1284
      %1322 = vst.msk [vmem:[#allocation4 + $0x60] sm:$0xff] %vm1309, %v1286
      %1323 = vst.msk [vmem:[#allocation4 + $0x68] sm:$0xff] %vm1309, %v1288
      %1324 = vst.msk [vmem:[#allocation4 + $0x70] sm:$0xff] %vm1309, %v1290
      %1325 = vst.msk [vmem:[#allocation4 + $0x78] sm:$0xff] %vm1309, %v1292
      %v1329 = vrot.slane %v572, 7
      %v1330 = vrot.slane %v573, 7
      %v1331 = vsel %vm624, %v1329, %v1330
      %v1332 = vrot.slane %v574, 7
      %v1333 = vsel %vm624, %v1330, %v1332
      %v1336 = vpack.c.bf16 %v1333, %v1331
      %1338 = vrot.lane.b32.xlu0 %v739, 24
      %v1339 = vpop.permute.xlu0 %1338
      %1340 = vrot.lane.b32.xlu0 %v740, 24
      %v1341 = vpop.permute.xlu0 %1340
      %1342 = vrot.lane.b32.xlu0 %v741, 24
      %v1343 = vpop.permute.xlu0 %1342
      %1344 = vrot.lane.b32.xlu0 %v742, 24
      %v1345 = vpop.permute.xlu0 %1344
      %1346 = vrot.lane.b32.xlu0 %v743, 24
      %v1347 = vpop.permute.xlu0 %1346
      %1348 = vrot.lane.b32.xlu0 %v744, 24
      %v1349 = vpop.permute.xlu0 %1348
      %1350 = vrot.lane.b32.xlu0 %v745, 24
      %v1351 = vpop.permute.xlu0 %1350
      %1352 = vrot.lane.b32.xlu0 %v746, 24
      %v1353 = vpop.permute.xlu0 %1352
      %1354 = vrot.lane.b32.xlu0 %v747, 24
      %v1355 = vpop.permute.xlu0 %1354
      %1356 = vrot.lane.b32.xlu0 %v748, 24
      %v1357 = vpop.permute.xlu0 %1356
      %1358 = vrot.lane.b32.xlu0 %v749, 24
      %v1359 = vpop.permute.xlu0 %1358
      %1360 = vrot.lane.b32.xlu0 %v750, 24
      %v1361 = vpop.permute.xlu0 %1360
      %1362 = vrot.lane.b32.xlu0 %v751, 24
      %v1363 = vpop.permute.xlu0 %1362
      %1364 = vrot.lane.b32.xlu0 %v752, 24
      %v1365 = vpop.permute.xlu0 %1364
      %1366 = vrot.lane.b32.xlu0 %v1102, 24
      %v1367 = vpop.permute.xlu0 %1366
      %1368 = vrot.lane.b32.xlu0 %v1336, 24
      %v1369 = vpop.permute.xlu0 %1368
      %vm1386 = vcmask 228544
      %1387 = vst.msk [vmem:[#allocation4] sm:$0xff] %vm1386, %v1339
      %1388 = vst.msk [vmem:[#allocation4 + $0x8] sm:$0xff] %vm1386, %v1341
      %1389 = vst.msk [vmem:[#allocation4 + $0x10] sm:$0xff] %vm1386, %v1343
      %1390 = vst.msk [vmem:[#allocation4 + $0x18] sm:$0xff] %vm1386, %v1345
      %1391 = vst.msk [vmem:[#allocation4 + $0x20] sm:$0xff] %vm1386, %v1347
      %1392 = vst.msk [vmem:[#allocation4 + $0x28] sm:$0xff] %vm1386, %v1349
      %1393 = vst.msk [vmem:[#allocation4 + $0x30] sm:$0xff] %vm1386, %v1351
      %1394 = vst.msk [vmem:[#allocation4 + $0x38] sm:$0xff] %vm1386, %v1353
      %1395 = vst.msk [vmem:[#allocation4 + $0x40] sm:$0xff] %vm1386, %v1355
      %1396 = vst.msk [vmem:[#allocation4 + $0x48] sm:$0xff] %vm1386, %v1357
      %1397 = vst.msk [vmem:[#allocation4 + $0x50] sm:$0xff] %vm1386, %v1359
      %1398 = vst.msk [vmem:[#allocation4 + $0x58] sm:$0xff] %vm1386, %v1361
      %1399 = vst.msk [vmem:[#allocation4 + $0x60] sm:$0xff] %vm1386, %v1363
      %1400 = vst.msk [vmem:[#allocation4 + $0x68] sm:$0xff] %vm1386, %v1365
      %1401 = vst.msk [vmem:[#allocation4 + $0x70] sm:$0xff] %vm1386, %v1367
      %1402 = vst.msk [vmem:[#allocation4 + $0x78] sm:$0xff] %vm1386, %v1369
      %v1403 = vpack.c.bf16 %v574, %v573
      %1405 = vrot.lane.b32.xlu0 %v771, 28
      %v1406 = vpop.permute.xlu0 %1405
      %1407 = vrot.lane.b32.xlu0 %v772, 28
      %v1408 = vpop.permute.xlu0 %1407
      %1409 = vrot.lane.b32.xlu0 %v773, 28
      %v1410 = vpop.permute.xlu0 %1409
      %1411 = vrot.lane.b32.xlu0 %v774, 28
      %v1412 = vpop.permute.xlu0 %1411
      %1413 = vrot.lane.b32.xlu0 %v775, 28
      %v1414 = vpop.permute.xlu0 %1413
      %1415 = vrot.lane.b32.xlu0 %v776, 28
      %v1416 = vpop.permute.xlu0 %1415
      %1417 = vrot.lane.b32.xlu0 %v777, 28
      %v1418 = vpop.permute.xlu0 %1417
      %1419 = vrot.lane.b32.xlu0 %v778, 28
      %v1420 = vpop.permute.xlu0 %1419
      %1421 = vrot.lane.b32.xlu0 %v779, 28
      %v1422 = vpop.permute.xlu0 %1421
      %1423 = vrot.lane.b32.xlu0 %v780, 28
      %v1424 = vpop.permute.xlu0 %1423
      %1425 = vrot.lane.b32.xlu0 %v781, 28
      %v1426 = vpop.permute.xlu0 %1425
      %1427 = vrot.lane.b32.xlu0 %v782, 28
      %v1428 = vpop.permute.xlu0 %1427
      %1429 = vrot.lane.b32.xlu0 %v783, 28
      %v1430 = vpop.permute.xlu0 %1429
      %1431 = vrot.lane.b32.xlu0 %v784, 28
      %v1432 = vpop.permute.xlu0 %1431
      %1433 = vrot.lane.b32.xlu0 %v1184, 28
      %v1434 = vpop.permute.xlu0 %1433
      %1435 = vrot.lane.b32.xlu0 %v1403, 28
      %v1436 = vpop.permute.xlu0 %1435
      %vm1453 = vcmask 261344
      %1454 = vst.msk [vmem:[#allocation4] sm:$0xff] %vm1453, %v1406
      %1455 = vst.msk [vmem:[#allocation4 + $0x8] sm:$0xff] %vm1453, %v1408
      %1456 = vst.msk [vmem:[#allocation4 + $0x10] sm:$0xff] %vm1453, %v1410
      %1457 = vst.msk [vmem:[#allocation4 + $0x18] sm:$0xff] %vm1453, %v1412
      %1458 = vst.msk [vmem:[#allocation4 + $0x20] sm:$0xff] %vm1453, %v1414
      %1459 = vst.msk [vmem:[#allocation4 + $0x28] sm:$0xff] %vm1453, %v1416
      %1460 = vst.msk [vmem:[#allocation4 + $0x30] sm:$0xff] %vm1453, %v1418
      %1461 = vst.msk [vmem:[#allocation4 + $0x38] sm:$0xff] %vm1453, %v1420
      %1462 = vst.msk [vmem:[#allocation4 + $0x40] sm:$0xff] %vm1453, %v1422
      %1463 = vst.msk [vmem:[#allocation4 + $0x48] sm:$0xff] %vm1453, %v1424
      %1464 = vst.msk [vmem:[#allocation4 + $0x50] sm:$0xff] %vm1453, %v1426
      %1465 = vst.msk [vmem:[#allocation4 + $0x58] sm:$0xff] %vm1453, %v1428
      %1466 = vst.msk [vmem:[#allocation4 + $0x60] sm:$0xff] %vm1453, %v1430
      %1467 = vst.msk [vmem:[#allocation4 + $0x68] sm:$0xff] %vm1453, %v1432
      %1468 = vst.msk [vmem:[#allocation4 + $0x70] sm:$0xff] %vm1453, %v1434
      %1469 = vst.msk [vmem:[#allocation4 + $0x78] sm:$0xff] %vm1453, %v1436
      %v1471 = vrot.slane %v573, 1
      %v1472 = vrot.slane %v574, 1
      %v1473 = vsel %vm882, %v1471, %v1472
      %v1474 = vrot.slane %v575, 1
      %v1475 = vsel %vm882, %v1472, %v1474
      %v1478 = vpack.c.bf16 %v1475, %v1473
      %1480 = vrot.lane.b32.xlu0 %v997, 32
      %v1481 = vpop.permute.xlu0 %1480
      %1482 = vrot.lane.b32.xlu0 %v998, 32
      %v1483 = vpop.permute.xlu0 %1482
      %1484 = vrot.lane.b32.xlu0 %v999, 32
      %v1485 = vpop.permute.xlu0 %1484
      %1486 = vrot.lane.b32.xlu0 %v1000, 32
      %v1487 = vpop.permute.xlu0 %1486
      %1488 = vrot.lane.b32.xlu0 %v1001, 32
      %v1489 = vpop.permute.xlu0 %1488
      %1490 = vrot.lane.b32.xlu0 %v1002, 32
      %v1491 = vpop.permute.xlu0 %1490
      %1492 = vrot.lane.b32.xlu0 %v1003, 32
      %v1493 = vpop.permute.xlu0 %1492
      %1494 = vrot.lane.b32.xlu0 %v1004, 32
      %v1495 = vpop.permute.xlu0 %1494
      %1496 = vrot.lane.b32.xlu0 %v1005, 32
      %v1497 = vpop.permute.xlu0 %1496
      %1498 = vrot.lane.b32.xlu0 %v1006, 32
      %v1499 = vpop.permute.xlu0 %1498
      %1500 = vrot.lane.b32.xlu0 %v1007, 32
      %v1501 = vpop.permute.xlu0 %1500
      %1502 = vrot.lane.b32.xlu0 %v1008, 32
      %v1503 = vpop.permute.xlu0 %1502
      %1504 = vrot.lane.b32.xlu0 %v1009, 32
      %v1505 = vpop.permute.xlu0 %1504
      %1506 = vrot.lane.b32.xlu0 %v1010, 32
      %v1507 = vpop.permute.xlu0 %1506
      %1508 = vrot.lane.b32.xlu0 %v1259, 32
      %v1509 = vpop.permute.xlu0 %1508
      %1510 = vrot.lane.b32.xlu0 %v1478, 32
      %v1511 = vpop.permute.xlu0 %1510
      %vm1528 = vcmask 294144
      %1529 = vst.msk [vmem:[#allocation4] sm:$0xff] %vm1528, %v1481
      %1530 = vst.msk [vmem:[#allocation4 + $0x8] sm:$0xff] %vm1528, %v1483
      %1531 = vst.msk [vmem:[#allocation4 + $0x10] sm:$0xff] %vm1528, %v1485
      %1532 = vst.msk [vmem:[#allocation4 + $0x18] sm:$0xff] %vm1528, %v1487
      %1533 = vst.msk [vmem:[#allocation4 + $0x20] sm:$0xff] %vm1528, %v1489
      %1534 = vst.msk [vmem:[#allocation4 + $0x28] sm:$0xff] %vm1528, %v1491
      %1535 = vst.msk [vmem:[#allocation4 + $0x30] sm:$0xff] %vm1528, %v1493
      %1536 = vst.msk [vmem:[#allocation4 + $0x38] sm:$0xff] %vm1528, %v1495
      %1537 = vst.msk [vmem:[#allocation4 + $0x40] sm:$0xff] %vm1528, %v1497
      %1538 = vst.msk [vmem:[#allocation4 + $0x48] sm:$0xff] %vm1528, %v1499
      %1539 = vst.msk [vmem:[#allocation4 + $0x50] sm:$0xff] %vm1528, %v1501
      %1540 = vst.msk [vmem:[#allocation4 + $0x58] sm:$0xff] %vm1528, %v1503
      %1541 = vst.msk [vmem:[#allocation4 + $0x60] sm:$0xff] %vm1528, %v1505
      %1542 = vst.msk [vmem:[#allocation4 + $0x68] sm:$0xff] %vm1528, %v1507
      %1543 = vst.msk [vmem:[#allocation4 + $0x70] sm:$0xff] %vm1528, %v1509
      %1544 = vst.msk [vmem:[#allocation4 + $0x78] sm:$0xff] %vm1528, %v1511
      %v1545 = vld [vmem:[#allocation4] sm:$0xff]
      %v1546 = vld [vmem:[#allocation4 + $0x8] sm:$0xff]
      %v1547 = vld [vmem:[#allocation4 + $0x10] sm:$0xff]
      %v1548 = vld [vmem:[#allocation4 + $0x18] sm:$0xff]
      %v1549 = vld [vmem:[#allocation4 + $0x20] sm:$0xff]
      %v1550 = vld [vmem:[#allocation4 + $0x28] sm:$0xff]
      %v1551 = vld [vmem:[#allocation4 + $0x30] sm:$0xff]
      %v1552 = vld [vmem:[#allocation4 + $0x38] sm:$0xff]
      %v1553 = vld [vmem:[#allocation4 + $0x40] sm:$0xff]
      %v1554 = vld [vmem:[#allocation4 + $0x48] sm:$0xff]
      %v1555 = vld [vmem:[#allocation4 + $0x50] sm:$0xff]
      %v1556 = vld [vmem:[#allocation4 + $0x58] sm:$0xff]
      %v1557 = vld [vmem:[#allocation4 + $0x60] sm:$0xff]
      %v1558 = vld [vmem:[#allocation4 + $0x68] sm:$0xff]
      %v1559 = vld [vmem:[#allocation4 + $0x70] sm:$0xff]
      %v1560 = vld [vmem:[#allocation4 + $0x78] sm:$0xff]
      %v1561 = vld [vmem:[%s1] sm:$0xf]
      %v1562 = vld [vmem:[%s1 + $0x4] sm:$0xf]
      %v1563 = vld [vmem:[%s1 + $0x8] sm:$0xf]
      %v1564 = vld [vmem:[%s1 + $0xc] sm:$0xf]
      %v1565 = vld [vmem:[%s1 + $0x10] sm:$0x3]
      %v1571 = vunpack.c.l.b16 %v1561
      %v1572 = vunpack.c.l.b16 %v1562
      %v1573 = vunpack.c.l.b16 %v1563
      %v1574 = vunpack.c.l.b16 %v1564
      %v1575 = vunpack.c.l.b16 %v1565
      %v1576 = vpack.c.b16 %v1572, %v1571
      %v1577 = vpack.c.b16 %v1574, %v1573
      %v1578 = vpack.c.b16 %v1575, %v1575
      %vm1581 = vcmask 293888
      %v1583 = vsel %vm1581, %v1545, 0
      %v1586 = vsel %vm1581, %v1546, 0
      %v1589 = vsel %vm1581, %v1547, 0
      %v1592 = vsel %vm1581, %v1548, 0
      %v1595 = vsel %vm1581, %v1549, 0
      %v1598 = vsel %vm1581, %v1550, 0
      %v1601 = vsel %vm1581, %v1551, 0
      %v1604 = vsel %vm1581, %v1552, 0
      %v1607 = vsel %vm1581, %v1553, 0
      %v1610 = vsel %vm1581, %v1554, 0
      %v1613 = vsel %vm1581, %v1555, 0
      %v1616 = vsel %vm1581, %v1556, 0
      %v1619 = vsel %vm1581, %v1557, 0
      %v1622 = vsel %vm1581, %v1558, 0
      %v1625 = vsel %vm1581, %v1559, 0
      %v1628 = vsel %vm1581, %v1560, 0
      %vm1630 = vcmask 1041408
      %v1632 = vsel %vm1630, %v1578, 0
      %1634 = vmatprep.subr.bf16.mxu0 0
      %1635 = vmatpush1.bf16.msra.mxu0 %v1576
      %1636 = vmatprep.subr.bf16.mxu0 0
      %1637 = vmatpush1.bf16.msra.mxu0 %v1577
      %1638 = vmatprep.subr.bf16.mxu0 0
      %1639 = vmatpush1.bf16.msra.mxu0 %v1632
      %1640 = vmatprep.subr.bf16.mxu0 0
      %1641 = vmatpush1.bf16.msra.mxu0 0
      %1642 = vmatprep.subr.bf16.mxu0 0
      %1643 = vmatpush1.bf16.msra.mxu0 0
      %1644 = vmatprep.subr.bf16.mxu0 0
      %1645 = vmatpush1.bf16.msra.mxu0 0
      %1646 = vmatprep.subr.bf16.mxu0 0
      %1647 = vmatpush1.bf16.msra.mxu0 0
      %1648 = vmatprep.subr.bf16.mxu0 0
      %1649 = vmatpush1.bf16.msra.mxu0 0
      %1650 = vmatprep.subr.bf16.mxu0 0
      %1651 = vmatpush1.bf16.msra.mxu0 0
      %1652 = vmatprep.subr.bf16.mxu0 0
      %1653 = vmatpush1.bf16.msra.mxu0 0
      %1654 = vmatprep.subr.bf16.mxu0 0
      %1655 = vmatpush1.bf16.msra.mxu0 0
      %1656 = vmatprep.subr.bf16.mxu0 0
      %1657 = vmatpush1.bf16.msra.mxu0 0
      %1658 = vmatprep.subr.bf16.mxu0 0
      %1659 = vmatpush1.bf16.msra.mxu0 0
      %1660 = vmatprep.subr.bf16.mxu0 0
      %1661 = vmatpush1.bf16.msra.mxu0 0
      %1662 = vmatprep.subr.bf16.mxu0 0
      %1663 = vmatpush1.bf16.msra.mxu0 0
      %1664 = vmatprep.subr.bf16.mxu0 0
      %1665 = vmatpush1.bf16.msra.mxu0 0
      %1666 = vmatprep.mubr.bf16.mxu0 0
      %1667 = vmatmul.mubr.bf16.gmra.mrb[0].mxu0 %v1583
      %v1668 = vpop.f32.mrb[0].mxu0
      %v1669 = vadd.f32 0.0, %v1668
      %v1670 = vpop.f32.mrb[0].mxu0
      %v1671 = vpop.f32.mrb[0].mxu0
      %v1672 = vadd.f32 0.0, %v1671
      %v1673 = vpop.f32.mrb[0].mxu0
      %1674 = vmatprep.mubr.bf16.mxu0 0
      %1675 = vmatmul.mubr.bf16.gmra.mrb[0].mxu0 %v1586
      %v1676 = vpop.f32.mrb[0].mxu0
      %v1677 = vadd.f32 0.0, %v1676
      %v1678 = vpop.f32.mrb[0].mxu0
      %v1679 = vpop.f32.mrb[0].mxu0
      %v1680 = vadd.f32 0.0, %v1679
      %v1681 = vpop.f32.mrb[0].mxu0
      %1682 = vmatprep.mubr.bf16.mxu0 0
      %1683 = vmatmul.mubr.bf16.gmra.mrb[0].mxu0 %v1589
      %v1684 = vpop.f32.mrb[0].mxu0
      %v1685 = vadd.f32 0.0, %v1684
      %v1686 = vpop.f32.mrb[0].mxu0
      %v1687 = vpop.f32.mrb[0].mxu0
      %v1688 = vadd.f32 0.0, %v1687
      %v1689 = vpop.f32.mrb[0].mxu0
      %1690 = vmatprep.mubr.bf16.mxu0 0
      %1691 = vmatmul.mubr.bf16.gmra.mrb[0].mxu0 %v1592
      %v1692 = vpop.f32.mrb[0].mxu0
      %v1693 = vadd.f32 0.0, %v1692
      %v1694 = vpop.f32.mrb[0].mxu0
      %v1695 = vpop.f32.mrb[0].mxu0
      %v1696 = vadd.f32 0.0, %v1695
      %v1697 = vpop.f32.mrb[0].mxu0
      %1698 = vmatprep.mubr.bf16.mxu0 0
      %1699 = vmatmul.mubr.bf16.gmra.mrb[0].mxu0 %v1595
      %v1700 = vpop.f32.mrb[0].mxu0
      %v1701 = vadd.f32 0.0, %v1700
      %v1702 = vpop.f32.mrb[0].mxu0
      %v1703 = vpop.f32.mrb[0].mxu0
      %v1704 = vadd.f32 0.0, %v1703
      %v1705 = vpop.f32.mrb[0].mxu0
      %1706 = vmatprep.mubr.bf16.mxu0 0
      %1707 = vmatmul.mubr.bf16.gmra.mrb[0].mxu0 %v1598
      %v1708 = vpop.f32.mrb[0].mxu0
      %v1709 = vadd.f32 0.0, %v1708
      %v1710 = vpop.f32.mrb[0].mxu0
      %v1711 = vpop.f32.mrb[0].mxu0
      %v1712 = vadd.f32 0.0, %v1711
      %v1713 = vpop.f32.mrb[0].mxu0
      %1714 = vmatprep.mubr.bf16.mxu0 0
      %1715 = vmatmul.mubr.bf16.gmra.mrb[0].mxu0 %v1601
      %v1716 = vpop.f32.mrb[0].mxu0
      %v1717 = vadd.f32 0.0, %v1716
      %v1718 = vpop.f32.mrb[0].mxu0
      %v1719 = vpop.f32.mrb[0].mxu0
      %v1720 = vadd.f32 0.0, %v1719
      %v1721 = vpop.f32.mrb[0].mxu0
      %1722 = vmatprep.mubr.bf16.mxu0 0
      %1723 = vmatmul.mubr.bf16.gmra.mrb[0].mxu0 %v1604
      %v1724 = vpop.f32.mrb[0].mxu0
      %v1725 = vadd.f32 0.0, %v1724
      %v1726 = vpop.f32.mrb[0].mxu0
      %v1727 = vpop.f32.mrb[0].mxu0
      %v1728 = vadd.f32 0.0, %v1727
      %v1729 = vpop.f32.mrb[0].mxu0
      %1730 = vmatprep.mubr.bf16.mxu0 0
      %1731 = vmatmul.mubr.bf16.gmra.mrb[0].mxu0 %v1607
      %v1732 = vpop.f32.mrb[0].mxu0
      %v1733 = vadd.f32 0.0, %v1732
      %v1734 = vpop.f32.mrb[0].mxu0
      %v1735 = vpop.f32.mrb[0].mxu0
      %v1736 = vadd.f32 0.0, %v1735
      %v1737 = vpop.f32.mrb[0].mxu0
      %1738 = vmatprep.mubr.bf16.mxu0 0
      %1739 = vmatmul.mubr.bf16.gmra.mrb[0].mxu0 %v1610
      %v1740 = vpop.f32.mrb[0].mxu0
      %v1741 = vadd.f32 0.0, %v1740
      %v1742 = vpop.f32.mrb[0].mxu0
      %v1743 = vpop.f32.mrb[0].mxu0
      %v1744 = vadd.f32 0.0, %v1743
      %v1745 = vpop.f32.mrb[0].mxu0
      %1746 = vmatprep.mubr.bf16.mxu0 0
      %1747 = vmatmul.mubr.bf16.gmra.mrb[0].mxu0 %v1613
      %v1748 = vpop.f32.mrb[0].mxu0
      %v1749 = vadd.f32 0.0, %v1748
      %v1750 = vpop.f32.mrb[0].mxu0
      %v1751 = vpop.f32.mrb[0].mxu0
      %v1752 = vadd.f32 0.0, %v1751
      %v1753 = vpop.f32.mrb[0].mxu0
      %1754 = vmatprep.mubr.bf16.mxu0 0
      %1755 = vmatmul.mubr.bf16.gmra.mrb[0].mxu0 %v1616
      %v1756 = vpop.f32.mrb[0].mxu0
      %v1757 = vadd.f32 0.0, %v1756
      %v1758 = vpop.f32.mrb[0].mxu0
      %v1759 = vpop.f32.mrb[0].mxu0
      %v1760 = vadd.f32 0.0, %v1759
      %v1761 = vpop.f32.mrb[0].mxu0
      %1762 = vmatprep.mubr.bf16.mxu0 0
      %1763 = vmatmul.mubr.bf16.gmra.mrb[0].mxu0 %v1619
      %v1764 = vpop.f32.mrb[0].mxu0
      %v1765 = vadd.f32 0.0, %v1764
      %v1766 = vpop.f32.mrb[0].mxu0
      %v1767 = vpop.f32.mrb[0].mxu0
      %v1768 = vadd.f32 0.0, %v1767
      %v1769 = vpop.f32.mrb[0].mxu0
      %1770 = vmatprep.mubr.bf16.mxu0 0
      %1771 = vmatmul.mubr.bf16.gmra.mrb[0].mxu0 %v1622
      %v1772 = vpop.f32.mrb[0].mxu0
      %v1773 = vadd.f32 0.0, %v1772
      %v1774 = vpop.f32.mrb[0].mxu0
      %v1775 = vpop.f32.mrb[0].mxu0
      %v1776 = vadd.f32 0.0, %v1775
      %v1777 = vpop.f32.mrb[0].mxu0
      %1778 = vmatprep.mubr.bf16.mxu0 0
      %1779 = vmatmul.mubr.bf16.gmra.mrb[0].mxu0 %v1625
      %v1780 = vpop.f32.mrb[0].mxu0
      %v1781 = vadd.f32 0.0, %v1780
      %v1782 = vpop.f32.mrb[0].mxu0
      %v1783 = vpop.f32.mrb[0].mxu0
      %v1784 = vadd.f32 0.0, %v1783
      %v1785 = vpop.f32.mrb[0].mxu0
      %1786 = vmatprep.mubr.bf16.mxu0 0
      %1787 = vmatmul.mubr.bf16.gmra.mrb[0].mxu0 %v1628
      %v1788 = vpop.f32.mrb[0].mxu0
      %v1789 = vadd.f32 0.0, %v1788
      %v1790 = vpop.f32.mrb[0].mxu0
      %v1791 = vpop.f32.mrb[0].mxu0
      %v1792 = vadd.f32 0.0, %v1791
      %v1793 = vpop.f32.mrb[0].mxu0
      %1794 = vdwg.mxu0
      %v1795 = vld [vmem:[%s2] sm:$0x1]
      %v1797 = vlaneseq
      %v1798 = vshrl.u32 %v1797, 7
      %v1799 = vsub.s32 0, %v1798
      %v1800 = vrot.slane %v1795, %v1799
      %v1802 = vmul.f32 %v1669, %v1800
      %v1803 = vmul.f32 %v1672, %v1800
      %v1804 = vmul.f32 %v1677, %v1800
      %v1805 = vmul.f32 %v1680, %v1800
      %v1806 = vmul.f32 %v1685, %v1800
      %v1807 = vmul.f32 %v1688, %v1800
      %v1808 = vmul.f32 %v1693, %v1800
      %v1809 = vmul.f32 %v1696, %v1800
      %v1810 = vmul.f32 %v1701, %v1800
      %v1811 = vmul.f32 %v1704, %v1800
      %v1812 = vmul.f32 %v1709, %v1800
      %v1813 = vmul.f32 %v1712, %v1800
      %v1814 = vmul.f32 %v1717, %v1800
      %v1815 = vmul.f32 %v1720, %v1800
      %v1816 = vmul.f32 %v1725, %v1800
      %v1817 = vmul.f32 %v1728, %v1800
      %v1818 = vmul.f32 %v1733, %v1800
      %v1819 = vmul.f32 %v1736, %v1800
      %v1820 = vmul.f32 %v1741, %v1800
      %v1821 = vmul.f32 %v1744, %v1800
      %v1822 = vmul.f32 %v1749, %v1800
      %v1823 = vmul.f32 %v1752, %v1800
      %v1824 = vmul.f32 %v1757, %v1800
      %v1825 = vmul.f32 %v1760, %v1800
      %v1826 = vmul.f32 %v1765, %v1800
      %v1827 = vmul.f32 %v1768, %v1800
      %v1828 = vmul.f32 %v1773, %v1800
      %v1829 = vmul.f32 %v1776, %v1800
      %v1830 = vmul.f32 %v1781, %v1800
      %v1831 = vmul.f32 %v1784, %v1800
      %v1832 = vmul.f32 %v1789, %v1800
      %v1833 = vmul.f32 %v1792, %v1800
      %v1834 = vld [vmem:[%s3] sm:$0x1]
      %v1836 = vlaneseq
      %v1837 = vshrl.u32 %v1836, 7
      %v1838 = vsub.s32 0, %v1837
      %v1839 = vrot.slane %v1834, %v1838
      %v1841 = vadd.f32 %v1802, %v1839
      %v1842 = vadd.f32 %v1803, %v1839
      %v1843 = vadd.f32 %v1804, %v1839
      %v1844 = vadd.f32 %v1805, %v1839
      %v1845 = vadd.f32 %v1806, %v1839
      %v1846 = vadd.f32 %v1807, %v1839
      %v1847 = vadd.f32 %v1808, %v1839
      %v1848 = vadd.f32 %v1809, %v1839
      %v1849 = vadd.f32 %v1810, %v1839
      %v1850 = vadd.f32 %v1811, %v1839
      %v1851 = vadd.f32 %v1812, %v1839
      %v1852 = vadd.f32 %v1813, %v1839
      %v1853 = vadd.f32 %v1814, %v1839
      %v1854 = vadd.f32 %v1815, %v1839
      %v1855 = vadd.f32 %v1816, %v1839
      %v1856 = vadd.f32 %v1817, %v1839
      %v1857 = vadd.f32 %v1818, %v1839
      %v1858 = vadd.f32 %v1819, %v1839
      %v1859 = vadd.f32 %v1820, %v1839
      %v1860 = vadd.f32 %v1821, %v1839
      %v1861 = vadd.f32 %v1822, %v1839
      %v1862 = vadd.f32 %v1823, %v1839
      %v1863 = vadd.f32 %v1824, %v1839
      %v1864 = vadd.f32 %v1825, %v1839
      %v1865 = vadd.f32 %v1826, %v1839
      %v1866 = vadd.f32 %v1827, %v1839
      %v1867 = vadd.f32 %v1828, %v1839
      %v1868 = vadd.f32 %v1829, %v1839
      %v1869 = vadd.f32 %v1830, %v1839
      %v1870 = vadd.f32 %v1831, %v1839
      %v1871 = vadd.f32 %v1832, %v1839
      %v1872 = vadd.f32 %v1833, %v1839
      %v1873 = vmax.f32 %v1841, 0.0
      %v1874 = vmax.f32 %v1842, 0.0
      %v1875 = vmax.f32 %v1843, 0.0
      %v1876 = vmax.f32 %v1844, 0.0
      %v1877 = vmax.f32 %v1845, 0.0
      %v1878 = vmax.f32 %v1846, 0.0
      %v1879 = vmax.f32 %v1847, 0.0
      %v1880 = vmax.f32 %v1848, 0.0
      %v1881 = vmax.f32 %v1849, 0.0
      %v1882 = vmax.f32 %v1850, 0.0
      %v1883 = vmax.f32 %v1851, 0.0
      %v1884 = vmax.f32 %v1852, 0.0
      %v1885 = vmax.f32 %v1853, 0.0
      %v1886 = vmax.f32 %v1854, 0.0
      %v1887 = vmax.f32 %v1855, 0.0
      %v1888 = vmax.f32 %v1856, 0.0
      %v1889 = vmax.f32 %v1857, 0.0
      %v1890 = vmax.f32 %v1858, 0.0
      %v1891 = vmax.f32 %v1859, 0.0
      %v1892 = vmax.f32 %v1860, 0.0
      %v1893 = vmax.f32 %v1861, 0.0
      %v1894 = vmax.f32 %v1862, 0.0
      %v1895 = vmax.f32 %v1863, 0.0
      %v1896 = vmax.f32 %v1864, 0.0
      %v1897 = vmax.f32 %v1865, 0.0
      %v1898 = vmax.f32 %v1866, 0.0
      %v1899 = vmax.f32 %v1867, 0.0
      %v1900 = vmax.f32 %v1868, 0.0
      %v1901 = vmax.f32 %v1869, 0.0
      %v1902 = vmax.f32 %v1870, 0.0
      %v1903 = vmax.f32 %v1871, 0.0
      %v1904 = vmax.f32 %v1872, 0.0
      %vm1905 = vcmask 64512
      %1906 = vst.msk [vmem:[#allocation3] sm:$0xff] %vm1905, 0.0
      %1907 = vst.msk [vmem:[#allocation3 + $0x8] sm:$0xff] %vm1905, 0.0
      %1908 = vst.msk [vmem:[#allocation3 + $0x10] sm:$0xff] %vm1905, 0.0
      %1909 = vst.msk [vmem:[#allocation3 + $0x18] sm:$0xff] %vm1905, 0.0
      %1910 = vst.msk [vmem:[#allocation3 + $0x20] sm:$0xff] %vm1905, 0.0
      %1911 = vst.msk [vmem:[#allocation3 + $0x28] sm:$0xff] %vm1905, 0.0
      %1912 = vst.msk [vmem:[#allocation3 + $0x30] sm:$0xff] %vm1905, 0.0
      %1913 = vst.msk [vmem:[#allocation3 + $0x38] sm:$0xff] %vm1905, 0.0
      %1914 = vst.msk [vmem:[#allocation3 + $0x40] sm:$0xff] %vm1905, 0.0
      %1915 = vst.msk [vmem:[#allocation3 + $0x48] sm:$0xff] %vm1905, 0.0
      %1916 = vst.msk [vmem:[#allocation3 + $0x50] sm:$0xff] %vm1905, 0.0
      %1917 = vst.msk [vmem:[#allocation3 + $0x58] sm:$0xff] %vm1905, 0.0
      %1918 = vst.msk [vmem:[#allocation3 + $0x60] sm:$0xff] %vm1905, 0.0
      %1919 = vst.msk [vmem:[#allocation3 + $0x68] sm:$0xff] %vm1905, 0.0
      %1920 = vst.msk [vmem:[#allocation3 + $0x70] sm:$0xff] %vm1905, 0.0
      %1921 = vst.msk [vmem:[#allocation3 + $0x78] sm:$0xff] %vm1905, 0.0
      %1922 = vst.msk [vmem:[#allocation3 + $0x80] sm:$0xff] %vm1905, 0.0
      %1923 = vst.msk [vmem:[#allocation3 + $0x88] sm:$0xff] %vm1905, 0.0
      %1924 = vst.msk [vmem:[#allocation3 + $0x90] sm:$0xff] %vm1905, 0.0
      %1925 = vst.msk [vmem:[#allocation3 + $0x98] sm:$0xff] %vm1905, 0.0
      %1926 = vst.msk [vmem:[#allocation3 + $0xa0] sm:$0xff] %vm1905, 0.0
      %1927 = vst.msk [vmem:[#allocation3 + $0xa8] sm:$0xff] %vm1905, 0.0
      %1928 = vst.msk [vmem:[#allocation3 + $0xb0] sm:$0xff] %vm1905, 0.0
      %1929 = vst.msk [vmem:[#allocation3 + $0xb8] sm:$0xff] %vm1905, 0.0
      %1930 = vst.msk [vmem:[#allocation3 + $0xc0] sm:$0xff] %vm1905, 0.0
      %1931 = vst.msk [vmem:[#allocation3 + $0xc8] sm:$0xff] %vm1905, 0.0
      %1932 = vst.msk [vmem:[#allocation3 + $0xd0] sm:$0xff] %vm1905, 0.0
      %1933 = vst.msk [vmem:[#allocation3 + $0xd8] sm:$0xff] %vm1905, 0.0
      %1934 = vst.msk [vmem:[#allocation3 + $0xe0] sm:$0xff] %vm1905, 0.0
      %1935 = vst.msk [vmem:[#allocation3 + $0xe8] sm:$0xff] %vm1905, 0.0
      %1936 = vst.msk [vmem:[#allocation3 + $0xf0] sm:$0xff] %vm1905, 0.0
      %1937 = vst.msk [vmem:[#allocation3 + $0xf8] sm:$0xff] %vm1905, 0.0
      %1938 = vst.msk [vmem:[#allocation3 + $0x100] sm:$0xff] %vm1905, 0.0
      %1939 = vst.msk [vmem:[#allocation3 + $0x108] sm:$0xff] %vm1905, 0.0
      %1940 = vst.msk [vmem:[#allocation3 + $0x110] sm:$0xff] %vm1905, 0.0
      %1941 = vst.msk [vmem:[#allocation3 + $0x118] sm:$0xff] %vm1905, 0.0
      %1942 = vst.msk [vmem:[#allocation3 + $0x120] sm:$0xff] %vm1905, 0.0
      %1943 = vst.msk [vmem:[#allocation3 + $0x128] sm:$0xff] %vm1905, 0.0
      %1944 = vst.msk [vmem:[#allocation3 + $0x130] sm:$0xff] %vm1905, 0.0
      %1945 = vst.msk [vmem:[#allocation3 + $0x138] sm:$0xff] %vm1905, 0.0
      %1946 = vst.msk [vmem:[#allocation3 + $0x140] sm:$0xff] %vm1905, 0.0
      %1947 = vst.msk [vmem:[#allocation3 + $0x148] sm:$0xff] %vm1905, 0.0
      %1948 = vst.msk [vmem:[#allocation3 + $0x150] sm:$0xff] %vm1905, 0.0
      %1949 = vst.msk [vmem:[#allocation3 + $0x158] sm:$0xff] %vm1905, 0.0
      %1950 = vst.msk [vmem:[#allocation3 + $0x160] sm:$0xff] %vm1905, 0.0
      %1951 = vst.msk [vmem:[#allocation3 + $0x168] sm:$0xff] %vm1905, 0.0
      %1952 = vst.msk [vmem:[#allocation3 + $0x170] sm:$0xff] %vm1905, 0.0
      %1953 = vst.msk [vmem:[#allocation3 + $0x178] sm:$0xff] %vm1905, 0.0
      %1954 = vst.msk [vmem:[#allocation3 + $0x180] sm:$0xff] %vm1905, 0.0
      %1955 = vst.msk [vmem:[#allocation3 + $0x188] sm:$0xff] %vm1905, 0.0
      %1956 = vst.msk [vmem:[#allocation3 + $0x190] sm:$0xff] %vm1905, 0.0
      %1957 = vst.msk [vmem:[#allocation3 + $0x198] sm:$0xff] %vm1905, 0.0
      %1958 = vst.msk [vmem:[#allocation3 + $0x1a0] sm:$0xff] %vm1905, 0.0
      %1959 = vst.msk [vmem:[#allocation3 + $0x1a8] sm:$0xff] %vm1905, 0.0
      %1960 = vst.msk [vmem:[#allocation3 + $0x1b0] sm:$0xff] %vm1905, 0.0
      %1961 = vst.msk [vmem:[#allocation3 + $0x1b8] sm:$0xff] %vm1905, 0.0
      %1962 = vst.msk [vmem:[#allocation3 + $0x1c0] sm:$0xff] %vm1905, 0.0
      %1963 = vst.msk [vmem:[#allocation3 + $0x1c8] sm:$0xff] %vm1905, 0.0
      %1964 = vst.msk [vmem:[#allocation3 + $0x1d0] sm:$0xff] %vm1905, 0.0
      %1965 = vst.msk [vmem:[#allocation3 + $0x1d8] sm:$0xff] %vm1905, 0.0
      %1966 = vst.msk [vmem:[#allocation3 + $0x1e0] sm:$0xff] %vm1905, 0.0
      %1967 = vst.msk [vmem:[#allocation3 + $0x1e8] sm:$0xff] %vm1905, 0.0
      %1968 = vst.msk [vmem:[#allocation3 + $0x1f0] sm:$0xff] %vm1905, 0.0
      %1969 = vst.msk [vmem:[#allocation3 + $0x1f8] sm:$0xff] %vm1905, 0.0
      %1970 = vst.msk [vmem:[#allocation3 + $0x200] sm:$0xff] %vm1905, 0.0
      %1971 = vst.msk [vmem:[#allocation3 + $0x208] sm:$0xff] %vm1905, 0.0
      %1972 = vst.msk [vmem:[#allocation3 + $0x210] sm:$0xff] %vm1905, 0.0
      %1973 = vst.msk [vmem:[#allocation3 + $0x218] sm:$0xff] %vm1905, 0.0
      %1974 = vst.msk [vmem:[#allocation3 + $0x220] sm:$0xff] %vm1905, 0.0
      %1975 = vst.msk [vmem:[#allocation3 + $0x228] sm:$0xff] %vm1905, 0.0
      %1976 = vst.msk [vmem:[#allocation3 + $0x230] sm:$0xff] %vm1905, 0.0
      %1977 = vst.msk [vmem:[#allocation3 + $0x238] sm:$0xff] %vm1905, 0.0
      %s1978 = scalar_lea.vmem [#allocation3], 32
      %1979 = vst.msk [vmem:[%s1978 + $0x8] sm:$0xff] %vm1905, %v1873
      %1980 = vst.msk [vmem:[%s1978 + $0x10] sm:$0xff] %vm1905, %v1874
      %1981 = vst.msk [vmem:[%s1978 + $0x28] sm:$0xff] %vm1905, %v1875
      %1982 = vst.msk [vmem:[%s1978 + $0x30] sm:$0xff] %vm1905, %v1876
      %1983 = vst.msk [vmem:[%s1978 + $0x48] sm:$0xff] %vm1905, %v1877
      %1984 = vst.msk [vmem:[%s1978 + $0x50] sm:$0xff] %vm1905, %v1878
      %1985 = vst.msk [vmem:[%s1978 + $0x68] sm:$0xff] %vm1905, %v1879
      %1986 = vst.msk [vmem:[%s1978 + $0x70] sm:$0xff] %vm1905, %v1880
      %1987 = vst.msk [vmem:[%s1978 + $0x88] sm:$0xff] %vm1905, %v1881
      %1988 = vst.msk [vmem:[%s1978 + $0x90] sm:$0xff] %vm1905, %v1882
      %1989 = vst.msk [vmem:[%s1978 + $0xa8] sm:$0xff] %vm1905, %v1883
      %1990 = vst.msk [vmem:[%s1978 + $0xb0] sm:$0xff] %vm1905, %v1884
      %1991 = vst.msk [vmem:[%s1978 + $0xc8] sm:$0xff] %vm1905, %v1885
      %1992 = vst.msk [vmem:[%s1978 + $0xd0] sm:$0xff] %vm1905, %v1886
      %1993 = vst.msk [vmem:[%s1978 + $0xe8] sm:$0xff] %vm1905, %v1887
      %1994 = vst.msk [vmem:[%s1978 + $0xf0] sm:$0xff] %vm1905, %v1888
      %1995 = vst.msk [vmem:[%s1978 + $0x108] sm:$0xff] %vm1905, %v1889
      %1996 = vst.msk [vmem:[%s1978 + $0x110] sm:$0xff] %vm1905, %v1890
      %1997 = vst.msk [vmem:[%s1978 + $0x128] sm:$0xff] %vm1905, %v1891
      %1998 = vst.msk [vmem:[%s1978 + $0x130] sm:$0xff] %vm1905, %v1892
      %1999 = vst.msk [vmem:[%s1978 + $0x148] sm:$0xff] %vm1905, %v1893
      %2000 = vst.msk [vmem:[%s1978 + $0x150] sm:$0xff] %vm1905, %v1894
      %2001 = vst.msk [vmem:[%s1978 + $0x168] sm:$0xff] %vm1905, %v1895
      %2002 = vst.msk [vmem:[%s1978 + $0x170] sm:$0xff] %vm1905, %v1896
      %2003 = vst.msk [vmem:[%s1978 + $0x188] sm:$0xff] %vm1905, %v1897
      %2004 = vst.msk [vmem:[%s1978 + $0x190] sm:$0xff] %vm1905, %v1898
      %2005 = vst.msk [vmem:[%s1978 + $0x1a8] sm:$0xff] %vm1905, %v1899
      %2006 = vst.msk [vmem:[%s1978 + $0x1b0] sm:$0xff] %vm1905, %v1900
      %2007 = vst.msk [vmem:[%s1978 + $0x1c8] sm:$0xff] %vm1905, %v1901
      %2008 = vst.msk [vmem:[%s1978 + $0x1d0] sm:$0xff] %vm1905, %v1902
      %2009 = vst.msk [vmem:[%s1978 + $0x1e8] sm:$0xff] %vm1905, %v1903
      %2010 = vst.msk [vmem:[%s1978 + $0x1f0] sm:$0xff] %vm1905, %v1904
      %v2011 = vld [vmem:[#allocation3] sm:$0xff]
      %v2012 = vld [vmem:[#allocation3 + $0x8] sm:$0xff]
      %v2013 = vld [vmem:[#allocation3 + $0x10] sm:$0xff]
      %v2014 = vld [vmem:[#allocation3 + $0x18] sm:$0xff]
      %v2015 = vld [vmem:[#allocation3 + $0x20] sm:$0xff]
      %v2016 = vld [vmem:[#allocation3 + $0x28] sm:$0xff]
      %v2017 = vld [vmem:[#allocation3 + $0x30] sm:$0xff]
      %v2018 = vld [vmem:[#allocation3 + $0x38] sm:$0xff]
      %v2019 = vld [vmem:[#allocation3 + $0x40] sm:$0xff]
      %v2020 = vld [vmem:[#allocation3 + $0x48] sm:$0xff]
      %v2021 = vld [vmem:[#allocation3 + $0x50] sm:$0xff]
      %v2022 = vld [vmem:[#allocation3 + $0x58] sm:$0xff]
      %v2023 = vld [vmem:[#allocation3 + $0x60] sm:$0xff]
      %v2024 = vld [vmem:[#allocation3 + $0x68] sm:$0xff]
      %v2025 = vld [vmem:[#allocation3 + $0x70] sm:$0xff]
      %v2026 = vld [vmem:[#allocation3 + $0x78] sm:$0xff]
      %v2027 = vld [vmem:[#allocation3 + $0x80] sm:$0xff]
      %v2028 = vld [vmem:[#allocation3 + $0x88] sm:$0xff]
      %v2029 = vld [vmem:[#allocation3 + $0x90] sm:$0xff]
      %v2030 = vld [vmem:[#allocation3 + $0x98] sm:$0xff]
      %v2031 = vld [vmem:[#allocation3 + $0xa0] sm:$0xff]
      %v2032 = vld [vmem:[#allocation3 + $0xa8] sm:$0xff]
      %v2033 = vld [vmem:[#allocation3 + $0xb0] sm:$0xff]
      %v2034 = vld [vmem:[#allocation3 + $0xb8] sm:$0xff]
      %v2035 = vld [vmem:[#allocation3 + $0xc0] sm:$0xff]
      %v2036 = vld [vmem:[#allocation3 + $0xc8] sm:$0xff]
      %v2037 = vld [vmem:[#allocation3 + $0xd0] sm:$0xff]
      %v2038 = vld [vmem:[#allocation3 + $0xd8] sm:$0xff]
      %v2039 = vld [vmem:[#allocation3 + $0xe0] sm:$0xff]
      %v2040 = vld [vmem:[#allocation3 + $0xe8] sm:$0xff]
      %v2041 = vld [vmem:[#allocation3 + $0xf0] sm:$0xff]
      %v2042 = vld [vmem:[#allocation3 + $0xf8] sm:$0xff]
      %v2043 = vld [vmem:[#allocation3 + $0x100] sm:$0xff]
      %v2044 = vld [vmem:[#allocation3 + $0x108] sm:$0xff]
      %v2045 = vld [vmem:[#allocation3 + $0x110] sm:$0xff]
      %v2046 = vld [vmem:[#allocation3 + $0x118] sm:$0xff]
      %v2047 = vld [vmem:[#allocation3 + $0x120] sm:$0xff]
      %v2048 = vld [vmem:[#allocation3 + $0x128] sm:$0xff]
      %v2049 = vld [vmem:[#allocation3 + $0x130] sm:$0xff]
      %v2050 = vld [vmem:[#allocation3 + $0x138] sm:$0xff]
      %v2051 = vld [vmem:[#allocation3 + $0x140] sm:$0xff]
      %v2052 = vld [vmem:[#allocation3 + $0x148] sm:$0xff]
      %v2053 = vld [vmem:[#allocation3 + $0x150] sm:$0xff]
      %v2054 = vld [vmem:[#allocation3 + $0x158] sm:$0xff]
      %v2055 = vld [vmem:[#allocation3 + $0x160] sm:$0xff]
      %v2056 = vld [vmem:[#allocation3 + $0x168] sm:$0xff]
      %v2057 = vld [vmem:[#allocation3 + $0x170] sm:$0xff]
      %v2058 = vld [vmem:[#allocation3 + $0x178] sm:$0xff]
      %v2059 = vld [vmem:[#allocation3 + $0x180] sm:$0xff]
      %v2060 = vld [vmem:[#allocation3 + $0x188] sm:$0xff]
      %v2061 = vld [vmem:[#allocation3 + $0x190] sm:$0xff]
      %v2062 = vld [vmem:[#allocation3 + $0x198] sm:$0xff]
      %v2063 = vld [vmem:[#allocation3 + $0x1a0] sm:$0xff]
      %v2064 = vld [vmem:[#allocation3 + $0x1a8] sm:$0xff]
      %v2065 = vld [vmem:[#allocation3 + $0x1b0] sm:$0xff]
      %v2066 = vld [vmem:[#allocation3 + $0x1b8] sm:$0xff]
      %v2067 = vld [vmem:[#allocation3 + $0x1c0] sm:$0xff]
      %v2068 = vld [vmem:[#allocation3 + $0x1c8] sm:$0xff]
      %v2069 = vld [vmem:[#allocation3 + $0x1d0] sm:$0xff]
      %v2070 = vld [vmem:[#allocation3 + $0x1d8] sm:$0xff]
      %v2071 = vld [vmem:[#allocation3 + $0x1e0] sm:$0xff]
      %v2072 = vld [vmem:[#allocation3 + $0x1e8] sm:$0xff]
      %v2073 = vld [vmem:[#allocation3 + $0x1f0] sm:$0xff]
      %v2074 = vld [vmem:[#allocation3 + $0x1f8] sm:$0xff]
      %v2075 = vld [vmem:[#allocation3 + $0x200] sm:$0xff]
      %v2076 = vld [vmem:[#allocation3 + $0x208] sm:$0xff]
      %v2077 = vld [vmem:[#allocation3 + $0x210] sm:$0xff]
      %v2078 = vld [vmem:[#allocation3 + $0x218] sm:$0xff]
      %v2079 = vld [vmem:[#allocation3 + $0x220] sm:$0xff]
      %v2080 = vld [vmem:[#allocation3 + $0x228] sm:$0xff]
      %v2081 = vld [vmem:[#allocation3 + $0x230] sm:$0xff]
      %v2082 = vld [vmem:[#allocation3 + $0x238] sm:$0xff]
      %v2131 = vrot.slane %v2011, 7
      %v2132 = vrot.slane %v2012, 7
      %v2133 = vsel %vm624, %v2131, %v2132
      %v2134 = vrot.slane %v2013, 7
      %v2135 = vsel %vm624, %v2132, %v2134
      %v2136 = vrot.slane %v2015, 7
      %v2137 = vrot.slane %v2016, 7
      %v2138 = vsel %vm624, %v2136, %v2137
      %v2139 = vrot.slane %v2017, 7
      %v2140 = vsel %vm624, %v2137, %v2139
      %v2141 = vrot.slane %v2019, 7
      %v2142 = vrot.slane %v2020, 7
      %v2143 = vsel %vm624, %v2141, %v2142
      %v2144 = vrot.slane %v2021, 7
      %v2145 = vsel %vm624, %v2142, %v2144
      %v2146 = vrot.slane %v2023, 7
      %v2147 = vrot.slane %v2024, 7
      %v2148 = vsel %vm624, %v2146, %v2147
      %v2149 = vrot.slane %v2025, 7
      %v2150 = vsel %vm624, %v2147, %v2149
      %v2151 = vrot.slane %v2027, 7
      %v2152 = vrot.slane %v2028, 7
      %v2153 = vsel %vm624, %v2151, %v2152
      %v2154 = vrot.slane %v2029, 7
      %v2155 = vsel %vm624, %v2152, %v2154
      %v2156 = vrot.slane %v2031, 7
      %v2157 = vrot.slane %v2032, 7
      %v2158 = vsel %vm624, %v2156, %v2157
      %v2159 = vrot.slane %v2033, 7
      %v2160 = vsel %vm624, %v2157, %v2159
      %v2161 = vrot.slane %v2035, 7
      %v2162 = vrot.slane %v2036, 7
      %v2163 = vsel %vm624, %v2161, %v2162
      %v2164 = vrot.slane %v2037, 7
      %v2165 = vsel %vm624, %v2162, %v2164
      %v2166 = vrot.slane %v2039, 7
      %v2167 = vrot.slane %v2040, 7
      %v2168 = vsel %vm624, %v2166, %v2167
      %v2169 = vrot.slane %v2041, 7
      %v2170 = vsel %vm624, %v2167, %v2169
      %v2171 = vrot.slane %v2043, 7
      %v2172 = vrot.slane %v2044, 7
      %v2173 = vsel %vm624, %v2171, %v2172
      %v2174 = vrot.slane %v2045, 7
      %v2175 = vsel %vm624, %v2172, %v2174
      %v2176 = vrot.slane %v2047, 7
      %v2177 = vrot.slane %v2048, 7
      %v2178 = vsel %vm624, %v2176, %v2177
      %v2179 = vrot.slane %v2049, 7
      %v2180 = vsel %vm624, %v2177, %v2179
      %v2181 = vrot.slane %v2051, 7
      %v2182 = vrot.slane %v2052, 7
      %v2183 = vsel %vm624, %v2181, %v2182
      %v2184 = vrot.slane %v2053, 7
      %v2185 = vsel %vm624, %v2182, %v2184
      %v2186 = vrot.slane %v2055, 7
      %v2187 = vrot.slane %v2056, 7
      %v2188 = vsel %vm624, %v2186, %v2187
      %v2189 = vrot.slane %v2057, 7
      %v2190 = vsel %vm624, %v2187, %v2189
      %v2191 = vrot.slane %v2059, 7
      %v2192 = vrot.slane %v2060, 7
      %v2193 = vsel %vm624, %v2191, %v2192
      %v2194 = vrot.slane %v2061, 7
      %v2195 = vsel %vm624, %v2192, %v2194
      %v2196 = vrot.slane %v2063, 7
      %v2197 = vrot.slane %v2064, 7
      %v2198 = vsel %vm624, %v2196, %v2197
      %v2199 = vrot.slane %v2065, 7
      %v2200 = vsel %vm624, %v2197, %v2199
      %v2201 = vrot.slane %v2067, 7
      %v2202 = vrot.slane %v2068, 7
      %v2203 = vsel %vm624, %v2201, %v2202
      %v2204 = vrot.slane %v2069, 7
      %v2205 = vsel %vm624, %v2202, %v2204
      %v2206 = vrot.slane %v2071, 7
      %v2207 = vrot.slane %v2072, 7
      %v2208 = vsel %vm624, %v2206, %v2207
      %v2209 = vrot.slane %v2073, 7
      %v2210 = vsel %vm624, %v2207, %v2209
      %v2243 = vpack.c.bf16 %v2135, %v2133
      %v2244 = vpack.c.bf16 %v2140, %v2138
      %v2245 = vpack.c.bf16 %v2145, %v2143
      %v2246 = vpack.c.bf16 %v2150, %v2148
      %v2247 = vpack.c.bf16 %v2155, %v2153
      %v2248 = vpack.c.bf16 %v2160, %v2158
      %v2249 = vpack.c.bf16 %v2165, %v2163
      %v2250 = vpack.c.bf16 %v2170, %v2168
      %v2251 = vpack.c.bf16 %v2175, %v2173
      %v2252 = vpack.c.bf16 %v2180, %v2178
      %v2253 = vpack.c.bf16 %v2185, %v2183
      %v2254 = vpack.c.bf16 %v2190, %v2188
      %v2255 = vpack.c.bf16 %v2195, %v2193
      %v2256 = vpack.c.bf16 %v2200, %v2198
      %v2257 = vpack.c.bf16 %v2205, %v2203
      %v2258 = vpack.c.bf16 %v2210, %v2208
      %2259 = vst.msk [vmem:[#allocation5] sm:$0xff] %vm1905, %v2243
      %2260 = vst.msk [vmem:[#allocation5 + $0x8] sm:$0xff] %vm1905, %v2244
      %2261 = vst.msk [vmem:[#allocation5 + $0x10] sm:$0xff] %vm1905, %v2245
      %2262 = vst.msk [vmem:[#allocation5 + $0x18] sm:$0xff] %vm1905, %v2246
      %2263 = vst.msk [vmem:[#allocation5 + $0x20] sm:$0xff] %vm1905, %v2247
      %2264 = vst.msk [vmem:[#allocation5 + $0x28] sm:$0xff] %vm1905, %v2248
      %2265 = vst.msk [vmem:[#allocation5 + $0x30] sm:$0xff] %vm1905, %v2249
      %2266 = vst.msk [vmem:[#allocation5 + $0x38] sm:$0xff] %vm1905, %v2250
      %2267 = vst.msk [vmem:[#allocation5 + $0x40] sm:$0xff] %vm1905, %v2251
      %2268 = vst.msk [vmem:[#allocation5 + $0x48] sm:$0xff] %vm1905, %v2252
      %2269 = vst.msk [vmem:[#allocation5 + $0x50] sm:$0xff] %vm1905, %v2253
      %2270 = vst.msk [vmem:[#allocation5 + $0x58] sm:$0xff] %vm1905, %v2254
      %2271 = vst.msk [vmem:[#allocation5 + $0x60] sm:$0xff] %vm1905, %v2255
      %2272 = vst.msk [vmem:[#allocation5 + $0x68] sm:$0xff] %vm1905, %v2256
      %2273 = vst.msk [vmem:[#allocation5 + $0x70] sm:$0xff] %vm1905, %v2257
      %2274 = vst.msk [vmem:[#allocation5 + $0x78] sm:$0xff] %vm1905, %v2258
      %v2275 = vpack.c.bf16 %v2013, %v2012
      %v2276 = vpack.c.bf16 %v2017, %v2016
      %v2277 = vpack.c.bf16 %v2021, %v2020
      %v2278 = vpack.c.bf16 %v2025, %v2024
      %v2279 = vpack.c.bf16 %v2029, %v2028
      %v2280 = vpack.c.bf16 %v2033, %v2032
      %v2281 = vpack.c.bf16 %v2037, %v2036
      %v2282 = vpack.c.bf16 %v2041, %v2040
      %v2283 = vpack.c.bf16 %v2045, %v2044
      %v2284 = vpack.c.bf16 %v2049, %v2048
      %v2285 = vpack.c.bf16 %v2053, %v2052
      %v2286 = vpack.c.bf16 %v2057, %v2056
      %v2287 = vpack.c.bf16 %v2061, %v2060
      %v2288 = vpack.c.bf16 %v2065, %v2064
      %v2289 = vpack.c.bf16 %v2069, %v2068
      %v2290 = vpack.c.bf16 %v2073, %v2072
      %2307 = vrot.lane.b32.xlu0 %v2275, 8
      %v2308 = vpop.permute.xlu0 %2307
      %2309 = vrot.lane.b32.xlu0 %v2276, 8
      %v2310 = vpop.permute.xlu0 %2309
      %2311 = vrot.lane.b32.xlu0 %v2277, 8
      %v2312 = vpop.permute.xlu0 %2311
      %2313 = vrot.lane.b32.xlu0 %v2278, 8
      %v2314 = vpop.permute.xlu0 %2313
      %2315 = vrot.lane.b32.xlu0 %v2279, 8
      %v2316 = vpop.permute.xlu0 %2315
      %2317 = vrot.lane.b32.xlu0 %v2280, 8
      %v2318 = vpop.permute.xlu0 %2317
      %2319 = vrot.lane.b32.xlu0 %v2281, 8
      %v2320 = vpop.permute.xlu0 %2319
      %2321 = vrot.lane.b32.xlu0 %v2282, 8
      %v2322 = vpop.permute.xlu0 %2321
      %2323 = vrot.lane.b32.xlu0 %v2283, 8
      %v2324 = vpop.permute.xlu0 %2323
      %2325 = vrot.lane.b32.xlu0 %v2284, 8
      %v2326 = vpop.permute.xlu0 %2325
      %2327 = vrot.lane.b32.xlu0 %v2285, 8
      %v2328 = vpop.permute.xlu0 %2327
      %2329 = vrot.lane.b32.xlu0 %v2286, 8
      %v2330 = vpop.permute.xlu0 %2329
      %2331 = vrot.lane.b32.xlu0 %v2287, 8
      %v2332 = vpop.permute.xlu0 %2331
      %2333 = vrot.lane.b32.xlu0 %v2288, 8
      %v2334 = vpop.permute.xlu0 %2333
      %2335 = vrot.lane.b32.xlu0 %v2289, 8
      %v2336 = vpop.permute.xlu0 %2335
      %2337 = vrot.lane.b32.xlu0 %v2290, 8
      %v2338 = vpop.permute.xlu0 %2337
      %vm2355 = vcmask 130112
      %2356 = vst.msk [vmem:[#allocation5] sm:$0xff] %vm2355, %v2308
      %2357 = vst.msk [vmem:[#allocation5 + $0x8] sm:$0xff] %vm2355, %v2310
      %2358 = vst.msk [vmem:[#allocation5 + $0x10] sm:$0xff] %vm2355, %v2312
      %2359 = vst.msk [vmem:[#allocation5 + $0x18] sm:$0xff] %vm2355, %v2314
      %2360 = vst.msk [vmem:[#allocation5 + $0x20] sm:$0xff] %vm2355, %v2316
      %2361 = vst.msk [vmem:[#allocation5 + $0x28] sm:$0xff] %vm2355, %v2318
      %2362 = vst.msk [vmem:[#allocation5 + $0x30] sm:$0xff] %vm2355, %v2320
      %2363 = vst.msk [vmem:[#allocation5 + $0x38] sm:$0xff] %vm2355, %v2322
      %2364 = vst.msk [vmem:[#allocation5 + $0x40] sm:$0xff] %vm2355, %v2324
      %2365 = vst.msk [vmem:[#allocation5 + $0x48] sm:$0xff] %vm2355, %v2326
      %2366 = vst.msk [vmem:[#allocation5 + $0x50] sm:$0xff] %vm2355, %v2328
      %2367 = vst.msk [vmem:[#allocation5 + $0x58] sm:$0xff] %vm2355, %v2330
      %2368 = vst.msk [vmem:[#allocation5 + $0x60] sm:$0xff] %vm2355, %v2332
      %2369 = vst.msk [vmem:[#allocation5 + $0x68] sm:$0xff] %vm2355, %v2334
      %2370 = vst.msk [vmem:[#allocation5 + $0x70] sm:$0xff] %vm2355, %v2336
      %2371 = vst.msk [vmem:[#allocation5 + $0x78] sm:$0xff] %vm2355, %v2338
      %v2388 = vrot.slane %v2012, 1
      %v2389 = vrot.slane %v2013, 1
      %v2390 = vsel %vm882, %v2388, %v2389
      %v2391 = vrot.slane %v2014, 1
      %v2392 = vsel %vm882, %v2389, %v2391
      %v2393 = vrot.slane %v2016, 1
      %v2394 = vrot.slane %v2017, 1
      %v2395 = vsel %vm882, %v2393, %v2394
      %v2396 = vrot.slane %v2018, 1
      %v2397 = vsel %vm882, %v2394, %v2396
      %v2398 = vrot.slane %v2020, 1
      %v2399 = vrot.slane %v2021, 1
      %v2400 = vsel %vm882, %v2398, %v2399
      %v2401 = vrot.slane %v2022, 1
      %v2402 = vsel %vm882, %v2399, %v2401
      %v2403 = vrot.slane %v2024, 1
      %v2404 = vrot.slane %v2025, 1
      %v2405 = vsel %vm882, %v2403, %v2404
      %v2406 = vrot.slane %v2026, 1
      %v2407 = vsel %vm882, %v2404, %v2406
      %v2408 = vrot.slane %v2028, 1
      %v2409 = vrot.slane %v2029, 1
      %v2410 = vsel %vm882, %v2408, %v2409
      %v2411 = vrot.slane %v2030, 1
      %v2412 = vsel %vm882, %v2409, %v2411
      %v2413 = vrot.slane %v2032, 1
      %v2414 = vrot.slane %v2033, 1
      %v2415 = vsel %vm882, %v2413, %v2414
      %v2416 = vrot.slane %v2034, 1
      %v2417 = vsel %vm882, %v2414, %v2416
      %v2418 = vrot.slane %v2036, 1
      %v2419 = vrot.slane %v2037, 1
      %v2420 = vsel %vm882, %v2418, %v2419
      %v2421 = vrot.slane %v2038, 1
      %v2422 = vsel %vm882, %v2419, %v2421
      %v2423 = vrot.slane %v2040, 1
      %v2424 = vrot.slane %v2041, 1
      %v2425 = vsel %vm882, %v2423, %v2424
      %v2426 = vrot.slane %v2042, 1
      %v2427 = vsel %vm882, %v2424, %v2426
      %v2428 = vrot.slane %v2044, 1
      %v2429 = vrot.slane %v2045, 1
      %v2430 = vsel %vm882, %v2428, %v2429
      %v2431 = vrot.slane %v2046, 1
      %v2432 = vsel %vm882, %v2429, %v2431
      %v2433 = vrot.slane %v2048, 1
      %v2434 = vrot.slane %v2049, 1
      %v2435 = vsel %vm882, %v2433, %v2434
      %v2436 = vrot.slane %v2050, 1
      %v2437 = vsel %vm882, %v2434, %v2436
      %v2438 = vrot.slane %v2052, 1
      %v2439 = vrot.slane %v2053, 1
      %v2440 = vsel %vm882, %v2438, %v2439
      %v2441 = vrot.slane %v2054, 1
      %v2442 = vsel %vm882, %v2439, %v2441
      %v2443 = vrot.slane %v2056, 1
      %v2444 = vrot.slane %v2057, 1
      %v2445 = vsel %vm882, %v2443, %v2444
      %v2446 = vrot.slane %v2058, 1
      %v2447 = vsel %vm882, %v2444, %v2446
      %v2448 = vrot.slane %v2060, 1
      %v2449 = vrot.slane %v2061, 1
      %v2450 = vsel %vm882, %v2448, %v2449
      %v2451 = vrot.slane %v2062, 1
      %v2452 = vsel %vm882, %v2449, %v2451
      %v2453 = vrot.slane %v2064, 1
      %v2454 = vrot.slane %v2065, 1
      %v2455 = vsel %vm882, %v2453, %v2454
      %v2456 = vrot.slane %v2066, 1
      %v2457 = vsel %vm882, %v2454, %v2456
      %v2458 = vrot.slane %v2068, 1
      %v2459 = vrot.slane %v2069, 1
      %v2460 = vsel %vm882, %v2458, %v2459
      %v2461 = vrot.slane %v2070, 1
      %v2462 = vsel %vm882, %v2459, %v2461
      %v2463 = vrot.slane %v2072, 1
      %v2464 = vrot.slane %v2073, 1
      %v2465 = vsel %vm882, %v2463, %v2464
      %v2466 = vrot.slane %v2074, 1
      %v2467 = vsel %vm882, %v2464, %v2466
      %v2500 = vpack.c.bf16 %v2392, %v2390
      %v2501 = vpack.c.bf16 %v2397, %v2395
      %v2502 = vpack.c.bf16 %v2402, %v2400
      %v2503 = vpack.c.bf16 %v2407, %v2405
      %v2504 = vpack.c.bf16 %v2412, %v2410
      %v2505 = vpack.c.bf16 %v2417, %v2415
      %v2506 = vpack.c.bf16 %v2422, %v2420
      %v2507 = vpack.c.bf16 %v2427, %v2425
      %v2508 = vpack.c.bf16 %v2432, %v2430
      %v2509 = vpack.c.bf16 %v2437, %v2435
      %v2510 = vpack.c.bf16 %v2442, %v2440
      %v2511 = vpack.c.bf16 %v2447, %v2445
      %v2512 = vpack.c.bf16 %v2452, %v2450
      %v2513 = vpack.c.bf16 %v2457, %v2455
      %v2514 = vpack.c.bf16 %v2462, %v2460
      %v2515 = vpack.c.bf16 %v2467, %v2465
      %2532 = vrot.lane.b32.xlu0 %v2500, 16
      %v2533 = vpop.permute.xlu0 %2532
      %2534 = vrot.lane.b32.xlu0 %v2501, 16
      %v2535 = vpop.permute.xlu0 %2534
      %2536 = vrot.lane.b32.xlu0 %v2502, 16
      %v2537 = vpop.permute.xlu0 %2536
      %2538 = vrot.lane.b32.xlu0 %v2503, 16
      %v2539 = vpop.permute.xlu0 %2538
      %2540 = vrot.lane.b32.xlu0 %v2504, 16
      %v2541 = vpop.permute.xlu0 %2540
      %2542 = vrot.lane.b32.xlu0 %v2505, 16
      %v2543 = vpop.permute.xlu0 %2542
      %2544 = vrot.lane.b32.xlu0 %v2506, 16
      %v2545 = vpop.permute.xlu0 %2544
      %2546 = vrot.lane.b32.xlu0 %v2507, 16
      %v2547 = vpop.permute.xlu0 %2546
      %2548 = vrot.lane.b32.xlu0 %v2508, 16
      %v2549 = vpop.permute.xlu0 %2548
      %2550 = vrot.lane.b32.xlu0 %v2509, 16
      %v2551 = vpop.permute.xlu0 %2550
      %2552 = vrot.lane.b32.xlu0 %v2510, 16
      %v2553 = vpop.permute.xlu0 %2552
      %2554 = vrot.lane.b32.xlu0 %v2511, 16
      %v2555 = vpop.permute.xlu0 %2554
      %2556 = vrot.lane.b32.xlu0 %v2512, 16
      %v2557 = vpop.permute.xlu0 %2556
      %2558 = vrot.lane.b32.xlu0 %v2513, 16
      %v2559 = vpop.permute.xlu0 %2558
      %2560 = vrot.lane.b32.xlu0 %v2514, 16
      %v2561 = vpop.permute.xlu0 %2560
      %2562 = vrot.lane.b32.xlu0 %v2515, 16
      %v2563 = vpop.permute.xlu0 %2562
      %vm2580 = vcmask 195712
      %2581 = vst.msk [vmem:[#allocation5] sm:$0xff] %vm2580, %v2533
      %2582 = vst.msk [vmem:[#allocation5 + $0x8] sm:$0xff] %vm2580, %v2535
      %2583 = vst.msk [vmem:[#allocation5 + $0x10] sm:$0xff] %vm2580, %v2537
      %2584 = vst.msk [vmem:[#allocation5 + $0x18] sm:$0xff] %vm2580, %v2539
      %2585 = vst.msk [vmem:[#allocation5 + $0x20] sm:$0xff] %vm2580, %v2541
      %2586 = vst.msk [vmem:[#allocation5 + $0x28] sm:$0xff] %vm2580, %v2543
      %2587 = vst.msk [vmem:[#allocation5 + $0x30] sm:$0xff] %vm2580, %v2545
      %2588 = vst.msk [vmem:[#allocation5 + $0x38] sm:$0xff] %vm2580, %v2547
      %2589 = vst.msk [vmem:[#allocation5 + $0x40] sm:$0xff] %vm2580, %v2549
      %2590 = vst.msk [vmem:[#allocation5 + $0x48] sm:$0xff] %vm2580, %v2551
      %2591 = vst.msk [vmem:[#allocation5 + $0x50] sm:$0xff] %vm2580, %v2553
      %2592 = vst.msk [vmem:[#allocation5 + $0x58] sm:$0xff] %vm2580, %v2555
      %2593 = vst.msk [vmem:[#allocation5 + $0x60] sm:$0xff] %vm2580, %v2557
      %2594 = vst.msk [vmem:[#allocation5 + $0x68] sm:$0xff] %vm2580, %v2559
      %2595 = vst.msk [vmem:[#allocation5 + $0x70] sm:$0xff] %vm2580, %v2561
      %2596 = vst.msk [vmem:[#allocation5 + $0x78] sm:$0xff] %vm2580, %v2563
      %v2600 = vrot.slane %v2075, 7
      %v2601 = vrot.slane %v2076, 7
      %v2602 = vsel %vm624, %v2600, %v2601
      %v2603 = vrot.slane %v2077, 7
      %v2604 = vsel %vm624, %v2601, %v2603
      %v2607 = vpack.c.bf16 %v2604, %v2602
      %2624 = vrot.lane.b32.xlu0 %v2244, 24
      %v2625 = vpop.permute.xlu0 %2624
      %2626 = vrot.lane.b32.xlu0 %v2245, 24
      %v2627 = vpop.permute.xlu0 %2626
      %2628 = vrot.lane.b32.xlu0 %v2246, 24
      %v2629 = vpop.permute.xlu0 %2628
      %2630 = vrot.lane.b32.xlu0 %v2247, 24
      %v2631 = vpop.permute.xlu0 %2630
      %2632 = vrot.lane.b32.xlu0 %v2248, 24
      %v2633 = vpop.permute.xlu0 %2632
      %2634 = vrot.lane.b32.xlu0 %v2249, 24
      %v2635 = vpop.permute.xlu0 %2634
      %2636 = vrot.lane.b32.xlu0 %v2250, 24
      %v2637 = vpop.permute.xlu0 %2636
      %2638 = vrot.lane.b32.xlu0 %v2251, 24
      %v2639 = vpop.permute.xlu0 %2638
      %2640 = vrot.lane.b32.xlu0 %v2252, 24
      %v2641 = vpop.permute.xlu0 %2640
      %2642 = vrot.lane.b32.xlu0 %v2253, 24
      %v2643 = vpop.permute.xlu0 %2642
      %2644 = vrot.lane.b32.xlu0 %v2254, 24
      %v2645 = vpop.permute.xlu0 %2644
      %2646 = vrot.lane.b32.xlu0 %v2255, 24
      %v2647 = vpop.permute.xlu0 %2646
      %2648 = vrot.lane.b32.xlu0 %v2256, 24
      %v2649 = vpop.permute.xlu0 %2648
      %2650 = vrot.lane.b32.xlu0 %v2257, 24
      %v2651 = vpop.permute.xlu0 %2650
      %2652 = vrot.lane.b32.xlu0 %v2258, 24
      %v2653 = vpop.permute.xlu0 %2652
      %2654 = vrot.lane.b32.xlu0 %v2607, 24
      %v2655 = vpop.permute.xlu0 %2654
      %vm2672 = vcmask 261312
      %2673 = vst.msk [vmem:[#allocation5] sm:$0xff] %vm2672, %v2625
      %2674 = vst.msk [vmem:[#allocation5 + $0x8] sm:$0xff] %vm2672, %v2627
      %2675 = vst.msk [vmem:[#allocation5 + $0x10] sm:$0xff] %vm2672, %v2629
      %2676 = vst.msk [vmem:[#allocation5 + $0x18] sm:$0xff] %vm2672, %v2631
      %2677 = vst.msk [vmem:[#allocation5 + $0x20] sm:$0xff] %vm2672, %v2633
      %2678 = vst.msk [vmem:[#allocation5 + $0x28] sm:$0xff] %vm2672, %v2635
      %2679 = vst.msk [vmem:[#allocation5 + $0x30] sm:$0xff] %vm2672, %v2637
      %2680 = vst.msk [vmem:[#allocation5 + $0x38] sm:$0xff] %vm2672, %v2639
      %2681 = vst.msk [vmem:[#allocation5 + $0x40] sm:$0xff] %vm2672, %v2641
      %2682 = vst.msk [vmem:[#allocation5 + $0x48] sm:$0xff] %vm2672, %v2643
      %2683 = vst.msk [vmem:[#allocation5 + $0x50] sm:$0xff] %vm2672, %v2645
      %2684 = vst.msk [vmem:[#allocation5 + $0x58] sm:$0xff] %vm2672, %v2647
      %2685 = vst.msk [vmem:[#allocation5 + $0x60] sm:$0xff] %vm2672, %v2649
      %2686 = vst.msk [vmem:[#allocation5 + $0x68] sm:$0xff] %vm2672, %v2651
      %2687 = vst.msk [vmem:[#allocation5 + $0x70] sm:$0xff] %vm2672, %v2653
      %2688 = vst.msk [vmem:[#allocation5 + $0x78] sm:$0xff] %vm2672, %v2655
      %v2689 = vpack.c.bf16 %v2077, %v2076
      %2691 = vrot.lane.b32.xlu0 %v2276, 32
      %v2692 = vpop.permute.xlu0 %2691
      %2693 = vrot.lane.b32.xlu0 %v2277, 32
      %v2694 = vpop.permute.xlu0 %2693
      %2695 = vrot.lane.b32.xlu0 %v2278, 32
      %v2696 = vpop.permute.xlu0 %2695
      %2697 = vrot.lane.b32.xlu0 %v2279, 32
      %v2698 = vpop.permute.xlu0 %2697
      %2699 = vrot.lane.b32.xlu0 %v2280, 32
      %v2700 = vpop.permute.xlu0 %2699
      %2701 = vrot.lane.b32.xlu0 %v2281, 32
      %v2702 = vpop.permute.xlu0 %2701
      %2703 = vrot.lane.b32.xlu0 %v2282, 32
      %v2704 = vpop.permute.xlu0 %2703
      %2705 = vrot.lane.b32.xlu0 %v2283, 32
      %v2706 = vpop.permute.xlu0 %2705
      %2707 = vrot.lane.b32.xlu0 %v2284, 32
      %v2708 = vpop.permute.xlu0 %2707
      %2709 = vrot.lane.b32.xlu0 %v2285, 32
      %v2710 = vpop.permute.xlu0 %2709
      %2711 = vrot.lane.b32.xlu0 %v2286, 32
      %v2712 = vpop.permute.xlu0 %2711
      %2713 = vrot.lane.b32.xlu0 %v2287, 32
      %v2714 = vpop.permute.xlu0 %2713
      %2715 = vrot.lane.b32.xlu0 %v2288, 32
      %v2716 = vpop.permute.xlu0 %2715
      %2717 = vrot.lane.b32.xlu0 %v2289, 32
      %v2718 = vpop.permute.xlu0 %2717
      %2719 = vrot.lane.b32.xlu0 %v2290, 32
      %v2720 = vpop.permute.xlu0 %2719
      %2721 = vrot.lane.b32.xlu0 %v2689, 32
      %v2722 = vpop.permute.xlu0 %2721
      %vm2739 = vcmask 326912
      %2740 = vst.msk [vmem:[#allocation5] sm:$0xff] %vm2739, %v2692
      %2741 = vst.msk [vmem:[#allocation5 + $0x8] sm:$0xff] %vm2739, %v2694
      %2742 = vst.msk [vmem:[#allocation5 + $0x10] sm:$0xff] %vm2739, %v2696
      %2743 = vst.msk [vmem:[#allocation5 + $0x18] sm:$0xff] %vm2739, %v2698
      %2744 = vst.msk [vmem:[#allocation5 + $0x20] sm:$0xff] %vm2739, %v2700
      %2745 = vst.msk [vmem:[#allocation5 + $0x28] sm:$0xff] %vm2739, %v2702
      %2746 = vst.msk [vmem:[#allocation5 + $0x30] sm:$0xff] %vm2739, %v2704
      %2747 = vst.msk [vmem:[#allocation5 + $0x38] sm:$0xff] %vm2739, %v2706
      %2748 = vst.msk [vmem:[#allocation5 + $0x40] sm:$0xff] %vm2739, %v2708
      %2749 = vst.msk [vmem:[#allocation5 + $0x48] sm:$0xff] %vm2739, %v2710
      %2750 = vst.msk [vmem:[#allocation5 + $0x50] sm:$0xff] %vm2739, %v2712
      %2751 = vst.msk [vmem:[#allocation5 + $0x58] sm:$0xff] %vm2739, %v2714
      %2752 = vst.msk [vmem:[#allocation5 + $0x60] sm:$0xff] %vm2739, %v2716
      %2753 = vst.msk [vmem:[#allocation5 + $0x68] sm:$0xff] %vm2739, %v2718
      %2754 = vst.msk [vmem:[#allocation5 + $0x70] sm:$0xff] %vm2739, %v2720
      %2755 = vst.msk [vmem:[#allocation5 + $0x78] sm:$0xff] %vm2739, %v2722
      %v2757 = vrot.slane %v2076, 1
      %v2758 = vrot.slane %v2077, 1
      %v2759 = vsel %vm882, %v2757, %v2758
      %v2760 = vrot.slane %v2078, 1
      %v2761 = vsel %vm882, %v2758, %v2760
      %v2764 = vpack.c.bf16 %v2761, %v2759
      %2766 = vrot.lane.b32.xlu0 %v2501, 40
      %v2767 = vpop.permute.xlu0 %2766
      %2768 = vrot.lane.b32.xlu0 %v2502, 40
      %v2769 = vpop.permute.xlu0 %2768
      %2770 = vrot.lane.b32.xlu0 %v2503, 40
      %v2771 = vpop.permute.xlu0 %2770
      %2772 = vrot.lane.b32.xlu0 %v2504, 40
      %v2773 = vpop.permute.xlu0 %2772
      %2774 = vrot.lane.b32.xlu0 %v2505, 40
      %v2775 = vpop.permute.xlu0 %2774
      %2776 = vrot.lane.b32.xlu0 %v2506, 40
      %v2777 = vpop.permute.xlu0 %2776
      %2778 = vrot.lane.b32.xlu0 %v2507, 40
      %v2779 = vpop.permute.xlu0 %2778
      %2780 = vrot.lane.b32.xlu0 %v2508, 40
      %v2781 = vpop.permute.xlu0 %2780
      %2782 = vrot.lane.b32.xlu0 %v2509, 40
      %v2783 = vpop.permute.xlu0 %2782
      %2784 = vrot.lane.b32.xlu0 %v2510, 40
      %v2785 = vpop.permute.xlu0 %2784
      %2786 = vrot.lane.b32.xlu0 %v2511, 40
      %v2787 = vpop.permute.xlu0 %2786
      %2788 = vrot.lane.b32.xlu0 %v2512, 40
      %v2789 = vpop.permute.xlu0 %2788
      %2790 = vrot.lane.b32.xlu0 %v2513, 40
      %v2791 = vpop.permute.xlu0 %2790
      %2792 = vrot.lane.b32.xlu0 %v2514, 40
      %v2793 = vpop.permute.xlu0 %2792
      %2794 = vrot.lane.b32.xlu0 %v2515, 40
      %v2795 = vpop.permute.xlu0 %2794
      %2796 = vrot.lane.b32.xlu0 %v2764, 40
      %v2797 = vpop.permute.xlu0 %2796
      %vm2814 = vcmask 392512
      %2815 = vst.msk [vmem:[#allocation5] sm:$0xff] %vm2814, %v2767
      %2816 = vst.msk [vmem:[#allocation5 + $0x8] sm:$0xff] %vm2814, %v2769
      %2817 = vst.msk [vmem:[#allocation5 + $0x10] sm:$0xff] %vm2814, %v2771
      %2818 = vst.msk [vmem:[#allocation5 + $0x18] sm:$0xff] %vm2814, %v2773
      %2819 = vst.msk [vmem:[#allocation5 + $0x20] sm:$0xff] %vm2814, %v2775
      %2820 = vst.msk [vmem:[#allocation5 + $0x28] sm:$0xff] %vm2814, %v2777
      %2821 = vst.msk [vmem:[#allocation5 + $0x30] sm:$0xff] %vm2814, %v2779
      %2822 = vst.msk [vmem:[#allocation5 + $0x38] sm:$0xff] %vm2814, %v2781
      %2823 = vst.msk [vmem:[#allocation5 + $0x40] sm:$0xff] %vm2814, %v2783
      %2824 = vst.msk [vmem:[#allocation5 + $0x48] sm:$0xff] %vm2814, %v2785
      %2825 = vst.msk [vmem:[#allocation5 + $0x50] sm:$0xff] %vm2814, %v2787
      %2826 = vst.msk [vmem:[#allocation5 + $0x58] sm:$0xff] %vm2814, %v2789
      %2827 = vst.msk [vmem:[#allocation5 + $0x60] sm:$0xff] %vm2814, %v2791
      %2828 = vst.msk [vmem:[#allocation5 + $0x68] sm:$0xff] %vm2814, %v2793
      %2829 = vst.msk [vmem:[#allocation5 + $0x70] sm:$0xff] %vm2814, %v2795
      %2830 = vst.msk [vmem:[#allocation5 + $0x78] sm:$0xff] %vm2814, %v2797
      %v2834 = vrot.slane %v2079, 7
      %v2835 = vrot.slane %v2080, 7
      %v2836 = vsel %vm624, %v2834, %v2835
      %v2837 = vrot.slane %v2081, 7
      %v2838 = vsel %vm624, %v2835, %v2837
      %v2841 = vpack.c.bf16 %v2838, %v2836
      %2843 = vrot.lane.b32.xlu0 %v2245, 48
      %v2844 = vpop.permute.xlu0 %2843
      %2845 = vrot.lane.b32.xlu0 %v2246, 48
      %v2846 = vpop.permute.xlu0 %2845
      %2847 = vrot.lane.b32.xlu0 %v2247, 48
      %v2848 = vpop.permute.xlu0 %2847
      %2849 = vrot.lane.b32.xlu0 %v2248, 48
      %v2850 = vpop.permute.xlu0 %2849
      %2851 = vrot.lane.b32.xlu0 %v2249, 48
      %v2852 = vpop.permute.xlu0 %2851
      %2853 = vrot.lane.b32.xlu0 %v2250, 48
      %v2854 = vpop.permute.xlu0 %2853
      %2855 = vrot.lane.b32.xlu0 %v2251, 48
      %v2856 = vpop.permute.xlu0 %2855
      %2857 = vrot.lane.b32.xlu0 %v2252, 48
      %v2858 = vpop.permute.xlu0 %2857
      %2859 = vrot.lane.b32.xlu0 %v2253, 48
      %v2860 = vpop.permute.xlu0 %2859
      %2861 = vrot.lane.b32.xlu0 %v2254, 48
      %v2862 = vpop.permute.xlu0 %2861
      %2863 = vrot.lane.b32.xlu0 %v2255, 48
      %v2864 = vpop.permute.xlu0 %2863
      %2865 = vrot.lane.b32.xlu0 %v2256, 48
      %v2866 = vpop.permute.xlu0 %2865
      %2867 = vrot.lane.b32.xlu0 %v2257, 48
      %v2868 = vpop.permute.xlu0 %2867
      %2869 = vrot.lane.b32.xlu0 %v2258, 48
      %v2870 = vpop.permute.xlu0 %2869
      %2871 = vrot.lane.b32.xlu0 %v2607, 48
      %v2872 = vpop.permute.xlu0 %2871
      %2873 = vrot.lane.b32.xlu0 %v2841, 48
      %v2874 = vpop.permute.xlu0 %2873
      %vm2891 = vcmask 458112
      %2892 = vst.msk [vmem:[#allocation5] sm:$0xff] %vm2891, %v2844
      %2893 = vst.msk [vmem:[#allocation5 + $0x8] sm:$0xff] %vm2891, %v2846
      %2894 = vst.msk [vmem:[#allocation5 + $0x10] sm:$0xff] %vm2891, %v2848
      %2895 = vst.msk [vmem:[#allocation5 + $0x18] sm:$0xff] %vm2891, %v2850
      %2896 = vst.msk [vmem:[#allocation5 + $0x20] sm:$0xff] %vm2891, %v2852
      %2897 = vst.msk [vmem:[#allocation5 + $0x28] sm:$0xff] %vm2891, %v2854
      %2898 = vst.msk [vmem:[#allocation5 + $0x30] sm:$0xff] %vm2891, %v2856
      %2899 = vst.msk [vmem:[#allocation5 + $0x38] sm:$0xff] %vm2891, %v2858
      %2900 = vst.msk [vmem:[#allocation5 + $0x40] sm:$0xff] %vm2891, %v2860
      %2901 = vst.msk [vmem:[#allocation5 + $0x48] sm:$0xff] %vm2891, %v2862
      %2902 = vst.msk [vmem:[#allocation5 + $0x50] sm:$0xff] %vm2891, %v2864
      %2903 = vst.msk [vmem:[#allocation5 + $0x58] sm:$0xff] %vm2891, %v2866
      %2904 = vst.msk [vmem:[#allocation5 + $0x60] sm:$0xff] %vm2891, %v2868
      %2905 = vst.msk [vmem:[#allocation5 + $0x68] sm:$0xff] %vm2891, %v2870
      %2906 = vst.msk [vmem:[#allocation5 + $0x70] sm:$0xff] %vm2891, %v2872
      %2907 = vst.msk [vmem:[#allocation5 + $0x78] sm:$0xff] %vm2891, %v2874
      %v2908 = vpack.c.bf16 %v2081, %v2080
      %2910 = vrot.lane.b32.xlu0 %v2277, 56
      %v2911 = vpop.permute.xlu0 %2910
      %2912 = vrot.lane.b32.xlu0 %v2278, 56
      %v2913 = vpop.permute.xlu0 %2912
      %2914 = vrot.lane.b32.xlu0 %v2279, 56
      %v2915 = vpop.permute.xlu0 %2914
      %2916 = vrot.lane.b32.xlu0 %v2280, 56
      %v2917 = vpop.permute.xlu0 %2916
      %2918 = vrot.lane.b32.xlu0 %v2281, 56
      %v2919 = vpop.permute.xlu0 %2918
      %2920 = vrot.lane.b32.xlu0 %v2282, 56
      %v2921 = vpop.permute.xlu0 %2920
      %2922 = vrot.lane.b32.xlu0 %v2283, 56
      %v2923 = vpop.permute.xlu0 %2922
      %2924 = vrot.lane.b32.xlu0 %v2284, 56
      %v2925 = vpop.permute.xlu0 %2924
      %2926 = vrot.lane.b32.xlu0 %v2285, 56
      %v2927 = vpop.permute.xlu0 %2926
      %2928 = vrot.lane.b32.xlu0 %v2286, 56
      %v2929 = vpop.permute.xlu0 %2928
      %2930 = vrot.lane.b32.xlu0 %v2287, 56
      %v2931 = vpop.permute.xlu0 %2930
      %2932 = vrot.lane.b32.xlu0 %v2288, 56
      %v2933 = vpop.permute.xlu0 %2932
      %2934 = vrot.lane.b32.xlu0 %v2289, 56
      %v2935 = vpop.permute.xlu0 %2934
      %2936 = vrot.lane.b32.xlu0 %v2290, 56
      %v2937 = vpop.permute.xlu0 %2936
      %2938 = vrot.lane.b32.xlu0 %v2689, 56
      %v2939 = vpop.permute.xlu0 %2938
      %2940 = vrot.lane.b32.xlu0 %v2908, 56
      %v2941 = vpop.permute.xlu0 %2940
      %vm2958 = vcmask 523712
      %2959 = vst.msk [vmem:[#allocation5] sm:$0xff] %vm2958, %v2911
      %2960 = vst.msk [vmem:[#allocation5 + $0x8] sm:$0xff] %vm2958, %v2913
      %2961 = vst.msk [vmem:[#allocation5 + $0x10] sm:$0xff] %vm2958, %v2915
      %2962 = vst.msk [vmem:[#allocation5 + $0x18] sm:$0xff] %vm2958, %v2917
      %2963 = vst.msk [vmem:[#allocation5 + $0x20] sm:$0xff] %vm2958, %v2919
      %2964 = vst.msk [vmem:[#allocation5 + $0x28] sm:$0xff] %vm2958, %v2921
      %2965 = vst.msk [vmem:[#allocation5 + $0x30] sm:$0xff] %vm2958, %v2923
      %2966 = vst.msk [vmem:[#allocation5 + $0x38] sm:$0xff] %vm2958, %v2925
      %2967 = vst.msk [vmem:[#allocation5 + $0x40] sm:$0xff] %vm2958, %v2927
      %2968 = vst.msk [vmem:[#allocation5 + $0x48] sm:$0xff] %vm2958, %v2929
      %2969 = vst.msk [vmem:[#allocation5 + $0x50] sm:$0xff] %vm2958, %v2931
      %2970 = vst.msk [vmem:[#allocation5 + $0x58] sm:$0xff] %vm2958, %v2933
      %2971 = vst.msk [vmem:[#allocation5 + $0x60] sm:$0xff] %vm2958, %v2935
      %2972 = vst.msk [vmem:[#allocation5 + $0x68] sm:$0xff] %vm2958, %v2937
      %2973 = vst.msk [vmem:[#allocation5 + $0x70] sm:$0xff] %vm2958, %v2939
      %2974 = vst.msk [vmem:[#allocation5 + $0x78] sm:$0xff] %vm2958, %v2941
      %v2976 = vrot.slane %v2080, 1
      %v2977 = vrot.slane %v2081, 1
      %v2978 = vsel %vm882, %v2976, %v2977
      %v2979 = vrot.slane %v2082, 1
      %v2980 = vsel %vm882, %v2977, %v2979
      %v2983 = vpack.c.bf16 %v2980, %v2978
      %2985 = vrot.lane.b32.xlu0 %v2502, 64
      %v2986 = vpop.permute.xlu0 %2985
      %2987 = vrot.lane.b32.xlu0 %v2503, 64
      %v2988 = vpop.permute.xlu0 %2987
      %2989 = vrot.lane.b32.xlu0 %v2504, 64
      %v2990 = vpop.permute.xlu0 %2989
      %2991 = vrot.lane.b32.xlu0 %v2505, 64
      %v2992 = vpop.permute.xlu0 %2991
      %2993 = vrot.lane.b32.xlu0 %v2506, 64
      %v2994 = vpop.permute.xlu0 %2993
      %2995 = vrot.lane.b32.xlu0 %v2507, 64
      %v2996 = vpop.permute.xlu0 %2995
      %2997 = vrot.lane.b32.xlu0 %v2508, 64
      %v2998 = vpop.permute.xlu0 %2997
      %2999 = vrot.lane.b32.xlu0 %v2509, 64
      %v3000 = vpop.permute.xlu0 %2999
      %3001 = vrot.lane.b32.xlu0 %v2510, 64
      %v3002 = vpop.permute.xlu0 %3001
      %3003 = vrot.lane.b32.xlu0 %v2511, 64
      %v3004 = vpop.permute.xlu0 %3003
      %3005 = vrot.lane.b32.xlu0 %v2512, 64
      %v3006 = vpop.permute.xlu0 %3005
      %3007 = vrot.lane.b32.xlu0 %v2513, 64
      %v3008 = vpop.permute.xlu0 %3007
      %3009 = vrot.lane.b32.xlu0 %v2514, 64
      %v3010 = vpop.permute.xlu0 %3009
      %3011 = vrot.lane.b32.xlu0 %v2515, 64
      %v3012 = vpop.permute.xlu0 %3011
      %3013 = vrot.lane.b32.xlu0 %v2764, 64
      %v3014 = vpop.permute.xlu0 %3013
      %3015 = vrot.lane.b32.xlu0 %v2983, 64
      %v3016 = vpop.permute.xlu0 %3015
      %vm3033 = vcmask 589312
      %3034 = vst.msk [vmem:[#allocation5] sm:$0xff] %vm3033, %v2986
      %3035 = vst.msk [vmem:[#allocation5 + $0x8] sm:$0xff] %vm3033, %v2988
      %3036 = vst.msk [vmem:[#allocation5 + $0x10] sm:$0xff] %vm3033, %v2990
      %3037 = vst.msk [vmem:[#allocation5 + $0x18] sm:$0xff] %vm3033, %v2992
      %3038 = vst.msk [vmem:[#allocation5 + $0x20] sm:$0xff] %vm3033, %v2994
      %3039 = vst.msk [vmem:[#allocation5 + $0x28] sm:$0xff] %vm3033, %v2996
      %3040 = vst.msk [vmem:[#allocation5 + $0x30] sm:$0xff] %vm3033, %v2998
      %3041 = vst.msk [vmem:[#allocation5 + $0x38] sm:$0xff] %vm3033, %v3000
      %3042 = vst.msk [vmem:[#allocation5 + $0x40] sm:$0xff] %vm3033, %v3002
      %3043 = vst.msk [vmem:[#allocation5 + $0x48] sm:$0xff] %vm3033, %v3004
      %3044 = vst.msk [vmem:[#allocation5 + $0x50] sm:$0xff] %vm3033, %v3006
      %3045 = vst.msk [vmem:[#allocation5 + $0x58] sm:$0xff] %vm3033, %v3008
      %3046 = vst.msk [vmem:[#allocation5 + $0x60] sm:$0xff] %vm3033, %v3010
      %3047 = vst.msk [vmem:[#allocation5 + $0x68] sm:$0xff] %vm3033, %v3012
      %3048 = vst.msk [vmem:[#allocation5 + $0x70] sm:$0xff] %vm3033, %v3014
      %3049 = vst.msk [vmem:[#allocation5 + $0x78] sm:$0xff] %vm3033, %v3016
      %v3050 = vld [vmem:[#allocation5] sm:$0xff]
      %v3051 = vld [vmem:[#allocation5 + $0x8] sm:$0xff]
      %v3052 = vld [vmem:[#allocation5 + $0x10] sm:$0xff]
      %v3053 = vld [vmem:[#allocation5 + $0x18] sm:$0xff]
      %v3054 = vld [vmem:[#allocation5 + $0x20] sm:$0xff]
      %v3055 = vld [vmem:[#allocation5 + $0x28] sm:$0xff]
      %v3056 = vld [vmem:[#allocation5 + $0x30] sm:$0xff]
      %v3057 = vld [vmem:[#allocation5 + $0x38] sm:$0xff]
      %v3058 = vld [vmem:[#allocation5 + $0x40] sm:$0xff]
      %v3059 = vld [vmem:[#allocation5 + $0x48] sm:$0xff]
      %v3060 = vld [vmem:[#allocation5 + $0x50] sm:$0xff]
      %v3061 = vld [vmem:[#allocation5 + $0x58] sm:$0xff]
      %v3062 = vld [vmem:[#allocation5 + $0x60] sm:$0xff]
      %v3063 = vld [vmem:[#allocation5 + $0x68] sm:$0xff]
      %v3064 = vld [vmem:[#allocation5 + $0x70] sm:$0xff]
      %v3065 = vld [vmem:[#allocation5 + $0x78] sm:$0xff]
      %v3066 = vld [vmem:[%s4] sm:$0xf]
      %v3067 = vld [vmem:[%s4 + $0x4] sm:$0xf]
      %v3068 = vld [vmem:[%s4 + $0x8] sm:$0xf]
      %v3069 = vld [vmem:[%s4 + $0xc] sm:$0xf]
      %v3070 = vld [vmem:[%s4 + $0x10] sm:$0xf]
      %v3071 = vld [vmem:[%s4 + $0x14] sm:$0xf]
      %v3072 = vld [vmem:[%s4 + $0x18] sm:$0xf]
      %v3073 = vld [vmem:[%s4 + $0x1c] sm:$0xf]
      %v3074 = vld [vmem:[%s4 + $0x20] sm:$0xf]
      %v3084 = vunpack.c.l.b16 %v3066
      %v3085 = vunpack.c.l.b16 %v3067
      %v3086 = vunpack.c.l.b16 %v3068
      %v3087 = vunpack.c.l.b16 %v3069
      %v3088 = vunpack.c.l.b16 %v3070
      %v3089 = vunpack.c.l.b16 %v3071
      %v3090 = vunpack.c.l.b16 %v3072
      %v3091 = vunpack.c.l.b16 %v3073
      %v3092 = vunpack.c.l.b16 %v3074
      %v3093 = vpack.c.b16 %v3085, %v3084
      %v3094 = vpack.c.b16 %v3087, %v3086
      %v3095 = vpack.c.b16 %v3089, %v3088
      %v3096 = vpack.c.b16 %v3091, %v3090
      %v3097 = vpack.c.b16 %v3092, %v3092
      %vm3102 = vcmask 588800
      %v3104 = vsel %vm3102, %v3050, 0
      %v3107 = vsel %vm3102, %v3051, 0
      %v3110 = vsel %vm3102, %v3052, 0
      %v3113 = vsel %vm3102, %v3053, 0
      %v3116 = vsel %vm3102, %v3054, 0
      %v3119 = vsel %vm3102, %v3055, 0
      %v3122 = vsel %vm3102, %v3056, 0
      %v3125 = vsel %vm3102, %v3057, 0
      %v3128 = vsel %vm3102, %v3058, 0
      %v3131 = vsel %vm3102, %v3059, 0
      %v3134 = vsel %vm3102, %v3060, 0
      %v3137 = vsel %vm3102, %v3061, 0
      %v3140 = vsel %vm3102, %v3062, 0
      %v3143 = vsel %vm3102, %v3063, 0
      %v3146 = vsel %vm3102, %v3064, 0
      %v3149 = vsel %vm3102, %v3065, 0
      %vm3151 = vcmask 1043456
      %v3153 = vsel %vm3151, %v3097, 0
      %3155 = vmatprep.subr.bf16.mxu0 0
      %3156 = vmatpush1.bf16.msra.mxu0 %v3093
      %3157 = vmatprep.subr.bf16.mxu0 0
      %3158 = vmatpush1.bf16.msra.mxu0 %v3094
      %3159 = vmatprep.subr.bf16.mxu0 0
      %3160 = vmatpush1.bf16.msra.mxu0 %v3095
      %3161 = vmatprep.subr.bf16.mxu0 0
      %3162 = vmatpush1.bf16.msra.mxu0 %v3096
      %3163 = vmatprep.subr.bf16.mxu0 0
      %3164 = vmatpush1.bf16.msra.mxu0 %v3153
      %3165 = vmatprep.subr.bf16.mxu0 0
      %3166 = vmatpush1.bf16.msra.mxu0 0
      %3167 = vmatprep.subr.bf16.mxu0 0
      %3168 = vmatpush1.bf16.msra.mxu0 0
      %3169 = vmatprep.subr.bf16.mxu0 0
      %3170 = vmatpush1.bf16.msra.mxu0 0
      %3171 = vmatprep.subr.bf16.mxu0 0
      %3172 = vmatpush1.bf16.msra.mxu0 0
      %3173 = vmatprep.subr.bf16.mxu0 0
      %3174 = vmatpush1.bf16.msra.mxu0 0
      %3175 = vmatprep.subr.bf16.mxu0 0
      %3176 = vmatpush1.bf16.msra.mxu0 0
      %3177 = vmatprep.subr.bf16.mxu0 0
      %3178 = vmatpush1.bf16.msra.mxu0 0
      %3179 = vmatprep.subr.bf16.mxu0 0
      %3180 = vmatpush1.bf16.msra.mxu0 0
      %3181 = vmatprep.subr.bf16.mxu0 0
      %3182 = vmatpush1.bf16.msra.mxu0 0
      %3183 = vmatprep.subr.bf16.mxu0 0
      %3184 = vmatpush1.bf16.msra.mxu0 0
      %3185 = vmatprep.subr.bf16.mxu0 0
      %3186 = vmatpush1.bf16.msra.mxu0 0
      %3187 = vmatprep.mubr.bf16.mxu0 0
      %3188 = vmatmul.mubr.bf16.gmra.mrb[0].mxu0 %v3104
      %v3189 = vpop.f32.mrb[0].mxu0
      %v3190 = vadd.f32 0.0, %v3189
      %v3191 = vpop.f32.mrb[0].mxu0
      %v3192 = vpop.f32.mrb[0].mxu0
      %v3193 = vadd.f32 0.0, %v3192
      %v3194 = vpop.f32.mrb[0].mxu0
      %3195 = vmatprep.mubr.bf16.mxu0 0
      %3196 = vmatmul.mubr.bf16.gmra.mrb[0].mxu0 %v3107
      %v3197 = vpop.f32.mrb[0].mxu0
      %v3198 = vadd.f32 0.0, %v3197
      %v3199 = vpop.f32.mrb[0].mxu0
      %v3200 = vpop.f32.mrb[0].mxu0
      %v3201 = vadd.f32 0.0, %v3200
      %v3202 = vpop.f32.mrb[0].mxu0
      %3203 = vmatprep.mubr.bf16.mxu0 0
      %3204 = vmatmul.mubr.bf16.gmra.mrb[0].mxu0 %v3110
      %v3205 = vpop.f32.mrb[0].mxu0
      %v3206 = vadd.f32 0.0, %v3205
      %v3207 = vpop.f32.mrb[0].mxu0
      %v3208 = vpop.f32.mrb[0].mxu0
      %v3209 = vadd.f32 0.0, %v3208
      %v3210 = vpop.f32.mrb[0].mxu0
      %3211 = vmatprep.mubr.bf16.mxu0 0
      %3212 = vmatmul.mubr.bf16.gmra.mrb[0].mxu0 %v3113
      %v3213 = vpop.f32.mrb[0].mxu0
      %v3214 = vadd.f32 0.0, %v3213
      %v3215 = vpop.f32.mrb[0].mxu0
      %v3216 = vpop.f32.mrb[0].mxu0
      %v3217 = vadd.f32 0.0, %v3216
      %v3218 = vpop.f32.mrb[0].mxu0
      %3219 = vmatprep.mubr.bf16.mxu0 0
      %3220 = vmatmul.mubr.bf16.gmra.mrb[0].mxu0 %v3116
      %v3221 = vpop.f32.mrb[0].mxu0
      %v3222 = vadd.f32 0.0, %v3221
      %v3223 = vpop.f32.mrb[0].mxu0
      %v3224 = vpop.f32.mrb[0].mxu0
      %v3225 = vadd.f32 0.0, %v3224
      %v3226 = vpop.f32.mrb[0].mxu0
      %3227 = vmatprep.mubr.bf16.mxu0 0
      %3228 = vmatmul.mubr.bf16.gmra.mrb[0].mxu0 %v3119
      %v3229 = vpop.f32.mrb[0].mxu0
      %v3230 = vadd.f32 0.0, %v3229
      %v3231 = vpop.f32.mrb[0].mxu0
      %v3232 = vpop.f32.mrb[0].mxu0
      %v3233 = vadd.f32 0.0, %v3232
      %v3234 = vpop.f32.mrb[0].mxu0
      %3235 = vmatprep.mubr.bf16.mxu0 0
      %3236 = vmatmul.mubr.bf16.gmra.mrb[0].mxu0 %v3122
      %v3237 = vpop.f32.mrb[0].mxu0
      %v3238 = vadd.f32 0.0, %v3237
      %v3239 = vpop.f32.mrb[0].mxu0
      %v3240 = vpop.f32.mrb[0].mxu0
      %v3241 = vadd.f32 0.0, %v3240
      %v3242 = vpop.f32.mrb[0].mxu0
      %3243 = vmatprep.mubr.bf16.mxu0 0
      %3244 = vmatmul.mubr.bf16.gmra.mrb[0].mxu0 %v3125
      %v3245 = vpop.f32.mrb[0].mxu0
      %v3246 = vadd.f32 0.0, %v3245
      %v3247 = vpop.f32.mrb[0].mxu0
      %v3248 = vpop.f32.mrb[0].mxu0
      %v3249 = vadd.f32 0.0, %v3248
      %v3250 = vpop.f32.mrb[0].mxu0
      %3251 = vmatprep.mubr.bf16.mxu0 0
      %3252 = vmatmul.mubr.bf16.gmra.mrb[0].mxu0 %v3128
      %v3253 = vpop.f32.mrb[0].mxu0
      %v3254 = vadd.f32 0.0, %v3253
      %v3255 = vpop.f32.mrb[0].mxu0
      %v3256 = vpop.f32.mrb[0].mxu0
      %v3257 = vadd.f32 0.0, %v3256
      %v3258 = vpop.f32.mrb[0].mxu0
      %3259 = vmatprep.mubr.bf16.mxu0 0
      %3260 = vmatmul.mubr.bf16.gmra.mrb[0].mxu0 %v3131
      %v3261 = vpop.f32.mrb[0].mxu0
      %v3262 = vadd.f32 0.0, %v3261
      %v3263 = vpop.f32.mrb[0].mxu0
      %v3264 = vpop.f32.mrb[0].mxu0
      %v3265 = vadd.f32 0.0, %v3264
      %v3266 = vpop.f32.mrb[0].mxu0
      %3267 = vmatprep.mubr.bf16.mxu0 0
      %3268 = vmatmul.mubr.bf16.gmra.mrb[0].mxu0 %v3134
      %v3269 = vpop.f32.mrb[0].mxu0
      %v3270 = vadd.f32 0.0, %v3269
      %v3271 = vpop.f32.mrb[0].mxu0
      %v3272 = vpop.f32.mrb[0].mxu0
      %v3273 = vadd.f32 0.0, %v3272
      %v3274 = vpop.f32.mrb[0].mxu0
      %3275 = vmatprep.mubr.bf16.mxu0 0
      %3276 = vmatmul.mubr.bf16.gmra.mrb[0].mxu0 %v3137
      %v3277 = vpop.f32.mrb[0].mxu0
      %v3278 = vadd.f32 0.0, %v3277
      %v3279 = vpop.f32.mrb[0].mxu0
      %v3280 = vpop.f32.mrb[0].mxu0
      %v3281 = vadd.f32 0.0, %v3280
      %v3282 = vpop.f32.mrb[0].mxu0
      %3283 = vmatprep.mubr.bf16.mxu0 0
      %3284 = vmatmul.mubr.bf16.gmra.mrb[0].mxu0 %v3140
      %v3285 = vpop.f32.mrb[0].mxu0
      %v3286 = vadd.f32 0.0, %v3285
      %v3287 = vpop.f32.mrb[0].mxu0
      %v3288 = vpop.f32.mrb[0].mxu0
      %v3289 = vadd.f32 0.0, %v3288
      %v3290 = vpop.f32.mrb[0].mxu0
      %3291 = vmatprep.mubr.bf16.mxu0 0
      %3292 = vmatmul.mubr.bf16.gmra.mrb[0].mxu0 %v3143
      %v3293 = vpop.f32.mrb[0].mxu0
      %v3294 = vadd.f32 0.0, %v3293
      %v3295 = vpop.f32.mrb[0].mxu0
      %v3296 = vpop.f32.mrb[0].mxu0
      %v3297 = vadd.f32 0.0, %v3296
      %v3298 = vpop.f32.mrb[0].mxu0
      %3299 = vmatprep.mubr.bf16.mxu0 0
      %3300 = vmatmul.mubr.bf16.gmra.mrb[0].mxu0 %v3146
      %v3301 = vpop.f32.mrb[0].mxu0
      %v3302 = vadd.f32 0.0, %v3301
      %v3303 = vpop.f32.mrb[0].mxu0
      %v3304 = vpop.f32.mrb[0].mxu0
      %v3305 = vadd.f32 0.0, %v3304
      %v3306 = vpop.f32.mrb[0].mxu0
      %3307 = vmatprep.mubr.bf16.mxu0 0
      %3308 = vmatmul.mubr.bf16.gmra.mrb[0].mxu0 %v3149
      %v3309 = vpop.f32.mrb[0].mxu0
      %v3310 = vadd.f32 0.0, %v3309
      %v3311 = vpop.f32.mrb[0].mxu0
      %v3312 = vpop.f32.mrb[0].mxu0
      %v3313 = vadd.f32 0.0, %v3312
      %v3314 = vpop.f32.mrb[0].mxu0
      %3315 = vdwg.mxu0
      %v3316 = vld [vmem:[%s5] sm:$0x1]
      %v3318 = vlaneseq
      %v3319 = vshrl.u32 %v3318, 7
      %v3320 = vsub.s32 0, %v3319
      %v3321 = vrot.slane %v3316, %v3320
      %v3323 = vmul.f32 %v3190, %v3321
      %v3324 = vmul.f32 %v3193, %v3321
      %v3325 = vmul.f32 %v3198, %v3321
      %v3326 = vmul.f32 %v3201, %v3321
      %v3327 = vmul.f32 %v3206, %v3321
      %v3328 = vmul.f32 %v3209, %v3321
      %v3329 = vmul.f32 %v3214, %v3321
      %v3330 = vmul.f32 %v3217, %v3321
      %v3331 = vmul.f32 %v3222, %v3321
      %v3332 = vmul.f32 %v3225, %v3321
      %v3333 = vmul.f32 %v3230, %v3321
      %v3334 = vmul.f32 %v3233, %v3321
      %v3335 = vmul.f32 %v3238, %v3321
      %v3336 = vmul.f32 %v3241, %v3321
      %v3337 = vmul.f32 %v3246, %v3321
      %v3338 = vmul.f32 %v3249, %v3321
      %v3339 = vmul.f32 %v3254, %v3321
      %v3340 = vmul.f32 %v3257, %v3321
      %v3341 = vmul.f32 %v3262, %v3321
      %v3342 = vmul.f32 %v3265, %v3321
      %v3343 = vmul.f32 %v3270, %v3321
      %v3344 = vmul.f32 %v3273, %v3321
      %v3345 = vmul.f32 %v3278, %v3321
      %v3346 = vmul.f32 %v3281, %v3321
      %v3347 = vmul.f32 %v3286, %v3321
      %v3348 = vmul.f32 %v3289, %v3321
      %v3349 = vmul.f32 %v3294, %v3321
      %v3350 = vmul.f32 %v3297, %v3321
      %v3351 = vmul.f32 %v3302, %v3321
      %v3352 = vmul.f32 %v3305, %v3321
      %v3353 = vmul.f32 %v3310, %v3321
      %v3354 = vmul.f32 %v3313, %v3321
      %v3355 = vld [vmem:[%s6] sm:$0x1]
      %v3357 = vlaneseq
      %v3358 = vshrl.u32 %v3357, 7
      %v3359 = vsub.s32 0, %v3358
      %v3360 = vrot.slane %v3355, %v3359
      %v3362 = vadd.f32 %v3323, %v3360
      %v3363 = vadd.f32 %v3324, %v3360
      %v3364 = vadd.f32 %v3325, %v3360
      %v3365 = vadd.f32 %v3326, %v3360
      %v3366 = vadd.f32 %v3327, %v3360
      %v3367 = vadd.f32 %v3328, %v3360
      %v3368 = vadd.f32 %v3329, %v3360
      %v3369 = vadd.f32 %v3330, %v3360
      %v3370 = vadd.f32 %v3331, %v3360
      %v3371 = vadd.f32 %v3332, %v3360
      %v3372 = vadd.f32 %v3333, %v3360
      %v3373 = vadd.f32 %v3334, %v3360
      %v3374 = vadd.f32 %v3335, %v3360
      %v3375 = vadd.f32 %v3336, %v3360
      %v3376 = vadd.f32 %v3337, %v3360
      %v3377 = vadd.f32 %v3338, %v3360
      %v3378 = vadd.f32 %v3339, %v3360
      %v3379 = vadd.f32 %v3340, %v3360
      %v3380 = vadd.f32 %v3341, %v3360
      %v3381 = vadd.f32 %v3342, %v3360
      %v3382 = vadd.f32 %v3343, %v3360
      %v3383 = vadd.f32 %v3344, %v3360
      %v3384 = vadd.f32 %v3345, %v3360
      %v3385 = vadd.f32 %v3346, %v3360
      %v3386 = vadd.f32 %v3347, %v3360
      %v3387 = vadd.f32 %v3348, %v3360
      %v3388 = vadd.f32 %v3349, %v3360
      %v3389 = vadd.f32 %v3350, %v3360
      %v3390 = vadd.f32 %v3351, %v3360
      %v3391 = vadd.f32 %v3352, %v3360
      %v3392 = vadd.f32 %v3353, %v3360
      %v3393 = vadd.f32 %v3354, %v3360
      %v3394 = vmax.f32 %v3362, 0.0
      %v3395 = vmax.f32 %v3363, 0.0
      %v3396 = vmax.f32 %v3364, 0.0
      %v3397 = vmax.f32 %v3365, 0.0
      %v3398 = vmax.f32 %v3366, 0.0
      %v3399 = vmax.f32 %v3367, 0.0
      %v3400 = vmax.f32 %v3368, 0.0
      %v3401 = vmax.f32 %v3369, 0.0
      %v3402 = vmax.f32 %v3370, 0.0
      %v3403 = vmax.f32 %v3371, 0.0
      %v3404 = vmax.f32 %v3372, 0.0
      %v3405 = vmax.f32 %v3373, 0.0
      %v3406 = vmax.f32 %v3374, 0.0
      %v3407 = vmax.f32 %v3375, 0.0
      %v3408 = vmax.f32 %v3376, 0.0
      %v3409 = vmax.f32 %v3377, 0.0
      %v3410 = vmax.f32 %v3378, 0.0
      %v3411 = vmax.f32 %v3379, 0.0
      %v3412 = vmax.f32 %v3380, 0.0
      %v3413 = vmax.f32 %v3381, 0.0
      %v3414 = vmax.f32 %v3382, 0.0
      %v3415 = vmax.f32 %v3383, 0.0
      %v3416 = vmax.f32 %v3384, 0.0
      %v3417 = vmax.f32 %v3385, 0.0
      %v3418 = vmax.f32 %v3386, 0.0
      %v3419 = vmax.f32 %v3387, 0.0
      %v3420 = vmax.f32 %v3388, 0.0
      %v3421 = vmax.f32 %v3389, 0.0
      %v3422 = vmax.f32 %v3390, 0.0
      %v3423 = vmax.f32 %v3391, 0.0
      %v3424 = vmax.f32 %v3392, 0.0
      %v3425 = vmax.f32 %v3393, 0.0
      %v3426 = vpack.c.bf16 %v367, %v366
      %v3427 = vpack.c.bf16 %v369, %v368
      %v3428 = vpack.c.bf16 %v371, %v370
      %v3429 = vpack.c.bf16 %v373, %v372
      %v3430 = vpack.c.bf16 %v375, %v374
      %v3431 = vpack.c.bf16 %v377, %v376
      %v3432 = vpack.c.bf16 %v379, %v378
      %v3433 = vpack.c.bf16 %v381, %v380
      %v3434 = vpack.c.bf16 %v383, %v382
      %v3435 = vpack.c.bf16 %v385, %v384
      %v3436 = vpack.c.bf16 %v387, %v386
      %v3437 = vpack.c.bf16 %v389, %v388
      %v3438 = vpack.c.bf16 %v391, %v390
      %v3439 = vpack.c.bf16 %v393, %v392
      %v3440 = vpack.c.bf16 %v395, %v394
      %v3441 = vpack.c.bf16 %v397, %v396
      %v3442 = vld [vmem:[%s7] sm:$0x3]
      %v3443 = vld [vmem:[%s8] sm:$0x1]
      %v3445 = vlaneseq
      %v3446 = vshrl.u32 %v3445, 7
      %v3447 = vsub.s32 0, %v3446
      %v3448 = vrot.slane %v3443, %v3447
      %v3451 = vsel %vm398, %v3426, 0
      %v3454 = vsel %vm398, %v3427, 0
      %v3457 = vsel %vm398, %v3428, 0
      %v3460 = vsel %vm398, %v3429, 0
      %v3463 = vsel %vm398, %v3430, 0
      %v3466 = vsel %vm398, %v3431, 0
      %v3469 = vsel %vm398, %v3432, 0
      %v3472 = vsel %vm398, %v3433, 0
      %v3475 = vsel %vm398, %v3434, 0
      %v3478 = vsel %vm398, %v3435, 0
      %v3481 = vsel %vm398, %v3436, 0
      %v3484 = vsel %vm398, %v3437, 0
      %v3487 = vsel %vm398, %v3438, 0
      %v3490 = vsel %vm398, %v3439, 0
      %v3493 = vsel %vm398, %v3440, 0
      %v3496 = vsel %vm398, %v3441, 0
      %v3499 = vsel %vm1630, %v3442, 0
      %3501 = vmatprep.subr.bf16.mxu0 0
      %3502 = vmatpush1.bf16.msra.mxu0 %v3499
      %3503 = vmatprep.subr.bf16.mxu0 0
      %3504 = vmatpush1.bf16.msra.mxu0 0
      %3505 = vmatprep.subr.bf16.mxu0 0
      %3506 = vmatpush1.bf16.msra.mxu0 0
      %3507 = vmatprep.subr.bf16.mxu0 0
      %3508 = vmatpush1.bf16.msra.mxu0 0
      %3509 = vmatprep.subr.bf16.mxu0 0
      %3510 = vmatpush1.bf16.msra.mxu0 0
      %3511 = vmatprep.subr.bf16.mxu0 0
      %3512 = vmatpush1.bf16.msra.mxu0 0
      %3513 = vmatprep.subr.bf16.mxu0 0
      %3514 = vmatpush1.bf16.msra.mxu0 0
      %3515 = vmatprep.subr.bf16.mxu0 0
      %3516 = vmatpush1.bf16.msra.mxu0 0
      %3517 = vmatprep.subr.bf16.mxu0 0
      %3518 = vmatpush1.bf16.msra.mxu0 0
      %3519 = vmatprep.subr.bf16.mxu0 0
      %3520 = vmatpush1.bf16.msra.mxu0 0
      %3521 = vmatprep.subr.bf16.mxu0 0
      %3522 = vmatpush1.bf16.msra.mxu0 0
      %3523 = vmatprep.subr.bf16.mxu0 0
      %3524 = vmatpush1.bf16.msra.mxu0 0
      %3525 = vmatprep.subr.bf16.mxu0 0
      %3526 = vmatpush1.bf16.msra.mxu0 0
      %3527 = vmatprep.subr.bf16.mxu0 0
      %3528 = vmatpush1.bf16.msra.mxu0 0
      %3529 = vmatprep.subr.bf16.mxu0 0
      %3530 = vmatpush1.bf16.msra.mxu0 0
      %3531 = vmatprep.subr.bf16.mxu0 0
      %3532 = vmatpush1.bf16.msra.mxu0 0
      %3533 = vmatprep.mubr.bf16.mxu0 0
      %3534 = vmatmul.mubr.bf16.gmra.mrb[0].mxu0 %v3451
      %v3535 = vpop.f32.mrb[0].mxu0
      %v3536 = vadd.f32 %v3448, %v3535
      %v3537 = vpop.f32.mrb[0].mxu0
      %v3538 = vpop.f32.mrb[0].mxu0
      %v3539 = vadd.f32 %v3448, %v3538
      %v3540 = vpop.f32.mrb[0].mxu0
      %3541 = vmatprep.mubr.bf16.mxu0 0
      %3542 = vmatmul.mubr.bf16.gmra.mrb[0].mxu0 %v3454
      %v3543 = vpop.f32.mrb[0].mxu0
      %v3544 = vadd.f32 %v3448, %v3543
      %v3545 = vpop.f32.mrb[0].mxu0
      %v3546 = vpop.f32.mrb[0].mxu0
      %v3547 = vadd.f32 %v3448, %v3546
      %v3548 = vpop.f32.mrb[0].mxu0
      %3549 = vmatprep.mubr.bf16.mxu0 0
      %3550 = vmatmul.mubr.bf16.gmra.mrb[0].mxu0 %v3457
      %v3551 = vpop.f32.mrb[0].mxu0
      %v3552 = vadd.f32 %v3448, %v3551
      %v3553 = vpop.f32.mrb[0].mxu0
      %v3554 = vpop.f32.mrb[0].mxu0
      %v3555 = vadd.f32 %v3448, %v3554
      %v3556 = vpop.f32.mrb[0].mxu0
      %3557 = vmatprep.mubr.bf16.mxu0 0
      %3558 = vmatmul.mubr.bf16.gmra.mrb[0].mxu0 %v3460
      %v3559 = vpop.f32.mrb[0].mxu0
      %v3560 = vadd.f32 %v3448, %v3559
      %v3561 = vpop.f32.mrb[0].mxu0
      %v3562 = vpop.f32.mrb[0].mxu0
      %v3563 = vadd.f32 %v3448, %v3562
      %v3564 = vpop.f32.mrb[0].mxu0
      %3565 = vmatprep.mubr.bf16.mxu0 0
      %3566 = vmatmul.mubr.bf16.gmra.mrb[0].mxu0 %v3463
      %v3567 = vpop.f32.mrb[0].mxu0
      %v3568 = vadd.f32 %v3448, %v3567
      %v3569 = vpop.f32.mrb[0].mxu0
      %v3570 = vpop.f32.mrb[0].mxu0
      %v3571 = vadd.f32 %v3448, %v3570
      %v3572 = vpop.f32.mrb[0].mxu0
      %3573 = vmatprep.mubr.bf16.mxu0 0
      %3574 = vmatmul.mubr.bf16.gmra.mrb[0].mxu0 %v3466
      %v3575 = vpop.f32.mrb[0].mxu0
      %v3576 = vadd.f32 %v3448, %v3575
      %v3577 = vpop.f32.mrb[0].mxu0
      %v3578 = vpop.f32.mrb[0].mxu0
      %v3579 = vadd.f32 %v3448, %v3578
      %v3580 = vpop.f32.mrb[0].mxu0
      %3581 = vmatprep.mubr.bf16.mxu0 0
      %3582 = vmatmul.mubr.bf16.gmra.mrb[0].mxu0 %v3469
      %v3583 = vpop.f32.mrb[0].mxu0
      %v3584 = vadd.f32 %v3448, %v3583
      %v3585 = vpop.f32.mrb[0].mxu0
      %v3586 = vpop.f32.mrb[0].mxu0
      %v3587 = vadd.f32 %v3448, %v3586
      %v3588 = vpop.f32.mrb[0].mxu0
      %3589 = vmatprep.mubr.bf16.mxu0 0
      %3590 = vmatmul.mubr.bf16.gmra.mrb[0].mxu0 %v3472
      %v3591 = vpop.f32.mrb[0].mxu0
      %v3592 = vadd.f32 %v3448, %v3591
      %v3593 = vpop.f32.mrb[0].mxu0
      %v3594 = vpop.f32.mrb[0].mxu0
      %v3595 = vadd.f32 %v3448, %v3594
      %v3596 = vpop.f32.mrb[0].mxu0
      %3597 = vmatprep.mubr.bf16.mxu0 0
      %3598 = vmatmul.mubr.bf16.gmra.mrb[0].mxu0 %v3475
      %v3599 = vpop.f32.mrb[0].mxu0
      %v3600 = vadd.f32 %v3448, %v3599
      %v3601 = vpop.f32.mrb[0].mxu0
      %v3602 = vpop.f32.mrb[0].mxu0
      %v3603 = vadd.f32 %v3448, %v3602
      %v3604 = vpop.f32.mrb[0].mxu0
      %3605 = vmatprep.mubr.bf16.mxu0 0
      %3606 = vmatmul.mubr.bf16.gmra.mrb[0].mxu0 %v3478
      %v3607 = vpop.f32.mrb[0].mxu0
      %v3608 = vadd.f32 %v3448, %v3607
      %v3609 = vpop.f32.mrb[0].mxu0
      %v3610 = vpop.f32.mrb[0].mxu0
      %v3611 = vadd.f32 %v3448, %v3610
      %v3612 = vpop.f32.mrb[0].mxu0
      %3613 = vmatprep.mubr.bf16.mxu0 0
      %3614 = vmatmul.mubr.bf16.gmra.mrb[0].mxu0 %v3481
      %v3615 = vpop.f32.mrb[0].mxu0
      %v3616 = vadd.f32 %v3448, %v3615
      %v3617 = vpop.f32.mrb[0].mxu0
      %v3618 = vpop.f32.mrb[0].mxu0
      %v3619 = vadd.f32 %v3448, %v3618
      %v3620 = vpop.f32.mrb[0].mxu0
      %3621 = vmatprep.mubr.bf16.mxu0 0
      %3622 = vmatmul.mubr.bf16.gmra.mrb[0].mxu0 %v3484
      %v3623 = vpop.f32.mrb[0].mxu0
      %v3624 = vadd.f32 %v3448, %v3623
      %v3625 = vpop.f32.mrb[0].mxu0
      %v3626 = vpop.f32.mrb[0].mxu0
      %v3627 = vadd.f32 %v3448, %v3626
      %v3628 = vpop.f32.mrb[0].mxu0
      %3629 = vmatprep.mubr.bf16.mxu0 0
      %3630 = vmatmul.mubr.bf16.gmra.mrb[0].mxu0 %v3487
      %v3631 = vpop.f32.mrb[0].mxu0
      %v3632 = vadd.f32 %v3448, %v3631
      %v3633 = vpop.f32.mrb[0].mxu0
      %v3634 = vpop.f32.mrb[0].mxu0
      %v3635 = vadd.f32 %v3448, %v3634
      %v3636 = vpop.f32.mrb[0].mxu0
      %3637 = vmatprep.mubr.bf16.mxu0 0
      %3638 = vmatmul.mubr.bf16.gmra.mrb[0].mxu0 %v3490
      %v3639 = vpop.f32.mrb[0].mxu0
      %v3640 = vadd.f32 %v3448, %v3639
      %v3641 = vpop.f32.mrb[0].mxu0
      %v3642 = vpop.f32.mrb[0].mxu0
      %v3643 = vadd.f32 %v3448, %v3642
      %v3644 = vpop.f32.mrb[0].mxu0
      %3645 = vmatprep.mubr.bf16.mxu0 0
      %3646 = vmatmul.mubr.bf16.gmra.mrb[0].mxu0 %v3493
      %v3647 = vpop.f32.mrb[0].mxu0
      %v3648 = vadd.f32 %v3448, %v3647
      %v3649 = vpop.f32.mrb[0].mxu0
      %v3650 = vpop.f32.mrb[0].mxu0
      %v3651 = vadd.f32 %v3448, %v3650
      %v3652 = vpop.f32.mrb[0].mxu0
      %3653 = vmatprep.mubr.bf16.mxu0 0
      %3654 = vmatmul.mubr.bf16.gmra.mrb[0].mxu0 %v3496
      %v3655 = vpop.f32.mrb[0].mxu0
      %v3656 = vadd.f32 %v3448, %v3655
      %v3657 = vpop.f32.mrb[0].mxu0
      %v3658 = vpop.f32.mrb[0].mxu0
      %v3659 = vadd.f32 %v3448, %v3658
      %v3660 = vpop.f32.mrb[0].mxu0
      %3661 = vdwg.mxu0
      %v3662 = vadd.f32 %v3394, %v3536
      %v3663 = vadd.f32 %v3395, %v3539
      %v3664 = vadd.f32 %v3396, %v3544
      %v3665 = vadd.f32 %v3397, %v3547
      %v3666 = vadd.f32 %v3398, %v3552
      %v3667 = vadd.f32 %v3399, %v3555
      %v3668 = vadd.f32 %v3400, %v3560
      %v3669 = vadd.f32 %v3401, %v3563
      %v3670 = vadd.f32 %v3402, %v3568
      %v3671 = vadd.f32 %v3403, %v3571
      %v3672 = vadd.f32 %v3404, %v3576
      %v3673 = vadd.f32 %v3405, %v3579
      %v3674 = vadd.f32 %v3406, %v3584
      %v3675 = vadd.f32 %v3407, %v3587
      %v3676 = vadd.f32 %v3408, %v3592
      %v3677 = vadd.f32 %v3409, %v3595
      %v3678 = vadd.f32 %v3410, %v3600
      %v3679 = vadd.f32 %v3411, %v3603
      %v3680 = vadd.f32 %v3412, %v3608
      %v3681 = vadd.f32 %v3413, %v3611
      %v3682 = vadd.f32 %v3414, %v3616
      %v3683 = vadd.f32 %v3415, %v3619
      %v3684 = vadd.f32 %v3416, %v3624
      %v3685 = vadd.f32 %v3417, %v3627
      %v3686 = vadd.f32 %v3418, %v3632
      %v3687 = vadd.f32 %v3419, %v3635
      %v3688 = vadd.f32 %v3420, %v3640
      %v3689 = vadd.f32 %v3421, %v3643
      %v3690 = vadd.f32 %v3422, %v3648
      %v3691 = vadd.f32 %v3423, %v3651
      %v3692 = vadd.f32 %v3424, %v3656
      %v3693 = vadd.f32 %v3425, %v3659
      %3694 = vst.msk [vmem:[#allocation6] sm:$0xff] %vm1905, %v3662
      %3695 = vst.msk [vmem:[#allocation6 + $0x8] sm:$0xff] %vm1905, %v3663
      %3696 = vst.msk [vmem:[#allocation6 + $0x10] sm:$0xff] %vm1905, %v3664
      %3697 = vst.msk [vmem:[#allocation6 + $0x18] sm:$0xff] %vm1905, %v3665
      %3698 = vst.msk [vmem:[#allocation6 + $0x20] sm:$0xff] %vm1905, %v3666
      %3699 = vst.msk [vmem:[#allocation6 + $0x28] sm:$0xff] %vm1905, %v3667
      %3700 = vst.msk [vmem:[#allocation6 + $0x30] sm:$0xff] %vm1905, %v3668
      %3701 = vst.msk [vmem:[#allocation6 + $0x38] sm:$0xff] %vm1905, %v3669
      %3702 = vst.msk [vmem:[#allocation6 + $0x40] sm:$0xff] %vm1905, %v3670
      %3703 = vst.msk [vmem:[#allocation6 + $0x48] sm:$0xff] %vm1905, %v3671
      %3704 = vst.msk [vmem:[#allocation6 + $0x50] sm:$0xff] %vm1905, %v3672
      %3705 = vst.msk [vmem:[#allocation6 + $0x58] sm:$0xff] %vm1905, %v3673
      %3706 = vst.msk [vmem:[#allocation6 + $0x60] sm:$0xff] %vm1905, %v3674
      %3707 = vst.msk [vmem:[#allocation6 + $0x68] sm:$0xff] %vm1905, %v3675
      %3708 = vst.msk [vmem:[#allocation6 + $0x70] sm:$0xff] %vm1905, %v3676
      %3709 = vst.msk [vmem:[#allocation6 + $0x78] sm:$0xff] %vm1905, %v3677
      %3710 = vst.msk [vmem:[#allocation6 + $0x80] sm:$0xff] %vm1905, %v3678
      %3711 = vst.msk [vmem:[#allocation6 + $0x88] sm:$0xff] %vm1905, %v3679
      %3712 = vst.msk [vmem:[#allocation6 + $0x90] sm:$0xff] %vm1905, %v3680
      %3713 = vst.msk [vmem:[#allocation6 + $0x98] sm:$0xff] %vm1905, %v3681
      %3714 = vst.msk [vmem:[#allocation6 + $0xa0] sm:$0xff] %vm1905, %v3682
      %3715 = vst.msk [vmem:[#allocation6 + $0xa8] sm:$0xff] %vm1905, %v3683
      %3716 = vst.msk [vmem:[#allocation6 + $0xb0] sm:$0xff] %vm1905, %v3684
      %3717 = vst.msk [vmem:[#allocation6 + $0xb8] sm:$0xff] %vm1905, %v3685
      %3718 = vst.msk [vmem:[#allocation6 + $0xc0] sm:$0xff] %vm1905, %v3686
      %3719 = vst.msk [vmem:[#allocation6 + $0xc8] sm:$0xff] %vm1905, %v3687
      %3720 = vst.msk [vmem:[#allocation6 + $0xd0] sm:$0xff] %vm1905, %v3688
      %3721 = vst.msk [vmem:[#allocation6 + $0xd8] sm:$0xff] %vm1905, %v3689
      %3722 = vst.msk [vmem:[#allocation6 + $0xe0] sm:$0xff] %vm1905, %v3690
      %3723 = vst.msk [vmem:[#allocation6 + $0xe8] sm:$0xff] %vm1905, %v3691
      %3724 = vst.msk [vmem:[#allocation6 + $0xf0] sm:$0xff] %vm1905, %v3692
      %3725 = vst.msk [vmem:[#allocation6 + $0xf8] sm:$0xff] %vm1905, %v3693
      %v3726 = vld [vmem:[#allocation6] ss:$16 sm:$0x3]
      %v3727 = vld [vmem:[#allocation6] ss:$16 sm:$0xc]
      %v3728 = vor.u32 %v3726, %v3727
      %v3729 = vld [vmem:[#allocation6] ss:$16 sm:$0x30]
      %v3730 = vor.u32 %v3728, %v3729
      %v3731 = vld [vmem:[#allocation6] ss:$16 sm:$0xc0]
      %v3732 = vor.u32 %v3730, %v3731
      %s3733 = scalar_lea.vmem [#allocation6], 128
      %v3734 = vld [vmem:[%s3733] ss:$16 sm:$0x3]
      %v3735 = vld [vmem:[%s3733] ss:$16 sm:$0xc]
      %v3736 = vor.u32 %v3734, %v3735
      %v3737 = vld [vmem:[%s3733] ss:$16 sm:$0x30]
      %v3738 = vor.u32 %v3736, %v3737
      %v3739 = vld [vmem:[%s3733] ss:$16 sm:$0xc0]
      %v3740 = vor.u32 %v3738, %v3739
      %v3741 = vpack.c.bf16 %v3740, %v3732
      %v3743 = vunpack.c.l.b16 %v3741
      %v3744 = vunpack.c.h.b16 %v3741
      %v3745 = vpack.c.b16 %v3743, %v3743
      %v3746 = vpack.c.b16 %v3744, %v3744
      %vm3749 = vcmask 60416
      %3750 = vst.msk [vmem:[%s332] sm:$0xf] %vm3749, %v3745
      %3751 = vst.msk [vmem:[%s332 + $0x4] sm:$0xf] %vm3749, %v3746
      %s3752 = scalar_lea.vmem [#allocation6], 1
      %v3753 = vld [vmem:[%s3752] ss:$16 sm:$0x3]
      %v3754 = vld [vmem:[%s3752] ss:$16 sm:$0xc]
      %v3755 = vor.u32 %v3753, %v3754
      %v3756 = vld [vmem:[%s3752] ss:$16 sm:$0x30]
      %v3757 = vor.u32 %v3755, %v3756
      %v3758 = vld [vmem:[%s3752] ss:$16 sm:$0xc0]
      %v3759 = vor.u32 %v3757, %v3758
      %s3760 = scalar_lea.vmem [#allocation6], 129
      %v3761 = vld [vmem:[%s3760] ss:$16 sm:$0x3]
      %v3762 = vld [vmem:[%s3760] ss:$16 sm:$0xc]
      %v3763 = vor.u32 %v3761, %v3762
      %v3764 = vld [vmem:[%s3760] ss:$16 sm:$0x30]
      %v3765 = vor.u32 %v3763, %v3764
      %v3766 = vld [vmem:[%s3760] ss:$16 sm:$0xc0]
      %v3767 = vor.u32 %v3765, %v3766
      %v3768 = vpack.c.bf16 %v3767, %v3759
      %v3770 = vunpack.c.l.b16 %v3768
      %v3771 = vunpack.c.h.b16 %v3768
      %v3772 = vpack.c.b16 %v3770, %v3770
      %v3773 = vpack.c.b16 %v3771, %v3771
      %3774 = vrot.lane.b32.xlu0 %v3772, 8
      %v3775 = vpop.permute.xlu0 %3774
      %3776 = vrot.lane.b32.xlu0 %v3773, 8
      %v3777 = vpop.permute.xlu0 %3776
      %vm3780 = vcmask 126016
      %3781 = vst.msk [vmem:[%s332] sm:$0xf] %vm3780, %v3775
      %3782 = vst.msk [vmem:[%s332 + $0x4] sm:$0xf] %vm3780, %v3777
      %s3783 = scalar_lea.vmem [#allocation6], 2
      %v3784 = vld [vmem:[%s3783] ss:$16 sm:$0x3]
      %v3785 = vld [vmem:[%s3783] ss:$16 sm:$0xc]
      %v3786 = vor.u32 %v3784, %v3785
      %v3787 = vld [vmem:[%s3783] ss:$16 sm:$0x30]
      %v3788 = vor.u32 %v3786, %v3787
      %v3789 = vld [vmem:[%s3783] ss:$16 sm:$0xc0]
      %v3790 = vor.u32 %v3788, %v3789
      %s3791 = scalar_lea.vmem [#allocation6], 130
      %v3792 = vld [vmem:[%s3791] ss:$16 sm:$0x3]
      %v3793 = vld [vmem:[%s3791] ss:$16 sm:$0xc]
      %v3794 = vor.u32 %v3792, %v3793
      %v3795 = vld [vmem:[%s3791] ss:$16 sm:$0x30]
      %v3796 = vor.u32 %v3794, %v3795
      %v3797 = vld [vmem:[%s3791] ss:$16 sm:$0xc0]
      %v3798 = vor.u32 %v3796, %v3797
      %v3799 = vpack.c.bf16 %v3798, %v3790
      %v3801 = vunpack.c.l.b16 %v3799
      %v3802 = vunpack.c.h.b16 %v3799
      %v3803 = vpack.c.b16 %v3801, %v3801
      %v3804 = vpack.c.b16 %v3802, %v3802
      %3805 = vrot.lane.b32.xlu0 %v3803, 16
      %v3806 = vpop.permute.xlu0 %3805
      %3807 = vrot.lane.b32.xlu0 %v3804, 16
      %v3808 = vpop.permute.xlu0 %3807
      %vm3811 = vcmask 191616
      %3812 = vst.msk [vmem:[%s332] sm:$0xf] %vm3811, %v3806
      %3813 = vst.msk [vmem:[%s332 + $0x4] sm:$0xf] %vm3811, %v3808
      %s3814 = scalar_lea.vmem [#allocation6], 3
      %v3815 = vld [vmem:[%s3814] ss:$16 sm:$0x3]
      %v3816 = vld [vmem:[%s3814] ss:$16 sm:$0xc]
      %v3817 = vor.u32 %v3815, %v3816
      %v3818 = vld [vmem:[%s3814] ss:$16 sm:$0x30]
      %v3819 = vor.u32 %v3817, %v3818
      %v3820 = vld [vmem:[%s3814] ss:$16 sm:$0xc0]
      %v3821 = vor.u32 %v3819, %v3820
      %s3822 = scalar_lea.vmem [#allocation6], 131
      %v3823 = vld [vmem:[%s3822] ss:$16 sm:$0x3]
      %v3824 = vld [vmem:[%s3822] ss:$16 sm:$0xc]
      %v3825 = vor.u32 %v3823, %v3824
      %v3826 = vld [vmem:[%s3822] ss:$16 sm:$0x30]
      %v3827 = vor.u32 %v3825, %v3826
      %v3828 = vld [vmem:[%s3822] ss:$16 sm:$0xc0]
      %v3829 = vor.u32 %v3827, %v3828
      %v3830 = vpack.c.bf16 %v3829, %v3821
      %v3832 = vunpack.c.l.b16 %v3830
      %v3833 = vunpack.c.h.b16 %v3830
      %v3834 = vpack.c.b16 %v3832, %v3832
      %v3835 = vpack.c.b16 %v3833, %v3833
      %3836 = vrot.lane.b32.xlu0 %v3834, 24
      %v3837 = vpop.permute.xlu0 %3836
      %3838 = vrot.lane.b32.xlu0 %v3835, 24
      %v3839 = vpop.permute.xlu0 %3838
      %vm3842 = vcmask 257216
      %3843 = vst.msk [vmem:[%s332] sm:$0xf] %vm3842, %v3837
      %3844 = vst.msk [vmem:[%s332 + $0x4] sm:$0xf] %vm3842, %v3839
      %s3845 = scalar_lea.vmem [#allocation6], 4
      %v3846 = vld [vmem:[%s3845] ss:$16 sm:$0x3]
      %v3847 = vld [vmem:[%s3845] ss:$16 sm:$0xc]
      %v3848 = vor.u32 %v3846, %v3847
      %v3849 = vld [vmem:[%s3845] ss:$16 sm:$0x30]
      %v3850 = vor.u32 %v3848, %v3849
      %v3851 = vld [vmem:[%s3845] ss:$16 sm:$0xc0]
      %v3852 = vor.u32 %v3850, %v3851
      %s3853 = scalar_lea.vmem [#allocation6], 132
      %v3854 = vld [vmem:[%s3853] ss:$16 sm:$0x3]
      %v3855 = vld [vmem:[%s3853] ss:$16 sm:$0xc]
      %v3856 = vor.u32 %v3854, %v3855
      %v3857 = vld [vmem:[%s3853] ss:$16 sm:$0x30]
      %v3858 = vor.u32 %v3856, %v3857
      %v3859 = vld [vmem:[%s3853] ss:$16 sm:$0xc0]
      %v3860 = vor.u32 %v3858, %v3859
      %v3861 = vpack.c.bf16 %v3860, %v3852
      %v3863 = vunpack.c.l.b16 %v3861
      %v3864 = vunpack.c.h.b16 %v3861
      %v3865 = vpack.c.b16 %v3863, %v3863
      %v3866 = vpack.c.b16 %v3864, %v3864
      %3867 = vrot.lane.b32.xlu0 %v3865, 32
      %v3868 = vpop.permute.xlu0 %3867
      %3869 = vrot.lane.b32.xlu0 %v3866, 32
      %v3870 = vpop.permute.xlu0 %3869
      %vm3873 = vcmask 322816
      %3874 = vst.msk [vmem:[%s332] sm:$0xf] %vm3873, %v3868
      %3875 = vst.msk [vmem:[%s332 + $0x4] sm:$0xf] %vm3873, %v3870
      %s3876 = scalar_lea.vmem [#allocation6], 5
      %v3877 = vld [vmem:[%s3876] ss:$16 sm:$0x3]
      %v3878 = vld [vmem:[%s3876] ss:$16 sm:$0xc]
      %v3879 = vor.u32 %v3877, %v3878
      %v3880 = vld [vmem:[%s3876] ss:$16 sm:$0x30]
      %v3881 = vor.u32 %v3879, %v3880
      %v3882 = vld [vmem:[%s3876] ss:$16 sm:$0xc0]
      %v3883 = vor.u32 %v3881, %v3882
      %s3884 = scalar_lea.vmem [#allocation6], 133
      %v3885 = vld [vmem:[%s3884] ss:$16 sm:$0x3]
      %v3886 = vld [vmem:[%s3884] ss:$16 sm:$0xc]
      %v3887 = vor.u32 %v3885, %v3886
      %v3888 = vld [vmem:[%s3884] ss:$16 sm:$0x30]
      %v3889 = vor.u32 %v3887, %v3888
      %v3890 = vld [vmem:[%s3884] ss:$16 sm:$0xc0]
      %v3891 = vor.u32 %v3889, %v3890
      %v3892 = vpack.c.bf16 %v3891, %v3883
      %v3894 = vunpack.c.l.b16 %v3892
      %v3895 = vunpack.c.h.b16 %v3892
      %v3896 = vpack.c.b16 %v3894, %v3894
      %v3897 = vpack.c.b16 %v3895, %v3895
      %3898 = vrot.lane.b32.xlu0 %v3896, 40
      %v3899 = vpop.permute.xlu0 %3898
      %3900 = vrot.lane.b32.xlu0 %v3897, 40
      %v3901 = vpop.permute.xlu0 %3900
      %vm3904 = vcmask 388416
      %3905 = vst.msk [vmem:[%s332] sm:$0xf] %vm3904, %v3899
      %3906 = vst.msk [vmem:[%s332 + $0x4] sm:$0xf] %vm3904, %v3901
      %s3907 = scalar_lea.vmem [#allocation6], 6
      %v3908 = vld [vmem:[%s3907] ss:$16 sm:$0x3]
      %v3909 = vld [vmem:[%s3907] ss:$16 sm:$0xc]
      %v3910 = vor.u32 %v3908, %v3909
      %v3911 = vld [vmem:[%s3907] ss:$16 sm:$0x30]
      %v3912 = vor.u32 %v3910, %v3911
      %v3913 = vld [vmem:[%s3907] ss:$16 sm:$0xc0]
      %v3914 = vor.u32 %v3912, %v3913
      %s3915 = scalar_lea.vmem [#allocation6], 134
      %v3916 = vld [vmem:[%s3915] ss:$16 sm:$0x3]
      %v3917 = vld [vmem:[%s3915] ss:$16 sm:$0xc]
      %v3918 = vor.u32 %v3916, %v3917
      %v3919 = vld [vmem:[%s3915] ss:$16 sm:$0x30]
      %v3920 = vor.u32 %v3918, %v3919
      %v3921 = vld [vmem:[%s3915] ss:$16 sm:$0xc0]
      %v3922 = vor.u32 %v3920, %v3921
      %v3923 = vpack.c.bf16 %v3922, %v3914
      %v3925 = vunpack.c.l.b16 %v3923
      %v3926 = vunpack.c.h.b16 %v3923
      %v3927 = vpack.c.b16 %v3925, %v3925
      %v3928 = vpack.c.b16 %v3926, %v3926
      %3929 = vrot.lane.b32.xlu0 %v3927, 48
      %v3930 = vpop.permute.xlu0 %3929
      %3931 = vrot.lane.b32.xlu0 %v3928, 48
      %v3932 = vpop.permute.xlu0 %3931
      %vm3935 = vcmask 454016
      %3936 = vst.msk [vmem:[%s332] sm:$0xf] %vm3935, %v3930
      %3937 = vst.msk [vmem:[%s332 + $0x4] sm:$0xf] %vm3935, %v3932
      %s3938 = scalar_lea.vmem [#allocation6], 7
      %v3939 = vld [vmem:[%s3938] ss:$16 sm:$0x3]
      %v3940 = vld [vmem:[%s3938] ss:$16 sm:$0xc]
      %v3941 = vor.u32 %v3939, %v3940
      %v3942 = vld [vmem:[%s3938] ss:$16 sm:$0x30]
      %v3943 = vor.u32 %v3941, %v3942
      %v3944 = vld [vmem:[%s3938] ss:$16 sm:$0xc0]
      %v3945 = vor.u32 %v3943, %v3944
      %s3946 = scalar_lea.vmem [#allocation6], 135
      %v3947 = vld [vmem:[%s3946] ss:$16 sm:$0x3]
      %v3948 = vld [vmem:[%s3946] ss:$16 sm:$0xc]
      %v3949 = vor.u32 %v3947, %v3948
      %v3950 = vld [vmem:[%s3946] ss:$16 sm:$0x30]
      %v3951 = vor.u32 %v3949, %v3950
      %v3952 = vld [vmem:[%s3946] ss:$16 sm:$0xc0]
      %v3953 = vor.u32 %v3951, %v3952
      %v3954 = vpack.c.bf16 %v3953, %v3945
      %v3956 = vunpack.c.l.b16 %v3954
      %v3957 = vunpack.c.h.b16 %v3954
      %v3958 = vpack.c.b16 %v3956, %v3956
      %v3959 = vpack.c.b16 %v3957, %v3957
      %3960 = vrot.lane.b32.xlu0 %v3958, 56
      %v3961 = vpop.permute.xlu0 %3960
      %3962 = vrot.lane.b32.xlu0 %v3959, 56
      %v3963 = vpop.permute.xlu0 %3962
      %vm3966 = vcmask 519616
      %3967 = vst.msk [vmem:[%s332] sm:$0xf] %vm3966, %v3961
      %3968 = vst.msk [vmem:[%s332 + $0x4] sm:$0xf] %vm3966, %v3963
      %s3969 = scalar_lea.vmem [#allocation6], 8
      %v3970 = vld [vmem:[%s3969] ss:$16 sm:$0x3]
      %v3971 = vld [vmem:[%s3969] ss:$16 sm:$0xc]
      %v3972 = vor.u32 %v3970, %v3971
      %v3973 = vld [vmem:[%s3969] ss:$16 sm:$0x30]
      %v3974 = vor.u32 %v3972, %v3973
      %v3975 = vld [vmem:[%s3969] ss:$16 sm:$0xc0]
      %v3976 = vor.u32 %v3974, %v3975
      %s3977 = scalar_lea.vmem [#allocation6], 136
      %v3978 = vld [vmem:[%s3977] ss:$16 sm:$0x3]
      %v3979 = vld [vmem:[%s3977] ss:$16 sm:$0xc]
      %v3980 = vor.u32 %v3978, %v3979
      %v3981 = vld [vmem:[%s3977] ss:$16 sm:$0x30]
      %v3982 = vor.u32 %v3980, %v3981
      %v3983 = vld [vmem:[%s3977] ss:$16 sm:$0xc0]
      %v3984 = vor.u32 %v3982, %v3983
      %v3985 = vpack.c.bf16 %v3984, %v3976
      %v3987 = vunpack.c.l.b16 %v3985
      %v3988 = vunpack.c.h.b16 %v3985
      %v3989 = vpack.c.b16 %v3987, %v3987
      %v3990 = vpack.c.b16 %v3988, %v3988
      %3991 = vrot.lane.b32.xlu0 %v3989, 64
      %v3992 = vpop.permute.xlu0 %3991
      %3993 = vrot.lane.b32.xlu0 %v3990, 64
      %v3994 = vpop.permute.xlu0 %3993
      %vm3997 = vcmask 585216
      %3998 = vst.msk [vmem:[%s332] sm:$0xf] %vm3997, %v3992
      %3999 = vst.msk [vmem:[%s332 + $0x4] sm:$0xf] %vm3997, %v3994
      %s4000 = scalar_lea.vmem [#allocation6], 9
      %v4001 = vld [vmem:[%s4000] ss:$16 sm:$0x3]
      %v4002 = vld [vmem:[%s4000] ss:$16 sm:$0xc]
      %v4003 = vor.u32 %v4001, %v4002
      %v4004 = vld [vmem:[%s4000] ss:$16 sm:$0x30]
      %v4005 = vor.u32 %v4003, %v4004
      %v4006 = vld [vmem:[%s4000] ss:$16 sm:$0xc0]
      %v4007 = vor.u32 %v4005, %v4006
      %s4008 = scalar_lea.vmem [#allocation6], 137
      %v4009 = vld [vmem:[%s4008] ss:$16 sm:$0x3]
      %v4010 = vld [vmem:[%s4008] ss:$16 sm:$0xc]
      %v4011 = vor.u32 %v4009, %v4010
      %v4012 = vld [vmem:[%s4008] ss:$16 sm:$0x30]
      %v4013 = vor.u32 %v4011, %v4012
      %v4014 = vld [vmem:[%s4008] ss:$16 sm:$0xc0]
      %v4015 = vor.u32 %v4013, %v4014
      %v4016 = vpack.c.bf16 %v4015, %v4007
      %v4018 = vunpack.c.l.b16 %v4016
      %v4019 = vunpack.c.h.b16 %v4016
      %v4020 = vpack.c.b16 %v4018, %v4018
      %v4021 = vpack.c.b16 %v4019, %v4019
      %4022 = vrot.lane.b32.xlu0 %v4020, 72
      %v4023 = vpop.permute.xlu0 %4022
      %4024 = vrot.lane.b32.xlu0 %v4021, 72
      %v4025 = vpop.permute.xlu0 %4024
      %vm4028 = vcmask 650816
      %4029 = vst.msk [vmem:[%s332] sm:$0xf] %vm4028, %v4023
      %4030 = vst.msk [vmem:[%s332 + $0x4] sm:$0xf] %vm4028, %v4025
      %s4031 = scalar_lea.vmem [#allocation6], 10
      %v4032 = vld [vmem:[%s4031] ss:$16 sm:$0x3]
      %v4033 = vld [vmem:[%s4031] ss:$16 sm:$0xc]
      %v4034 = vor.u32 %v4032, %v4033
      %v4035 = vld [vmem:[%s4031] ss:$16 sm:$0x30]
      %v4036 = vor.u32 %v4034, %v4035
      %v4037 = vld [vmem:[%s4031] ss:$16 sm:$0xc0]
      %v4038 = vor.u32 %v4036, %v4037
      %s4039 = scalar_lea.vmem [#allocation6], 138
      %v4040 = vld [vmem:[%s4039] ss:$16 sm:$0x3]
      %v4041 = vld [vmem:[%s4039] ss:$16 sm:$0xc]
      %v4042 = vor.u32 %v4040, %v4041
      %v4043 = vld [vmem:[%s4039] ss:$16 sm:$0x30]
      %v4044 = vor.u32 %v4042, %v4043
      %v4045 = vld [vmem:[%s4039] ss:$16 sm:$0xc0]
      %v4046 = vor.u32 %v4044, %v4045
      %v4047 = vpack.c.bf16 %v4046, %v4038
      %v4049 = vunpack.c.l.b16 %v4047
      %v4050 = vunpack.c.h.b16 %v4047
      %v4051 = vpack.c.b16 %v4049, %v4049
      %v4052 = vpack.c.b16 %v4050, %v4050
      %4053 = vrot.lane.b32.xlu0 %v4051, 80
      %v4054 = vpop.permute.xlu0 %4053
      %4055 = vrot.lane.b32.xlu0 %v4052, 80
      %v4056 = vpop.permute.xlu0 %4055
      %vm4059 = vcmask 716416
      %4060 = vst.msk [vmem:[%s332] sm:$0xf] %vm4059, %v4054
      %4061 = vst.msk [vmem:[%s332 + $0x4] sm:$0xf] %vm4059, %v4056
      %s4062 = scalar_lea.vmem [#allocation6], 11
      %v4063 = vld [vmem:[%s4062] ss:$16 sm:$0x3]
      %v4064 = vld [vmem:[%s4062] ss:$16 sm:$0xc]
      %v4065 = vor.u32 %v4063, %v4064
      %v4066 = vld [vmem:[%s4062] ss:$16 sm:$0x30]
      %v4067 = vor.u32 %v4065, %v4066
      %v4068 = vld [vmem:[%s4062] ss:$16 sm:$0xc0]
      %v4069 = vor.u32 %v4067, %v4068
      %s4070 = scalar_lea.vmem [#allocation6], 139
      %v4071 = vld [vmem:[%s4070] ss:$16 sm:$0x3]
      %v4072 = vld [vmem:[%s4070] ss:$16 sm:$0xc]
      %v4073 = vor.u32 %v4071, %v4072
      %v4074 = vld [vmem:[%s4070] ss:$16 sm:$0x30]
      %v4075 = vor.u32 %v4073, %v4074
      %v4076 = vld [vmem:[%s4070] ss:$16 sm:$0xc0]
      %v4077 = vor.u32 %v4075, %v4076
      %v4078 = vpack.c.bf16 %v4077, %v4069
      %v4080 = vunpack.c.l.b16 %v4078
      %v4081 = vunpack.c.h.b16 %v4078
      %v4082 = vpack.c.b16 %v4080, %v4080
      %v4083 = vpack.c.b16 %v4081, %v4081
      %4084 = vrot.lane.b32.xlu0 %v4082, 88
      %v4085 = vpop.permute.xlu0 %4084
      %4086 = vrot.lane.b32.xlu0 %v4083, 88
      %v4087 = vpop.permute.xlu0 %4086
      %vm4090 = vcmask 782016
      %4091 = vst.msk [vmem:[%s332] sm:$0xf] %vm4090, %v4085
      %4092 = vst.msk [vmem:[%s332 + $0x4] sm:$0xf] %vm4090, %v4087
      %s4093 = scalar_lea.vmem [#allocation6], 12
      %v4094 = vld [vmem:[%s4093] ss:$16 sm:$0x3]
      %v4095 = vld [vmem:[%s4093] ss:$16 sm:$0xc]
      %v4096 = vor.u32 %v4094, %v4095
      %v4097 = vld [vmem:[%s4093] ss:$16 sm:$0x30]
      %v4098 = vor.u32 %v4096, %v4097
      %v4099 = vld [vmem:[%s4093] ss:$16 sm:$0xc0]
      %v4100 = vor.u32 %v4098, %v4099
      %s4101 = scalar_lea.vmem [#allocation6], 140
      %v4102 = vld [vmem:[%s4101] ss:$16 sm:$0x3]
      %v4103 = vld [vmem:[%s4101] ss:$16 sm:$0xc]
      %v4104 = vor.u32 %v4102, %v4103
      %v4105 = vld [vmem:[%s4101] ss:$16 sm:$0x30]
      %v4106 = vor.u32 %v4104, %v4105
      %v4107 = vld [vmem:[%s4101] ss:$16 sm:$0xc0]
      %v4108 = vor.u32 %v4106, %v4107
      %v4109 = vpack.c.bf16 %v4108, %v4100
      %v4111 = vunpack.c.l.b16 %v4109
      %v4112 = vunpack.c.h.b16 %v4109
      %v4113 = vpack.c.b16 %v4111, %v4111
      %v4114 = vpack.c.b16 %v4112, %v4112
      %4115 = vrot.lane.b32.xlu0 %v4113, 96
      %v4116 = vpop.permute.xlu0 %4115
      %4117 = vrot.lane.b32.xlu0 %v4114, 96
      %v4118 = vpop.permute.xlu0 %4117
      %vm4121 = vcmask 847616
      %4122 = vst.msk [vmem:[%s332] sm:$0xf] %vm4121, %v4116
      %4123 = vst.msk [vmem:[%s332 + $0x4] sm:$0xf] %vm4121, %v4118
      %s4124 = scalar_lea.vmem [#allocation6], 13
      %v4125 = vld [vmem:[%s4124] ss:$16 sm:$0x3]
      %v4126 = vld [vmem:[%s4124] ss:$16 sm:$0xc]
      %v4127 = vor.u32 %v4125, %v4126
      %v4128 = vld [vmem:[%s4124] ss:$16 sm:$0x30]
      %v4129 = vor.u32 %v4127, %v4128
      %v4130 = vld [vmem:[%s4124] ss:$16 sm:$0xc0]
      %v4131 = vor.u32 %v4129, %v4130
      %s4132 = scalar_lea.vmem [#allocation6], 141
      %v4133 = vld [vmem:[%s4132] ss:$16 sm:$0x3]
      %v4134 = vld [vmem:[%s4132] ss:$16 sm:$0xc]
      %v4135 = vor.u32 %v4133, %v4134
      %v4136 = vld [vmem:[%s4132] ss:$16 sm:$0x30]
      %v4137 = vor.u32 %v4135, %v4136
      %v4138 = vld [vmem:[%s4132] ss:$16 sm:$0xc0]
      %v4139 = vor.u32 %v4137, %v4138
      %v4140 = vpack.c.bf16 %v4139, %v4131
      %v4142 = vunpack.c.l.b16 %v4140
      %v4143 = vunpack.c.h.b16 %v4140
      %v4144 = vpack.c.b16 %v4142, %v4142
      %v4145 = vpack.c.b16 %v4143, %v4143
      %4146 = vrot.lane.b32.xlu0 %v4144, 104
      %v4147 = vpop.permute.xlu0 %4146
      %4148 = vrot.lane.b32.xlu0 %v4145, 104
      %v4149 = vpop.permute.xlu0 %4148
      %vm4152 = vcmask 913216
      %4153 = vst.msk [vmem:[%s332] sm:$0xf] %vm4152, %v4147
      %4154 = vst.msk [vmem:[%s332 + $0x4] sm:$0xf] %vm4152, %v4149
      %s4155 = scalar_lea.vmem [#allocation6], 14
      %v4156 = vld [vmem:[%s4155] ss:$16 sm:$0x3]
      %v4157 = vld [vmem:[%s4155] ss:$16 sm:$0xc]
      %v4158 = vor.u32 %v4156, %v4157
      %v4159 = vld [vmem:[%s4155] ss:$16 sm:$0x30]
      %v4160 = vor.u32 %v4158, %v4159
      %v4161 = vld [vmem:[%s4155] ss:$16 sm:$0xc0]
      %v4162 = vor.u32 %v4160, %v4161
      %s4163 = scalar_lea.vmem [#allocation6], 142
      %v4164 = vld [vmem:[%s4163] ss:$16 sm:$0x3]
      %v4165 = vld [vmem:[%s4163] ss:$16 sm:$0xc]
      %v4166 = vor.u32 %v4164, %v4165
      %v4167 = vld [vmem:[%s4163] ss:$16 sm:$0x30]
      %v4168 = vor.u32 %v4166, %v4167
      %v4169 = vld [vmem:[%s4163] ss:$16 sm:$0xc0]
      %v4170 = vor.u32 %v4168, %v4169
      %v4171 = vpack.c.bf16 %v4170, %v4162
      %v4173 = vunpack.c.l.b16 %v4171
      %v4174 = vunpack.c.h.b16 %v4171
      %v4175 = vpack.c.b16 %v4173, %v4173
      %v4176 = vpack.c.b16 %v4174, %v4174
      %4177 = vrot.lane.b32.xlu0 %v4175, 112
      %v4178 = vpop.permute.xlu0 %4177
      %4179 = vrot.lane.b32.xlu0 %v4176, 112
      %v4180 = vpop.permute.xlu0 %4179
      %vm4183 = vcmask 978816
      %4184 = vst.msk [vmem:[%s332] sm:$0xf] %vm4183, %v4178
      %4185 = vst.msk [vmem:[%s332 + $0x4] sm:$0xf] %vm4183, %v4180
      %s4186 = scalar_lea.vmem [#allocation6], 15
      %v4187 = vld [vmem:[%s4186] ss:$16 sm:$0x3]
      %v4188 = vld [vmem:[%s4186] ss:$16 sm:$0xc]
      %v4189 = vor.u32 %v4187, %v4188
      %v4190 = vld [vmem:[%s4186] ss:$16 sm:$0x30]
      %v4191 = vor.u32 %v4189, %v4190
      %v4192 = vld [vmem:[%s4186] ss:$16 sm:$0xc0]
      %v4193 = vor.u32 %v4191, %v4192
      %s4194 = scalar_lea.vmem [#allocation6], 143
      %v4195 = vld [vmem:[%s4194] ss:$16 sm:$0x3]
      %v4196 = vld [vmem:[%s4194] ss:$16 sm:$0xc]
      %v4197 = vor.u32 %v4195, %v4196
      %v4198 = vld [vmem:[%s4194] ss:$16 sm:$0x30]
      %v4199 = vor.u32 %v4197, %v4198
      %v4200 = vld [vmem:[%s4194] ss:$16 sm:$0xc0]
      %v4201 = vor.u32 %v4199, %v4200
      %v4202 = vpack.c.bf16 %v4201, %v4193
      %v4204 = vunpack.c.l.b16 %v4202
      %v4205 = vunpack.c.h.b16 %v4202
      %v4206 = vpack.c.b16 %v4204, %v4204
      %v4207 = vpack.c.b16 %v4205, %v4205
      %4208 = vrot.lane.b32.xlu0 %v4206, 120
      %v4209 = vpop.permute.xlu0 %4208
      %4210 = vrot.lane.b32.xlu0 %v4207, 120
      %v4211 = vpop.permute.xlu0 %4210
      %vm4214 = vcmask 1044416
      %4215 = vst.msk [vmem:[%s332] sm:$0xf] %vm4214, %v4209
      %4216 = vst.msk [vmem:[%s332 + $0x4] sm:$0xf] %vm4214, %v4211
      %p4217 = scmp.lt.s32.totalorder %s20, 1
      %s4218 = scalar_select %p4217, %s20, 1
      %s4219 = smul.addr %s4218, 2
      %s4220 = smul.addr %s4219, 4
      %s4221 = scalar_lea.vmem %s9, %s4220
      // Predicated region
      $region57: #{resnet_forward.2} parent=55 // pred_check
        %p4222 = pneg %p232
      $region58: #{resnet_forward.2} parent=55 // pred_check_branch
        %4224 = sbr.rel (%p4222) target = $region60
      $region59: #{resnet_forward.2} parent=55 // pred_region
        _
      $region60: #{resnet_forward.2} parent=55 // pred_fallthru
        _
    $region56: #{resnet_forward.2} parent=5 // pred_fallthru
      _
    %p4225 = scmp.le.s32.totalorder 2, %s15
    // Predicated region
    $region61: #{resnet_forward.2} parent=5 // pred_check
      %p4226 = pneg %p4225
    $region62: #{resnet_forward.2} parent=5 // pred_check_branch
      %4228 = sbr.rel (%p4226) target = $region64
    $region63: #{resnet_forward.2} parent=5 // pred_region
      %s4229 = ssub.s32 %s15, 2
      // Predicated region
      $region65: #{resnet_forward.2} parent=63 // pred_check
        %p4230 = pneg %p238
      $region66: #{resnet_forward.2} parent=63 // pred_check_branch
        %4232 = sbr.rel (%p4230) target = $region68
      $region67: #{resnet_forward.2} parent=63 // pred_region
        %p4233 = scmp.lt.s32.totalorder %s21, 1
        %s4234 = scalar_select %p4233, %s21, 1
        %s4235 = smul.addr %s4234, 2
        %s4236 = smul.addr %s4235, 4
        %s4237 = scalar_lea.vmem %s9, %s4236
      $region68: #{resnet_forward.2} parent=63 // pred_fallthru
        _
    $region64: #{resnet_forward.2} parent=5 // pred_fallthru
      _
  $region6: #{resnet_forward.2} parent=0 // loop_footer
    %s19 = sadd.s32 1, %s15
  $region7: #{resnet_forward.2} parent=0 // loop_footer_branch
    %14 = sbr.rel target = $region3
  $region8: #{resnet_forward.2} parent=0 // loop_exit
    _

// kernel: resnet_forward.3
$region0: #{resnet_forward.3}
  #allocation0 [shape = 'u32[]', space=smem, size = 0x4, offset = 0x4, fixed_abs, tag = 'smem constant byte address 0x4 - core index']
  #allocation1 [shape = 'u32[144,128]{1,0:T(1,128)}', space=vmem, size = 0x12000, scoped, tag = 'internal scratch']
  #allocation2 [shape = 'f32[18,32,8]{2,1,0:T(8,128)}', space=vmem, size = 0x48000, scoped, tag = 'scratch operand']
  #allocation3 [shape = 'f32[18,32,8]{2,1,0:T(8,128)}', space=vmem, size = 0x48000, scoped, tag = 'scratch operand']
  #allocation4 [shape = 'bf16[256,72]{1,0:T(16,128)(2,1)}', space=vmem, size = 0x10000, scoped, tag = 'scratch operand']
  #allocation5 [shape = 'bf16[256,72]{1,0:T(16,128)(2,1)}', space=vmem, size = 0x10000, scoped, tag = 'scratch operand']
  #allocation6 [shape = 'f32[256,8]{1,0:T(8,128)}', space=vmem, size = 0x20000, scoped, tag = 'scratch operand']
  %s0 = inlined_call_operand.vmem [shape: bf16[2,16,16,8], index: 0, kind: input, shape index: {}]
  %s1 = inlined_call_operand.vmem [shape: bf16[72,8], index: 1, kind: input, shape index: {}]
  %s2 = inlined_call_operand.vmem [shape: f32[1,8], index: 2, kind: input, shape index: {}]
  %s3 = inlined_call_operand.vmem [shape: f32[1,8], index: 3, kind: input, shape index: {}]
  %s4 = inlined_call_operand.vmem [shape: bf16[72,8], index: 4, kind: input, shape index: {}]
  %s5 = inlined_call_operand.vmem [shape: f32[1,8], index: 5, kind: input, shape index: {}]
  %s6 = inlined_call_operand.vmem [shape: f32[1,8], index: 6, kind: input, shape index: {}]
  %s7 = inlined_call_operand.vmem [shape: bf16[2,16,128], index: 7, kind: output, shape index: {}]
  %s8 = sld [smem:[#allocation0]]
  $region61: #{resnet_forward.3} parent=0
    _
  %s10 = ssub.s32 1, %s8
  %s11 = scalar_select 0, %s10, %s8
  loop: start=0, step=1, limit=4
  $region2: #{resnet_forward.3} parent=0 // loop_pre_header
    _
  $region3: #{resnet_forward.3} parent=0 // loop_header
    %s13 = sphi 0, %s17
    %p14 = scmp.ge.s32.totalorder %s13, 4
    %s23 = sphi 0, %s25
    %s26 = sphi 0, %s23
    %s27 = sphi 0, %s26
    %s43 = sphi 0, %s27
    %s47 = sphi 0, %s47
    %s49 = sphi 0, %s47
    %s50 = sphi 0, %s49
    %s64 = sphi 0, %s50
    %s68 = sphi 0, %s68
    %s70 = sphi 0, %s68
    %s71 = sphi 0, %s70
    %s85 = sphi 0, %s71
    %s89 = sphi 0, %s89
    %s91 = sphi 0, %s89
    %s92 = sphi 0, %s91
    %s106 = sphi 0, %s92
    %s110 = sphi 0, %s110
    %s112 = sphi 0, %s110
    %s113 = sphi 0, %s112
    %s127 = sphi 0, %s113
    %s131 = sphi 0, %s131
    %s133 = sphi 0, %s131
    %s134 = sphi 0, %s133
    %s148 = sphi 0, %s134
    %s152 = sphi 0, %s152
    %s154 = sphi 0, %s152
    %s155 = sphi 0, %s154
    %s169 = sphi 0, %s155
    %s175 = sphi 0, %s177
    %s178 = sphi 0, %s175
    %s179 = sphi 0, %s178
    %s195 = sphi 0, %s179
  $region4: #{resnet_forward.3} parent=0 // loop_header_branch
    %16 = sbr.rel (%p14) target = $region8
  $region5: #{resnet_forward.3} parent=0 // loop_body
    %s18 = ssub.s32 %s13, 1
    %s19 = ssub.s32 %s13, 2
    %s20 = sadd.s32 %s13, 1
    %s21 = ssub.s32 %s13, %s20
    %p22 = scmp.eq.s32.totalorder %s21, 0
    %s24 = sadd.s32 %s23, 1
    %s25 = scalar_select %p22, %s23, %s24
    %p28 = pneg %p22
    %p29 = scmp.eq.s32.totalorder %s13, 1
    %p30 = por %p28, %p29
    %p31 = scmp.ne.s32.totalorder %s23, %s26
    %p32 = scmp.eq.s32.totalorder %s13, 0
    %p33 = por %p31, %p32
    %p34 = scmp.ne.s32.totalorder %s23, %s26
    %p35 = scmp.eq.s32.totalorder %s18, 1
    %p36 = por %p34, %p35
    %p37 = scmp.ne.s32.totalorder %s26, %s27
    %p38 = scmp.eq.s32.totalorder %s18, 0
    %p39 = por %p37, %p38
    %p40 = scmp.ne.s32.totalorder %s26, %s27
    %p41 = scmp.eq.s32.totalorder %s19, 1
    %p42 = por %p40, %p41
    %p44 = scmp.ne.s32.totalorder %s27, %s43
    %p45 = scmp.eq.s32.totalorder %s19, 0
    %p46 = por %p44, %p45
    %s48 = sadd.s32 %s47, 1
    %p51 = scmp.eq.s32.totalorder %s13, 1
    %p52 = scmp.ne.s32.totalorder %s47, %s49
    %p53 = scmp.eq.s32.totalorder %s13, 0
    %p54 = por %p52, %p53
    %p55 = scmp.ne.s32.totalorder %s47, %s49
    %p56 = scmp.eq.s32.totalorder %s18, 1
    %p57 = por %p55, %p56
    %p58 = scmp.ne.s32.totalorder %s49, %s50
    %p59 = scmp.eq.s32.totalorder %s18, 0
    %p60 = por %p58, %p59
    %p61 = scmp.ne.s32.totalorder %s49, %s50
    %p62 = scmp.eq.s32.totalorder %s19, 1
    %p63 = por %p61, %p62
    %p65 = scmp.ne.s32.totalorder %s50, %s64
    %p66 = scmp.eq.s32.totalorder %s19, 0
    %p67 = por %p65, %p66
    %s69 = sadd.s32 %s68, 1
    %p72 = scmp.eq.s32.totalorder %s13, 1
    %p73 = scmp.ne.s32.totalorder %s68, %s70
    %p74 = scmp.eq.s32.totalorder %s13, 0
    %p75 = por %p73, %p74
    %p76 = scmp.ne.s32.totalorder %s68, %s70
    %p77 = scmp.eq.s32.totalorder %s18, 1
    %p78 = por %p76, %p77
    %p79 = scmp.ne.s32.totalorder %s70, %s71
    %p80 = scmp.eq.s32.totalorder %s18, 0
    %p81 = por %p79, %p80
    %p82 = scmp.ne.s32.totalorder %s70, %s71
    %p83 = scmp.eq.s32.totalorder %s19, 1
    %p84 = por %p82, %p83
    %p86 = scmp.ne.s32.totalorder %s71, %s85
    %p87 = scmp.eq.s32.totalorder %s19, 0
    %p88 = por %p86, %p87
    %s90 = sadd.s32 %s89, 1
    %p93 = scmp.eq.s32.totalorder %s13, 1
    %p94 = scmp.ne.s32.totalorder %s89, %s91
    %p95 = scmp.eq.s32.totalorder %s13, 0
    %p96 = por %p94, %p95
    %p97 = scmp.ne.s32.totalorder %s89, %s91
    %p98 = scmp.eq.s32.totalorder %s18, 1
    %p99 = por %p97, %p98
    %p100 = scmp.ne.s32.totalorder %s91, %s92
    %p101 = scmp.eq.s32.totalorder %s18, 0
    %p102 = por %p100, %p101
    %p103 = scmp.ne.s32.totalorder %s91, %s92
    %p104 = scmp.eq.s32.totalorder %s19, 1
    %p105 = por %p103, %p104
    %p107 = scmp.ne.s32.totalorder %s92, %s106
    %p108 = scmp.eq.s32.totalorder %s19, 0
    %p109 = por %p107, %p108
    %s111 = sadd.s32 %s110, 1
    %p114 = scmp.eq.s32.totalorder %s13, 1
    %p115 = scmp.ne.s32.totalorder %s110, %s112
    %p116 = scmp.eq.s32.totalorder %s13, 0
    %p117 = por %p115, %p116
    %p118 = scmp.ne.s32.totalorder %s110, %s112
    %p119 = scmp.eq.s32.totalorder %s18, 1
    %p120 = por %p118, %p119
    %p121 = scmp.ne.s32.totalorder %s112, %s113
    %p122 = scmp.eq.s32.totalorder %s18, 0
    %p123 = por %p121, %p122
    %p124 = scmp.ne.s32.totalorder %s112, %s113
    %p125 = scmp.eq.s32.totalorder %s19, 1
    %p126 = por %p124, %p125
    %p128 = scmp.ne.s32.totalorder %s113, %s127
    %p129 = scmp.eq.s32.totalorder %s19, 0
    %p130 = por %p128, %p129
    %s132 = sadd.s32 %s131, 1
    %p135 = scmp.eq.s32.totalorder %s13, 1
    %p136 = scmp.ne.s32.totalorder %s131, %s133
    %p137 = scmp.eq.s32.totalorder %s13, 0
    %p138 = por %p136, %p137
    %p139 = scmp.ne.s32.totalorder %s131, %s133
    %p140 = scmp.eq.s32.totalorder %s18, 1
    %p141 = por %p139, %p140
    %p142 = scmp.ne.s32.totalorder %s133, %s134
    %p143 = scmp.eq.s32.totalorder %s18, 0
    %p144 = por %p142, %p143
    %p145 = scmp.ne.s32.totalorder %s133, %s134
    %p146 = scmp.eq.s32.totalorder %s19, 1
    %p147 = por %p145, %p146
    %p149 = scmp.ne.s32.totalorder %s134, %s148
    %p150 = scmp.eq.s32.totalorder %s19, 0
    %p151 = por %p149, %p150
    %s153 = sadd.s32 %s152, 1
    %p156 = scmp.eq.s32.totalorder %s13, 1
    %p157 = scmp.ne.s32.totalorder %s152, %s154
    %p158 = scmp.eq.s32.totalorder %s13, 0
    %p159 = por %p157, %p158
    %p160 = scmp.ne.s32.totalorder %s152, %s154
    %p161 = scmp.eq.s32.totalorder %s18, 1
    %p162 = por %p160, %p161
    %p163 = scmp.ne.s32.totalorder %s154, %s155
    %p164 = scmp.eq.s32.totalorder %s18, 0
    %p165 = por %p163, %p164
    %p166 = scmp.ne.s32.totalorder %s154, %s155
    %p167 = scmp.eq.s32.totalorder %s19, 1
    %p168 = por %p166, %p167
    %p170 = scmp.ne.s32.totalorder %s155, %s169
    %p171 = scmp.eq.s32.totalorder %s19, 0
    %p172 = por %p170, %p171
    %s173 = ssub.s32 %s13, %s20
    %p174 = scmp.eq.s32.totalorder %s173, 0
    %s176 = sadd.s32 %s175, 1
    %s177 = scalar_select %p174, %s175, %s176
    %p180 = pneg %p174
    %p181 = scmp.eq.s32.totalorder %s13, 1
    %p182 = por %p180, %p181
    %p183 = scmp.ne.s32.totalorder %s175, %s178
    %p184 = scmp.eq.s32.totalorder %s13, 0
    %p185 = por %p183, %p184
    %p186 = scmp.ne.s32.totalorder %s175, %s178
    %p187 = scmp.eq.s32.totalorder %s18, 1
    %p188 = por %p186, %p187
    %p189 = scmp.ne.s32.totalorder %s178, %s179
    %p190 = scmp.eq.s32.totalorder %s18, 0
    %p191 = por %p189, %p190
    %p192 = scmp.ne.s32.totalorder %s178, %s179
    %p193 = scmp.eq.s32.totalorder %s19, 1
    %p194 = por %p192, %p193
    %p196 = scmp.ne.s32.totalorder %s179, %s195
    %p197 = scmp.eq.s32.totalorder %s19, 0
    %p198 = por %p196, %p197
    %p199 = scmp.le.s32.totalorder 1, %s13
    %p200 = scmp.lt.s32.totalorder %s13, 3
    %p201 = pnand %p199, %p200
    %p202 = pneg %p201
    // Predicated region
    $region9: #{resnet_forward.3} parent=5 // pred_check
      _
    $region10: #{resnet_forward.3} parent=5 // pred_check_branch
      %204 = sbr.rel (%p201) target = $region12
    $region11: #{resnet_forward.3} parent=5 // pred_region
      %s205 = ssub.s32 %s13, 1
      // Predicated region
      $region13: #{resnet_forward.3} parent=11 // pred_check
        %p206 = pneg %p60
      $region14: #{resnet_forward.3} parent=11 // pred_check_branch
        %208 = sbr.rel (%p206) target = $region16
      $region15: #{resnet_forward.3} parent=11 // pred_region
        _
      $region16: #{resnet_forward.3} parent=11 // pred_fallthru
        _
      // Predicated region
      $region17: #{resnet_forward.3} parent=11 // pred_check
        %p209 = pneg %p81
      $region18: #{resnet_forward.3} parent=11 // pred_check_branch
        %211 = sbr.rel (%p209) target = $region20
      $region19: #{resnet_forward.3} parent=11 // pred_region
        _
      $region20: #{resnet_forward.3} parent=11 // pred_fallthru
        _
      // Predicated region
      $region21: #{resnet_forward.3} parent=11 // pred_check
        %p212 = pneg %p102
      $region22: #{resnet_forward.3} parent=11 // pred_check_branch
        %214 = sbr.rel (%p212) target = $region24
      $region23: #{resnet_forward.3} parent=11 // pred_region
        _
      $region24: #{resnet_forward.3} parent=11 // pred_fallthru
        _
      // Predicated region
      $region25: #{resnet_forward.3} parent=11 // pred_check
        %p215 = pneg %p123
      $region26: #{resnet_forward.3} parent=11 // pred_check_branch
        %217 = sbr.rel (%p215) target = $region28
      $region27: #{resnet_forward.3} parent=11 // pred_region
        _
      $region28: #{resnet_forward.3} parent=11 // pred_fallthru
        _
      // Predicated region
      $region29: #{resnet_forward.3} parent=11 // pred_check
        %p218 = pneg %p144
      $region30: #{resnet_forward.3} parent=11 // pred_check_branch
        %220 = sbr.rel (%p218) target = $region32
      $region31: #{resnet_forward.3} parent=11 // pred_region
        _
      $region32: #{resnet_forward.3} parent=11 // pred_fallthru
        _
      // Predicated region
      $region33: #{resnet_forward.3} parent=11 // pred_check
        %p221 = pneg %p165
      $region34: #{resnet_forward.3} parent=11 // pred_check_branch
        %223 = sbr.rel (%p221) target = $region36
      $region35: #{resnet_forward.3} parent=11 // pred_region
        _
      $region36: #{resnet_forward.3} parent=11 // pred_fallthru
        _
    $region12: #{resnet_forward.3} parent=5 // pred_fallthru
      _
    %p224 = scmp.lt.s32.totalorder %s13, 2
    // Predicated region
    $region37: #{resnet_forward.3} parent=5 // pred_check
      %p225 = pneg %p224
    $region38: #{resnet_forward.3} parent=5 // pred_check_branch
      %227 = sbr.rel (%p225) target = $region40
    $region39: #{resnet_forward.3} parent=5 // pred_region
      // Predicated region
      $region41: #{resnet_forward.3} parent=39 // pred_check
        %p228 = pneg %p33
      $region42: #{resnet_forward.3} parent=39 // pred_check_branch
        %230 = sbr.rel (%p228) target = $region44
      $region43: #{resnet_forward.3} parent=39 // pred_region
        %p231 = scmp.lt.s32.totalorder %s13, 1
        %s232 = scalar_select %p231, %s13, 1
        %s233 = smul.addr %s232, 32
        %s234 = smul.addr %s233, 4
        %s235 = scalar_lea.vmem %s0, %s234
      $region44: #{resnet_forward.3} parent=39 // pred_fallthru
        _
    $region40: #{resnet_forward.3} parent=5 // pred_fallthru
      _
    %p236 = scmp.le.s32.totalorder 1, %s13
    %p237 = scmp.lt.s32.totalorder %s13, 3
    %p238 = pnand %p236, %p237
    %p239 = pneg %p238
    // Predicated region
    $region45: #{resnet_forward.3} parent=5 // pred_check
      _
    $region46: #{resnet_forward.3} parent=5 // pred_check_branch
      %241 = sbr.rel (%p238) target = $region48
    $region47: #{resnet_forward.3} parent=5 // pred_region
      %s242 = ssub.s32 %s13, 1
      %p243 = scmp.lt.s32.totalorder %s18, 1
      %s244 = scalar_select %p243, %s18, 1
      %s245 = smul.addr %s244, 32
      %s246 = smul.addr %s245, 4
      %s247 = scalar_lea.vmem %s0, %s246
      %p248 = pneg %p39
      %p249 = pneg %p36
      %p250 = pneg %p60
      %p251 = pneg %p57
      %p252 = pneg %p81
      %p253 = pneg %p78
      %p254 = pneg %p102
      %p255 = pneg %p99
      %p256 = pneg %p123
      %p257 = pneg %p120
      %p258 = pneg %p144
      %p259 = pneg %p141
      %p260 = pneg %p165
      %p261 = pneg %p162
      %p262 = pneg %p191
      %p263 = pneg %p188
      %p264 = scmp.lt.s32.totalorder %s18, 1
      %s265 = scalar_select %p264, %s18, 1
      %s266 = smul.addr %s265, 2
      %s267 = smul.addr %s266, 4
      %s268 = scalar_lea.vmem %s7, %s267
      %p269 = scmp.lt.s32.totalorder %s18, 1
      %s270 = scalar_select %p269, %s18, 1
      %s271 = smul.addr %s270, 32
      %s272 = smul.addr %s271, 4
      %s273 = scalar_lea.vmem %s0, %s272
      %p274 = scmp.lt.s32.totalorder %s18, 1
      %s275 = scalar_select %p274, %s18, 1
      %s276 = smul.addr %s275, 2
      %s277 = smul.addr %s276, 4
      %s278 = scalar_lea.vmem %s7, %s277
      %v280 = vld [vmem:[%s273] sm:$0xf]
      %v281 = vld [vmem:[%s273 + $0x4] sm:$0xf]
      %v282 = vld [vmem:[%s273 + $0x8] sm:$0xf]
      %v283 = vld [vmem:[%s273 + $0xc] sm:$0xf]
      %v284 = vld [vmem:[%s273 + $0x10] sm:$0xf]
      %v285 = vld [vmem:[%s273 + $0x14] sm:$0xf]
      %v286 = vld [vmem:[%s273 + $0x18] sm:$0xf]
      %v287 = vld [vmem:[%s273 + $0x1c] sm:$0xf]
      %v288 = vld [vmem:[%s273 + $0x20] sm:$0xf]
      %v289 = vld [vmem:[%s273 + $0x24] sm:$0xf]
      %v290 = vld [vmem:[%s273 + $0x28] sm:$0xf]
      %v291 = vld [vmem:[%s273 + $0x2c] sm:$0xf]
      %v292 = vld [vmem:[%s273 + $0x30] sm:$0xf]
      %v293 = vld [vmem:[%s273 + $0x34] sm:$0xf]
      %v294 = vld [vmem:[%s273 + $0x38] sm:$0xf]
      %v295 = vld [vmem:[%s273 + $0x3c] sm:$0xf]
      %v296 = vld [vmem:[%s273 + $0x40] sm:$0xf]
      %v297 = vld [vmem:[%s273 + $0x44] sm:$0xf]
      %v298 = vld [vmem:[%s273 + $0x48] sm:$0xf]
      %v299 = vld [vmem:[%s273 + $0x4c] sm:$0xf]
      %v300 = vld [vmem:[%s273 + $0x50] sm:$0xf]
      %v301 = vld [vmem:[%s273 + $0x54] sm:$0xf]
      %v302 = vld [vmem:[%s273 + $0x58] sm:$0xf]
      %v303 = vld [vmem:[%s273 + $0x5c] sm:$0xf]
      %v304 = vld [vmem:[%s273 + $0x60] sm:$0xf]
      %v305 = vld [vmem:[%s273 + $0x64] sm:$0xf]
      %v306 = vld [vmem:[%s273 + $0x68] sm:$0xf]
      %v307 = vld [vmem:[%s273 + $0x6c] sm:$0xf]
      %v308 = vld [vmem:[%s273 + $0x70] sm:$0xf]
      %v309 = vld [vmem:[%s273 + $0x74] sm:$0xf]
      %v310 = vld [vmem:[%s273 + $0x78] sm:$0xf]
      %v311 = vld [vmem:[%s273 + $0x7c] sm:$0xf]
      %v312 = vunpack.c.l.bf16 %v280
      %v313 = vunpack.c.l.bf16 %v281
      %v314 = vunpack.c.l.bf16 %v282
      %v315 = vunpack.c.l.bf16 %v283
      %v316 = vunpack.c.l.bf16 %v284
      %v317 = vunpack.c.l.bf16 %v285
      %v318 = vunpack.c.l.bf16 %v286
      %v319 = vunpack.c.l.bf16 %v287
      %v320 = vunpack.c.l.bf16 %v288
      %v321 = vunpack.c.l.bf16 %v289
      %v322 = vunpack.c.l.bf16 %v290
      %v323 = vunpack.c.l.bf16 %v291
      %v324 = vunpack.c.l.bf16 %v292
      %v325 = vunpack.c.l.bf16 %v293
      %v326 = vunpack.c.l.bf16 %v294
      %v327 = vunpack.c.l.bf16 %v295
      %v328 = vunpack.c.l.bf16 %v296
      %v329 = vunpack.c.l.bf16 %v297
      %v330 = vunpack.c.l.bf16 %v298
      %v331 = vunpack.c.l.bf16 %v299
      %v332 = vunpack.c.l.bf16 %v300
      %v333 = vunpack.c.l.bf16 %v301
      %v334 = vunpack.c.l.bf16 %v302
      %v335 = vunpack.c.l.bf16 %v303
      %v336 = vunpack.c.l.bf16 %v304
      %v337 = vunpack.c.l.bf16 %v305
      %v338 = vunpack.c.l.bf16 %v306
      %v339 = vunpack.c.l.bf16 %v307
      %v340 = vunpack.c.l.bf16 %v308
      %v341 = vunpack.c.l.bf16 %v309
      %v342 = vunpack.c.l.bf16 %v310
      %v343 = vunpack.c.l.bf16 %v311
      %vm344 = vcmask 64512
      %345 = vst.msk [vmem:[#allocation2] sm:$0xff] %vm344, 0.0
      %346 = vst.msk [vmem:[#allocation2 + $0x8] sm:$0xff] %vm344, 0.0
      %347 = vst.msk [vmem:[#allocation2 + $0x10] sm:$0xff] %vm344, 0.0
      %348 = vst.msk [vmem:[#allocation2 + $0x18] sm:$0xff] %vm344, 0.0
      %349 = vst.msk [vmem:[#allocation2 + $0x20] sm:$0xff] %vm344, 0.0
      %350 = vst.msk [vmem:[#allocation2 + $0x28] sm:$0xff] %vm344, 0.0
      %351 = vst.msk [vmem:[#allocation2 + $0x30] sm:$0xff] %vm344, 0.0
      %352 = vst.msk [vmem:[#allocation2 + $0x38] sm:$0xff] %vm344, 0.0
      %353 = vst.msk [vmem:[#allocation2 + $0x40] sm:$0xff] %vm344, 0.0
      %354 = vst.msk [vmem:[#allocation2 + $0x48] sm:$0xff] %vm344, 0.0
      %355 = vst.msk [vmem:[#allocation2 + $0x50] sm:$0xff] %vm344, 0.0
      %356 = vst.msk [vmem:[#allocation2 + $0x58] sm:$0xff] %vm344, 0.0
      %357 = vst.msk [vmem:[#allocation2 + $0x60] sm:$0xff] %vm344, 0.0
      %358 = vst.msk [vmem:[#allocation2 + $0x68] sm:$0xff] %vm344, 0.0
      %359 = vst.msk [vmem:[#allocation2 + $0x70] sm:$0xff] %vm344, 0.0
      %360 = vst.msk [vmem:[#allocation2 + $0x78] sm:$0xff] %vm344, 0.0
      %361 = vst.msk [vmem:[#allocation2 + $0x80] sm:$0xff] %vm344, 0.0
      %362 = vst.msk [vmem:[#allocation2 + $0x88] sm:$0xff] %vm344, 0.0
      %363 = vst.msk [vmem:[#allocation2 + $0x90] sm:$0xff] %vm344, 0.0
      %364 = vst.msk [vmem:[#allocation2 + $0x98] sm:$0xff] %vm344, 0.0
      %365 = vst.msk [vmem:[#allocation2 + $0xa0] sm:$0xff] %vm344, 0.0
      %366 = vst.msk [vmem:[#allocation2 + $0xa8] sm:$0xff] %vm344, 0.0
      %367 = vst.msk [vmem:[#allocation2 + $0xb0] sm:$0xff] %vm344, 0.0
      %368 = vst.msk [vmem:[#allocation2 + $0xb8] sm:$0xff] %vm344, 0.0
      %369 = vst.msk [vmem:[#allocation2 + $0xc0] sm:$0xff] %vm344, 0.0
      %370 = vst.msk [vmem:[#allocation2 + $0xc8] sm:$0xff] %vm344, 0.0
      %371 = vst.msk [vmem:[#allocation2 + $0xd0] sm:$0xff] %vm344, 0.0
      %372 = vst.msk [vmem:[#allocation2 + $0xd8] sm:$0xff] %vm344, 0.0
      %373 = vst.msk [vmem:[#allocation2 + $0xe0] sm:$0xff] %vm344, 0.0
      %374 = vst.msk [vmem:[#allocation2 + $0xe8] sm:$0xff] %vm344, 0.0
      %375 = vst.msk [vmem:[#allocation2 + $0xf0] sm:$0xff] %vm344, 0.0
      %376 = vst.msk [vmem:[#allocation2 + $0xf8] sm:$0xff] %vm344, 0.0
      %377 = vst.msk [vmem:[#allocation2 + $0x100] sm:$0xff] %vm344, 0.0
      %378 = vst.msk [vmem:[#allocation2 + $0x108] sm:$0xff] %vm344, 0.0
      %379 = vst.msk [vmem:[#allocation2 + $0x110] sm:$0xff] %vm344, 0.0
      %380 = vst.msk [vmem:[#allocation2 + $0x118] sm:$0xff] %vm344, 0.0
      %381 = vst.msk [vmem:[#allocation2 + $0x120] sm:$0xff] %vm344, 0.0
      %382 = vst.msk [vmem:[#allocation2 + $0x128] sm:$0xff] %vm344, 0.0
      %383 = vst.msk [vmem:[#allocation2 + $0x130] sm:$0xff] %vm344, 0.0
      %384 = vst.msk [vmem:[#allocation2 + $0x138] sm:$0xff] %vm344, 0.0
      %385 = vst.msk [vmem:[#allocation2 + $0x140] sm:$0xff] %vm344, 0.0
      %386 = vst.msk [vmem:[#allocation2 + $0x148] sm:$0xff] %vm344, 0.0
      %387 = vst.msk [vmem:[#allocation2 + $0x150] sm:$0xff] %vm344, 0.0
      %388 = vst.msk [vmem:[#allocation2 + $0x158] sm:$0xff] %vm344, 0.0
      %389 = vst.msk [vmem:[#allocation2 + $0x160] sm:$0xff] %vm344, 0.0
      %390 = vst.msk [vmem:[#allocation2 + $0x168] sm:$0xff] %vm344, 0.0
      %391 = vst.msk [vmem:[#allocation2 + $0x170] sm:$0xff] %vm344, 0.0
      %392 = vst.msk [vmem:[#allocation2 + $0x178] sm:$0xff] %vm344, 0.0
      %393 = vst.msk [vmem:[#allocation2 + $0x180] sm:$0xff] %vm344, 0.0
      %394 = vst.msk [vmem:[#allocation2 + $0x188] sm:$0xff] %vm344, 0.0
      %395 = vst.msk [vmem:[#allocation2 + $0x190] sm:$0xff] %vm344, 0.0
      %396 = vst.msk [vmem:[#allocation2 + $0x198] sm:$0xff] %vm344, 0.0
      %397 = vst.msk [vmem:[#allocation2 + $0x1a0] sm:$0xff] %vm344, 0.0
      %398 = vst.msk [vmem:[#allocation2 + $0x1a8] sm:$0xff] %vm344, 0.0
      %399 = vst.msk [vmem:[#allocation2 + $0x1b0] sm:$0xff] %vm344, 0.0
      %400 = vst.msk [vmem:[#allocation2 + $0x1b8] sm:$0xff] %vm344, 0.0
      %401 = vst.msk [vmem:[#allocation2 + $0x1c0] sm:$0xff] %vm344, 0.0
      %402 = vst.msk [vmem:[#allocation2 + $0x1c8] sm:$0xff] %vm344, 0.0
      %403 = vst.msk [vmem:[#allocation2 + $0x1d0] sm:$0xff] %vm344, 0.0
      %404 = vst.msk [vmem:[#allocation2 + $0x1d8] sm:$0xff] %vm344, 0.0
      %405 = vst.msk [vmem:[#allocation2 + $0x1e0] sm:$0xff] %vm344, 0.0
      %406 = vst.msk [vmem:[#allocation2 + $0x1e8] sm:$0xff] %vm344, 0.0
      %407 = vst.msk [vmem:[#allocation2 + $0x1f0] sm:$0xff] %vm344, 0.0
      %408 = vst.msk [vmem:[#allocation2 + $0x1f8] sm:$0xff] %vm344, 0.0
      %409 = vst.msk [vmem:[#allocation2 + $0x200] sm:$0xff] %vm344, 0.0
      %410 = vst.msk [vmem:[#allocation2 + $0x208] sm:$0xff] %vm344, 0.0
      %411 = vst.msk [vmem:[#allocation2 + $0x210] sm:$0xff] %vm344, 0.0
      %412 = vst.msk [vmem:[#allocation2 + $0x218] sm:$0xff] %vm344, 0.0
      %413 = vst.msk [vmem:[#allocation2 + $0x220] sm:$0xff] %vm344, 0.0
      %414 = vst.msk [vmem:[#allocation2 + $0x228] sm:$0xff] %vm344, 0.0
      %415 = vst.msk [vmem:[#allocation2 + $0x230] sm:$0xff] %vm344, 0.0
      %416 = vst.msk [vmem:[#allocation2 + $0x238] sm:$0xff] %vm344, 0.0
      %s417 = scalar_lea.vmem [#allocation2], 32
      %418 = vst.msk [vmem:[%s417 + $0x8] sm:$0xff] %vm344, %v312
      %419 = vst.msk [vmem:[%s417 + $0x10] sm:$0xff] %vm344, %v313
      %420 = vst.msk [vmem:[%s417 + $0x28] sm:$0xff] %vm344, %v314
      %421 = vst.msk [vmem:[%s417 + $0x30] sm:$0xff] %vm344, %v315
      %422 = vst.msk [vmem:[%s417 + $0x48] sm:$0xff] %vm344, %v316
      %423 = vst.msk [vmem:[%s417 + $0x50] sm:$0xff] %vm344, %v317
      %424 = vst.msk [vmem:[%s417 + $0x68] sm:$0xff] %vm344, %v318
      %425 = vst.msk [vmem:[%s417 + $0x70] sm:$0xff] %vm344, %v319
      %426 = vst.msk [vmem:[%s417 + $0x88] sm:$0xff] %vm344, %v320
      %427 = vst.msk [vmem:[%s417 + $0x90] sm:$0xff] %vm344, %v321
      %428 = vst.msk [vmem:[%s417 + $0xa8] sm:$0xff] %vm344, %v322
      %429 = vst.msk [vmem:[%s417 + $0xb0] sm:$0xff] %vm344, %v323
      %430 = vst.msk [vmem:[%s417 + $0xc8] sm:$0xff] %vm344, %v324
      %431 = vst.msk [vmem:[%s417 + $0xd0] sm:$0xff] %vm344, %v325
      %432 = vst.msk [vmem:[%s417 + $0xe8] sm:$0xff] %vm344, %v326
      %433 = vst.msk [vmem:[%s417 + $0xf0] sm:$0xff] %vm344, %v327
      %434 = vst.msk [vmem:[%s417 + $0x108] sm:$0xff] %vm344, %v328
      %435 = vst.msk [vmem:[%s417 + $0x110] sm:$0xff] %vm344, %v329
      %436 = vst.msk [vmem:[%s417 + $0x128] sm:$0xff] %vm344, %v330
      %437 = vst.msk [vmem:[%s417 + $0x130] sm:$0xff] %vm344, %v331
      %438 = vst.msk [vmem:[%s417 + $0x148] sm:$0xff] %vm344, %v332
      %439 = vst.msk [vmem:[%s417 + $0x150] sm:$0xff] %vm344, %v333
      %440 = vst.msk [vmem:[%s417 + $0x168] sm:$0xff] %vm344, %v334
      %441 = vst.msk [vmem:[%s417 + $0x170] sm:$0xff] %vm344, %v335
      %442 = vst.msk [vmem:[%s417 + $0x188] sm:$0xff] %vm344, %v336
      %443 = vst.msk [vmem:[%s417 + $0x190] sm:$0xff] %vm344, %v337
      %444 = vst.msk [vmem:[%s417 + $0x1a8] sm:$0xff] %vm344, %v338
      %445 = vst.msk [vmem:[%s417 + $0x1b0] sm:$0xff] %vm344, %v339
      %446 = vst.msk [vmem:[%s417 + $0x1c8] sm:$0xff] %vm344, %v340
      %447 = vst.msk [vmem:[%s417 + $0x1d0] sm:$0xff] %vm344, %v341
      %448 = vst.msk [vmem:[%s417 + $0x1e8] sm:$0xff] %vm344, %v342
      %449 = vst.msk [vmem:[%s417 + $0x1f0] sm:$0xff] %vm344, %v343
      %v450 = vld [vmem:[#allocation2] sm:$0xff]
      %v451 = vld [vmem:[#allocation2 + $0x8] sm:$0xff]
      %v452 = vld [vmem:[#allocation2 + $0x10] sm:$0xff]
      %v453 = vld [vmem:[#allocation2 + $0x18] sm:$0xff]
      %v454 = vld [vmem:[#allocation2 + $0x20] sm:$0xff]
      %v455 = vld [vmem:[#allocation2 + $0x28] sm:$0xff]
      %v456 = vld [vmem:[#allocation2 + $0x30] sm:$0xff]
      %v457 = vld [vmem:[#allocation2 + $0x38] sm:$0xff]
      %v458 = vld [vmem:[#allocation2 + $0x40] sm:$0xff]
      %v459 = vld [vmem:[#allocation2 + $0x48] sm:$0xff]
      %v460 = vld [vmem:[#allocation2 + $0x50] sm:$0xff]
      %v461 = vld [vmem:[#allocation2 + $0x58] sm:$0xff]
      %v462 = vld [vmem:[#allocation2 + $0x60] sm:$0xff]
      %v463 = vld [vmem:[#allocation2 + $0x68] sm:$0xff]
      %v464 = vld [vmem:[#allocation2 + $0x70] sm:$0xff]
      %v465 = vld [vmem:[#allocation2 + $0x78] sm:$0xff]
      %v466 = vld [vmem:[#allocation2 + $0x80] sm:$0xff]
      %v467 = vld [vmem:[#allocation2 + $0x88] sm:$0xff]
      %v468 = vld [vmem:[#allocation2 + $0x90] sm:$0xff]
      %v469 = vld [vmem:[#allocation2 + $0x98] sm:$0xff]
      %v470 = vld [vmem:[#allocation2 + $0xa0] sm:$0xff]
      %v471 = vld [vmem:[#allocation2 + $0xa8] sm:$0xff]
      %v472 = vld [vmem:[#allocation2 + $0xb0] sm:$0xff]
      %v473 = vld [vmem:[#allocation2 + $0xb8] sm:$0xff]
      %v474 = vld [vmem:[#allocation2 + $0xc0] sm:$0xff]
      %v475 = vld [vmem:[#allocation2 + $0xc8] sm:$0xff]
      %v476 = vld [vmem:[#allocation2 + $0xd0] sm:$0xff]
      %v477 = vld [vmem:[#allocation2 + $0xd8] sm:$0xff]
      %v478 = vld [vmem:[#allocation2 + $0xe0] sm:$0xff]
      %v479 = vld [vmem:[#allocation2 + $0xe8] sm:$0xff]
      %v480 = vld [vmem:[#allocation2 + $0xf0] sm:$0xff]
      %v481 = vld [vmem:[#allocation2 + $0xf8] sm:$0xff]
      %v482 = vld [vmem:[#allocation2 + $0x100] sm:$0xff]
      %v483 = vld [vmem:[#allocation2 + $0x108] sm:$0xff]
      %v484 = vld [vmem:[#allocation2 + $0x110] sm:$0xff]
      %v485 = vld [vmem:[#allocation2 + $0x118] sm:$0xff]
      %v486 = vld [vmem:[#allocation2 + $0x120] sm:$0xff]
      %v487 = vld [vmem:[#allocation2 + $0x128] sm:$0xff]
      %v488 = vld [vmem:[#allocation2 + $0x130] sm:$0xff]
      %v489 = vld [vmem:[#allocation2 + $0x138] sm:$0xff]
      %v490 = vld [vmem:[#allocation2 + $0x140] sm:$0xff]
      %v491 = vld [vmem:[#allocation2 + $0x148] sm:$0xff]
      %v492 = vld [vmem:[#allocation2 + $0x150] sm:$0xff]
      %v493 = vld [vmem:[#allocation2 + $0x158] sm:$0xff]
      %v494 = vld [vmem:[#allocation2 + $0x160] sm:$0xff]
      %v495 = vld [vmem:[#allocation2 + $0x168] sm:$0xff]
      %v496 = vld [vmem:[#allocation2 + $0x170] sm:$0xff]
      %v497 = vld [vmem:[#allocation2 + $0x178] sm:$0xff]
      %v498 = vld [vmem:[#allocation2 + $0x180] sm:$0xff]
      %v499 = vld [vmem:[#allocation2 + $0x188] sm:$0xff]
      %v500 = vld [vmem:[#allocation2 + $0x190] sm:$0xff]
      %v501 = vld [vmem:[#allocation2 + $0x198] sm:$0xff]
      %v502 = vld [vmem:[#allocation2 + $0x1a0] sm:$0xff]
      %v503 = vld [vmem:[#allocation2 + $0x1a8] sm:$0xff]
      %v504 = vld [vmem:[#allocation2 + $0x1b0] sm:$0xff]
      %v505 = vld [vmem:[#allocation2 + $0x1b8] sm:$0xff]
      %v506 = vld [vmem:[#allocation2 + $0x1c0] sm:$0xff]
      %v507 = vld [vmem:[#allocation2 + $0x1c8] sm:$0xff]
      %v508 = vld [vmem:[#allocation2 + $0x1d0] sm:$0xff]
      %v509 = vld [vmem:[#allocation2 + $0x1d8] sm:$0xff]
      %v510 = vld [vmem:[#allocation2 + $0x1e0] sm:$0xff]
      %v511 = vld [vmem:[#allocation2 + $0x1e8] sm:$0xff]
      %v512 = vld [vmem:[#allocation2 + $0x1f0] sm:$0xff]
      %v513 = vld [vmem:[#allocation2 + $0x1f8] sm:$0xff]
      %v514 = vld [vmem:[#allocation2 + $0x200] sm:$0xff]
      %v515 = vld [vmem:[#allocation2 + $0x208] sm:$0xff]
      %v516 = vld [vmem:[#allocation2 + $0x210] sm:$0xff]
      %v517 = vld [vmem:[#allocation2 + $0x218] sm:$0xff]
      %v518 = vld [vmem:[#allocation2 + $0x220] sm:$0xff]
      %v519 = vld [vmem:[#allocation2 + $0x228] sm:$0xff]
      %v520 = vld [vmem:[#allocation2 + $0x230] sm:$0xff]
      %v521 = vld [vmem:[#allocation2 + $0x238] sm:$0xff]
      %vm570 = vcmask 1040384
      %v571 = vrot.slane %v450, 7
      %v572 = vrot.slane %v451, 7
      %v573 = vsel %vm570, %v571, %v572
      %v574 = vrot.slane %v452, 7
      %v575 = vsel %vm570, %v572, %v574
      %v576 = vrot.slane %v454, 7
      %v577 = vrot.slane %v455, 7
      %v578 = vsel %vm570, %v576, %v577
      %v579 = vrot.slane %v456, 7
      %v580 = vsel %vm570, %v577, %v579
      %v581 = vrot.slane %v458, 7
      %v582 = vrot.slane %v459, 7
      %v583 = vsel %vm570, %v581, %v582
      %v584 = vrot.slane %v460, 7
      %v585 = vsel %vm570, %v582, %v584
      %v586 = vrot.slane %v462, 7
      %v587 = vrot.slane %v463, 7
      %v588 = vsel %vm570, %v586, %v587
      %v589 = vrot.slane %v464, 7
      %v590 = vsel %vm570, %v587, %v589
      %v591 = vrot.slane %v466, 7
      %v592 = vrot.slane %v467, 7
      %v593 = vsel %vm570, %v591, %v592
      %v594 = vrot.slane %v468, 7
      %v595 = vsel %vm570, %v592, %v594
      %v596 = vrot.slane %v470, 7
      %v597 = vrot.slane %v471, 7
      %v598 = vsel %vm570, %v596, %v597
      %v599 = vrot.slane %v472, 7
      %v600 = vsel %vm570, %v597, %v599
      %v601 = vrot.slane %v474, 7
      %v602 = vrot.slane %v475, 7
      %v603 = vsel %vm570, %v601, %v602
      %v604 = vrot.slane %v476, 7
      %v605 = vsel %vm570, %v602, %v604
      %v606 = vrot.slane %v478, 7
      %v607 = vrot.slane %v479, 7
      %v608 = vsel %vm570, %v606, %v607
      %v609 = vrot.slane %v480, 7
      %v610 = vsel %vm570, %v607, %v609
      %v611 = vrot.slane %v482, 7
      %v612 = vrot.slane %v483, 7
      %v613 = vsel %vm570, %v611, %v612
      %v614 = vrot.slane %v484, 7
      %v615 = vsel %vm570, %v612, %v614
      %v616 = vrot.slane %v486, 7
      %v617 = vrot.slane %v487, 7
      %v618 = vsel %vm570, %v616, %v617
      %v619 = vrot.slane %v488, 7
      %v620 = vsel %vm570, %v617, %v619
      %v621 = vrot.slane %v490, 7
      %v622 = vrot.slane %v491, 7
      %v623 = vsel %vm570, %v621, %v622
      %v624 = vrot.slane %v492, 7
      %v625 = vsel %vm570, %v622, %v624
      %v626 = vrot.slane %v494, 7
      %v627 = vrot.slane %v495, 7
      %v628 = vsel %vm570, %v626, %v627
      %v629 = vrot.slane %v496, 7
      %v630 = vsel %vm570, %v627, %v629
      %v631 = vrot.slane %v498, 7
      %v632 = vrot.slane %v499, 7
      %v633 = vsel %vm570, %v631, %v632
      %v634 = vrot.slane %v500, 7
      %v635 = vsel %vm570, %v632, %v634
      %v636 = vrot.slane %v502, 7
      %v637 = vrot.slane %v503, 7
      %v638 = vsel %vm570, %v636, %v637
      %v639 = vrot.slane %v504, 7
      %v640 = vsel %vm570, %v637, %v639
      %v641 = vrot.slane %v506, 7
      %v642 = vrot.slane %v507, 7
      %v643 = vsel %vm570, %v641, %v642
      %v644 = vrot.slane %v508, 7
      %v645 = vsel %vm570, %v642, %v644
      %v646 = vrot.slane %v510, 7
      %v647 = vrot.slane %v511, 7
      %v648 = vsel %vm570, %v646, %v647
      %v649 = vrot.slane %v512, 7
      %v650 = vsel %vm570, %v647, %v649
      %v683 = vpack.c.bf16 %v575, %v573
      %v684 = vpack.c.bf16 %v580, %v578
      %v685 = vpack.c.bf16 %v585, %v583
      %v686 = vpack.c.bf16 %v590, %v588
      %v687 = vpack.c.bf16 %v595, %v593
      %v688 = vpack.c.bf16 %v600, %v598
      %v689 = vpack.c.bf16 %v605, %v603
      %v690 = vpack.c.bf16 %v610, %v608
      %v691 = vpack.c.bf16 %v615, %v613
      %v692 = vpack.c.bf16 %v620, %v618
      %v693 = vpack.c.bf16 %v625, %v623
      %v694 = vpack.c.bf16 %v630, %v628
      %v695 = vpack.c.bf16 %v635, %v633
      %v696 = vpack.c.bf16 %v640, %v638
      %v697 = vpack.c.bf16 %v645, %v643
      %v698 = vpack.c.bf16 %v650, %v648
      %699 = vst.msk [vmem:[#allocation4] sm:$0xff] %vm344, %v683
      %700 = vst.msk [vmem:[#allocation4 + $0x8] sm:$0xff] %vm344, %v684
      %701 = vst.msk [vmem:[#allocation4 + $0x10] sm:$0xff] %vm344, %v685
      %702 = vst.msk [vmem:[#allocation4 + $0x18] sm:$0xff] %vm344, %v686
      %703 = vst.msk [vmem:[#allocation4 + $0x20] sm:$0xff] %vm344, %v687
      %704 = vst.msk [vmem:[#allocation4 + $0x28] sm:$0xff] %vm344, %v688
      %705 = vst.msk [vmem:[#allocation4 + $0x30] sm:$0xff] %vm344, %v689
      %706 = vst.msk [vmem:[#allocation4 + $0x38] sm:$0xff] %vm344, %v690
      %707 = vst.msk [vmem:[#allocation4 + $0x40] sm:$0xff] %vm344, %v691
      %708 = vst.msk [vmem:[#allocation4 + $0x48] sm:$0xff] %vm344, %v692
      %709 = vst.msk [vmem:[#allocation4 + $0x50] sm:$0xff] %vm344, %v693
      %710 = vst.msk [vmem:[#allocation4 + $0x58] sm:$0xff] %vm344, %v694
      %711 = vst.msk [vmem:[#allocation4 + $0x60] sm:$0xff] %vm344, %v695
      %712 = vst.msk [vmem:[#allocation4 + $0x68] sm:$0xff] %vm344, %v696
      %713 = vst.msk [vmem:[#allocation4 + $0x70] sm:$0xff] %vm344, %v697
      %714 = vst.msk [vmem:[#allocation4 + $0x78] sm:$0xff] %vm344, %v698
      %v715 = vpack.c.bf16 %v452, %v451
      %v716 = vpack.c.bf16 %v456, %v455
      %v717 = vpack.c.bf16 %v460, %v459
      %v718 = vpack.c.bf16 %v464, %v463
      %v719 = vpack.c.bf16 %v468, %v467
      %v720 = vpack.c.bf16 %v472, %v471
      %v721 = vpack.c.bf16 %v476, %v475
      %v722 = vpack.c.bf16 %v480, %v479
      %v723 = vpack.c.bf16 %v484, %v483
      %v724 = vpack.c.bf16 %v488, %v487
      %v725 = vpack.c.bf16 %v492, %v491
      %v726 = vpack.c.bf16 %v496, %v495
      %v727 = vpack.c.bf16 %v500, %v499
      %v728 = vpack.c.bf16 %v504, %v503
      %v729 = vpack.c.bf16 %v508, %v507
      %v730 = vpack.c.bf16 %v512, %v511
      %747 = vrot.lane.b32.xlu0 %v715, 8
      %v748 = vpop.permute.xlu0 %747
      %749 = vrot.lane.b32.xlu0 %v716, 8
      %v750 = vpop.permute.xlu0 %749
      %751 = vrot.lane.b32.xlu0 %v717, 8
      %v752 = vpop.permute.xlu0 %751
      %753 = vrot.lane.b32.xlu0 %v718, 8
      %v754 = vpop.permute.xlu0 %753
      %755 = vrot.lane.b32.xlu0 %v719, 8
      %v756 = vpop.permute.xlu0 %755
      %757 = vrot.lane.b32.xlu0 %v720, 8
      %v758 = vpop.permute.xlu0 %757
      %759 = vrot.lane.b32.xlu0 %v721, 8
      %v760 = vpop.permute.xlu0 %759
      %761 = vrot.lane.b32.xlu0 %v722, 8
      %v762 = vpop.permute.xlu0 %761
      %763 = vrot.lane.b32.xlu0 %v723, 8
      %v764 = vpop.permute.xlu0 %763
      %765 = vrot.lane.b32.xlu0 %v724, 8
      %v766 = vpop.permute.xlu0 %765
      %767 = vrot.lane.b32.xlu0 %v725, 8
      %v768 = vpop.permute.xlu0 %767
      %769 = vrot.lane.b32.xlu0 %v726, 8
      %v770 = vpop.permute.xlu0 %769
      %771 = vrot.lane.b32.xlu0 %v727, 8
      %v772 = vpop.permute.xlu0 %771
      %773 = vrot.lane.b32.xlu0 %v728, 8
      %v774 = vpop.permute.xlu0 %773
      %775 = vrot.lane.b32.xlu0 %v729, 8
      %v776 = vpop.permute.xlu0 %775
      %777 = vrot.lane.b32.xlu0 %v730, 8
      %v778 = vpop.permute.xlu0 %777
      %vm795 = vcmask 130112
      %796 = vst.msk [vmem:[#allocation4] sm:$0xff] %vm795, %v748
      %797 = vst.msk [vmem:[#allocation4 + $0x8] sm:$0xff] %vm795, %v750
      %798 = vst.msk [vmem:[#allocation4 + $0x10] sm:$0xff] %vm795, %v752
      %799 = vst.msk [vmem:[#allocation4 + $0x18] sm:$0xff] %vm795, %v754
      %800 = vst.msk [vmem:[#allocation4 + $0x20] sm:$0xff] %vm795, %v756
      %801 = vst.msk [vmem:[#allocation4 + $0x28] sm:$0xff] %vm795, %v758
      %802 = vst.msk [vmem:[#allocation4 + $0x30] sm:$0xff] %vm795, %v760
      %803 = vst.msk [vmem:[#allocation4 + $0x38] sm:$0xff] %vm795, %v762
      %804 = vst.msk [vmem:[#allocation4 + $0x40] sm:$0xff] %vm795, %v764
      %805 = vst.msk [vmem:[#allocation4 + $0x48] sm:$0xff] %vm795, %v766
      %806 = vst.msk [vmem:[#allocation4 + $0x50] sm:$0xff] %vm795, %v768
      %807 = vst.msk [vmem:[#allocation4 + $0x58] sm:$0xff] %vm795, %v770
      %808 = vst.msk [vmem:[#allocation4 + $0x60] sm:$0xff] %vm795, %v772
      %809 = vst.msk [vmem:[#allocation4 + $0x68] sm:$0xff] %vm795, %v774
      %810 = vst.msk [vmem:[#allocation4 + $0x70] sm:$0xff] %vm795, %v776
      %811 = vst.msk [vmem:[#allocation4 + $0x78] sm:$0xff] %vm795, %v778
      %vm828 = vcmask 1046528
      %v829 = vrot.slane %v451, 1
      %v830 = vrot.slane %v452, 1
      %v831 = vsel %vm828, %v829, %v830
      %v832 = vrot.slane %v453, 1
      %v833 = vsel %vm828, %v830, %v832
      %v834 = vrot.slane %v455, 1
      %v835 = vrot.slane %v456, 1
      %v836 = vsel %vm828, %v834, %v835
      %v837 = vrot.slane %v457, 1
      %v838 = vsel %vm828, %v835, %v837
      %v839 = vrot.slane %v459, 1
      %v840 = vrot.slane %v460, 1
      %v841 = vsel %vm828, %v839, %v840
      %v842 = vrot.slane %v461, 1
      %v843 = vsel %vm828, %v840, %v842
      %v844 = vrot.slane %v463, 1
      %v845 = vrot.slane %v464, 1
      %v846 = vsel %vm828, %v844, %v845
      %v847 = vrot.slane %v465, 1
      %v848 = vsel %vm828, %v845, %v847
      %v849 = vrot.slane %v467, 1
      %v850 = vrot.slane %v468, 1
      %v851 = vsel %vm828, %v849, %v850
      %v852 = vrot.slane %v469, 1
      %v853 = vsel %vm828, %v850, %v852
      %v854 = vrot.slane %v471, 1
      %v855 = vrot.slane %v472, 1
      %v856 = vsel %vm828, %v854, %v855
      %v857 = vrot.slane %v473, 1
      %v858 = vsel %vm828, %v855, %v857
      %v859 = vrot.slane %v475, 1
      %v860 = vrot.slane %v476, 1
      %v861 = vsel %vm828, %v859, %v860
      %v862 = vrot.slane %v477, 1
      %v863 = vsel %vm828, %v860, %v862
      %v864 = vrot.slane %v479, 1
      %v865 = vrot.slane %v480, 1
      %v866 = vsel %vm828, %v864, %v865
      %v867 = vrot.slane %v481, 1
      %v868 = vsel %vm828, %v865, %v867
      %v869 = vrot.slane %v483, 1
      %v870 = vrot.slane %v484, 1
      %v871 = vsel %vm828, %v869, %v870
      %v872 = vrot.slane %v485, 1
      %v873 = vsel %vm828, %v870, %v872
      %v874 = vrot.slane %v487, 1
      %v875 = vrot.slane %v488, 1
      %v876 = vsel %vm828, %v874, %v875
      %v877 = vrot.slane %v489, 1
      %v878 = vsel %vm828, %v875, %v877
      %v879 = vrot.slane %v491, 1
      %v880 = vrot.slane %v492, 1
      %v881 = vsel %vm828, %v879, %v880
      %v882 = vrot.slane %v493, 1
      %v883 = vsel %vm828, %v880, %v882
      %v884 = vrot.slane %v495, 1
      %v885 = vrot.slane %v496, 1
      %v886 = vsel %vm828, %v884, %v885
      %v887 = vrot.slane %v497, 1
      %v888 = vsel %vm828, %v885, %v887
      %v889 = vrot.slane %v499, 1
      %v890 = vrot.slane %v500, 1
      %v891 = vsel %vm828, %v889, %v890
      %v892 = vrot.slane %v501, 1
      %v893 = vsel %vm828, %v890, %v892
      %v894 = vrot.slane %v503, 1
      %v895 = vrot.slane %v504, 1
      %v896 = vsel %vm828, %v894, %v895
      %v897 = vrot.slane %v505, 1
      %v898 = vsel %vm828, %v895, %v897
      %v899 = vrot.slane %v507, 1
      %v900 = vrot.slane %v508, 1
      %v901 = vsel %vm828, %v899, %v900
      %v902 = vrot.slane %v509, 1
      %v903 = vsel %vm828, %v900, %v902
      %v904 = vrot.slane %v511, 1
      %v905 = vrot.slane %v512, 1
      %v906 = vsel %vm828, %v904, %v905
      %v907 = vrot.slane %v513, 1
      %v908 = vsel %vm828, %v905, %v907
      %v941 = vpack.c.bf16 %v833, %v831
      %v942 = vpack.c.bf16 %v838, %v836
      %v943 = vpack.c.bf16 %v843, %v841
      %v944 = vpack.c.bf16 %v848, %v846
      %v945 = vpack.c.bf16 %v853, %v851
      %v946 = vpack.c.bf16 %v858, %v856
      %v947 = vpack.c.bf16 %v863, %v861
      %v948 = vpack.c.bf16 %v868, %v866
      %v949 = vpack.c.bf16 %v873, %v871
      %v950 = vpack.c.bf16 %v878, %v876
      %v951 = vpack.c.bf16 %v883, %v881
      %v952 = vpack.c.bf16 %v888, %v886
      %v953 = vpack.c.bf16 %v893, %v891
      %v954 = vpack.c.bf16 %v898, %v896
      %v955 = vpack.c.bf16 %v903, %v901
      %v956 = vpack.c.bf16 %v908, %v906
      %973 = vrot.lane.b32.xlu0 %v941, 16
      %v974 = vpop.permute.xlu0 %973
      %975 = vrot.lane.b32.xlu0 %v942, 16
      %v976 = vpop.permute.xlu0 %975
      %977 = vrot.lane.b32.xlu0 %v943, 16
      %v978 = vpop.permute.xlu0 %977
      %979 = vrot.lane.b32.xlu0 %v944, 16
      %v980 = vpop.permute.xlu0 %979
      %981 = vrot.lane.b32.xlu0 %v945, 16
      %v982 = vpop.permute.xlu0 %981
      %983 = vrot.lane.b32.xlu0 %v946, 16
      %v984 = vpop.permute.xlu0 %983
      %985 = vrot.lane.b32.xlu0 %v947, 16
      %v986 = vpop.permute.xlu0 %985
      %987 = vrot.lane.b32.xlu0 %v948, 16
      %v988 = vpop.permute.xlu0 %987
      %989 = vrot.lane.b32.xlu0 %v949, 16
      %v990 = vpop.permute.xlu0 %989
      %991 = vrot.lane.b32.xlu0 %v950, 16
      %v992 = vpop.permute.xlu0 %991
      %993 = vrot.lane.b32.xlu0 %v951, 16
      %v994 = vpop.permute.xlu0 %993
      %995 = vrot.lane.b32.xlu0 %v952, 16
      %v996 = vpop.permute.xlu0 %995
      %997 = vrot.lane.b32.xlu0 %v953, 16
      %v998 = vpop.permute.xlu0 %997
      %999 = vrot.lane.b32.xlu0 %v954, 16
      %v1000 = vpop.permute.xlu0 %999
      %1001 = vrot.lane.b32.xlu0 %v955, 16
      %v1002 = vpop.permute.xlu0 %1001
      %1003 = vrot.lane.b32.xlu0 %v956, 16
      %v1004 = vpop.permute.xlu0 %1003
      %vm1021 = vcmask 195712
      %1022 = vst.msk [vmem:[#allocation4] sm:$0xff] %vm1021, %v974
      %1023 = vst.msk [vmem:[#allocation4 + $0x8] sm:$0xff] %vm1021, %v976
      %1024 = vst.msk [vmem:[#allocation4 + $0x10] sm:$0xff] %vm1021, %v978
      %1025 = vst.msk [vmem:[#allocation4 + $0x18] sm:$0xff] %vm1021, %v980
      %1026 = vst.msk [vmem:[#allocation4 + $0x20] sm:$0xff] %vm1021, %v982
      %1027 = vst.msk [vmem:[#allocation4 + $0x28] sm:$0xff] %vm1021, %v984
      %1028 = vst.msk [vmem:[#allocation4 + $0x30] sm:$0xff] %vm1021, %v986
      %1029 = vst.msk [vmem:[#allocation4 + $0x38] sm:$0xff] %vm1021, %v988
      %1030 = vst.msk [vmem:[#allocation4 + $0x40] sm:$0xff] %vm1021, %v990
      %1031 = vst.msk [vmem:[#allocation4 + $0x48] sm:$0xff] %vm1021, %v992
      %1032 = vst.msk [vmem:[#allocation4 + $0x50] sm:$0xff] %vm1021, %v994
      %1033 = vst.msk [vmem:[#allocation4 + $0x58] sm:$0xff] %vm1021, %v996
      %1034 = vst.msk [vmem:[#allocation4 + $0x60] sm:$0xff] %vm1021, %v998
      %1035 = vst.msk [vmem:[#allocation4 + $0x68] sm:$0xff] %vm1021, %v1000
      %1036 = vst.msk [vmem:[#allocation4 + $0x70] sm:$0xff] %vm1021, %v1002
      %1037 = vst.msk [vmem:[#allocation4 + $0x78] sm:$0xff] %vm1021, %v1004
      %v1041 = vrot.slane %v514, 7
      %v1042 = vrot.slane %v515, 7
      %v1043 = vsel %vm570, %v1041, %v1042
      %v1044 = vrot.slane %v516, 7
      %v1045 = vsel %vm570, %v1042, %v1044
      %v1048 = vpack.c.bf16 %v1045, %v1043
      %1065 = vrot.lane.b32.xlu0 %v684, 24
      %v1066 = vpop.permute.xlu0 %1065
      %1067 = vrot.lane.b32.xlu0 %v685, 24
      %v1068 = vpop.permute.xlu0 %1067
      %1069 = vrot.lane.b32.xlu0 %v686, 24
      %v1070 = vpop.permute.xlu0 %1069
      %1071 = vrot.lane.b32.xlu0 %v687, 24
      %v1072 = vpop.permute.xlu0 %1071
      %1073 = vrot.lane.b32.xlu0 %v688, 24
      %v1074 = vpop.permute.xlu0 %1073
      %1075 = vrot.lane.b32.xlu0 %v689, 24
      %v1076 = vpop.permute.xlu0 %1075
      %1077 = vrot.lane.b32.xlu0 %v690, 24
      %v1078 = vpop.permute.xlu0 %1077
      %1079 = vrot.lane.b32.xlu0 %v691, 24
      %v1080 = vpop.permute.xlu0 %1079
      %1081 = vrot.lane.b32.xlu0 %v692, 24
      %v1082 = vpop.permute.xlu0 %1081
      %1083 = vrot.lane.b32.xlu0 %v693, 24
      %v1084 = vpop.permute.xlu0 %1083
      %1085 = vrot.lane.b32.xlu0 %v694, 24
      %v1086 = vpop.permute.xlu0 %1085
      %1087 = vrot.lane.b32.xlu0 %v695, 24
      %v1088 = vpop.permute.xlu0 %1087
      %1089 = vrot.lane.b32.xlu0 %v696, 24
      %v1090 = vpop.permute.xlu0 %1089
      %1091 = vrot.lane.b32.xlu0 %v697, 24
      %v1092 = vpop.permute.xlu0 %1091
      %1093 = vrot.lane.b32.xlu0 %v698, 24
      %v1094 = vpop.permute.xlu0 %1093
      %1095 = vrot.lane.b32.xlu0 %v1048, 24
      %v1096 = vpop.permute.xlu0 %1095
      %vm1113 = vcmask 261312
      %1114 = vst.msk [vmem:[#allocation4] sm:$0xff] %vm1113, %v1066
      %1115 = vst.msk [vmem:[#allocation4 + $0x8] sm:$0xff] %vm1113, %v1068
      %1116 = vst.msk [vmem:[#allocation4 + $0x10] sm:$0xff] %vm1113, %v1070
      %1117 = vst.msk [vmem:[#allocation4 + $0x18] sm:$0xff] %vm1113, %v1072
      %1118 = vst.msk [vmem:[#allocation4 + $0x20] sm:$0xff] %vm1113, %v1074
      %1119 = vst.msk [vmem:[#allocation4 + $0x28] sm:$0xff] %vm1113, %v1076
      %1120 = vst.msk [vmem:[#allocation4 + $0x30] sm:$0xff] %vm1113, %v1078
      %1121 = vst.msk [vmem:[#allocation4 + $0x38] sm:$0xff] %vm1113, %v1080
      %1122 = vst.msk [vmem:[#allocation4 + $0x40] sm:$0xff] %vm1113, %v1082
      %1123 = vst.msk [vmem:[#allocation4 + $0x48] sm:$0xff] %vm1113, %v1084
      %1124 = vst.msk [vmem:[#allocation4 + $0x50] sm:$0xff] %vm1113, %v1086
      %1125 = vst.msk [vmem:[#allocation4 + $0x58] sm:$0xff] %vm1113, %v1088
      %1126 = vst.msk [vmem:[#allocation4 + $0x60] sm:$0xff] %vm1113, %v1090
      %1127 = vst.msk [vmem:[#allocation4 + $0x68] sm:$0xff] %vm1113, %v1092
      %1128 = vst.msk [vmem:[#allocation4 + $0x70] sm:$0xff] %vm1113, %v1094
      %1129 = vst.msk [vmem:[#allocation4 + $0x78] sm:$0xff] %vm1113, %v1096
      %v1130 = vpack.c.bf16 %v516, %v515
      %1132 = vrot.lane.b32.xlu0 %v716, 32
      %v1133 = vpop.permute.xlu0 %1132
      %1134 = vrot.lane.b32.xlu0 %v717, 32
      %v1135 = vpop.permute.xlu0 %1134
      %1136 = vrot.lane.b32.xlu0 %v718, 32
      %v1137 = vpop.permute.xlu0 %1136
      %1138 = vrot.lane.b32.xlu0 %v719, 32
      %v1139 = vpop.permute.xlu0 %1138
      %1140 = vrot.lane.b32.xlu0 %v720, 32
      %v1141 = vpop.permute.xlu0 %1140
      %1142 = vrot.lane.b32.xlu0 %v721, 32
      %v1143 = vpop.permute.xlu0 %1142
      %1144 = vrot.lane.b32.xlu0 %v722, 32
      %v1145 = vpop.permute.xlu0 %1144
      %1146 = vrot.lane.b32.xlu0 %v723, 32
      %v1147 = vpop.permute.xlu0 %1146
      %1148 = vrot.lane.b32.xlu0 %v724, 32
      %v1149 = vpop.permute.xlu0 %1148
      %1150 = vrot.lane.b32.xlu0 %v725, 32
      %v1151 = vpop.permute.xlu0 %1150
      %1152 = vrot.lane.b32.xlu0 %v726, 32
      %v1153 = vpop.permute.xlu0 %1152
      %1154 = vrot.lane.b32.xlu0 %v727, 32
      %v1155 = vpop.permute.xlu0 %1154
      %1156 = vrot.lane.b32.xlu0 %v728, 32
      %v1157 = vpop.permute.xlu0 %1156
      %1158 = vrot.lane.b32.xlu0 %v729, 32
      %v1159 = vpop.permute.xlu0 %1158
      %1160 = vrot.lane.b32.xlu0 %v730, 32
      %v1161 = vpop.permute.xlu0 %1160
      %1162 = vrot.lane.b32.xlu0 %v1130, 32
      %v1163 = vpop.permute.xlu0 %1162
      %vm1180 = vcmask 326912
      %1181 = vst.msk [vmem:[#allocation4] sm:$0xff] %vm1180, %v1133
      %1182 = vst.msk [vmem:[#allocation4 + $0x8] sm:$0xff] %vm1180, %v1135
      %1183 = vst.msk [vmem:[#allocation4 + $0x10] sm:$0xff] %vm1180, %v1137
      %1184 = vst.msk [vmem:[#allocation4 + $0x18] sm:$0xff] %vm1180, %v1139
      %1185 = vst.msk [vmem:[#allocation4 + $0x20] sm:$0xff] %vm1180, %v1141
      %1186 = vst.msk [vmem:[#allocation4 + $0x28] sm:$0xff] %vm1180, %v1143
      %1187 = vst.msk [vmem:[#allocation4 + $0x30] sm:$0xff] %vm1180, %v1145
      %1188 = vst.msk [vmem:[#allocation4 + $0x38] sm:$0xff] %vm1180, %v1147
      %1189 = vst.msk [vmem:[#allocation4 + $0x40] sm:$0xff] %vm1180, %v1149
      %1190 = vst.msk [vmem:[#allocation4 + $0x48] sm:$0xff] %vm1180, %v1151
      %1191 = vst.msk [vmem:[#allocation4 + $0x50] sm:$0xff] %vm1180, %v1153
      %1192 = vst.msk [vmem:[#allocation4 + $0x58] sm:$0xff] %vm1180, %v1155
      %1193 = vst.msk [vmem:[#allocation4 + $0x60] sm:$0xff] %vm1180, %v1157
      %1194 = vst.msk [vmem:[#allocation4 + $0x68] sm:$0xff] %vm1180, %v1159
      %1195 = vst.msk [vmem:[#allocation4 + $0x70] sm:$0xff] %vm1180, %v1161
      %1196 = vst.msk [vmem:[#allocation4 + $0x78] sm:$0xff] %vm1180, %v1163
      %v1198 = vrot.slane %v515, 1
      %v1199 = vrot.slane %v516, 1
      %v1200 = vsel %vm828, %v1198, %v1199
      %v1201 = vrot.slane %v517, 1
      %v1202 = vsel %vm828, %v1199, %v1201
      %v1205 = vpack.c.bf16 %v1202, %v1200
      %1207 = vrot.lane.b32.xlu0 %v942, 40
      %v1208 = vpop.permute.xlu0 %1207
      %1209 = vrot.lane.b32.xlu0 %v943, 40
      %v1210 = vpop.permute.xlu0 %1209
      %1211 = vrot.lane.b32.xlu0 %v944, 40
      %v1212 = vpop.permute.xlu0 %1211
      %1213 = vrot.lane.b32.xlu0 %v945, 40
      %v1214 = vpop.permute.xlu0 %1213
      %1215 = vrot.lane.b32.xlu0 %v946, 40
      %v1216 = vpop.permute.xlu0 %1215
      %1217 = vrot.lane.b32.xlu0 %v947, 40
      %v1218 = vpop.permute.xlu0 %1217
      %1219 = vrot.lane.b32.xlu0 %v948, 40
      %v1220 = vpop.permute.xlu0 %1219
      %1221 = vrot.lane.b32.xlu0 %v949, 40
      %v1222 = vpop.permute.xlu0 %1221
      %1223 = vrot.lane.b32.xlu0 %v950, 40
      %v1224 = vpop.permute.xlu0 %1223
      %1225 = vrot.lane.b32.xlu0 %v951, 40
      %v1226 = vpop.permute.xlu0 %1225
      %1227 = vrot.lane.b32.xlu0 %v952, 40
      %v1228 = vpop.permute.xlu0 %1227
      %1229 = vrot.lane.b32.xlu0 %v953, 40
      %v1230 = vpop.permute.xlu0 %1229
      %1231 = vrot.lane.b32.xlu0 %v954, 40
      %v1232 = vpop.permute.xlu0 %1231
      %1233 = vrot.lane.b32.xlu0 %v955, 40
      %v1234 = vpop.permute.xlu0 %1233
      %1235 = vrot.lane.b32.xlu0 %v956, 40
      %v1236 = vpop.permute.xlu0 %1235
      %1237 = vrot.lane.b32.xlu0 %v1205, 40
      %v1238 = vpop.permute.xlu0 %1237
      %vm1255 = vcmask 392512
      %1256 = vst.msk [vmem:[#allocation4] sm:$0xff] %vm1255, %v1208
      %1257 = vst.msk [vmem:[#allocation4 + $0x8] sm:$0xff] %vm1255, %v1210
      %1258 = vst.msk [vmem:[#allocation4 + $0x10] sm:$0xff] %vm1255, %v1212
      %1259 = vst.msk [vmem:[#allocation4 + $0x18] sm:$0xff] %vm1255, %v1214
      %1260 = vst.msk [vmem:[#allocation4 + $0x20] sm:$0xff] %vm1255, %v1216
      %1261 = vst.msk [vmem:[#allocation4 + $0x28] sm:$0xff] %vm1255, %v1218
      %1262 = vst.msk [vmem:[#allocation4 + $0x30] sm:$0xff] %vm1255, %v1220
      %1263 = vst.msk [vmem:[#allocation4 + $0x38] sm:$0xff] %vm1255, %v1222
      %1264 = vst.msk [vmem:[#allocation4 + $0x40] sm:$0xff] %vm1255, %v1224
      %1265 = vst.msk [vmem:[#allocation4 + $0x48] sm:$0xff] %vm1255, %v1226
      %1266 = vst.msk [vmem:[#allocation4 + $0x50] sm:$0xff] %vm1255, %v1228
      %1267 = vst.msk [vmem:[#allocation4 + $0x58] sm:$0xff] %vm1255, %v1230
      %1268 = vst.msk [vmem:[#allocation4 + $0x60] sm:$0xff] %vm1255, %v1232
      %1269 = vst.msk [vmem:[#allocation4 + $0x68] sm:$0xff] %vm1255, %v1234
      %1270 = vst.msk [vmem:[#allocation4 + $0x70] sm:$0xff] %vm1255, %v1236
      %1271 = vst.msk [vmem:[#allocation4 + $0x78] sm:$0xff] %vm1255, %v1238
      %v1275 = vrot.slane %v518, 7
      %v1276 = vrot.slane %v519, 7
      %v1277 = vsel %vm570, %v1275, %v1276
      %v1278 = vrot.slane %v520, 7
      %v1279 = vsel %vm570, %v1276, %v1278
      %v1282 = vpack.c.bf16 %v1279, %v1277
      %1284 = vrot.lane.b32.xlu0 %v685, 48
      %v1285 = vpop.permute.xlu0 %1284
      %1286 = vrot.lane.b32.xlu0 %v686, 48
      %v1287 = vpop.permute.xlu0 %1286
      %1288 = vrot.lane.b32.xlu0 %v687, 48
      %v1289 = vpop.permute.xlu0 %1288
      %1290 = vrot.lane.b32.xlu0 %v688, 48
      %v1291 = vpop.permute.xlu0 %1290
      %1292 = vrot.lane.b32.xlu0 %v689, 48
      %v1293 = vpop.permute.xlu0 %1292
      %1294 = vrot.lane.b32.xlu0 %v690, 48
      %v1295 = vpop.permute.xlu0 %1294
      %1296 = vrot.lane.b32.xlu0 %v691, 48
      %v1297 = vpop.permute.xlu0 %1296
      %1298 = vrot.lane.b32.xlu0 %v692, 48
      %v1299 = vpop.permute.xlu0 %1298
      %1300 = vrot.lane.b32.xlu0 %v693, 48
      %v1301 = vpop.permute.xlu0 %1300
      %1302 = vrot.lane.b32.xlu0 %v694, 48
      %v1303 = vpop.permute.xlu0 %1302
      %1304 = vrot.lane.b32.xlu0 %v695, 48
      %v1305 = vpop.permute.xlu0 %1304
      %1306 = vrot.lane.b32.xlu0 %v696, 48
      %v1307 = vpop.permute.xlu0 %1306
      %1308 = vrot.lane.b32.xlu0 %v697, 48
      %v1309 = vpop.permute.xlu0 %1308
      %1310 = vrot.lane.b32.xlu0 %v698, 48
      %v1311 = vpop.permute.xlu0 %1310
      %1312 = vrot.lane.b32.xlu0 %v1048, 48
      %v1313 = vpop.permute.xlu0 %1312
      %1314 = vrot.lane.b32.xlu0 %v1282, 48
      %v1315 = vpop.permute.xlu0 %1314
      %vm1332 = vcmask 458112
      %1333 = vst.msk [vmem:[#allocation4] sm:$0xff] %vm1332, %v1285
      %1334 = vst.msk [vmem:[#allocation4 + $0x8] sm:$0xff] %vm1332, %v1287
      %1335 = vst.msk [vmem:[#allocation4 + $0x10] sm:$0xff] %vm1332, %v1289
      %1336 = vst.msk [vmem:[#allocation4 + $0x18] sm:$0xff] %vm1332, %v1291
      %1337 = vst.msk [vmem:[#allocation4 + $0x20] sm:$0xff] %vm1332, %v1293
      %1338 = vst.msk [vmem:[#allocation4 + $0x28] sm:$0xff] %vm1332, %v1295
      %1339 = vst.msk [vmem:[#allocation4 + $0x30] sm:$0xff] %vm1332, %v1297
      %1340 = vst.msk [vmem:[#allocation4 + $0x38] sm:$0xff] %vm1332, %v1299
      %1341 = vst.msk [vmem:[#allocation4 + $0x40] sm:$0xff] %vm1332, %v1301
      %1342 = vst.msk [vmem:[#allocation4 + $0x48] sm:$0xff] %vm1332, %v1303
      %1343 = vst.msk [vmem:[#allocation4 + $0x50] sm:$0xff] %vm1332, %v1305
      %1344 = vst.msk [vmem:[#allocation4 + $0x58] sm:$0xff] %vm1332, %v1307
      %1345 = vst.msk [vmem:[#allocation4 + $0x60] sm:$0xff] %vm1332, %v1309
      %1346 = vst.msk [vmem:[#allocation4 + $0x68] sm:$0xff] %vm1332, %v1311
      %1347 = vst.msk [vmem:[#allocation4 + $0x70] sm:$0xff] %vm1332, %v1313
      %1348 = vst.msk [vmem:[#allocation4 + $0x78] sm:$0xff] %vm1332, %v1315
      %v1349 = vpack.c.bf16 %v520, %v519
      %1351 = vrot.lane.b32.xlu0 %v717, 56
      %v1352 = vpop.permute.xlu0 %1351
      %1353 = vrot.lane.b32.xlu0 %v718, 56
      %v1354 = vpop.permute.xlu0 %1353
      %1355 = vrot.lane.b32.xlu0 %v719, 56
      %v1356 = vpop.permute.xlu0 %1355
      %1357 = vrot.lane.b32.xlu0 %v720, 56
      %v1358 = vpop.permute.xlu0 %1357
      %1359 = vrot.lane.b32.xlu0 %v721, 56
      %v1360 = vpop.permute.xlu0 %1359
      %1361 = vrot.lane.b32.xlu0 %v722, 56
      %v1362 = vpop.permute.xlu0 %1361
      %1363 = vrot.lane.b32.xlu0 %v723, 56
      %v1364 = vpop.permute.xlu0 %1363
      %1365 = vrot.lane.b32.xlu0 %v724, 56
      %v1366 = vpop.permute.xlu0 %1365
      %1367 = vrot.lane.b32.xlu0 %v725, 56
      %v1368 = vpop.permute.xlu0 %1367
      %1369 = vrot.lane.b32.xlu0 %v726, 56
      %v1370 = vpop.permute.xlu0 %1369
      %1371 = vrot.lane.b32.xlu0 %v727, 56
      %v1372 = vpop.permute.xlu0 %1371
      %1373 = vrot.lane.b32.xlu0 %v728, 56
      %v1374 = vpop.permute.xlu0 %1373
      %1375 = vrot.lane.b32.xlu0 %v729, 56
      %v1376 = vpop.permute.xlu0 %1375
      %1377 = vrot.lane.b32.xlu0 %v730, 56
      %v1378 = vpop.permute.xlu0 %1377
      %1379 = vrot.lane.b32.xlu0 %v1130, 56
      %v1380 = vpop.permute.xlu0 %1379
      %1381 = vrot.lane.b32.xlu0 %v1349, 56
      %v1382 = vpop.permute.xlu0 %1381
      %vm1399 = vcmask 523712
      %1400 = vst.msk [vmem:[#allocation4] sm:$0xff] %vm1399, %v1352
      %1401 = vst.msk [vmem:[#allocation4 + $0x8] sm:$0xff] %vm1399, %v1354
      %1402 = vst.msk [vmem:[#allocation4 + $0x10] sm:$0xff] %vm1399, %v1356
      %1403 = vst.msk [vmem:[#allocation4 + $0x18] sm:$0xff] %vm1399, %v1358
      %1404 = vst.msk [vmem:[#allocation4 + $0x20] sm:$0xff] %vm1399, %v1360
      %1405 = vst.msk [vmem:[#allocation4 + $0x28] sm:$0xff] %vm1399, %v1362
      %1406 = vst.msk [vmem:[#allocation4 + $0x30] sm:$0xff] %vm1399, %v1364
      %1407 = vst.msk [vmem:[#allocation4 + $0x38] sm:$0xff] %vm1399, %v1366
      %1408 = vst.msk [vmem:[#allocation4 + $0x40] sm:$0xff] %vm1399, %v1368
      %1409 = vst.msk [vmem:[#allocation4 + $0x48] sm:$0xff] %vm1399, %v1370
      %1410 = vst.msk [vmem:[#allocation4 + $0x50] sm:$0xff] %vm1399, %v1372
      %1411 = vst.msk [vmem:[#allocation4 + $0x58] sm:$0xff] %vm1399, %v1374
      %1412 = vst.msk [vmem:[#allocation4 + $0x60] sm:$0xff] %vm1399, %v1376
      %1413 = vst.msk [vmem:[#allocation4 + $0x68] sm:$0xff] %vm1399, %v1378
      %1414 = vst.msk [vmem:[#allocation4 + $0x70] sm:$0xff] %vm1399, %v1380
      %1415 = vst.msk [vmem:[#allocation4 + $0x78] sm:$0xff] %vm1399, %v1382
      %v1417 = vrot.slane %v519, 1
      %v1418 = vrot.slane %v520, 1
      %v1419 = vsel %vm828, %v1417, %v1418
      %v1420 = vrot.slane %v521, 1
      %v1421 = vsel %vm828, %v1418, %v1420
      %v1424 = vpack.c.bf16 %v1421, %v1419
      %1426 = vrot.lane.b32.xlu0 %v943, 64
      %v1427 = vpop.permute.xlu0 %1426
      %1428 = vrot.lane.b32.xlu0 %v944, 64
      %v1429 = vpop.permute.xlu0 %1428
      %1430 = vrot.lane.b32.xlu0 %v945, 64
      %v1431 = vpop.permute.xlu0 %1430
      %1432 = vrot.lane.b32.xlu0 %v946, 64
      %v1433 = vpop.permute.xlu0 %1432
      %1434 = vrot.lane.b32.xlu0 %v947, 64
      %v1435 = vpop.permute.xlu0 %1434
      %1436 = vrot.lane.b32.xlu0 %v948, 64
      %v1437 = vpop.permute.xlu0 %1436
      %1438 = vrot.lane.b32.xlu0 %v949, 64
      %v1439 = vpop.permute.xlu0 %1438
      %1440 = vrot.lane.b32.xlu0 %v950, 64
      %v1441 = vpop.permute.xlu0 %1440
      %1442 = vrot.lane.b32.xlu0 %v951, 64
      %v1443 = vpop.permute.xlu0 %1442
      %1444 = vrot.lane.b32.xlu0 %v952, 64
      %v1445 = vpop.permute.xlu0 %1444
      %1446 = vrot.lane.b32.xlu0 %v953, 64
      %v1447 = vpop.permute.xlu0 %1446
      %1448 = vrot.lane.b32.xlu0 %v954, 64
      %v1449 = vpop.permute.xlu0 %1448
      %1450 = vrot.lane.b32.xlu0 %v955, 64
      %v1451 = vpop.permute.xlu0 %1450
      %1452 = vrot.lane.b32.xlu0 %v956, 64
      %v1453 = vpop.permute.xlu0 %1452
      %1454 = vrot.lane.b32.xlu0 %v1205, 64
      %v1455 = vpop.permute.xlu0 %1454
      %1456 = vrot.lane.b32.xlu0 %v1424, 64
      %v1457 = vpop.permute.xlu0 %1456
      %vm1474 = vcmask 589312
      %1475 = vst.msk [vmem:[#allocation4] sm:$0xff] %vm1474, %v1427
      %1476 = vst.msk [vmem:[#allocation4 + $0x8] sm:$0xff] %vm1474, %v1429
      %1477 = vst.msk [vmem:[#allocation4 + $0x10] sm:$0xff] %vm1474, %v1431
      %1478 = vst.msk [vmem:[#allocation4 + $0x18] sm:$0xff] %vm1474, %v1433
      %1479 = vst.msk [vmem:[#allocation4 + $0x20] sm:$0xff] %vm1474, %v1435
      %1480 = vst.msk [vmem:[#allocation4 + $0x28] sm:$0xff] %vm1474, %v1437
      %1481 = vst.msk [vmem:[#allocation4 + $0x30] sm:$0xff] %vm1474, %v1439
      %1482 = vst.msk [vmem:[#allocation4 + $0x38] sm:$0xff] %vm1474, %v1441
      %1483 = vst.msk [vmem:[#allocation4 + $0x40] sm:$0xff] %vm1474, %v1443
      %1484 = vst.msk [vmem:[#allocation4 + $0x48] sm:$0xff] %vm1474, %v1445
      %1485 = vst.msk [vmem:[#allocation4 + $0x50] sm:$0xff] %vm1474, %v1447
      %1486 = vst.msk [vmem:[#allocation4 + $0x58] sm:$0xff] %vm1474, %v1449
      %1487 = vst.msk [vmem:[#allocation4 + $0x60] sm:$0xff] %vm1474, %v1451
      %1488 = vst.msk [vmem:[#allocation4 + $0x68] sm:$0xff] %vm1474, %v1453
      %1489 = vst.msk [vmem:[#allocation4 + $0x70] sm:$0xff] %vm1474, %v1455
      %1490 = vst.msk [vmem:[#allocation4 + $0x78] sm:$0xff] %vm1474, %v1457
      %v1491 = vld [vmem:[#allocation4] sm:$0xff]
      %v1492 = vld [vmem:[#allocation4 + $0x8] sm:$0xff]
      %v1493 = vld [vmem:[#allocation4 + $0x10] sm:$0xff]
      %v1494 = vld [vmem:[#allocation4 + $0x18] sm:$0xff]
      %v1495 = vld [vmem:[#allocation4 + $0x20] sm:$0xff]
      %v1496 = vld [vmem:[#allocation4 + $0x28] sm:$0xff]
      %v1497 = vld [vmem:[#allocation4 + $0x30] sm:$0xff]
      %v1498 = vld [vmem:[#allocation4 + $0x38] sm:$0xff]
      %v1499 = vld [vmem:[#allocation4 + $0x40] sm:$0xff]
      %v1500 = vld [vmem:[#allocation4 + $0x48] sm:$0xff]
      %v1501 = vld [vmem:[#allocation4 + $0x50] sm:$0xff]
      %v1502 = vld [vmem:[#allocation4 + $0x58] sm:$0xff]
      %v1503 = vld [vmem:[#allocation4 + $0x60] sm:$0xff]
      %v1504 = vld [vmem:[#allocation4 + $0x68] sm:$0xff]
      %v1505 = vld [vmem:[#allocation4 + $0x70] sm:$0xff]
      %v1506 = vld [vmem:[#allocation4 + $0x78] sm:$0xff]
      %v1507 = vld [vmem:[%s1] sm:$0xf]
      %v1508 = vld [vmem:[%s1 + $0x4] sm:$0xf]
      %v1509 = vld [vmem:[%s1 + $0x8] sm:$0xf]
      %v1510 = vld [vmem:[%s1 + $0xc] sm:$0xf]
      %v1511 = vld [vmem:[%s1 + $0x10] sm:$0xf]
      %v1512 = vld [vmem:[%s1 + $0x14] sm:$0xf]
      %v1513 = vld [vmem:[%s1 + $0x18] sm:$0xf]
      %v1514 = vld [vmem:[%s1 + $0x1c] sm:$0xf]
      %v1515 = vld [vmem:[%s1 + $0x20] sm:$0xf]
      %v1525 = vunpack.c.l.b16 %v1507
      %v1526 = vunpack.c.l.b16 %v1508
      %v1527 = vunpack.c.l.b16 %v1509
      %v1528 = vunpack.c.l.b16 %v1510
      %v1529 = vunpack.c.l.b16 %v1511
      %v1530 = vunpack.c.l.b16 %v1512
      %v1531 = vunpack.c.l.b16 %v1513
      %v1532 = vunpack.c.l.b16 %v1514
      %v1533 = vunpack.c.l.b16 %v1515
      %v1534 = vpack.c.b16 %v1526, %v1525
      %v1535 = vpack.c.b16 %v1528, %v1527
      %v1536 = vpack.c.b16 %v1530, %v1529
      %v1537 = vpack.c.b16 %v1532, %v1531
      %v1538 = vpack.c.b16 %v1533, %v1533
      %vm1543 = vcmask 588800
      %v1545 = vsel %vm1543, %v1491, 0
      %v1548 = vsel %vm1543, %v1492, 0
      %v1551 = vsel %vm1543, %v1493, 0
      %v1554 = vsel %vm1543, %v1494, 0
      %v1557 = vsel %vm1543, %v1495, 0
      %v1560 = vsel %vm1543, %v1496, 0
      %v1563 = vsel %vm1543, %v1497, 0
      %v1566 = vsel %vm1543, %v1498, 0
      %v1569 = vsel %vm1543, %v1499, 0
      %v1572 = vsel %vm1543, %v1500, 0
      %v1575 = vsel %vm1543, %v1501, 0
      %v1578 = vsel %vm1543, %v1502, 0
      %v1581 = vsel %vm1543, %v1503, 0
      %v1584 = vsel %vm1543, %v1504, 0
      %v1587 = vsel %vm1543, %v1505, 0
      %v1590 = vsel %vm1543, %v1506, 0
      %vm1592 = vcmask 1043456
      %v1594 = vsel %vm1592, %v1538, 0
      %1596 = vmatprep.subr.bf16.mxu0 0
      %1597 = vmatpush1.bf16.msra.mxu0 %v1534
      %1598 = vmatprep.subr.bf16.mxu0 0
      %1599 = vmatpush1.bf16.msra.mxu0 %v1535
      %1600 = vmatprep.subr.bf16.mxu0 0
      %1601 = vmatpush1.bf16.msra.mxu0 %v1536
      %1602 = vmatprep.subr.bf16.mxu0 0
      %1603 = vmatpush1.bf16.msra.mxu0 %v1537
      %1604 = vmatprep.subr.bf16.mxu0 0
      %1605 = vmatpush1.bf16.msra.mxu0 %v1594
      %1606 = vmatprep.subr.bf16.mxu0 0
      %1607 = vmatpush1.bf16.msra.mxu0 0
      %1608 = vmatprep.subr.bf16.mxu0 0
      %1609 = vmatpush1.bf16.msra.mxu0 0
      %1610 = vmatprep.subr.bf16.mxu0 0
      %1611 = vmatpush1.bf16.msra.mxu0 0
      %1612 = vmatprep.subr.bf16.mxu0 0
      %1613 = vmatpush1.bf16.msra.mxu0 0
      %1614 = vmatprep.subr.bf16.mxu0 0
      %1615 = vmatpush1.bf16.msra.mxu0 0
      %1616 = vmatprep.subr.bf16.mxu0 0
      %1617 = vmatpush1.bf16.msra.mxu0 0
      %1618 = vmatprep.subr.bf16.mxu0 0
      %1619 = vmatpush1.bf16.msra.mxu0 0
      %1620 = vmatprep.subr.bf16.mxu0 0
      %1621 = vmatpush1.bf16.msra.mxu0 0
      %1622 = vmatprep.subr.bf16.mxu0 0
      %1623 = vmatpush1.bf16.msra.mxu0 0
      %1624 = vmatprep.subr.bf16.mxu0 0
      %1625 = vmatpush1.bf16.msra.mxu0 0
      %1626 = vmatprep.subr.bf16.mxu0 0
      %1627 = vmatpush1.bf16.msra.mxu0 0
      %1628 = vmatprep.mubr.bf16.mxu0 0
      %1629 = vmatmul.mubr.bf16.gmra.mrb[0].mxu0 %v1545
      %v1630 = vpop.f32.mrb[0].mxu0
      %v1631 = vadd.f32 0.0, %v1630
      %v1632 = vpop.f32.mrb[0].mxu0
      %v1633 = vpop.f32.mrb[0].mxu0
      %v1634 = vadd.f32 0.0, %v1633
      %v1635 = vpop.f32.mrb[0].mxu0
      %1636 = vmatprep.mubr.bf16.mxu0 0
      %1637 = vmatmul.mubr.bf16.gmra.mrb[0].mxu0 %v1548
      %v1638 = vpop.f32.mrb[0].mxu0
      %v1639 = vadd.f32 0.0, %v1638
      %v1640 = vpop.f32.mrb[0].mxu0
      %v1641 = vpop.f32.mrb[0].mxu0
      %v1642 = vadd.f32 0.0, %v1641
      %v1643 = vpop.f32.mrb[0].mxu0
      %1644 = vmatprep.mubr.bf16.mxu0 0
      %1645 = vmatmul.mubr.bf16.gmra.mrb[0].mxu0 %v1551
      %v1646 = vpop.f32.mrb[0].mxu0
      %v1647 = vadd.f32 0.0, %v1646
      %v1648 = vpop.f32.mrb[0].mxu0
      %v1649 = vpop.f32.mrb[0].mxu0
      %v1650 = vadd.f32 0.0, %v1649
      %v1651 = vpop.f32.mrb[0].mxu0
      %1652 = vmatprep.mubr.bf16.mxu0 0
      %1653 = vmatmul.mubr.bf16.gmra.mrb[0].mxu0 %v1554
      %v1654 = vpop.f32.mrb[0].mxu0
      %v1655 = vadd.f32 0.0, %v1654
      %v1656 = vpop.f32.mrb[0].mxu0
      %v1657 = vpop.f32.mrb[0].mxu0
      %v1658 = vadd.f32 0.0, %v1657
      %v1659 = vpop.f32.mrb[0].mxu0
      %1660 = vmatprep.mubr.bf16.mxu0 0
      %1661 = vmatmul.mubr.bf16.gmra.mrb[0].mxu0 %v1557
      %v1662 = vpop.f32.mrb[0].mxu0
      %v1663 = vadd.f32 0.0, %v1662
      %v1664 = vpop.f32.mrb[0].mxu0
      %v1665 = vpop.f32.mrb[0].mxu0
      %v1666 = vadd.f32 0.0, %v1665
      %v1667 = vpop.f32.mrb[0].mxu0
      %1668 = vmatprep.mubr.bf16.mxu0 0
      %1669 = vmatmul.mubr.bf16.gmra.mrb[0].mxu0 %v1560
      %v1670 = vpop.f32.mrb[0].mxu0
      %v1671 = vadd.f32 0.0, %v1670
      %v1672 = vpop.f32.mrb[0].mxu0
      %v1673 = vpop.f32.mrb[0].mxu0
      %v1674 = vadd.f32 0.0, %v1673
      %v1675 = vpop.f32.mrb[0].mxu0
      %1676 = vmatprep.mubr.bf16.mxu0 0
      %1677 = vmatmul.mubr.bf16.gmra.mrb[0].mxu0 %v1563
      %v1678 = vpop.f32.mrb[0].mxu0
      %v1679 = vadd.f32 0.0, %v1678
      %v1680 = vpop.f32.mrb[0].mxu0
      %v1681 = vpop.f32.mrb[0].mxu0
      %v1682 = vadd.f32 0.0, %v1681
      %v1683 = vpop.f32.mrb[0].mxu0
      %1684 = vmatprep.mubr.bf16.mxu0 0
      %1685 = vmatmul.mubr.bf16.gmra.mrb[0].mxu0 %v1566
      %v1686 = vpop.f32.mrb[0].mxu0
      %v1687 = vadd.f32 0.0, %v1686
      %v1688 = vpop.f32.mrb[0].mxu0
      %v1689 = vpop.f32.mrb[0].mxu0
      %v1690 = vadd.f32 0.0, %v1689
      %v1691 = vpop.f32.mrb[0].mxu0
      %1692 = vmatprep.mubr.bf16.mxu0 0
      %1693 = vmatmul.mubr.bf16.gmra.mrb[0].mxu0 %v1569
      %v1694 = vpop.f32.mrb[0].mxu0
      %v1695 = vadd.f32 0.0, %v1694
      %v1696 = vpop.f32.mrb[0].mxu0
      %v1697 = vpop.f32.mrb[0].mxu0
      %v1698 = vadd.f32 0.0, %v1697
      %v1699 = vpop.f32.mrb[0].mxu0
      %1700 = vmatprep.mubr.bf16.mxu0 0
      %1701 = vmatmul.mubr.bf16.gmra.mrb[0].mxu0 %v1572
      %v1702 = vpop.f32.mrb[0].mxu0
      %v1703 = vadd.f32 0.0, %v1702
      %v1704 = vpop.f32.mrb[0].mxu0
      %v1705 = vpop.f32.mrb[0].mxu0
      %v1706 = vadd.f32 0.0, %v1705
      %v1707 = vpop.f32.mrb[0].mxu0
      %1708 = vmatprep.mubr.bf16.mxu0 0
      %1709 = vmatmul.mubr.bf16.gmra.mrb[0].mxu0 %v1575
      %v1710 = vpop.f32.mrb[0].mxu0
      %v1711 = vadd.f32 0.0, %v1710
      %v1712 = vpop.f32.mrb[0].mxu0
      %v1713 = vpop.f32.mrb[0].mxu0
      %v1714 = vadd.f32 0.0, %v1713
      %v1715 = vpop.f32.mrb[0].mxu0
      %1716 = vmatprep.mubr.bf16.mxu0 0
      %1717 = vmatmul.mubr.bf16.gmra.mrb[0].mxu0 %v1578
      %v1718 = vpop.f32.mrb[0].mxu0
      %v1719 = vadd.f32 0.0, %v1718
      %v1720 = vpop.f32.mrb[0].mxu0
      %v1721 = vpop.f32.mrb[0].mxu0
      %v1722 = vadd.f32 0.0, %v1721
      %v1723 = vpop.f32.mrb[0].mxu0
      %1724 = vmatprep.mubr.bf16.mxu0 0
      %1725 = vmatmul.mubr.bf16.gmra.mrb[0].mxu0 %v1581
      %v1726 = vpop.f32.mrb[0].mxu0
      %v1727 = vadd.f32 0.0, %v1726
      %v1728 = vpop.f32.mrb[0].mxu0
      %v1729 = vpop.f32.mrb[0].mxu0
      %v1730 = vadd.f32 0.0, %v1729
      %v1731 = vpop.f32.mrb[0].mxu0
      %1732 = vmatprep.mubr.bf16.mxu0 0
      %1733 = vmatmul.mubr.bf16.gmra.mrb[0].mxu0 %v1584
      %v1734 = vpop.f32.mrb[0].mxu0
      %v1735 = vadd.f32 0.0, %v1734
      %v1736 = vpop.f32.mrb[0].mxu0
      %v1737 = vpop.f32.mrb[0].mxu0
      %v1738 = vadd.f32 0.0, %v1737
      %v1739 = vpop.f32.mrb[0].mxu0
      %1740 = vmatprep.mubr.bf16.mxu0 0
      %1741 = vmatmul.mubr.bf16.gmra.mrb[0].mxu0 %v1587
      %v1742 = vpop.f32.mrb[0].mxu0
      %v1743 = vadd.f32 0.0, %v1742
      %v1744 = vpop.f32.mrb[0].mxu0
      %v1745 = vpop.f32.mrb[0].mxu0
      %v1746 = vadd.f32 0.0, %v1745
      %v1747 = vpop.f32.mrb[0].mxu0
      %1748 = vmatprep.mubr.bf16.mxu0 0
      %1749 = vmatmul.mubr.bf16.gmra.mrb[0].mxu0 %v1590
      %v1750 = vpop.f32.mrb[0].mxu0
      %v1751 = vadd.f32 0.0, %v1750
      %v1752 = vpop.f32.mrb[0].mxu0
      %v1753 = vpop.f32.mrb[0].mxu0
      %v1754 = vadd.f32 0.0, %v1753
      %v1755 = vpop.f32.mrb[0].mxu0
      %1756 = vdwg.mxu0
      %v1757 = vld [vmem:[%s2] sm:$0x1]
      %v1759 = vlaneseq
      %v1760 = vshrl.u32 %v1759, 7
      %v1761 = vsub.s32 0, %v1760
      %v1762 = vrot.slane %v1757, %v1761
      %v1764 = vmul.f32 %v1631, %v1762
      %v1765 = vmul.f32 %v1634, %v1762
      %v1766 = vmul.f32 %v1639, %v1762
      %v1767 = vmul.f32 %v1642, %v1762
      %v1768 = vmul.f32 %v1647, %v1762
      %v1769 = vmul.f32 %v1650, %v1762
      %v1770 = vmul.f32 %v1655, %v1762
      %v1771 = vmul.f32 %v1658, %v1762
      %v1772 = vmul.f32 %v1663, %v1762
      %v1773 = vmul.f32 %v1666, %v1762
      %v1774 = vmul.f32 %v1671, %v1762
      %v1775 = vmul.f32 %v1674, %v1762
      %v1776 = vmul.f32 %v1679, %v1762
      %v1777 = vmul.f32 %v1682, %v1762
      %v1778 = vmul.f32 %v1687, %v1762
      %v1779 = vmul.f32 %v1690, %v1762
      %v1780 = vmul.f32 %v1695, %v1762
      %v1781 = vmul.f32 %v1698, %v1762
      %v1782 = vmul.f32 %v1703, %v1762
      %v1783 = vmul.f32 %v1706, %v1762
      %v1784 = vmul.f32 %v1711, %v1762
      %v1785 = vmul.f32 %v1714, %v1762
      %v1786 = vmul.f32 %v1719, %v1762
      %v1787 = vmul.f32 %v1722, %v1762
      %v1788 = vmul.f32 %v1727, %v1762
      %v1789 = vmul.f32 %v1730, %v1762
      %v1790 = vmul.f32 %v1735, %v1762
      %v1791 = vmul.f32 %v1738, %v1762
      %v1792 = vmul.f32 %v1743, %v1762
      %v1793 = vmul.f32 %v1746, %v1762
      %v1794 = vmul.f32 %v1751, %v1762
      %v1795 = vmul.f32 %v1754, %v1762
      %v1796 = vld [vmem:[%s3] sm:$0x1]
      %v1798 = vlaneseq
      %v1799 = vshrl.u32 %v1798, 7
      %v1800 = vsub.s32 0, %v1799
      %v1801 = vrot.slane %v1796, %v1800
      %v1803 = vadd.f32 %v1764, %v1801
      %v1804 = vadd.f32 %v1765, %v1801
      %v1805 = vadd.f32 %v1766, %v1801
      %v1806 = vadd.f32 %v1767, %v1801
      %v1807 = vadd.f32 %v1768, %v1801
      %v1808 = vadd.f32 %v1769, %v1801
      %v1809 = vadd.f32 %v1770, %v1801
      %v1810 = vadd.f32 %v1771, %v1801
      %v1811 = vadd.f32 %v1772, %v1801
      %v1812 = vadd.f32 %v1773, %v1801
      %v1813 = vadd.f32 %v1774, %v1801
      %v1814 = vadd.f32 %v1775, %v1801
      %v1815 = vadd.f32 %v1776, %v1801
      %v1816 = vadd.f32 %v1777, %v1801
      %v1817 = vadd.f32 %v1778, %v1801
      %v1818 = vadd.f32 %v1779, %v1801
      %v1819 = vadd.f32 %v1780, %v1801
      %v1820 = vadd.f32 %v1781, %v1801
      %v1821 = vadd.f32 %v1782, %v1801
      %v1822 = vadd.f32 %v1783, %v1801
      %v1823 = vadd.f32 %v1784, %v1801
      %v1824 = vadd.f32 %v1785, %v1801
      %v1825 = vadd.f32 %v1786, %v1801
      %v1826 = vadd.f32 %v1787, %v1801
      %v1827 = vadd.f32 %v1788, %v1801
      %v1828 = vadd.f32 %v1789, %v1801
      %v1829 = vadd.f32 %v1790, %v1801
      %v1830 = vadd.f32 %v1791, %v1801
      %v1831 = vadd.f32 %v1792, %v1801
      %v1832 = vadd.f32 %v1793, %v1801
      %v1833 = vadd.f32 %v1794, %v1801
      %v1834 = vadd.f32 %v1795, %v1801
      %v1835 = vmax.f32 %v1803, 0.0
      %v1836 = vmax.f32 %v1804, 0.0
      %v1837 = vmax.f32 %v1805, 0.0
      %v1838 = vmax.f32 %v1806, 0.0
      %v1839 = vmax.f32 %v1807, 0.0
      %v1840 = vmax.f32 %v1808, 0.0
      %v1841 = vmax.f32 %v1809, 0.0
      %v1842 = vmax.f32 %v1810, 0.0
      %v1843 = vmax.f32 %v1811, 0.0
      %v1844 = vmax.f32 %v1812, 0.0
      %v1845 = vmax.f32 %v1813, 0.0
      %v1846 = vmax.f32 %v1814, 0.0
      %v1847 = vmax.f32 %v1815, 0.0
      %v1848 = vmax.f32 %v1816, 0.0
      %v1849 = vmax.f32 %v1817, 0.0
      %v1850 = vmax.f32 %v1818, 0.0
      %v1851 = vmax.f32 %v1819, 0.0
      %v1852 = vmax.f32 %v1820, 0.0
      %v1853 = vmax.f32 %v1821, 0.0
      %v1854 = vmax.f32 %v1822, 0.0
      %v1855 = vmax.f32 %v1823, 0.0
      %v1856 = vmax.f32 %v1824, 0.0
      %v1857 = vmax.f32 %v1825, 0.0
      %v1858 = vmax.f32 %v1826, 0.0
      %v1859 = vmax.f32 %v1827, 0.0
      %v1860 = vmax.f32 %v1828, 0.0
      %v1861 = vmax.f32 %v1829, 0.0
      %v1862 = vmax.f32 %v1830, 0.0
      %v1863 = vmax.f32 %v1831, 0.0
      %v1864 = vmax.f32 %v1832, 0.0
      %v1865 = vmax.f32 %v1833, 0.0
      %v1866 = vmax.f32 %v1834, 0.0
      %1867 = vst.msk [vmem:[#allocation3] sm:$0xff] %vm344, 0.0
      %1868 = vst.msk [vmem:[#allocation3 + $0x8] sm:$0xff] %vm344, 0.0
      %1869 = vst.msk [vmem:[#allocation3 + $0x10] sm:$0xff] %vm344, 0.0
      %1870 = vst.msk [vmem:[#allocation3 + $0x18] sm:$0xff] %vm344, 0.0
      %1871 = vst.msk [vmem:[#allocation3 + $0x20] sm:$0xff] %vm344, 0.0
      %1872 = vst.msk [vmem:[#allocation3 + $0x28] sm:$0xff] %vm344, 0.0
      %1873 = vst.msk [vmem:[#allocation3 + $0x30] sm:$0xff] %vm344, 0.0
      %1874 = vst.msk [vmem:[#allocation3 + $0x38] sm:$0xff] %vm344, 0.0
      %1875 = vst.msk [vmem:[#allocation3 + $0x40] sm:$0xff] %vm344, 0.0
      %1876 = vst.msk [vmem:[#allocation3 + $0x48] sm:$0xff] %vm344, 0.0
      %1877 = vst.msk [vmem:[#allocation3 + $0x50] sm:$0xff] %vm344, 0.0
      %1878 = vst.msk [vmem:[#allocation3 + $0x58] sm:$0xff] %vm344, 0.0
      %1879 = vst.msk [vmem:[#allocation3 + $0x60] sm:$0xff] %vm344, 0.0
      %1880 = vst.msk [vmem:[#allocation3 + $0x68] sm:$0xff] %vm344, 0.0
      %1881 = vst.msk [vmem:[#allocation3 + $0x70] sm:$0xff] %vm344, 0.0
      %1882 = vst.msk [vmem:[#allocation3 + $0x78] sm:$0xff] %vm344, 0.0
      %1883 = vst.msk [vmem:[#allocation3 + $0x80] sm:$0xff] %vm344, 0.0
      %1884 = vst.msk [vmem:[#allocation3 + $0x88] sm:$0xff] %vm344, 0.0
      %1885 = vst.msk [vmem:[#allocation3 + $0x90] sm:$0xff] %vm344, 0.0
      %1886 = vst.msk [vmem:[#allocation3 + $0x98] sm:$0xff] %vm344, 0.0
      %1887 = vst.msk [vmem:[#allocation3 + $0xa0] sm:$0xff] %vm344, 0.0
      %1888 = vst.msk [vmem:[#allocation3 + $0xa8] sm:$0xff] %vm344, 0.0
      %1889 = vst.msk [vmem:[#allocation3 + $0xb0] sm:$0xff] %vm344, 0.0
      %1890 = vst.msk [vmem:[#allocation3 + $0xb8] sm:$0xff] %vm344, 0.0
      %1891 = vst.msk [vmem:[#allocation3 + $0xc0] sm:$0xff] %vm344, 0.0
      %1892 = vst.msk [vmem:[#allocation3 + $0xc8] sm:$0xff] %vm344, 0.0
      %1893 = vst.msk [vmem:[#allocation3 + $0xd0] sm:$0xff] %vm344, 0.0
      %1894 = vst.msk [vmem:[#allocation3 + $0xd8] sm:$0xff] %vm344, 0.0
      %1895 = vst.msk [vmem:[#allocation3 + $0xe0] sm:$0xff] %vm344, 0.0
      %1896 = vst.msk [vmem:[#allocation3 + $0xe8] sm:$0xff] %vm344, 0.0
      %1897 = vst.msk [vmem:[#allocation3 + $0xf0] sm:$0xff] %vm344, 0.0
      %1898 = vst.msk [vmem:[#allocation3 + $0xf8] sm:$0xff] %vm344, 0.0
      %1899 = vst.msk [vmem:[#allocation3 + $0x100] sm:$0xff] %vm344, 0.0
      %1900 = vst.msk [vmem:[#allocation3 + $0x108] sm:$0xff] %vm344, 0.0
      %1901 = vst.msk [vmem:[#allocation3 + $0x110] sm:$0xff] %vm344, 0.0
      %1902 = vst.msk [vmem:[#allocation3 + $0x118] sm:$0xff] %vm344, 0.0
      %1903 = vst.msk [vmem:[#allocation3 + $0x120] sm:$0xff] %vm344, 0.0
      %1904 = vst.msk [vmem:[#allocation3 + $0x128] sm:$0xff] %vm344, 0.0
      %1905 = vst.msk [vmem:[#allocation3 + $0x130] sm:$0xff] %vm344, 0.0
      %1906 = vst.msk [vmem:[#allocation3 + $0x138] sm:$0xff] %vm344, 0.0
      %1907 = vst.msk [vmem:[#allocation3 + $0x140] sm:$0xff] %vm344, 0.0
      %1908 = vst.msk [vmem:[#allocation3 + $0x148] sm:$0xff] %vm344, 0.0
      %1909 = vst.msk [vmem:[#allocation3 + $0x150] sm:$0xff] %vm344, 0.0
      %1910 = vst.msk [vmem:[#allocation3 + $0x158] sm:$0xff] %vm344, 0.0
      %1911 = vst.msk [vmem:[#allocation3 + $0x160] sm:$0xff] %vm344, 0.0
      %1912 = vst.msk [vmem:[#allocation3 + $0x168] sm:$0xff] %vm344, 0.0
      %1913 = vst.msk [vmem:[#allocation3 + $0x170] sm:$0xff] %vm344, 0.0
      %1914 = vst.msk [vmem:[#allocation3 + $0x178] sm:$0xff] %vm344, 0.0
      %1915 = vst.msk [vmem:[#allocation3 + $0x180] sm:$0xff] %vm344, 0.0
      %1916 = vst.msk [vmem:[#allocation3 + $0x188] sm:$0xff] %vm344, 0.0
      %1917 = vst.msk [vmem:[#allocation3 + $0x190] sm:$0xff] %vm344, 0.0
      %1918 = vst.msk [vmem:[#allocation3 + $0x198] sm:$0xff] %vm344, 0.0
      %1919 = vst.msk [vmem:[#allocation3 + $0x1a0] sm:$0xff] %vm344, 0.0
      %1920 = vst.msk [vmem:[#allocation3 + $0x1a8] sm:$0xff] %vm344, 0.0
      %1921 = vst.msk [vmem:[#allocation3 + $0x1b0] sm:$0xff] %vm344, 0.0
      %1922 = vst.msk [vmem:[#allocation3 + $0x1b8] sm:$0xff] %vm344, 0.0
      %1923 = vst.msk [vmem:[#allocation3 + $0x1c0] sm:$0xff] %vm344, 0.0
      %1924 = vst.msk [vmem:[#allocation3 + $0x1c8] sm:$0xff] %vm344, 0.0
      %1925 = vst.msk [vmem:[#allocation3 + $0x1d0] sm:$0xff] %vm344, 0.0
      %1926 = vst.msk [vmem:[#allocation3 + $0x1d8] sm:$0xff] %vm344, 0.0
      %1927 = vst.msk [vmem:[#allocation3 + $0x1e0] sm:$0xff] %vm344, 0.0
      %1928 = vst.msk [vmem:[#allocation3 + $0x1e8] sm:$0xff] %vm344, 0.0
      %1929 = vst.msk [vmem:[#allocation3 + $0x1f0] sm:$0xff] %vm344, 0.0
      %1930 = vst.msk [vmem:[#allocation3 + $0x1f8] sm:$0xff] %vm344, 0.0
      %1931 = vst.msk [vmem:[#allocation3 + $0x200] sm:$0xff] %vm344, 0.0
      %1932 = vst.msk [vmem:[#allocation3 + $0x208] sm:$0xff] %vm344, 0.0
      %1933 = vst.msk [vmem:[#allocation3 + $0x210] sm:$0xff] %vm344, 0.0
      %1934 = vst.msk [vmem:[#allocation3 + $0x218] sm:$0xff] %vm344, 0.0
      %1935 = vst.msk [vmem:[#allocation3 + $0x220] sm:$0xff] %vm344, 0.0
      %1936 = vst.msk [vmem:[#allocation3 + $0x228] sm:$0xff] %vm344, 0.0
      %1937 = vst.msk [vmem:[#allocation3 + $0x230] sm:$0xff] %vm344, 0.0
      %1938 = vst.msk [vmem:[#allocation3 + $0x238] sm:$0xff] %vm344, 0.0
      %s1939 = scalar_lea.vmem [#allocation3], 32
      %1940 = vst.msk [vmem:[%s1939 + $0x8] sm:$0xff] %vm344, %v1835
      %1941 = vst.msk [vmem:[%s1939 + $0x10] sm:$0xff] %vm344, %v1836
      %1942 = vst.msk [vmem:[%s1939 + $0x28] sm:$0xff] %vm344, %v1837
      %1943 = vst.msk [vmem:[%s1939 + $0x30] sm:$0xff] %vm344, %v1838
      %1944 = vst.msk [vmem:[%s1939 + $0x48] sm:$0xff] %vm344, %v1839
      %1945 = vst.msk [vmem:[%s1939 + $0x50] sm:$0xff] %vm344, %v1840
      %1946 = vst.msk [vmem:[%s1939 + $0x68] sm:$0xff] %vm344, %v1841
      %1947 = vst.msk [vmem:[%s1939 + $0x70] sm:$0xff] %vm344, %v1842
      %1948 = vst.msk [vmem:[%s1939 + $0x88] sm:$0xff] %vm344, %v1843
      %1949 = vst.msk [vmem:[%s1939 + $0x90] sm:$0xff] %vm344, %v1844
      %1950 = vst.msk [vmem:[%s1939 + $0xa8] sm:$0xff] %vm344, %v1845
      %1951 = vst.msk [vmem:[%s1939 + $0xb0] sm:$0xff] %vm344, %v1846
      %1952 = vst.msk [vmem:[%s1939 + $0xc8] sm:$0xff] %vm344, %v1847
      %1953 = vst.msk [vmem:[%s1939 + $0xd0] sm:$0xff] %vm344, %v1848
      %1954 = vst.msk [vmem:[%s1939 + $0xe8] sm:$0xff] %vm344, %v1849
      %1955 = vst.msk [vmem:[%s1939 + $0xf0] sm:$0xff] %vm344, %v1850
      %1956 = vst.msk [vmem:[%s1939 + $0x108] sm:$0xff] %vm344, %v1851
      %1957 = vst.msk [vmem:[%s1939 + $0x110] sm:$0xff] %vm344, %v1852
      %1958 = vst.msk [vmem:[%s1939 + $0x128] sm:$0xff] %vm344, %v1853
      %1959 = vst.msk [vmem:[%s1939 + $0x130] sm:$0xff] %vm344, %v1854
      %1960 = vst.msk [vmem:[%s1939 + $0x148] sm:$0xff] %vm344, %v1855
      %1961 = vst.msk [vmem:[%s1939 + $0x150] sm:$0xff] %vm344, %v1856
      %1962 = vst.msk [vmem:[%s1939 + $0x168] sm:$0xff] %vm344, %v1857
      %1963 = vst.msk [vmem:[%s1939 + $0x170] sm:$0xff] %vm344, %v1858
      %1964 = vst.msk [vmem:[%s1939 + $0x188] sm:$0xff] %vm344, %v1859
      %1965 = vst.msk [vmem:[%s1939 + $0x190] sm:$0xff] %vm344, %v1860
      %1966 = vst.msk [vmem:[%s1939 + $0x1a8] sm:$0xff] %vm344, %v1861
      %1967 = vst.msk [vmem:[%s1939 + $0x1b0] sm:$0xff] %vm344, %v1862
      %1968 = vst.msk [vmem:[%s1939 + $0x1c8] sm:$0xff] %vm344, %v1863
      %1969 = vst.msk [vmem:[%s1939 + $0x1d0] sm:$0xff] %vm344, %v1864
      %1970 = vst.msk [vmem:[%s1939 + $0x1e8] sm:$0xff] %vm344, %v1865
      %1971 = vst.msk [vmem:[%s1939 + $0x1f0] sm:$0xff] %vm344, %v1866
      %v1972 = vld [vmem:[#allocation3] sm:$0xff]
      %v1973 = vld [vmem:[#allocation3 + $0x8] sm:$0xff]
      %v1974 = vld [vmem:[#allocation3 + $0x10] sm:$0xff]
      %v1975 = vld [vmem:[#allocation3 + $0x18] sm:$0xff]
      %v1976 = vld [vmem:[#allocation3 + $0x20] sm:$0xff]
      %v1977 = vld [vmem:[#allocation3 + $0x28] sm:$0xff]
      %v1978 = vld [vmem:[#allocation3 + $0x30] sm:$0xff]
      %v1979 = vld [vmem:[#allocation3 + $0x38] sm:$0xff]
      %v1980 = vld [vmem:[#allocation3 + $0x40] sm:$0xff]
      %v1981 = vld [vmem:[#allocation3 + $0x48] sm:$0xff]
      %v1982 = vld [vmem:[#allocation3 + $0x50] sm:$0xff]
      %v1983 = vld [vmem:[#allocation3 + $0x58] sm:$0xff]
      %v1984 = vld [vmem:[#allocation3 + $0x60] sm:$0xff]
      %v1985 = vld [vmem:[#allocation3 + $0x68] sm:$0xff]
      %v1986 = vld [vmem:[#allocation3 + $0x70] sm:$0xff]
      %v1987 = vld [vmem:[#allocation3 + $0x78] sm:$0xff]
      %v1988 = vld [vmem:[#allocation3 + $0x80] sm:$0xff]
      %v1989 = vld [vmem:[#allocation3 + $0x88] sm:$0xff]
      %v1990 = vld [vmem:[#allocation3 + $0x90] sm:$0xff]
      %v1991 = vld [vmem:[#allocation3 + $0x98] sm:$0xff]
      %v1992 = vld [vmem:[#allocation3 + $0xa0] sm:$0xff]
      %v1993 = vld [vmem:[#allocation3 + $0xa8] sm:$0xff]
      %v1994 = vld [vmem:[#allocation3 + $0xb0] sm:$0xff]
      %v1995 = vld [vmem:[#allocation3 + $0xb8] sm:$0xff]
      %v1996 = vld [vmem:[#allocation3 + $0xc0] sm:$0xff]
      %v1997 = vld [vmem:[#allocation3 + $0xc8] sm:$0xff]
      %v1998 = vld [vmem:[#allocation3 + $0xd0] sm:$0xff]
      %v1999 = vld [vmem:[#allocation3 + $0xd8] sm:$0xff]
      %v2000 = vld [vmem:[#allocation3 + $0xe0] sm:$0xff]
      %v2001 = vld [vmem:[#allocation3 + $0xe8] sm:$0xff]
      %v2002 = vld [vmem:[#allocation3 + $0xf0] sm:$0xff]
      %v2003 = vld [vmem:[#allocation3 + $0xf8] sm:$0xff]
      %v2004 = vld [vmem:[#allocation3 + $0x100] sm:$0xff]
      %v2005 = vld [vmem:[#allocation3 + $0x108] sm:$0xff]
      %v2006 = vld [vmem:[#allocation3 + $0x110] sm:$0xff]
      %v2007 = vld [vmem:[#allocation3 + $0x118] sm:$0xff]
      %v2008 = vld [vmem:[#allocation3 + $0x120] sm:$0xff]
      %v2009 = vld [vmem:[#allocation3 + $0x128] sm:$0xff]
      %v2010 = vld [vmem:[#allocation3 + $0x130] sm:$0xff]
      %v2011 = vld [vmem:[#allocation3 + $0x138] sm:$0xff]
      %v2012 = vld [vmem:[#allocation3 + $0x140] sm:$0xff]
      %v2013 = vld [vmem:[#allocation3 + $0x148] sm:$0xff]
      %v2014 = vld [vmem:[#allocation3 + $0x150] sm:$0xff]
      %v2015 = vld [vmem:[#allocation3 + $0x158] sm:$0xff]
      %v2016 = vld [vmem:[#allocation3 + $0x160] sm:$0xff]
      %v2017 = vld [vmem:[#allocation3 + $0x168] sm:$0xff]
      %v2018 = vld [vmem:[#allocation3 + $0x170] sm:$0xff]
      %v2019 = vld [vmem:[#allocation3 + $0x178] sm:$0xff]
      %v2020 = vld [vmem:[#allocation3 + $0x180] sm:$0xff]
      %v2021 = vld [vmem:[#allocation3 + $0x188] sm:$0xff]
      %v2022 = vld [vmem:[#allocation3 + $0x190] sm:$0xff]
      %v2023 = vld [vmem:[#allocation3 + $0x198] sm:$0xff]
      %v2024 = vld [vmem:[#allocation3 + $0x1a0] sm:$0xff]
      %v2025 = vld [vmem:[#allocation3 + $0x1a8] sm:$0xff]
      %v2026 = vld [vmem:[#allocation3 + $0x1b0] sm:$0xff]
      %v2027 = vld [vmem:[#allocation3 + $0x1b8] sm:$0xff]
      %v2028 = vld [vmem:[#allocation3 + $0x1c0] sm:$0xff]
      %v2029 = vld [vmem:[#allocation3 + $0x1c8] sm:$0xff]
      %v2030 = vld [vmem:[#allocation3 + $0x1d0] sm:$0xff]
      %v2031 = vld [vmem:[#allocation3 + $0x1d8] sm:$0xff]
      %v2032 = vld [vmem:[#allocation3 + $0x1e0] sm:$0xff]
      %v2033 = vld [vmem:[#allocation3 + $0x1e8] sm:$0xff]
      %v2034 = vld [vmem:[#allocation3 + $0x1f0] sm:$0xff]
      %v2035 = vld [vmem:[#allocation3 + $0x1f8] sm:$0xff]
      %v2036 = vld [vmem:[#allocation3 + $0x200] sm:$0xff]
      %v2037 = vld [vmem:[#allocation3 + $0x208] sm:$0xff]
      %v2038 = vld [vmem:[#allocation3 + $0x210] sm:$0xff]
      %v2039 = vld [vmem:[#allocation3 + $0x218] sm:$0xff]
      %v2040 = vld [vmem:[#allocation3 + $0x220] sm:$0xff]
      %v2041 = vld [vmem:[#allocation3 + $0x228] sm:$0xff]
      %v2042 = vld [vmem:[#allocation3 + $0x230] sm:$0xff]
      %v2043 = vld [vmem:[#allocation3 + $0x238] sm:$0xff]
      %v2092 = vrot.slane %v1972, 7
      %v2093 = vrot.slane %v1973, 7
      %v2094 = vsel %vm570, %v2092, %v2093
      %v2095 = vrot.slane %v1974, 7
      %v2096 = vsel %vm570, %v2093, %v2095
      %v2097 = vrot.slane %v1976, 7
      %v2098 = vrot.slane %v1977, 7
      %v2099 = vsel %vm570, %v2097, %v2098
      %v2100 = vrot.slane %v1978, 7
      %v2101 = vsel %vm570, %v2098, %v2100
      %v2102 = vrot.slane %v1980, 7
      %v2103 = vrot.slane %v1981, 7
      %v2104 = vsel %vm570, %v2102, %v2103
      %v2105 = vrot.slane %v1982, 7
      %v2106 = vsel %vm570, %v2103, %v2105
      %v2107 = vrot.slane %v1984, 7
      %v2108 = vrot.slane %v1985, 7
      %v2109 = vsel %vm570, %v2107, %v2108
      %v2110 = vrot.slane %v1986, 7
      %v2111 = vsel %vm570, %v2108, %v2110
      %v2112 = vrot.slane %v1988, 7
      %v2113 = vrot.slane %v1989, 7
      %v2114 = vsel %vm570, %v2112, %v2113
      %v2115 = vrot.slane %v1990, 7
      %v2116 = vsel %vm570, %v2113, %v2115
      %v2117 = vrot.slane %v1992, 7
      %v2118 = vrot.slane %v1993, 7
      %v2119 = vsel %vm570, %v2117, %v2118
      %v2120 = vrot.slane %v1994, 7
      %v2121 = vsel %vm570, %v2118, %v2120
      %v2122 = vrot.slane %v1996, 7
      %v2123 = vrot.slane %v1997, 7
      %v2124 = vsel %vm570, %v2122, %v2123
      %v2125 = vrot.slane %v1998, 7
      %v2126 = vsel %vm570, %v2123, %v2125
      %v2127 = vrot.slane %v2000, 7
      %v2128 = vrot.slane %v2001, 7
      %v2129 = vsel %vm570, %v2127, %v2128
      %v2130 = vrot.slane %v2002, 7
      %v2131 = vsel %vm570, %v2128, %v2130
      %v2132 = vrot.slane %v2004, 7
      %v2133 = vrot.slane %v2005, 7
      %v2134 = vsel %vm570, %v2132, %v2133
      %v2135 = vrot.slane %v2006, 7
      %v2136 = vsel %vm570, %v2133, %v2135
      %v2137 = vrot.slane %v2008, 7
      %v2138 = vrot.slane %v2009, 7
      %v2139 = vsel %vm570, %v2137, %v2138
      %v2140 = vrot.slane %v2010, 7
      %v2141 = vsel %vm570, %v2138, %v2140
      %v2142 = vrot.slane %v2012, 7
      %v2143 = vrot.slane %v2013, 7
      %v2144 = vsel %vm570, %v2142, %v2143
      %v2145 = vrot.slane %v2014, 7
      %v2146 = vsel %vm570, %v2143, %v2145
      %v2147 = vrot.slane %v2016, 7
      %v2148 = vrot.slane %v2017, 7
      %v2149 = vsel %vm570, %v2147, %v2148
      %v2150 = vrot.slane %v2018, 7
      %v2151 = vsel %vm570, %v2148, %v2150
      %v2152 = vrot.slane %v2020, 7
      %v2153 = vrot.slane %v2021, 7
      %v2154 = vsel %vm570, %v2152, %v2153
      %v2155 = vrot.slane %v2022, 7
      %v2156 = vsel %vm570, %v2153, %v2155
      %v2157 = vrot.slane %v2024, 7
      %v2158 = vrot.slane %v2025, 7
      %v2159 = vsel %vm570, %v2157, %v2158
      %v2160 = vrot.slane %v2026, 7
      %v2161 = vsel %vm570, %v2158, %v2160
      %v2162 = vrot.slane %v2028, 7
      %v2163 = vrot.slane %v2029, 7
      %v2164 = vsel %vm570, %v2162, %v2163
      %v2165 = vrot.slane %v2030, 7
      %v2166 = vsel %vm570, %v2163, %v2165
      %v2167 = vrot.slane %v2032, 7
      %v2168 = vrot.slane %v2033, 7
      %v2169 = vsel %vm570, %v2167, %v2168
      %v2170 = vrot.slane %v2034, 7
      %v2171 = vsel %vm570, %v2168, %v2170
      %v2204 = vpack.c.bf16 %v2096, %v2094
      %v2205 = vpack.c.bf16 %v2101, %v2099
      %v2206 = vpack.c.bf16 %v2106, %v2104
      %v2207 = vpack.c.bf16 %v2111, %v2109
      %v2208 = vpack.c.bf16 %v2116, %v2114
      %v2209 = vpack.c.bf16 %v2121, %v2119
      %v2210 = vpack.c.bf16 %v2126, %v2124
      %v2211 = vpack.c.bf16 %v2131, %v2129
      %v2212 = vpack.c.bf16 %v2136, %v2134
      %v2213 = vpack.c.bf16 %v2141, %v2139
      %v2214 = vpack.c.bf16 %v2146, %v2144
      %v2215 = vpack.c.bf16 %v2151, %v2149
      %v2216 = vpack.c.bf16 %v2156, %v2154
      %v2217 = vpack.c.bf16 %v2161, %v2159
      %v2218 = vpack.c.bf16 %v2166, %v2164
      %v2219 = vpack.c.bf16 %v2171, %v2169
      %2220 = vst.msk [vmem:[#allocation5] sm:$0xff] %vm344, %v2204
      %2221 = vst.msk [vmem:[#allocation5 + $0x8] sm:$0xff] %vm344, %v2205
      %2222 = vst.msk [vmem:[#allocation5 + $0x10] sm:$0xff] %vm344, %v2206
      %2223 = vst.msk [vmem:[#allocation5 + $0x18] sm:$0xff] %vm344, %v2207
      %2224 = vst.msk [vmem:[#allocation5 + $0x20] sm:$0xff] %vm344, %v2208
      %2225 = vst.msk [vmem:[#allocation5 + $0x28] sm:$0xff] %vm344, %v2209
      %2226 = vst.msk [vmem:[#allocation5 + $0x30] sm:$0xff] %vm344, %v2210
      %2227 = vst.msk [vmem:[#allocation5 + $0x38] sm:$0xff] %vm344, %v2211
      %2228 = vst.msk [vmem:[#allocation5 + $0x40] sm:$0xff] %vm344, %v2212
      %2229 = vst.msk [vmem:[#allocation5 + $0x48] sm:$0xff] %vm344, %v2213
      %2230 = vst.msk [vmem:[#allocation5 + $0x50] sm:$0xff] %vm344, %v2214
      %2231 = vst.msk [vmem:[#allocation5 + $0x58] sm:$0xff] %vm344, %v2215
      %2232 = vst.msk [vmem:[#allocation5 + $0x60] sm:$0xff] %vm344, %v2216
      %2233 = vst.msk [vmem:[#allocation5 + $0x68] sm:$0xff] %vm344, %v2217
      %2234 = vst.msk [vmem:[#allocation5 + $0x70] sm:$0xff] %vm344, %v2218
      %2235 = vst.msk [vmem:[#allocation5 + $0x78] sm:$0xff] %vm344, %v2219
      %v2236 = vpack.c.bf16 %v1974, %v1973
      %v2237 = vpack.c.bf16 %v1978, %v1977
      %v2238 = vpack.c.bf16 %v1982, %v1981
      %v2239 = vpack.c.bf16 %v1986, %v1985
      %v2240 = vpack.c.bf16 %v1990, %v1989
      %v2241 = vpack.c.bf16 %v1994, %v1993
      %v2242 = vpack.c.bf16 %v1998, %v1997
      %v2243 = vpack.c.bf16 %v2002, %v2001
      %v2244 = vpack.c.bf16 %v2006, %v2005
      %v2245 = vpack.c.bf16 %v2010, %v2009
      %v2246 = vpack.c.bf16 %v2014, %v2013
      %v2247 = vpack.c.bf16 %v2018, %v2017
      %v2248 = vpack.c.bf16 %v2022, %v2021
      %v2249 = vpack.c.bf16 %v2026, %v2025
      %v2250 = vpack.c.bf16 %v2030, %v2029
      %v2251 = vpack.c.bf16 %v2034, %v2033
      %2268 = vrot.lane.b32.xlu0 %v2236, 8
      %v2269 = vpop.permute.xlu0 %2268
      %2270 = vrot.lane.b32.xlu0 %v2237, 8
      %v2271 = vpop.permute.xlu0 %2270
      %2272 = vrot.lane.b32.xlu0 %v2238, 8
      %v2273 = vpop.permute.xlu0 %2272
      %2274 = vrot.lane.b32.xlu0 %v2239, 8
      %v2275 = vpop.permute.xlu0 %2274
      %2276 = vrot.lane.b32.xlu0 %v2240, 8
      %v2277 = vpop.permute.xlu0 %2276
      %2278 = vrot.lane.b32.xlu0 %v2241, 8
      %v2279 = vpop.permute.xlu0 %2278
      %2280 = vrot.lane.b32.xlu0 %v2242, 8
      %v2281 = vpop.permute.xlu0 %2280
      %2282 = vrot.lane.b32.xlu0 %v2243, 8
      %v2283 = vpop.permute.xlu0 %2282
      %2284 = vrot.lane.b32.xlu0 %v2244, 8
      %v2285 = vpop.permute.xlu0 %2284
      %2286 = vrot.lane.b32.xlu0 %v2245, 8
      %v2287 = vpop.permute.xlu0 %2286
      %2288 = vrot.lane.b32.xlu0 %v2246, 8
      %v2289 = vpop.permute.xlu0 %2288
      %2290 = vrot.lane.b32.xlu0 %v2247, 8
      %v2291 = vpop.permute.xlu0 %2290
      %2292 = vrot.lane.b32.xlu0 %v2248, 8
      %v2293 = vpop.permute.xlu0 %2292
      %2294 = vrot.lane.b32.xlu0 %v2249, 8
      %v2295 = vpop.permute.xlu0 %2294
      %2296 = vrot.lane.b32.xlu0 %v2250, 8
      %v2297 = vpop.permute.xlu0 %2296
      %2298 = vrot.lane.b32.xlu0 %v2251, 8
      %v2299 = vpop.permute.xlu0 %2298
      %2316 = vst.msk [vmem:[#allocation5] sm:$0xff] %vm795, %v2269
      %2317 = vst.msk [vmem:[#allocation5 + $0x8] sm:$0xff] %vm795, %v2271
      %2318 = vst.msk [vmem:[#allocation5 + $0x10] sm:$0xff] %vm795, %v2273
      %2319 = vst.msk [vmem:[#allocation5 + $0x18] sm:$0xff] %vm795, %v2275
      %2320 = vst.msk [vmem:[#allocation5 + $0x20] sm:$0xff] %vm795, %v2277
      %2321 = vst.msk [vmem:[#allocation5 + $0x28] sm:$0xff] %vm795, %v2279
      %2322 = vst.msk [vmem:[#allocation5 + $0x30] sm:$0xff] %vm795, %v2281
      %2323 = vst.msk [vmem:[#allocation5 + $0x38] sm:$0xff] %vm795, %v2283
      %2324 = vst.msk [vmem:[#allocation5 + $0x40] sm:$0xff] %vm795, %v2285
      %2325 = vst.msk [vmem:[#allocation5 + $0x48] sm:$0xff] %vm795, %v2287
      %2326 = vst.msk [vmem:[#allocation5 + $0x50] sm:$0xff] %vm795, %v2289
      %2327 = vst.msk [vmem:[#allocation5 + $0x58] sm:$0xff] %vm795, %v2291
      %2328 = vst.msk [vmem:[#allocation5 + $0x60] sm:$0xff] %vm795, %v2293
      %2329 = vst.msk [vmem:[#allocation5 + $0x68] sm:$0xff] %vm795, %v2295
      %2330 = vst.msk [vmem:[#allocation5 + $0x70] sm:$0xff] %vm795, %v2297
      %2331 = vst.msk [vmem:[#allocation5 + $0x78] sm:$0xff] %vm795, %v2299
      %v2348 = vrot.slane %v1973, 1
      %v2349 = vrot.slane %v1974, 1
      %v2350 = vsel %vm828, %v2348, %v2349
      %v2351 = vrot.slane %v1975, 1
      %v2352 = vsel %vm828, %v2349, %v2351
      %v2353 = vrot.slane %v1977, 1
      %v2354 = vrot.slane %v1978, 1
      %v2355 = vsel %vm828, %v2353, %v2354
      %v2356 = vrot.slane %v1979, 1
      %v2357 = vsel %vm828, %v2354, %v2356
      %v2358 = vrot.slane %v1981, 1
      %v2359 = vrot.slane %v1982, 1
      %v2360 = vsel %vm828, %v2358, %v2359
      %v2361 = vrot.slane %v1983, 1
      %v2362 = vsel %vm828, %v2359, %v2361
      %v2363 = vrot.slane %v1985, 1
      %v2364 = vrot.slane %v1986, 1
      %v2365 = vsel %vm828, %v2363, %v2364
      %v2366 = vrot.slane %v1987, 1
      %v2367 = vsel %vm828, %v2364, %v2366
      %v2368 = vrot.slane %v1989, 1
      %v2369 = vrot.slane %v1990, 1
      %v2370 = vsel %vm828, %v2368, %v2369
      %v2371 = vrot.slane %v1991, 1
      %v2372 = vsel %vm828, %v2369, %v2371
      %v2373 = vrot.slane %v1993, 1
      %v2374 = vrot.slane %v1994, 1
      %v2375 = vsel %vm828, %v2373, %v2374
      %v2376 = vrot.slane %v1995, 1
      %v2377 = vsel %vm828, %v2374, %v2376
      %v2378 = vrot.slane %v1997, 1
      %v2379 = vrot.slane %v1998, 1
      %v2380 = vsel %vm828, %v2378, %v2379
      %v2381 = vrot.slane %v1999, 1
      %v2382 = vsel %vm828, %v2379, %v2381
      %v2383 = vrot.slane %v2001, 1
      %v2384 = vrot.slane %v2002, 1
      %v2385 = vsel %vm828, %v2383, %v2384
      %v2386 = vrot.slane %v2003, 1
      %v2387 = vsel %vm828, %v2384, %v2386
      %v2388 = vrot.slane %v2005, 1
      %v2389 = vrot.slane %v2006, 1
      %v2390 = vsel %vm828, %v2388, %v2389
      %v2391 = vrot.slane %v2007, 1
      %v2392 = vsel %vm828, %v2389, %v2391
      %v2393 = vrot.slane %v2009, 1
      %v2394 = vrot.slane %v2010, 1
      %v2395 = vsel %vm828, %v2393, %v2394
      %v2396 = vrot.slane %v2011, 1
      %v2397 = vsel %vm828, %v2394, %v2396
      %v2398 = vrot.slane %v2013, 1
      %v2399 = vrot.slane %v2014, 1
      %v2400 = vsel %vm828, %v2398, %v2399
      %v2401 = vrot.slane %v2015, 1
      %v2402 = vsel %vm828, %v2399, %v2401
      %v2403 = vrot.slane %v2017, 1
      %v2404 = vrot.slane %v2018, 1
      %v2405 = vsel %vm828, %v2403, %v2404
      %v2406 = vrot.slane %v2019, 1
      %v2407 = vsel %vm828, %v2404, %v2406
      %v2408 = vrot.slane %v2021, 1
      %v2409 = vrot.slane %v2022, 1
      %v2410 = vsel %vm828, %v2408, %v2409
      %v2411 = vrot.slane %v2023, 1
      %v2412 = vsel %vm828, %v2409, %v2411
      %v2413 = vrot.slane %v2025, 1
      %v2414 = vrot.slane %v2026, 1
      %v2415 = vsel %vm828, %v2413, %v2414
      %v2416 = vrot.slane %v2027, 1
      %v2417 = vsel %vm828, %v2414, %v2416
      %v2418 = vrot.slane %v2029, 1
      %v2419 = vrot.slane %v2030, 1
      %v2420 = vsel %vm828, %v2418, %v2419
      %v2421 = vrot.slane %v2031, 1
      %v2422 = vsel %vm828, %v2419, %v2421
      %v2423 = vrot.slane %v2033, 1
      %v2424 = vrot.slane %v2034, 1
      %v2425 = vsel %vm828, %v2423, %v2424
      %v2426 = vrot.slane %v2035, 1
      %v2427 = vsel %vm828, %v2424, %v2426
      %v2460 = vpack.c.bf16 %v2352, %v2350
      %v2461 = vpack.c.bf16 %v2357, %v2355
      %v2462 = vpack.c.bf16 %v2362, %v2360
      %v2463 = vpack.c.bf16 %v2367, %v2365
      %v2464 = vpack.c.bf16 %v2372, %v2370
      %v2465 = vpack.c.bf16 %v2377, %v2375
      %v2466 = vpack.c.bf16 %v2382, %v2380
      %v2467 = vpack.c.bf16 %v2387, %v2385
      %v2468 = vpack.c.bf16 %v2392, %v2390
      %v2469 = vpack.c.bf16 %v2397, %v2395
      %v2470 = vpack.c.bf16 %v2402, %v2400
      %v2471 = vpack.c.bf16 %v2407, %v2405
      %v2472 = vpack.c.bf16 %v2412, %v2410
      %v2473 = vpack.c.bf16 %v2417, %v2415
      %v2474 = vpack.c.bf16 %v2422, %v2420
      %v2475 = vpack.c.bf16 %v2427, %v2425
      %2492 = vrot.lane.b32.xlu0 %v2460, 16
      %v2493 = vpop.permute.xlu0 %2492
      %2494 = vrot.lane.b32.xlu0 %v2461, 16
      %v2495 = vpop.permute.xlu0 %2494
      %2496 = vrot.lane.b32.xlu0 %v2462, 16
      %v2497 = vpop.permute.xlu0 %2496
      %2498 = vrot.lane.b32.xlu0 %v2463, 16
      %v2499 = vpop.permute.xlu0 %2498
      %2500 = vrot.lane.b32.xlu0 %v2464, 16
      %v2501 = vpop.permute.xlu0 %2500
      %2502 = vrot.lane.b32.xlu0 %v2465, 16
      %v2503 = vpop.permute.xlu0 %2502
      %2504 = vrot.lane.b32.xlu0 %v2466, 16
      %v2505 = vpop.permute.xlu0 %2504
      %2506 = vrot.lane.b32.xlu0 %v2467, 16
      %v2507 = vpop.permute.xlu0 %2506
      %2508 = vrot.lane.b32.xlu0 %v2468, 16
      %v2509 = vpop.permute.xlu0 %2508
      %2510 = vrot.lane.b32.xlu0 %v2469, 16
      %v2511 = vpop.permute.xlu0 %2510
      %2512 = vrot.lane.b32.xlu0 %v2470, 16
      %v2513 = vpop.permute.xlu0 %2512
      %2514 = vrot.lane.b32.xlu0 %v2471, 16
      %v2515 = vpop.permute.xlu0 %2514
      %2516 = vrot.lane.b32.xlu0 %v2472, 16
      %v2517 = vpop.permute.xlu0 %2516
      %2518 = vrot.lane.b32.xlu0 %v2473, 16
      %v2519 = vpop.permute.xlu0 %2518
      %2520 = vrot.lane.b32.xlu0 %v2474, 16
      %v2521 = vpop.permute.xlu0 %2520
      %2522 = vrot.lane.b32.xlu0 %v2475, 16
      %v2523 = vpop.permute.xlu0 %2522
      %2540 = vst.msk [vmem:[#allocation5] sm:$0xff] %vm1021, %v2493
      %2541 = vst.msk [vmem:[#allocation5 + $0x8] sm:$0xff] %vm1021, %v2495
      %2542 = vst.msk [vmem:[#allocation5 + $0x10] sm:$0xff] %vm1021, %v2497
      %2543 = vst.msk [vmem:[#allocation5 + $0x18] sm:$0xff] %vm1021, %v2499
      %2544 = vst.msk [vmem:[#allocation5 + $0x20] sm:$0xff] %vm1021, %v2501
      %2545 = vst.msk [vmem:[#allocation5 + $0x28] sm:$0xff] %vm1021, %v2503
      %2546 = vst.msk [vmem:[#allocation5 + $0x30] sm:$0xff] %vm1021, %v2505
      %2547 = vst.msk [vmem:[#allocation5 + $0x38] sm:$0xff] %vm1021, %v2507
      %2548 = vst.msk [vmem:[#allocation5 + $0x40] sm:$0xff] %vm1021, %v2509
      %2549 = vst.msk [vmem:[#allocation5 + $0x48] sm:$0xff] %vm1021, %v2511
      %2550 = vst.msk [vmem:[#allocation5 + $0x50] sm:$0xff] %vm1021, %v2513
      %2551 = vst.msk [vmem:[#allocation5 + $0x58] sm:$0xff] %vm1021, %v2515
      %2552 = vst.msk [vmem:[#allocation5 + $0x60] sm:$0xff] %vm1021, %v2517
      %2553 = vst.msk [vmem:[#allocation5 + $0x68] sm:$0xff] %vm1021, %v2519
      %2554 = vst.msk [vmem:[#allocation5 + $0x70] sm:$0xff] %vm1021, %v2521
      %2555 = vst.msk [vmem:[#allocation5 + $0x78] sm:$0xff] %vm1021, %v2523
      %v2559 = vrot.slane %v2036, 7
      %v2560 = vrot.slane %v2037, 7
      %v2561 = vsel %vm570, %v2559, %v2560
      %v2562 = vrot.slane %v2038, 7
      %v2563 = vsel %vm570, %v2560, %v2562
      %v2566 = vpack.c.bf16 %v2563, %v2561
      %2583 = vrot.lane.b32.xlu0 %v2205, 24
      %v2584 = vpop.permute.xlu0 %2583
      %2585 = vrot.lane.b32.xlu0 %v2206, 24
      %v2586 = vpop.permute.xlu0 %2585
      %2587 = vrot.lane.b32.xlu0 %v2207, 24
      %v2588 = vpop.permute.xlu0 %2587
      %2589 = vrot.lane.b32.xlu0 %v2208, 24
      %v2590 = vpop.permute.xlu0 %2589
      %2591 = vrot.lane.b32.xlu0 %v2209, 24
      %v2592 = vpop.permute.xlu0 %2591
      %2593 = vrot.lane.b32.xlu0 %v2210, 24
      %v2594 = vpop.permute.xlu0 %2593
      %2595 = vrot.lane.b32.xlu0 %v2211, 24
      %v2596 = vpop.permute.xlu0 %2595
      %2597 = vrot.lane.b32.xlu0 %v2212, 24
      %v2598 = vpop.permute.xlu0 %2597
      %2599 = vrot.lane.b32.xlu0 %v2213, 24
      %v2600 = vpop.permute.xlu0 %2599
      %2601 = vrot.lane.b32.xlu0 %v2214, 24
      %v2602 = vpop.permute.xlu0 %2601
      %2603 = vrot.lane.b32.xlu0 %v2215, 24
      %v2604 = vpop.permute.xlu0 %2603
      %2605 = vrot.lane.b32.xlu0 %v2216, 24
      %v2606 = vpop.permute.xlu0 %2605
      %2607 = vrot.lane.b32.xlu0 %v2217, 24
      %v2608 = vpop.permute.xlu0 %2607
      %2609 = vrot.lane.b32.xlu0 %v2218, 24
      %v2610 = vpop.permute.xlu0 %2609
      %2611 = vrot.lane.b32.xlu0 %v2219, 24
      %v2612 = vpop.permute.xlu0 %2611
      %2613 = vrot.lane.b32.xlu0 %v2566, 24
      %v2614 = vpop.permute.xlu0 %2613
      %2631 = vst.msk [vmem:[#allocation5] sm:$0xff] %vm1113, %v2584
      %2632 = vst.msk [vmem:[#allocation5 + $0x8] sm:$0xff] %vm1113, %v2586
      %2633 = vst.msk [vmem:[#allocation5 + $0x10] sm:$0xff] %vm1113, %v2588
      %2634 = vst.msk [vmem:[#allocation5 + $0x18] sm:$0xff] %vm1113, %v2590
      %2635 = vst.msk [vmem:[#allocation5 + $0x20] sm:$0xff] %vm1113, %v2592
      %2636 = vst.msk [vmem:[#allocation5 + $0x28] sm:$0xff] %vm1113, %v2594
      %2637 = vst.msk [vmem:[#allocation5 + $0x30] sm:$0xff] %vm1113, %v2596
      %2638 = vst.msk [vmem:[#allocation5 + $0x38] sm:$0xff] %vm1113, %v2598
      %2639 = vst.msk [vmem:[#allocation5 + $0x40] sm:$0xff] %vm1113, %v2600
      %2640 = vst.msk [vmem:[#allocation5 + $0x48] sm:$0xff] %vm1113, %v2602
      %2641 = vst.msk [vmem:[#allocation5 + $0x50] sm:$0xff] %vm1113, %v2604
      %2642 = vst.msk [vmem:[#allocation5 + $0x58] sm:$0xff] %vm1113, %v2606
      %2643 = vst.msk [vmem:[#allocation5 + $0x60] sm:$0xff] %vm1113, %v2608
      %2644 = vst.msk [vmem:[#allocation5 + $0x68] sm:$0xff] %vm1113, %v2610
      %2645 = vst.msk [vmem:[#allocation5 + $0x70] sm:$0xff] %vm1113, %v2612
      %2646 = vst.msk [vmem:[#allocation5 + $0x78] sm:$0xff] %vm1113, %v2614
      %v2647 = vpack.c.bf16 %v2038, %v2037
      %2649 = vrot.lane.b32.xlu0 %v2237, 32
      %v2650 = vpop.permute.xlu0 %2649
      %2651 = vrot.lane.b32.xlu0 %v2238, 32
      %v2652 = vpop.permute.xlu0 %2651
      %2653 = vrot.lane.b32.xlu0 %v2239, 32
      %v2654 = vpop.permute.xlu0 %2653
      %2655 = vrot.lane.b32.xlu0 %v2240, 32
      %v2656 = vpop.permute.xlu0 %2655
      %2657 = vrot.lane.b32.xlu0 %v2241, 32
      %v2658 = vpop.permute.xlu0 %2657
      %2659 = vrot.lane.b32.xlu0 %v2242, 32
      %v2660 = vpop.permute.xlu0 %2659
      %2661 = vrot.lane.b32.xlu0 %v2243, 32
      %v2662 = vpop.permute.xlu0 %2661
      %2663 = vrot.lane.b32.xlu0 %v2244, 32
      %v2664 = vpop.permute.xlu0 %2663
      %2665 = vrot.lane.b32.xlu0 %v2245, 32
      %v2666 = vpop.permute.xlu0 %2665
      %2667 = vrot.lane.b32.xlu0 %v2246, 32
      %v2668 = vpop.permute.xlu0 %2667
      %2669 = vrot.lane.b32.xlu0 %v2247, 32
      %v2670 = vpop.permute.xlu0 %2669
      %2671 = vrot.lane.b32.xlu0 %v2248, 32
      %v2672 = vpop.permute.xlu0 %2671
      %2673 = vrot.lane.b32.xlu0 %v2249, 32
      %v2674 = vpop.permute.xlu0 %2673
      %2675 = vrot.lane.b32.xlu0 %v2250, 32
      %v2676 = vpop.permute.xlu0 %2675
      %2677 = vrot.lane.b32.xlu0 %v2251, 32
      %v2678 = vpop.permute.xlu0 %2677
      %2679 = vrot.lane.b32.xlu0 %v2647, 32
      %v2680 = vpop.permute.xlu0 %2679
      %2697 = vst.msk [vmem:[#allocation5] sm:$0xff] %vm1180, %v2650
      %2698 = vst.msk [vmem:[#allocation5 + $0x8] sm:$0xff] %vm1180, %v2652
      %2699 = vst.msk [vmem:[#allocation5 + $0x10] sm:$0xff] %vm1180, %v2654
      %2700 = vst.msk [vmem:[#allocation5 + $0x18] sm:$0xff] %vm1180, %v2656
      %2701 = vst.msk [vmem:[#allocation5 + $0x20] sm:$0xff] %vm1180, %v2658
      %2702 = vst.msk [vmem:[#allocation5 + $0x28] sm:$0xff] %vm1180, %v2660
      %2703 = vst.msk [vmem:[#allocation5 + $0x30] sm:$0xff] %vm1180, %v2662
      %2704 = vst.msk [vmem:[#allocation5 + $0x38] sm:$0xff] %vm1180, %v2664
      %2705 = vst.msk [vmem:[#allocation5 + $0x40] sm:$0xff] %vm1180, %v2666
      %2706 = vst.msk [vmem:[#allocation5 + $0x48] sm:$0xff] %vm1180, %v2668
      %2707 = vst.msk [vmem:[#allocation5 + $0x50] sm:$0xff] %vm1180, %v2670
      %2708 = vst.msk [vmem:[#allocation5 + $0x58] sm:$0xff] %vm1180, %v2672
      %2709 = vst.msk [vmem:[#allocation5 + $0x60] sm:$0xff] %vm1180, %v2674
      %2710 = vst.msk [vmem:[#allocation5 + $0x68] sm:$0xff] %vm1180, %v2676
      %2711 = vst.msk [vmem:[#allocation5 + $0x70] sm:$0xff] %vm1180, %v2678
      %2712 = vst.msk [vmem:[#allocation5 + $0x78] sm:$0xff] %vm1180, %v2680
      %v2714 = vrot.slane %v2037, 1
      %v2715 = vrot.slane %v2038, 1
      %v2716 = vsel %vm828, %v2714, %v2715
      %v2717 = vrot.slane %v2039, 1
      %v2718 = vsel %vm828, %v2715, %v2717
      %v2721 = vpack.c.bf16 %v2718, %v2716
      %2723 = vrot.lane.b32.xlu0 %v2461, 40
      %v2724 = vpop.permute.xlu0 %2723
      %2725 = vrot.lane.b32.xlu0 %v2462, 40
      %v2726 = vpop.permute.xlu0 %2725
      %2727 = vrot.lane.b32.xlu0 %v2463, 40
      %v2728 = vpop.permute.xlu0 %2727
      %2729 = vrot.lane.b32.xlu0 %v2464, 40
      %v2730 = vpop.permute.xlu0 %2729
      %2731 = vrot.lane.b32.xlu0 %v2465, 40
      %v2732 = vpop.permute.xlu0 %2731
      %2733 = vrot.lane.b32.xlu0 %v2466, 40
      %v2734 = vpop.permute.xlu0 %2733
      %2735 = vrot.lane.b32.xlu0 %v2467, 40
      %v2736 = vpop.permute.xlu0 %2735
      %2737 = vrot.lane.b32.xlu0 %v2468, 40
      %v2738 = vpop.permute.xlu0 %2737
      %2739 = vrot.lane.b32.xlu0 %v2469, 40
      %v2740 = vpop.permute.xlu0 %2739
      %2741 = vrot.lane.b32.xlu0 %v2470, 40
      %v2742 = vpop.permute.xlu0 %2741
      %2743 = vrot.lane.b32.xlu0 %v2471, 40
      %v2744 = vpop.permute.xlu0 %2743
      %2745 = vrot.lane.b32.xlu0 %v2472, 40
      %v2746 = vpop.permute.xlu0 %2745
      %2747 = vrot.lane.b32.xlu0 %v2473, 40
      %v2748 = vpop.permute.xlu0 %2747
      %2749 = vrot.lane.b32.xlu0 %v2474, 40
      %v2750 = vpop.permute.xlu0 %2749
      %2751 = vrot.lane.b32.xlu0 %v2475, 40
      %v2752 = vpop.permute.xlu0 %2751
      %2753 = vrot.lane.b32.xlu0 %v2721, 40
      %v2754 = vpop.permute.xlu0 %2753
      %2771 = vst.msk [vmem:[#allocation5] sm:$0xff] %vm1255, %v2724
      %2772 = vst.msk [vmem:[#allocation5 + $0x8] sm:$0xff] %vm1255, %v2726
      %2773 = vst.msk [vmem:[#allocation5 + $0x10] sm:$0xff] %vm1255, %v2728
      %2774 = vst.msk [vmem:[#allocation5 + $0x18] sm:$0xff] %vm1255, %v2730
      %2775 = vst.msk [vmem:[#allocation5 + $0x20] sm:$0xff] %vm1255, %v2732
      %2776 = vst.msk [vmem:[#allocation5 + $0x28] sm:$0xff] %vm1255, %v2734
      %2777 = vst.msk [vmem:[#allocation5 + $0x30] sm:$0xff] %vm1255, %v2736
      %2778 = vst.msk [vmem:[#allocation5 + $0x38] sm:$0xff] %vm1255, %v2738
      %2779 = vst.msk [vmem:[#allocation5 + $0x40] sm:$0xff] %vm1255, %v2740
      %2780 = vst.msk [vmem:[#allocation5 + $0x48] sm:$0xff] %vm1255, %v2742
      %2781 = vst.msk [vmem:[#allocation5 + $0x50] sm:$0xff] %vm1255, %v2744
      %2782 = vst.msk [vmem:[#allocation5 + $0x58] sm:$0xff] %vm1255, %v2746
      %2783 = vst.msk [vmem:[#allocation5 + $0x60] sm:$0xff] %vm1255, %v2748
      %2784 = vst.msk [vmem:[#allocation5 + $0x68] sm:$0xff] %vm1255, %v2750
      %2785 = vst.msk [vmem:[#allocation5 + $0x70] sm:$0xff] %vm1255, %v2752
      %2786 = vst.msk [vmem:[#allocation5 + $0x78] sm:$0xff] %vm1255, %v2754
      %v2790 = vrot.slane %v2040, 7
      %v2791 = vrot.slane %v2041, 7
      %v2792 = vsel %vm570, %v2790, %v2791
      %v2793 = vrot.slane %v2042, 7
      %v2794 = vsel %vm570, %v2791, %v2793
      %v2797 = vpack.c.bf16 %v2794, %v2792
      %2799 = vrot.lane.b32.xlu0 %v2206, 48
      %v2800 = vpop.permute.xlu0 %2799
      %2801 = vrot.lane.b32.xlu0 %v2207, 48
      %v2802 = vpop.permute.xlu0 %2801
      %2803 = vrot.lane.b32.xlu0 %v2208, 48
      %v2804 = vpop.permute.xlu0 %2803
      %2805 = vrot.lane.b32.xlu0 %v2209, 48
      %v2806 = vpop.permute.xlu0 %2805
      %2807 = vrot.lane.b32.xlu0 %v2210, 48
      %v2808 = vpop.permute.xlu0 %2807
      %2809 = vrot.lane.b32.xlu0 %v2211, 48
      %v2810 = vpop.permute.xlu0 %2809
      %2811 = vrot.lane.b32.xlu0 %v2212, 48
      %v2812 = vpop.permute.xlu0 %2811
      %2813 = vrot.lane.b32.xlu0 %v2213, 48
      %v2814 = vpop.permute.xlu0 %2813
      %2815 = vrot.lane.b32.xlu0 %v2214, 48
      %v2816 = vpop.permute.xlu0 %2815
      %2817 = vrot.lane.b32.xlu0 %v2215, 48
      %v2818 = vpop.permute.xlu0 %2817
      %2819 = vrot.lane.b32.xlu0 %v2216, 48
      %v2820 = vpop.permute.xlu0 %2819
      %2821 = vrot.lane.b32.xlu0 %v2217, 48
      %v2822 = vpop.permute.xlu0 %2821
      %2823 = vrot.lane.b32.xlu0 %v2218, 48
      %v2824 = vpop.permute.xlu0 %2823
      %2825 = vrot.lane.b32.xlu0 %v2219, 48
      %v2826 = vpop.permute.xlu0 %2825
      %2827 = vrot.lane.b32.xlu0 %v2566, 48
      %v2828 = vpop.permute.xlu0 %2827
      %2829 = vrot.lane.b32.xlu0 %v2797, 48
      %v2830 = vpop.permute.xlu0 %2829
      %2847 = vst.msk [vmem:[#allocation5] sm:$0xff] %vm1332, %v2800
      %2848 = vst.msk [vmem:[#allocation5 + $0x8] sm:$0xff] %vm1332, %v2802
      %2849 = vst.msk [vmem:[#allocation5 + $0x10] sm:$0xff] %vm1332, %v2804
      %2850 = vst.msk [vmem:[#allocation5 + $0x18] sm:$0xff] %vm1332, %v2806
      %2851 = vst.msk [vmem:[#allocation5 + $0x20] sm:$0xff] %vm1332, %v2808
      %2852 = vst.msk [vmem:[#allocation5 + $0x28] sm:$0xff] %vm1332, %v2810
      %2853 = vst.msk [vmem:[#allocation5 + $0x30] sm:$0xff] %vm1332, %v2812
      %2854 = vst.msk [vmem:[#allocation5 + $0x38] sm:$0xff] %vm1332, %v2814
      %2855 = vst.msk [vmem:[#allocation5 + $0x40] sm:$0xff] %vm1332, %v2816
      %2856 = vst.msk [vmem:[#allocation5 + $0x48] sm:$0xff] %vm1332, %v2818
      %2857 = vst.msk [vmem:[#allocation5 + $0x50] sm:$0xff] %vm1332, %v2820
      %2858 = vst.msk [vmem:[#allocation5 + $0x58] sm:$0xff] %vm1332, %v2822
      %2859 = vst.msk [vmem:[#allocation5 + $0x60] sm:$0xff] %vm1332, %v2824
      %2860 = vst.msk [vmem:[#allocation5 + $0x68] sm:$0xff] %vm1332, %v2826
      %2861 = vst.msk [vmem:[#allocation5 + $0x70] sm:$0xff] %vm1332, %v2828
      %2862 = vst.msk [vmem:[#allocation5 + $0x78] sm:$0xff] %vm1332, %v2830
      %v2863 = vpack.c.bf16 %v2042, %v2041
      %2865 = vrot.lane.b32.xlu0 %v2238, 56
      %v2866 = vpop.permute.xlu0 %2865
      %2867 = vrot.lane.b32.xlu0 %v2239, 56
      %v2868 = vpop.permute.xlu0 %2867
      %2869 = vrot.lane.b32.xlu0 %v2240, 56
      %v2870 = vpop.permute.xlu0 %2869
      %2871 = vrot.lane.b32.xlu0 %v2241, 56
      %v2872 = vpop.permute.xlu0 %2871
      %2873 = vrot.lane.b32.xlu0 %v2242, 56
      %v2874 = vpop.permute.xlu0 %2873
      %2875 = vrot.lane.b32.xlu0 %v2243, 56
      %v2876 = vpop.permute.xlu0 %2875
      %2877 = vrot.lane.b32.xlu0 %v2244, 56
      %v2878 = vpop.permute.xlu0 %2877
      %2879 = vrot.lane.b32.xlu0 %v2245, 56
      %v2880 = vpop.permute.xlu0 %2879
      %2881 = vrot.lane.b32.xlu0 %v2246, 56
      %v2882 = vpop.permute.xlu0 %2881
      %2883 = vrot.lane.b32.xlu0 %v2247, 56
      %v2884 = vpop.permute.xlu0 %2883
      %2885 = vrot.lane.b32.xlu0 %v2248, 56
      %v2886 = vpop.permute.xlu0 %2885
      %2887 = vrot.lane.b32.xlu0 %v2249, 56
      %v2888 = vpop.permute.xlu0 %2887
      %2889 = vrot.lane.b32.xlu0 %v2250, 56
      %v2890 = vpop.permute.xlu0 %2889
      %2891 = vrot.lane.b32.xlu0 %v2251, 56
      %v2892 = vpop.permute.xlu0 %2891
      %2893 = vrot.lane.b32.xlu0 %v2647, 56
      %v2894 = vpop.permute.xlu0 %2893
      %2895 = vrot.lane.b32.xlu0 %v2863, 56
      %v2896 = vpop.permute.xlu0 %2895
      %2913 = vst.msk [vmem:[#allocation5] sm:$0xff] %vm1399, %v2866
      %2914 = vst.msk [vmem:[#allocation5 + $0x8] sm:$0xff] %vm1399, %v2868
      %2915 = vst.msk [vmem:[#allocation5 + $0x10] sm:$0xff] %vm1399, %v2870
      %2916 = vst.msk [vmem:[#allocation5 + $0x18] sm:$0xff] %vm1399, %v2872
      %2917 = vst.msk [vmem:[#allocation5 + $0x20] sm:$0xff] %vm1399, %v2874
      %2918 = vst.msk [vmem:[#allocation5 + $0x28] sm:$0xff] %vm1399, %v2876
      %2919 = vst.msk [vmem:[#allocation5 + $0x30] sm:$0xff] %vm1399, %v2878
      %2920 = vst.msk [vmem:[#allocation5 + $0x38] sm:$0xff] %vm1399, %v2880
      %2921 = vst.msk [vmem:[#allocation5 + $0x40] sm:$0xff] %vm1399, %v2882
      %2922 = vst.msk [vmem:[#allocation5 + $0x48] sm:$0xff] %vm1399, %v2884
      %2923 = vst.msk [vmem:[#allocation5 + $0x50] sm:$0xff] %vm1399, %v2886
      %2924 = vst.msk [vmem:[#allocation5 + $0x58] sm:$0xff] %vm1399, %v2888
      %2925 = vst.msk [vmem:[#allocation5 + $0x60] sm:$0xff] %vm1399, %v2890
      %2926 = vst.msk [vmem:[#allocation5 + $0x68] sm:$0xff] %vm1399, %v2892
      %2927 = vst.msk [vmem:[#allocation5 + $0x70] sm:$0xff] %vm1399, %v2894
      %2928 = vst.msk [vmem:[#allocation5 + $0x78] sm:$0xff] %vm1399, %v2896
      %v2930 = vrot.slane %v2041, 1
      %v2931 = vrot.slane %v2042, 1
      %v2932 = vsel %vm828, %v2930, %v2931
      %v2933 = vrot.slane %v2043, 1
      %v2934 = vsel %vm828, %v2931, %v2933
      %v2937 = vpack.c.bf16 %v2934, %v2932
      %2939 = vrot.lane.b32.xlu0 %v2462, 64
      %v2940 = vpop.permute.xlu0 %2939
      %2941 = vrot.lane.b32.xlu0 %v2463, 64
      %v2942 = vpop.permute.xlu0 %2941
      %2943 = vrot.lane.b32.xlu0 %v2464, 64
      %v2944 = vpop.permute.xlu0 %2943
      %2945 = vrot.lane.b32.xlu0 %v2465, 64
      %v2946 = vpop.permute.xlu0 %2945
      %2947 = vrot.lane.b32.xlu0 %v2466, 64
      %v2948 = vpop.permute.xlu0 %2947
      %2949 = vrot.lane.b32.xlu0 %v2467, 64
      %v2950 = vpop.permute.xlu0 %2949
      %2951 = vrot.lane.b32.xlu0 %v2468, 64
      %v2952 = vpop.permute.xlu0 %2951
      %2953 = vrot.lane.b32.xlu0 %v2469, 64
      %v2954 = vpop.permute.xlu0 %2953
      %2955 = vrot.lane.b32.xlu0 %v2470, 64
      %v2956 = vpop.permute.xlu0 %2955
      %2957 = vrot.lane.b32.xlu0 %v2471, 64
      %v2958 = vpop.permute.xlu0 %2957
      %2959 = vrot.lane.b32.xlu0 %v2472, 64
      %v2960 = vpop.permute.xlu0 %2959
      %2961 = vrot.lane.b32.xlu0 %v2473, 64
      %v2962 = vpop.permute.xlu0 %2961
      %2963 = vrot.lane.b32.xlu0 %v2474, 64
      %v2964 = vpop.permute.xlu0 %2963
      %2965 = vrot.lane.b32.xlu0 %v2475, 64
      %v2966 = vpop.permute.xlu0 %2965
      %2967 = vrot.lane.b32.xlu0 %v2721, 64
      %v2968 = vpop.permute.xlu0 %2967
      %2969 = vrot.lane.b32.xlu0 %v2937, 64
      %v2970 = vpop.permute.xlu0 %2969
      %2987 = vst.msk [vmem:[#allocation5] sm:$0xff] %vm1474, %v2940
      %2988 = vst.msk [vmem:[#allocation5 + $0x8] sm:$0xff] %vm1474, %v2942
      %2989 = vst.msk [vmem:[#allocation5 + $0x10] sm:$0xff] %vm1474, %v2944
      %2990 = vst.msk [vmem:[#allocation5 + $0x18] sm:$0xff] %vm1474, %v2946
      %2991 = vst.msk [vmem:[#allocation5 + $0x20] sm:$0xff] %vm1474, %v2948
      %2992 = vst.msk [vmem:[#allocation5 + $0x28] sm:$0xff] %vm1474, %v2950
      %2993 = vst.msk [vmem:[#allocation5 + $0x30] sm:$0xff] %vm1474, %v2952
      %2994 = vst.msk [vmem:[#allocation5 + $0x38] sm:$0xff] %vm1474, %v2954
      %2995 = vst.msk [vmem:[#allocation5 + $0x40] sm:$0xff] %vm1474, %v2956
      %2996 = vst.msk [vmem:[#allocation5 + $0x48] sm:$0xff] %vm1474, %v2958
      %2997 = vst.msk [vmem:[#allocation5 + $0x50] sm:$0xff] %vm1474, %v2960
      %2998 = vst.msk [vmem:[#allocation5 + $0x58] sm:$0xff] %vm1474, %v2962
      %2999 = vst.msk [vmem:[#allocation5 + $0x60] sm:$0xff] %vm1474, %v2964
      %3000 = vst.msk [vmem:[#allocation5 + $0x68] sm:$0xff] %vm1474, %v2966
      %3001 = vst.msk [vmem:[#allocation5 + $0x70] sm:$0xff] %vm1474, %v2968
      %3002 = vst.msk [vmem:[#allocation5 + $0x78] sm:$0xff] %vm1474, %v2970
      %v3003 = vld [vmem:[#allocation5] sm:$0xff]
      %v3004 = vld [vmem:[#allocation5 + $0x8] sm:$0xff]
      %v3005 = vld [vmem:[#allocation5 + $0x10] sm:$0xff]
      %v3006 = vld [vmem:[#allocation5 + $0x18] sm:$0xff]
      %v3007 = vld [vmem:[#allocation5 + $0x20] sm:$0xff]
      %v3008 = vld [vmem:[#allocation5 + $0x28] sm:$0xff]
      %v3009 = vld [vmem:[#allocation5 + $0x30] sm:$0xff]
      %v3010 = vld [vmem:[#allocation5 + $0x38] sm:$0xff]
      %v3011 = vld [vmem:[#allocation5 + $0x40] sm:$0xff]
      %v3012 = vld [vmem:[#allocation5 + $0x48] sm:$0xff]
      %v3013 = vld [vmem:[#allocation5 + $0x50] sm:$0xff]
      %v3014 = vld [vmem:[#allocation5 + $0x58] sm:$0xff]
      %v3015 = vld [vmem:[#allocation5 + $0x60] sm:$0xff]
      %v3016 = vld [vmem:[#allocation5 + $0x68] sm:$0xff]
      %v3017 = vld [vmem:[#allocation5 + $0x70] sm:$0xff]
      %v3018 = vld [vmem:[#allocation5 + $0x78] sm:$0xff]
      %v3019 = vld [vmem:[%s4] sm:$0xf]
      %v3020 = vld [vmem:[%s4 + $0x4] sm:$0xf]
      %v3021 = vld [vmem:[%s4 + $0x8] sm:$0xf]
      %v3022 = vld [vmem:[%s4 + $0xc] sm:$0xf]
      %v3023 = vld [vmem:[%s4 + $0x10] sm:$0xf]
      %v3024 = vld [vmem:[%s4 + $0x14] sm:$0xf]
      %v3025 = vld [vmem:[%s4 + $0x18] sm:$0xf]
      %v3026 = vld [vmem:[%s4 + $0x1c] sm:$0xf]
      %v3027 = vld [vmem:[%s4 + $0x20] sm:$0xf]
      %v3037 = vunpack.c.l.b16 %v3019
      %v3038 = vunpack.c.l.b16 %v3020
      %v3039 = vunpack.c.l.b16 %v3021
      %v3040 = vunpack.c.l.b16 %v3022
      %v3041 = vunpack.c.l.b16 %v3023
      %v3042 = vunpack.c.l.b16 %v3024
      %v3043 = vunpack.c.l.b16 %v3025
      %v3044 = vunpack.c.l.b16 %v3026
      %v3045 = vunpack.c.l.b16 %v3027
      %v3046 = vpack.c.b16 %v3038, %v3037
      %v3047 = vpack.c.b16 %v3040, %v3039
      %v3048 = vpack.c.b16 %v3042, %v3041
      %v3049 = vpack.c.b16 %v3044, %v3043
      %v3050 = vpack.c.b16 %v3045, %v3045
      %v3056 = vsel %vm1543, %v3003, 0
      %v3059 = vsel %vm1543, %v3004, 0
      %v3062 = vsel %vm1543, %v3005, 0
      %v3065 = vsel %vm1543, %v3006, 0
      %v3068 = vsel %vm1543, %v3007, 0
      %v3071 = vsel %vm1543, %v3008, 0
      %v3074 = vsel %vm1543, %v3009, 0
      %v3077 = vsel %vm1543, %v3010, 0
      %v3080 = vsel %vm1543, %v3011, 0
      %v3083 = vsel %vm1543, %v3012, 0
      %v3086 = vsel %vm1543, %v3013, 0
      %v3089 = vsel %vm1543, %v3014, 0
      %v3092 = vsel %vm1543, %v3015, 0
      %v3095 = vsel %vm1543, %v3016, 0
      %v3098 = vsel %vm1543, %v3017, 0
      %v3101 = vsel %vm1543, %v3018, 0
      %v3104 = vsel %vm1592, %v3050, 0
      %3106 = vmatprep.subr.bf16.mxu0 0
      %3107 = vmatpush1.bf16.msra.mxu0 %v3046
      %3108 = vmatprep.subr.bf16.mxu0 0
      %3109 = vmatpush1.bf16.msra.mxu0 %v3047
      %3110 = vmatprep.subr.bf16.mxu0 0
      %3111 = vmatpush1.bf16.msra.mxu0 %v3048
      %3112 = vmatprep.subr.bf16.mxu0 0
      %3113 = vmatpush1.bf16.msra.mxu0 %v3049
      %3114 = vmatprep.subr.bf16.mxu0 0
      %3115 = vmatpush1.bf16.msra.mxu0 %v3104
      %3116 = vmatprep.subr.bf16.mxu0 0
      %3117 = vmatpush1.bf16.msra.mxu0 0
      %3118 = vmatprep.subr.bf16.mxu0 0
      %3119 = vmatpush1.bf16.msra.mxu0 0
      %3120 = vmatprep.subr.bf16.mxu0 0
      %3121 = vmatpush1.bf16.msra.mxu0 0
      %3122 = vmatprep.subr.bf16.mxu0 0
      %3123 = vmatpush1.bf16.msra.mxu0 0
      %3124 = vmatprep.subr.bf16.mxu0 0
      %3125 = vmatpush1.bf16.msra.mxu0 0
      %3126 = vmatprep.subr.bf16.mxu0 0
      %3127 = vmatpush1.bf16.msra.mxu0 0
      %3128 = vmatprep.subr.bf16.mxu0 0
      %3129 = vmatpush1.bf16.msra.mxu0 0
      %3130 = vmatprep.subr.bf16.mxu0 0
      %3131 = vmatpush1.bf16.msra.mxu0 0
      %3132 = vmatprep.subr.bf16.mxu0 0
      %3133 = vmatpush1.bf16.msra.mxu0 0
      %3134 = vmatprep.subr.bf16.mxu0 0
      %3135 = vmatpush1.bf16.msra.mxu0 0
      %3136 = vmatprep.subr.bf16.mxu0 0
      %3137 = vmatpush1.bf16.msra.mxu0 0
      %3138 = vmatprep.mubr.bf16.mxu0 0
      %3139 = vmatmul.mubr.bf16.gmra.mrb[0].mxu0 %v3056
      %v3140 = vpop.f32.mrb[0].mxu0
      %v3141 = vadd.f32 0.0, %v3140
      %v3142 = vpop.f32.mrb[0].mxu0
      %v3143 = vpop.f32.mrb[0].mxu0
      %v3144 = vadd.f32 0.0, %v3143
      %v3145 = vpop.f32.mrb[0].mxu0
      %3146 = vmatprep.mubr.bf16.mxu0 0
      %3147 = vmatmul.mubr.bf16.gmra.mrb[0].mxu0 %v3059
      %v3148 = vpop.f32.mrb[0].mxu0
      %v3149 = vadd.f32 0.0, %v3148
      %v3150 = vpop.f32.mrb[0].mxu0
      %v3151 = vpop.f32.mrb[0].mxu0
      %v3152 = vadd.f32 0.0, %v3151
      %v3153 = vpop.f32.mrb[0].mxu0
      %3154 = vmatprep.mubr.bf16.mxu0 0
      %3155 = vmatmul.mubr.bf16.gmra.mrb[0].mxu0 %v3062
      %v3156 = vpop.f32.mrb[0].mxu0
      %v3157 = vadd.f32 0.0, %v3156
      %v3158 = vpop.f32.mrb[0].mxu0
      %v3159 = vpop.f32.mrb[0].mxu0
      %v3160 = vadd.f32 0.0, %v3159
      %v3161 = vpop.f32.mrb[0].mxu0
      %3162 = vmatprep.mubr.bf16.mxu0 0
      %3163 = vmatmul.mubr.bf16.gmra.mrb[0].mxu0 %v3065
      %v3164 = vpop.f32.mrb[0].mxu0
      %v3165 = vadd.f32 0.0, %v3164
      %v3166 = vpop.f32.mrb[0].mxu0
      %v3167 = vpop.f32.mrb[0].mxu0
      %v3168 = vadd.f32 0.0, %v3167
      %v3169 = vpop.f32.mrb[0].mxu0
      %3170 = vmatprep.mubr.bf16.mxu0 0
      %3171 = vmatmul.mubr.bf16.gmra.mrb[0].mxu0 %v3068
      %v3172 = vpop.f32.mrb[0].mxu0
      %v3173 = vadd.f32 0.0, %v3172
      %v3174 = vpop.f32.mrb[0].mxu0
      %v3175 = vpop.f32.mrb[0].mxu0
      %v3176 = vadd.f32 0.0, %v3175
      %v3177 = vpop.f32.mrb[0].mxu0
      %3178 = vmatprep.mubr.bf16.mxu0 0
      %3179 = vmatmul.mubr.bf16.gmra.mrb[0].mxu0 %v3071
      %v3180 = vpop.f32.mrb[0].mxu0
      %v3181 = vadd.f32 0.0, %v3180
      %v3182 = vpop.f32.mrb[0].mxu0
      %v3183 = vpop.f32.mrb[0].mxu0
      %v3184 = vadd.f32 0.0, %v3183
      %v3185 = vpop.f32.mrb[0].mxu0
      %3186 = vmatprep.mubr.bf16.mxu0 0
      %3187 = vmatmul.mubr.bf16.gmra.mrb[0].mxu0 %v3074
      %v3188 = vpop.f32.mrb[0].mxu0
      %v3189 = vadd.f32 0.0, %v3188
      %v3190 = vpop.f32.mrb[0].mxu0
      %v3191 = vpop.f32.mrb[0].mxu0
      %v3192 = vadd.f32 0.0, %v3191
      %v3193 = vpop.f32.mrb[0].mxu0
      %3194 = vmatprep.mubr.bf16.mxu0 0
      %3195 = vmatmul.mubr.bf16.gmra.mrb[0].mxu0 %v3077
      %v3196 = vpop.f32.mrb[0].mxu0
      %v3197 = vadd.f32 0.0, %v3196
      %v3198 = vpop.f32.mrb[0].mxu0
      %v3199 = vpop.f32.mrb[0].mxu0
      %v3200 = vadd.f32 0.0, %v3199
      %v3201 = vpop.f32.mrb[0].mxu0
      %3202 = vmatprep.mubr.bf16.mxu0 0
      %3203 = vmatmul.mubr.bf16.gmra.mrb[0].mxu0 %v3080
      %v3204 = vpop.f32.mrb[0].mxu0
      %v3205 = vadd.f32 0.0, %v3204
      %v3206 = vpop.f32.mrb[0].mxu0
      %v3207 = vpop.f32.mrb[0].mxu0
      %v3208 = vadd.f32 0.0, %v3207
      %v3209 = vpop.f32.mrb[0].mxu0
      %3210 = vmatprep.mubr.bf16.mxu0 0
      %3211 = vmatmul.mubr.bf16.gmra.mrb[0].mxu0 %v3083
      %v3212 = vpop.f32.mrb[0].mxu0
      %v3213 = vadd.f32 0.0, %v3212
      %v3214 = vpop.f32.mrb[0].mxu0
      %v3215 = vpop.f32.mrb[0].mxu0
      %v3216 = vadd.f32 0.0, %v3215
      %v3217 = vpop.f32.mrb[0].mxu0
      %3218 = vmatprep.mubr.bf16.mxu0 0
      %3219 = vmatmul.mubr.bf16.gmra.mrb[0].mxu0 %v3086
      %v3220 = vpop.f32.mrb[0].mxu0
      %v3221 = vadd.f32 0.0, %v3220
      %v3222 = vpop.f32.mrb[0].mxu0
      %v3223 = vpop.f32.mrb[0].mxu0
      %v3224 = vadd.f32 0.0, %v3223
      %v3225 = vpop.f32.mrb[0].mxu0
      %3226 = vmatprep.mubr.bf16.mxu0 0
      %3227 = vmatmul.mubr.bf16.gmra.mrb[0].mxu0 %v3089
      %v3228 = vpop.f32.mrb[0].mxu0
      %v3229 = vadd.f32 0.0, %v3228
      %v3230 = vpop.f32.mrb[0].mxu0
      %v3231 = vpop.f32.mrb[0].mxu0
      %v3232 = vadd.f32 0.0, %v3231
      %v3233 = vpop.f32.mrb[0].mxu0
      %3234 = vmatprep.mubr.bf16.mxu0 0
      %3235 = vmatmul.mubr.bf16.gmra.mrb[0].mxu0 %v3092
      %v3236 = vpop.f32.mrb[0].mxu0
      %v3237 = vadd.f32 0.0, %v3236
      %v3238 = vpop.f32.mrb[0].mxu0
      %v3239 = vpop.f32.mrb[0].mxu0
      %v3240 = vadd.f32 0.0, %v3239
      %v3241 = vpop.f32.mrb[0].mxu0
      %3242 = vmatprep.mubr.bf16.mxu0 0
      %3243 = vmatmul.mubr.bf16.gmra.mrb[0].mxu0 %v3095
      %v3244 = vpop.f32.mrb[0].mxu0
      %v3245 = vadd.f32 0.0, %v3244
      %v3246 = vpop.f32.mrb[0].mxu0
      %v3247 = vpop.f32.mrb[0].mxu0
      %v3248 = vadd.f32 0.0, %v3247
      %v3249 = vpop.f32.mrb[0].mxu0
      %3250 = vmatprep.mubr.bf16.mxu0 0
      %3251 = vmatmul.mubr.bf16.gmra.mrb[0].mxu0 %v3098
      %v3252 = vpop.f32.mrb[0].mxu0
      %v3253 = vadd.f32 0.0, %v3252
      %v3254 = vpop.f32.mrb[0].mxu0
      %v3255 = vpop.f32.mrb[0].mxu0
      %v3256 = vadd.f32 0.0, %v3255
      %v3257 = vpop.f32.mrb[0].mxu0
      %3258 = vmatprep.mubr.bf16.mxu0 0
      %3259 = vmatmul.mubr.bf16.gmra.mrb[0].mxu0 %v3101
      %v3260 = vpop.f32.mrb[0].mxu0
      %v3261 = vadd.f32 0.0, %v3260
      %v3262 = vpop.f32.mrb[0].mxu0
      %v3263 = vpop.f32.mrb[0].mxu0
      %v3264 = vadd.f32 0.0, %v3263
      %v3265 = vpop.f32.mrb[0].mxu0
      %3266 = vdwg.mxu0
      %v3267 = vld [vmem:[%s5] sm:$0x1]
      %v3269 = vlaneseq
      %v3270 = vshrl.u32 %v3269, 7
      %v3271 = vsub.s32 0, %v3270
      %v3272 = vrot.slane %v3267, %v3271
      %v3274 = vmul.f32 %v3141, %v3272
      %v3275 = vmul.f32 %v3144, %v3272
      %v3276 = vmul.f32 %v3149, %v3272
      %v3277 = vmul.f32 %v3152, %v3272
      %v3278 = vmul.f32 %v3157, %v3272
      %v3279 = vmul.f32 %v3160, %v3272
      %v3280 = vmul.f32 %v3165, %v3272
      %v3281 = vmul.f32 %v3168, %v3272
      %v3282 = vmul.f32 %v3173, %v3272
      %v3283 = vmul.f32 %v3176, %v3272
      %v3284 = vmul.f32 %v3181, %v3272
      %v3285 = vmul.f32 %v3184, %v3272
      %v3286 = vmul.f32 %v3189, %v3272
      %v3287 = vmul.f32 %v3192, %v3272
      %v3288 = vmul.f32 %v3197, %v3272
      %v3289 = vmul.f32 %v3200, %v3272
      %v3290 = vmul.f32 %v3205, %v3272
      %v3291 = vmul.f32 %v3208, %v3272
      %v3292 = vmul.f32 %v3213, %v3272
      %v3293 = vmul.f32 %v3216, %v3272
      %v3294 = vmul.f32 %v3221, %v3272
      %v3295 = vmul.f32 %v3224, %v3272
      %v3296 = vmul.f32 %v3229, %v3272
      %v3297 = vmul.f32 %v3232, %v3272
      %v3298 = vmul.f32 %v3237, %v3272
      %v3299 = vmul.f32 %v3240, %v3272
      %v3300 = vmul.f32 %v3245, %v3272
      %v3301 = vmul.f32 %v3248, %v3272
      %v3302 = vmul.f32 %v3253, %v3272
      %v3303 = vmul.f32 %v3256, %v3272
      %v3304 = vmul.f32 %v3261, %v3272
      %v3305 = vmul.f32 %v3264, %v3272
      %v3306 = vld [vmem:[%s6] sm:$0x1]
      %v3308 = vlaneseq
      %v3309 = vshrl.u32 %v3308, 7
      %v3310 = vsub.s32 0, %v3309
      %v3311 = vrot.slane %v3306, %v3310
      %v3313 = vadd.f32 %v3274, %v3311
      %v3314 = vadd.f32 %v3275, %v3311
      %v3315 = vadd.f32 %v3276, %v3311
      %v3316 = vadd.f32 %v3277, %v3311
      %v3317 = vadd.f32 %v3278, %v3311
      %v3318 = vadd.f32 %v3279, %v3311
      %v3319 = vadd.f32 %v3280, %v3311
      %v3320 = vadd.f32 %v3281, %v3311
      %v3321 = vadd.f32 %v3282, %v3311
      %v3322 = vadd.f32 %v3283, %v3311
      %v3323 = vadd.f32 %v3284, %v3311
      %v3324 = vadd.f32 %v3285, %v3311
      %v3325 = vadd.f32 %v3286, %v3311
      %v3326 = vadd.f32 %v3287, %v3311
      %v3327 = vadd.f32 %v3288, %v3311
      %v3328 = vadd.f32 %v3289, %v3311
      %v3329 = vadd.f32 %v3290, %v3311
      %v3330 = vadd.f32 %v3291, %v3311
      %v3331 = vadd.f32 %v3292, %v3311
      %v3332 = vadd.f32 %v3293, %v3311
      %v3333 = vadd.f32 %v3294, %v3311
      %v3334 = vadd.f32 %v3295, %v3311
      %v3335 = vadd.f32 %v3296, %v3311
      %v3336 = vadd.f32 %v3297, %v3311
      %v3337 = vadd.f32 %v3298, %v3311
      %v3338 = vadd.f32 %v3299, %v3311
      %v3339 = vadd.f32 %v3300, %v3311
      %v3340 = vadd.f32 %v3301, %v3311
      %v3341 = vadd.f32 %v3302, %v3311
      %v3342 = vadd.f32 %v3303, %v3311
      %v3343 = vadd.f32 %v3304, %v3311
      %v3344 = vadd.f32 %v3305, %v3311
      %v3345 = vmax.f32 %v3313, 0.0
      %v3346 = vmax.f32 %v3314, 0.0
      %v3347 = vmax.f32 %v3315, 0.0
      %v3348 = vmax.f32 %v3316, 0.0
      %v3349 = vmax.f32 %v3317, 0.0
      %v3350 = vmax.f32 %v3318, 0.0
      %v3351 = vmax.f32 %v3319, 0.0
      %v3352 = vmax.f32 %v3320, 0.0
      %v3353 = vmax.f32 %v3321, 0.0
      %v3354 = vmax.f32 %v3322, 0.0
      %v3355 = vmax.f32 %v3323, 0.0
      %v3356 = vmax.f32 %v3324, 0.0
      %v3357 = vmax.f32 %v3325, 0.0
      %v3358 = vmax.f32 %v3326, 0.0
      %v3359 = vmax.f32 %v3327, 0.0
      %v3360 = vmax.f32 %v3328, 0.0
      %v3361 = vmax.f32 %v3329, 0.0
      %v3362 = vmax.f32 %v3330, 0.0
      %v3363 = vmax.f32 %v3331, 0.0
      %v3364 = vmax.f32 %v3332, 0.0
      %v3365 = vmax.f32 %v3333, 0.0
      %v3366 = vmax.f32 %v3334, 0.0
      %v3367 = vmax.f32 %v3335, 0.0
      %v3368 = vmax.f32 %v3336, 0.0
      %v3369 = vmax.f32 %v3337, 0.0
      %v3370 = vmax.f32 %v3338, 0.0
      %v3371 = vmax.f32 %v3339, 0.0
      %v3372 = vmax.f32 %v3340, 0.0
      %v3373 = vmax.f32 %v3341, 0.0
      %v3374 = vmax.f32 %v3342, 0.0
      %v3375 = vmax.f32 %v3343, 0.0
      %v3376 = vmax.f32 %v3344, 0.0
      %v3377 = vadd.f32 %v3345, %v312
      %v3378 = vadd.f32 %v3346, %v313
      %v3379 = vadd.f32 %v3347, %v314
      %v3380 = vadd.f32 %v3348, %v315
      %v3381 = vadd.f32 %v3349, %v316
      %v3382 = vadd.f32 %v3350, %v317
      %v3383 = vadd.f32 %v3351, %v318
      %v3384 = vadd.f32 %v3352, %v319
      %v3385 = vadd.f32 %v3353, %v320
      %v3386 = vadd.f32 %v3354, %v321
      %v3387 = vadd.f32 %v3355, %v322
      %v3388 = vadd.f32 %v3356, %v323
      %v3389 = vadd.f32 %v3357, %v324
      %v3390 = vadd.f32 %v3358, %v325
      %v3391 = vadd.f32 %v3359, %v326
      %v3392 = vadd.f32 %v3360, %v327
      %v3393 = vadd.f32 %v3361, %v328
      %v3394 = vadd.f32 %v3362, %v329
      %v3395 = vadd.f32 %v3363, %v330
      %v3396 = vadd.f32 %v3364, %v331
      %v3397 = vadd.f32 %v3365, %v332
      %v3398 = vadd.f32 %v3366, %v333
      %v3399 = vadd.f32 %v3367, %v334
      %v3400 = vadd.f32 %v3368, %v335
      %v3401 = vadd.f32 %v3369, %v336
      %v3402 = vadd.f32 %v3370, %v337
      %v3403 = vadd.f32 %v3371, %v338
      %v3404 = vadd.f32 %v3372, %v339
      %v3405 = vadd.f32 %v3373, %v340
      %v3406 = vadd.f32 %v3374, %v341
      %v3407 = vadd.f32 %v3375, %v342
      %v3408 = vadd.f32 %v3376, %v343
      %3409 = vst.msk [vmem:[#allocation6] sm:$0xff] %vm344, %v3377
      %3410 = vst.msk [vmem:[#allocation6 + $0x8] sm:$0xff] %vm344, %v3378
      %3411 = vst.msk [vmem:[#allocation6 + $0x10] sm:$0xff] %vm344, %v3379
      %3412 = vst.msk [vmem:[#allocation6 + $0x18] sm:$0xff] %vm344, %v3380
      %3413 = vst.msk [vmem:[#allocation6 + $0x20] sm:$0xff] %vm344, %v3381
      %3414 = vst.msk [vmem:[#allocation6 + $0x28] sm:$0xff] %vm344, %v3382
      %3415 = vst.msk [vmem:[#allocation6 + $0x30] sm:$0xff] %vm344, %v3383
      %3416 = vst.msk [vmem:[#allocation6 + $0x38] sm:$0xff] %vm344, %v3384
      %3417 = vst.msk [vmem:[#allocation6 + $0x40] sm:$0xff] %vm344, %v3385
      %3418 = vst.msk [vmem:[#allocation6 + $0x48] sm:$0xff] %vm344, %v3386
      %3419 = vst.msk [vmem:[#allocation6 + $0x50] sm:$0xff] %vm344, %v3387
      %3420 = vst.msk [vmem:[#allocation6 + $0x58] sm:$0xff] %vm344, %v3388
      %3421 = vst.msk [vmem:[#allocation6 + $0x60] sm:$0xff] %vm344, %v3389
      %3422 = vst.msk [vmem:[#allocation6 + $0x68] sm:$0xff] %vm344, %v3390
      %3423 = vst.msk [vmem:[#allocation6 + $0x70] sm:$0xff] %vm344, %v3391
      %3424 = vst.msk [vmem:[#allocation6 + $0x78] sm:$0xff] %vm344, %v3392
      %3425 = vst.msk [vmem:[#allocation6 + $0x80] sm:$0xff] %vm344, %v3393
      %3426 = vst.msk [vmem:[#allocation6 + $0x88] sm:$0xff] %vm344, %v3394
      %3427 = vst.msk [vmem:[#allocation6 + $0x90] sm:$0xff] %vm344, %v3395
      %3428 = vst.msk [vmem:[#allocation6 + $0x98] sm:$0xff] %vm344, %v3396
      %3429 = vst.msk [vmem:[#allocation6 + $0xa0] sm:$0xff] %vm344, %v3397
      %3430 = vst.msk [vmem:[#allocation6 + $0xa8] sm:$0xff] %vm344, %v3398
      %3431 = vst.msk [vmem:[#allocation6 + $0xb0] sm:$0xff] %vm344, %v3399
      %3432 = vst.msk [vmem:[#allocation6 + $0xb8] sm:$0xff] %vm344, %v3400
      %3433 = vst.msk [vmem:[#allocation6 + $0xc0] sm:$0xff] %vm344, %v3401
      %3434 = vst.msk [vmem:[#allocation6 + $0xc8] sm:$0xff] %vm344, %v3402
      %3435 = vst.msk [vmem:[#allocation6 + $0xd0] sm:$0xff] %vm344, %v3403
      %3436 = vst.msk [vmem:[#allocation6 + $0xd8] sm:$0xff] %vm344, %v3404
      %3437 = vst.msk [vmem:[#allocation6 + $0xe0] sm:$0xff] %vm344, %v3405
      %3438 = vst.msk [vmem:[#allocation6 + $0xe8] sm:$0xff] %vm344, %v3406
      %3439 = vst.msk [vmem:[#allocation6 + $0xf0] sm:$0xff] %vm344, %v3407
      %3440 = vst.msk [vmem:[#allocation6 + $0xf8] sm:$0xff] %vm344, %v3408
      %v3441 = vld [vmem:[#allocation6] ss:$16 sm:$0x3]
      %v3442 = vld [vmem:[#allocation6] ss:$16 sm:$0xc]
      %v3443 = vor.u32 %v3441, %v3442
      %v3444 = vld [vmem:[#allocation6] ss:$16 sm:$0x30]
      %v3445 = vor.u32 %v3443, %v3444
      %v3446 = vld [vmem:[#allocation6] ss:$16 sm:$0xc0]
      %v3447 = vor.u32 %v3445, %v3446
      %s3448 = scalar_lea.vmem [#allocation6], 128
      %v3449 = vld [vmem:[%s3448] ss:$16 sm:$0x3]
      %v3450 = vld [vmem:[%s3448] ss:$16 sm:$0xc]
      %v3451 = vor.u32 %v3449, %v3450
      %v3452 = vld [vmem:[%s3448] ss:$16 sm:$0x30]
      %v3453 = vor.u32 %v3451, %v3452
      %v3454 = vld [vmem:[%s3448] ss:$16 sm:$0xc0]
      %v3455 = vor.u32 %v3453, %v3454
      %v3456 = vpack.c.bf16 %v3455, %v3447
      %v3458 = vunpack.c.l.b16 %v3456
      %v3459 = vunpack.c.h.b16 %v3456
      %v3460 = vpack.c.b16 %v3458, %v3458
      %v3461 = vpack.c.b16 %v3459, %v3459
      %vm3464 = vcmask 60416
      %3465 = vst.msk [vmem:[%s278] sm:$0xf] %vm3464, %v3460
      %3466 = vst.msk [vmem:[%s278 + $0x4] sm:$0xf] %vm3464, %v3461
      %s3467 = scalar_lea.vmem [#allocation6], 1
      %v3468 = vld [vmem:[%s3467] ss:$16 sm:$0x3]
      %v3469 = vld [vmem:[%s3467] ss:$16 sm:$0xc]
      %v3470 = vor.u32 %v3468, %v3469
      %v3471 = vld [vmem:[%s3467] ss:$16 sm:$0x30]
      %v3472 = vor.u32 %v3470, %v3471
      %v3473 = vld [vmem:[%s3467] ss:$16 sm:$0xc0]
      %v3474 = vor.u32 %v3472, %v3473
      %s3475 = scalar_lea.vmem [#allocation6], 129
      %v3476 = vld [vmem:[%s3475] ss:$16 sm:$0x3]
      %v3477 = vld [vmem:[%s3475] ss:$16 sm:$0xc]
      %v3478 = vor.u32 %v3476, %v3477
      %v3479 = vld [vmem:[%s3475] ss:$16 sm:$0x30]
      %v3480 = vor.u32 %v3478, %v3479
      %v3481 = vld [vmem:[%s3475] ss:$16 sm:$0xc0]
      %v3482 = vor.u32 %v3480, %v3481
      %v3483 = vpack.c.bf16 %v3482, %v3474
      %v3485 = vunpack.c.l.b16 %v3483
      %v3486 = vunpack.c.h.b16 %v3483
      %v3487 = vpack.c.b16 %v3485, %v3485
      %v3488 = vpack.c.b16 %v3486, %v3486
      %3489 = vrot.lane.b32.xlu0 %v3487, 8
      %v3490 = vpop.permute.xlu0 %3489
      %3491 = vrot.lane.b32.xlu0 %v3488, 8
      %v3492 = vpop.permute.xlu0 %3491
      %vm3495 = vcmask 126016
      %3496 = vst.msk [vmem:[%s278] sm:$0xf] %vm3495, %v3490
      %3497 = vst.msk [vmem:[%s278 + $0x4] sm:$0xf] %vm3495, %v3492
      %s3498 = scalar_lea.vmem [#allocation6], 2
      %v3499 = vld [vmem:[%s3498] ss:$16 sm:$0x3]
      %v3500 = vld [vmem:[%s3498] ss:$16 sm:$0xc]
      %v3501 = vor.u32 %v3499, %v3500
      %v3502 = vld [vmem:[%s3498] ss:$16 sm:$0x30]
      %v3503 = vor.u32 %v3501, %v3502
      %v3504 = vld [vmem:[%s3498] ss:$16 sm:$0xc0]
      %v3505 = vor.u32 %v3503, %v3504
      %s3506 = scalar_lea.vmem [#allocation6], 130
      %v3507 = vld [vmem:[%s3506] ss:$16 sm:$0x3]
      %v3508 = vld [vmem:[%s3506] ss:$16 sm:$0xc]
      %v3509 = vor.u32 %v3507, %v3508
      %v3510 = vld [vmem:[%s3506] ss:$16 sm:$0x30]
      %v3511 = vor.u32 %v3509, %v3510
      %v3512 = vld [vmem:[%s3506] ss:$16 sm:$0xc0]
      %v3513 = vor.u32 %v3511, %v3512
      %v3514 = vpack.c.bf16 %v3513, %v3505
      %v3516 = vunpack.c.l.b16 %v3514
      %v3517 = vunpack.c.h.b16 %v3514
      %v3518 = vpack.c.b16 %v3516, %v3516
      %v3519 = vpack.c.b16 %v3517, %v3517
      %3520 = vrot.lane.b32.xlu0 %v3518, 16
      %v3521 = vpop.permute.xlu0 %3520
      %3522 = vrot.lane.b32.xlu0 %v3519, 16
      %v3523 = vpop.permute.xlu0 %3522
      %vm3526 = vcmask 191616
      %3527 = vst.msk [vmem:[%s278] sm:$0xf] %vm3526, %v3521
      %3528 = vst.msk [vmem:[%s278 + $0x4] sm:$0xf] %vm3526, %v3523
      %s3529 = scalar_lea.vmem [#allocation6], 3
      %v3530 = vld [vmem:[%s3529] ss:$16 sm:$0x3]
      %v3531 = vld [vmem:[%s3529] ss:$16 sm:$0xc]
      %v3532 = vor.u32 %v3530, %v3531
      %v3533 = vld [vmem:[%s3529] ss:$16 sm:$0x30]
      %v3534 = vor.u32 %v3532, %v3533
      %v3535 = vld [vmem:[%s3529] ss:$16 sm:$0xc0]
      %v3536 = vor.u32 %v3534, %v3535
      %s3537 = scalar_lea.vmem [#allocation6], 131
      %v3538 = vld [vmem:[%s3537] ss:$16 sm:$0x3]
      %v3539 = vld [vmem:[%s3537] ss:$16 sm:$0xc]
      %v3540 = vor.u32 %v3538, %v3539
      %v3541 = vld [vmem:[%s3537] ss:$16 sm:$0x30]
      %v3542 = vor.u32 %v3540, %v3541
      %v3543 = vld [vmem:[%s3537] ss:$16 sm:$0xc0]
      %v3544 = vor.u32 %v3542, %v3543
      %v3545 = vpack.c.bf16 %v3544, %v3536
      %v3547 = vunpack.c.l.b16 %v3545
      %v3548 = vunpack.c.h.b16 %v3545
      %v3549 = vpack.c.b16 %v3547, %v3547
      %v3550 = vpack.c.b16 %v3548, %v3548
      %3551 = vrot.lane.b32.xlu0 %v3549, 24
      %v3552 = vpop.permute.xlu0 %3551
      %3553 = vrot.lane.b32.xlu0 %v3550, 24
      %v3554 = vpop.permute.xlu0 %3553
      %vm3557 = vcmask 257216
      %3558 = vst.msk [vmem:[%s278] sm:$0xf] %vm3557, %v3552
      %3559 = vst.msk [vmem:[%s278 + $0x4] sm:$0xf] %vm3557, %v3554
      %s3560 = scalar_lea.vmem [#allocation6], 4
      %v3561 = vld [vmem:[%s3560] ss:$16 sm:$0x3]
      %v3562 = vld [vmem:[%s3560] ss:$16 sm:$0xc]
      %v3563 = vor.u32 %v3561, %v3562
      %v3564 = vld [vmem:[%s3560] ss:$16 sm:$0x30]
      %v3565 = vor.u32 %v3563, %v3564
      %v3566 = vld [vmem:[%s3560] ss:$16 sm:$0xc0]
      %v3567 = vor.u32 %v3565, %v3566
      %s3568 = scalar_lea.vmem [#allocation6], 132
      %v3569 = vld [vmem:[%s3568] ss:$16 sm:$0x3]
      %v3570 = vld [vmem:[%s3568] ss:$16 sm:$0xc]
      %v3571 = vor.u32 %v3569, %v3570
      %v3572 = vld [vmem:[%s3568] ss:$16 sm:$0x30]
      %v3573 = vor.u32 %v3571, %v3572
      %v3574 = vld [vmem:[%s3568] ss:$16 sm:$0xc0]
      %v3575 = vor.u32 %v3573, %v3574
      %v3576 = vpack.c.bf16 %v3575, %v3567
      %v3578 = vunpack.c.l.b16 %v3576
      %v3579 = vunpack.c.h.b16 %v3576
      %v3580 = vpack.c.b16 %v3578, %v3578
      %v3581 = vpack.c.b16 %v3579, %v3579
      %3582 = vrot.lane.b32.xlu0 %v3580, 32
      %v3583 = vpop.permute.xlu0 %3582
      %3584 = vrot.lane.b32.xlu0 %v3581, 32
      %v3585 = vpop.permute.xlu0 %3584
      %vm3588 = vcmask 322816
      %3589 = vst.msk [vmem:[%s278] sm:$0xf] %vm3588, %v3583
      %3590 = vst.msk [vmem:[%s278 + $0x4] sm:$0xf] %vm3588, %v3585
      %s3591 = scalar_lea.vmem [#allocation6], 5
      %v3592 = vld [vmem:[%s3591] ss:$16 sm:$0x3]
      %v3593 = vld [vmem:[%s3591] ss:$16 sm:$0xc]
      %v3594 = vor.u32 %v3592, %v3593
      %v3595 = vld [vmem:[%s3591] ss:$16 sm:$0x30]
      %v3596 = vor.u32 %v3594, %v3595
      %v3597 = vld [vmem:[%s3591] ss:$16 sm:$0xc0]
      %v3598 = vor.u32 %v3596, %v3597
      %s3599 = scalar_lea.vmem [#allocation6], 133
      %v3600 = vld [vmem:[%s3599] ss:$16 sm:$0x3]
      %v3601 = vld [vmem:[%s3599] ss:$16 sm:$0xc]
      %v3602 = vor.u32 %v3600, %v3601
      %v3603 = vld [vmem:[%s3599] ss:$16 sm:$0x30]
      %v3604 = vor.u32 %v3602, %v3603
      %v3605 = vld [vmem:[%s3599] ss:$16 sm:$0xc0]
      %v3606 = vor.u32 %v3604, %v3605
      %v3607 = vpack.c.bf16 %v3606, %v3598
      %v3609 = vunpack.c.l.b16 %v3607
      %v3610 = vunpack.c.h.b16 %v3607
      %v3611 = vpack.c.b16 %v3609, %v3609
      %v3612 = vpack.c.b16 %v3610, %v3610
      %3613 = vrot.lane.b32.xlu0 %v3611, 40
      %v3614 = vpop.permute.xlu0 %3613
      %3615 = vrot.lane.b32.xlu0 %v3612, 40
      %v3616 = vpop.permute.xlu0 %3615
      %vm3619 = vcmask 388416
      %3620 = vst.msk [vmem:[%s278] sm:$0xf] %vm3619, %v3614
      %3621 = vst.msk [vmem:[%s278 + $0x4] sm:$0xf] %vm3619, %v3616
      %s3622 = scalar_lea.vmem [#allocation6], 6
      %v3623 = vld [vmem:[%s3622] ss:$16 sm:$0x3]
      %v3624 = vld [vmem:[%s3622] ss:$16 sm:$0xc]
      %v3625 = vor.u32 %v3623, %v3624
      %v3626 = vld [vmem:[%s3622] ss:$16 sm:$0x30]
      %v3627 = vor.u32 %v3625, %v3626
      %v3628 = vld [vmem:[%s3622] ss:$16 sm:$0xc0]
      %v3629 = vor.u32 %v3627, %v3628
      %s3630 = scalar_lea.vmem [#allocation6], 134
      %v3631 = vld [vmem:[%s3630] ss:$16 sm:$0x3]
      %v3632 = vld [vmem:[%s3630] ss:$16 sm:$0xc]
      %v3633 = vor.u32 %v3631, %v3632
      %v3634 = vld [vmem:[%s3630] ss:$16 sm:$0x30]
      %v3635 = vor.u32 %v3633, %v3634
      %v3636 = vld [vmem:[%s3630] ss:$16 sm:$0xc0]
      %v3637 = vor.u32 %v3635, %v3636
      %v3638 = vpack.c.bf16 %v3637, %v3629
      %v3640 = vunpack.c.l.b16 %v3638
      %v3641 = vunpack.c.h.b16 %v3638
      %v3642 = vpack.c.b16 %v3640, %v3640
      %v3643 = vpack.c.b16 %v3641, %v3641
      %3644 = vrot.lane.b32.xlu0 %v3642, 48
      %v3645 = vpop.permute.xlu0 %3644
      %3646 = vrot.lane.b32.xlu0 %v3643, 48
      %v3647 = vpop.permute.xlu0 %3646
      %vm3650 = vcmask 454016
      %3651 = vst.msk [vmem:[%s278] sm:$0xf] %vm3650, %v3645
      %3652 = vst.msk [vmem:[%s278 + $0x4] sm:$0xf] %vm3650, %v3647
      %s3653 = scalar_lea.vmem [#allocation6], 7
      %v3654 = vld [vmem:[%s3653] ss:$16 sm:$0x3]
      %v3655 = vld [vmem:[%s3653] ss:$16 sm:$0xc]
      %v3656 = vor.u32 %v3654, %v3655
      %v3657 = vld [vmem:[%s3653] ss:$16 sm:$0x30]
      %v3658 = vor.u32 %v3656, %v3657
      %v3659 = vld [vmem:[%s3653] ss:$16 sm:$0xc0]
      %v3660 = vor.u32 %v3658, %v3659
      %s3661 = scalar_lea.vmem [#allocation6], 135
      %v3662 = vld [vmem:[%s3661] ss:$16 sm:$0x3]
      %v3663 = vld [vmem:[%s3661] ss:$16 sm:$0xc]
      %v3664 = vor.u32 %v3662, %v3663
      %v3665 = vld [vmem:[%s3661] ss:$16 sm:$0x30]
      %v3666 = vor.u32 %v3664, %v3665
      %v3667 = vld [vmem:[%s3661] ss:$16 sm:$0xc0]
      %v3668 = vor.u32 %v3666, %v3667
      %v3669 = vpack.c.bf16 %v3668, %v3660
      %v3671 = vunpack.c.l.b16 %v3669
      %v3672 = vunpack.c.h.b16 %v3669
      %v3673 = vpack.c.b16 %v3671, %v3671
      %v3674 = vpack.c.b16 %v3672, %v3672
      %3675 = vrot.lane.b32.xlu0 %v3673, 56
      %v3676 = vpop.permute.xlu0 %3675
      %3677 = vrot.lane.b32.xlu0 %v3674, 56
      %v3678 = vpop.permute.xlu0 %3677
      %vm3681 = vcmask 519616
      %3682 = vst.msk [vmem:[%s278] sm:$0xf] %vm3681, %v3676
      %3683 = vst.msk [vmem:[%s278 + $0x4] sm:$0xf] %vm3681, %v3678
      %s3684 = scalar_lea.vmem [#allocation6], 8
      %v3685 = vld [vmem:[%s3684] ss:$16 sm:$0x3]
      %v3686 = vld [vmem:[%s3684] ss:$16 sm:$0xc]
      %v3687 = vor.u32 %v3685, %v3686
      %v3688 = vld [vmem:[%s3684] ss:$16 sm:$0x30]
      %v3689 = vor.u32 %v3687, %v3688
      %v3690 = vld [vmem:[%s3684] ss:$16 sm:$0xc0]
      %v3691 = vor.u32 %v3689, %v3690
      %s3692 = scalar_lea.vmem [#allocation6], 136
      %v3693 = vld [vmem:[%s3692] ss:$16 sm:$0x3]
      %v3694 = vld [vmem:[%s3692] ss:$16 sm:$0xc]
      %v3695 = vor.u32 %v3693, %v3694
      %v3696 = vld [vmem:[%s3692] ss:$16 sm:$0x30]
      %v3697 = vor.u32 %v3695, %v3696
      %v3698 = vld [vmem:[%s3692] ss:$16 sm:$0xc0]
      %v3699 = vor.u32 %v3697, %v3698
      %v3700 = vpack.c.bf16 %v3699, %v3691
      %v3702 = vunpack.c.l.b16 %v3700
      %v3703 = vunpack.c.h.b16 %v3700
      %v3704 = vpack.c.b16 %v3702, %v3702
      %v3705 = vpack.c.b16 %v3703, %v3703
      %3706 = vrot.lane.b32.xlu0 %v3704, 64
      %v3707 = vpop.permute.xlu0 %3706
      %3708 = vrot.lane.b32.xlu0 %v3705, 64
      %v3709 = vpop.permute.xlu0 %3708
      %vm3712 = vcmask 585216
      %3713 = vst.msk [vmem:[%s278] sm:$0xf] %vm3712, %v3707
      %3714 = vst.msk [vmem:[%s278 + $0x4] sm:$0xf] %vm3712, %v3709
      %s3715 = scalar_lea.vmem [#allocation6], 9
      %v3716 = vld [vmem:[%s3715] ss:$16 sm:$0x3]
      %v3717 = vld [vmem:[%s3715] ss:$16 sm:$0xc]
      %v3718 = vor.u32 %v3716, %v3717
      %v3719 = vld [vmem:[%s3715] ss:$16 sm:$0x30]
      %v3720 = vor.u32 %v3718, %v3719
      %v3721 = vld [vmem:[%s3715] ss:$16 sm:$0xc0]
      %v3722 = vor.u32 %v3720, %v3721
      %s3723 = scalar_lea.vmem [#allocation6], 137
      %v3724 = vld [vmem:[%s3723] ss:$16 sm:$0x3]
      %v3725 = vld [vmem:[%s3723] ss:$16 sm:$0xc]
      %v3726 = vor.u32 %v3724, %v3725
      %v3727 = vld [vmem:[%s3723] ss:$16 sm:$0x30]
      %v3728 = vor.u32 %v3726, %v3727
      %v3729 = vld [vmem:[%s3723] ss:$16 sm:$0xc0]
      %v3730 = vor.u32 %v3728, %v3729
      %v3731 = vpack.c.bf16 %v3730, %v3722
      %v3733 = vunpack.c.l.b16 %v3731
      %v3734 = vunpack.c.h.b16 %v3731
      %v3735 = vpack.c.b16 %v3733, %v3733
      %v3736 = vpack.c.b16 %v3734, %v3734
      %3737 = vrot.lane.b32.xlu0 %v3735, 72
      %v3738 = vpop.permute.xlu0 %3737
      %3739 = vrot.lane.b32.xlu0 %v3736, 72
      %v3740 = vpop.permute.xlu0 %3739
      %vm3743 = vcmask 650816
      %3744 = vst.msk [vmem:[%s278] sm:$0xf] %vm3743, %v3738
      %3745 = vst.msk [vmem:[%s278 + $0x4] sm:$0xf] %vm3743, %v3740
      %s3746 = scalar_lea.vmem [#allocation6], 10
      %v3747 = vld [vmem:[%s3746] ss:$16 sm:$0x3]
      %v3748 = vld [vmem:[%s3746] ss:$16 sm:$0xc]
      %v3749 = vor.u32 %v3747, %v3748
      %v3750 = vld [vmem:[%s3746] ss:$16 sm:$0x30]
      %v3751 = vor.u32 %v3749, %v3750
      %v3752 = vld [vmem:[%s3746] ss:$16 sm:$0xc0]
      %v3753 = vor.u32 %v3751, %v3752
      %s3754 = scalar_lea.vmem [#allocation6], 138
      %v3755 = vld [vmem:[%s3754] ss:$16 sm:$0x3]
      %v3756 = vld [vmem:[%s3754] ss:$16 sm:$0xc]
      %v3757 = vor.u32 %v3755, %v3756
      %v3758 = vld [vmem:[%s3754] ss:$16 sm:$0x30]
      %v3759 = vor.u32 %v3757, %v3758
      %v3760 = vld [vmem:[%s3754] ss:$16 sm:$0xc0]
      %v3761 = vor.u32 %v3759, %v3760
      %v3762 = vpack.c.bf16 %v3761, %v3753
      %v3764 = vunpack.c.l.b16 %v3762
      %v3765 = vunpack.c.h.b16 %v3762
      %v3766 = vpack.c.b16 %v3764, %v3764
      %v3767 = vpack.c.b16 %v3765, %v3765
      %3768 = vrot.lane.b32.xlu0 %v3766, 80
      %v3769 = vpop.permute.xlu0 %3768
      %3770 = vrot.lane.b32.xlu0 %v3767, 80
      %v3771 = vpop.permute.xlu0 %3770
      %vm3774 = vcmask 716416
      %3775 = vst.msk [vmem:[%s278] sm:$0xf] %vm3774, %v3769
      %3776 = vst.msk [vmem:[%s278 + $0x4] sm:$0xf] %vm3774, %v3771
      %s3777 = scalar_lea.vmem [#allocation6], 11
      %v3778 = vld [vmem:[%s3777] ss:$16 sm:$0x3]
      %v3779 = vld [vmem:[%s3777] ss:$16 sm:$0xc]
      %v3780 = vor.u32 %v3778, %v3779
      %v3781 = vld [vmem:[%s3777] ss:$16 sm:$0x30]
      %v3782 = vor.u32 %v3780, %v3781
      %v3783 = vld [vmem:[%s3777] ss:$16 sm:$0xc0]
      %v3784 = vor.u32 %v3782, %v3783
      %s3785 = scalar_lea.vmem [#allocation6], 139
      %v3786 = vld [vmem:[%s3785] ss:$16 sm:$0x3]
      %v3787 = vld [vmem:[%s3785] ss:$16 sm:$0xc]
      %v3788 = vor.u32 %v3786, %v3787
      %v3789 = vld [vmem:[%s3785] ss:$16 sm:$0x30]
      %v3790 = vor.u32 %v3788, %v3789
      %v3791 = vld [vmem:[%s3785] ss:$16 sm:$0xc0]
      %v3792 = vor.u32 %v3790, %v3791
      %v3793 = vpack.c.bf16 %v3792, %v3784
      %v3795 = vunpack.c.l.b16 %v3793
      %v3796 = vunpack.c.h.b16 %v3793
      %v3797 = vpack.c.b16 %v3795, %v3795
      %v3798 = vpack.c.b16 %v3796, %v3796
      %3799 = vrot.lane.b32.xlu0 %v3797, 88
      %v3800 = vpop.permute.xlu0 %3799
      %3801 = vrot.lane.b32.xlu0 %v3798, 88
      %v3802 = vpop.permute.xlu0 %3801
      %vm3805 = vcmask 782016
      %3806 = vst.msk [vmem:[%s278] sm:$0xf] %vm3805, %v3800
      %3807 = vst.msk [vmem:[%s278 + $0x4] sm:$0xf] %vm3805, %v3802
      %s3808 = scalar_lea.vmem [#allocation6], 12
      %v3809 = vld [vmem:[%s3808] ss:$16 sm:$0x3]
      %v3810 = vld [vmem:[%s3808] ss:$16 sm:$0xc]
      %v3811 = vor.u32 %v3809, %v3810
      %v3812 = vld [vmem:[%s3808] ss:$16 sm:$0x30]
      %v3813 = vor.u32 %v3811, %v3812
      %v3814 = vld [vmem:[%s3808] ss:$16 sm:$0xc0]
      %v3815 = vor.u32 %v3813, %v3814
      %s3816 = scalar_lea.vmem [#allocation6], 140
      %v3817 = vld [vmem:[%s3816] ss:$16 sm:$0x3]
      %v3818 = vld [vmem:[%s3816] ss:$16 sm:$0xc]
      %v3819 = vor.u32 %v3817, %v3818
      %v3820 = vld [vmem:[%s3816] ss:$16 sm:$0x30]
      %v3821 = vor.u32 %v3819, %v3820
      %v3822 = vld [vmem:[%s3816] ss:$16 sm:$0xc0]
      %v3823 = vor.u32 %v3821, %v3822
      %v3824 = vpack.c.bf16 %v3823, %v3815
      %v3826 = vunpack.c.l.b16 %v3824
      %v3827 = vunpack.c.h.b16 %v3824
      %v3828 = vpack.c.b16 %v3826, %v3826
      %v3829 = vpack.c.b16 %v3827, %v3827
      %3830 = vrot.lane.b32.xlu0 %v3828, 96
      %v3831 = vpop.permute.xlu0 %3830
      %3832 = vrot.lane.b32.xlu0 %v3829, 96
      %v3833 = vpop.permute.xlu0 %3832
      %vm3836 = vcmask 847616
      %3837 = vst.msk [vmem:[%s278] sm:$0xf] %vm3836, %v3831
      %3838 = vst.msk [vmem:[%s278 + $0x4] sm:$0xf] %vm3836, %v3833
      %s3839 = scalar_lea.vmem [#allocation6], 13
      %v3840 = vld [vmem:[%s3839] ss:$16 sm:$0x3]
      %v3841 = vld [vmem:[%s3839] ss:$16 sm:$0xc]
      %v3842 = vor.u32 %v3840, %v3841
      %v3843 = vld [vmem:[%s3839] ss:$16 sm:$0x30]
      %v3844 = vor.u32 %v3842, %v3843
      %v3845 = vld [vmem:[%s3839] ss:$16 sm:$0xc0]
      %v3846 = vor.u32 %v3844, %v3845
      %s3847 = scalar_lea.vmem [#allocation6], 141
      %v3848 = vld [vmem:[%s3847] ss:$16 sm:$0x3]
      %v3849 = vld [vmem:[%s3847] ss:$16 sm:$0xc]
      %v3850 = vor.u32 %v3848, %v3849
      %v3851 = vld [vmem:[%s3847] ss:$16 sm:$0x30]
      %v3852 = vor.u32 %v3850, %v3851
      %v3853 = vld [vmem:[%s3847] ss:$16 sm:$0xc0]
      %v3854 = vor.u32 %v3852, %v3853
      %v3855 = vpack.c.bf16 %v3854, %v3846
      %v3857 = vunpack.c.l.b16 %v3855
      %v3858 = vunpack.c.h.b16 %v3855
      %v3859 = vpack.c.b16 %v3857, %v3857
      %v3860 = vpack.c.b16 %v3858, %v3858
      %3861 = vrot.lane.b32.xlu0 %v3859, 104
      %v3862 = vpop.permute.xlu0 %3861
      %3863 = vrot.lane.b32.xlu0 %v3860, 104
      %v3864 = vpop.permute.xlu0 %3863
      %vm3867 = vcmask 913216
      %3868 = vst.msk [vmem:[%s278] sm:$0xf] %vm3867, %v3862
      %3869 = vst.msk [vmem:[%s278 + $0x4] sm:$0xf] %vm3867, %v3864
      %s3870 = scalar_lea.vmem [#allocation6], 14
      %v3871 = vld [vmem:[%s3870] ss:$16 sm:$0x3]
      %v3872 = vld [vmem:[%s3870] ss:$16 sm:$0xc]
      %v3873 = vor.u32 %v3871, %v3872
      %v3874 = vld [vmem:[%s3870] ss:$16 sm:$0x30]
      %v3875 = vor.u32 %v3873, %v3874
      %v3876 = vld [vmem:[%s3870] ss:$16 sm:$0xc0]
      %v3877 = vor.u32 %v3875, %v3876
      %s3878 = scalar_lea.vmem [#allocation6], 142
      %v3879 = vld [vmem:[%s3878] ss:$16 sm:$0x3]
      %v3880 = vld [vmem:[%s3878] ss:$16 sm:$0xc]
      %v3881 = vor.u32 %v3879, %v3880
      %v3882 = vld [vmem:[%s3878] ss:$16 sm:$0x30]
      %v3883 = vor.u32 %v3881, %v3882
      %v3884 = vld [vmem:[%s3878] ss:$16 sm:$0xc0]
      %v3885 = vor.u32 %v3883, %v3884
      %v3886 = vpack.c.bf16 %v3885, %v3877
      %v3888 = vunpack.c.l.b16 %v3886
      %v3889 = vunpack.c.h.b16 %v3886
      %v3890 = vpack.c.b16 %v3888, %v3888
      %v3891 = vpack.c.b16 %v3889, %v3889
      %3892 = vrot.lane.b32.xlu0 %v3890, 112
      %v3893 = vpop.permute.xlu0 %3892
      %3894 = vrot.lane.b32.xlu0 %v3891, 112
      %v3895 = vpop.permute.xlu0 %3894
      %vm3898 = vcmask 978816
      %3899 = vst.msk [vmem:[%s278] sm:$0xf] %vm3898, %v3893
      %3900 = vst.msk [vmem:[%s278 + $0x4] sm:$0xf] %vm3898, %v3895
      %s3901 = scalar_lea.vmem [#allocation6], 15
      %v3902 = vld [vmem:[%s3901] ss:$16 sm:$0x3]
      %v3903 = vld [vmem:[%s3901] ss:$16 sm:$0xc]
      %v3904 = vor.u32 %v3902, %v3903
      %v3905 = vld [vmem:[%s3901] ss:$16 sm:$0x30]
      %v3906 = vor.u32 %v3904, %v3905
      %v3907 = vld [vmem:[%s3901] ss:$16 sm:$0xc0]
      %v3908 = vor.u32 %v3906, %v3907
      %s3909 = scalar_lea.vmem [#allocation6], 143
      %v3910 = vld [vmem:[%s3909] ss:$16 sm:$0x3]
      %v3911 = vld [vmem:[%s3909] ss:$16 sm:$0xc]
      %v3912 = vor.u32 %v3910, %v3911
      %v3913 = vld [vmem:[%s3909] ss:$16 sm:$0x30]
      %v3914 = vor.u32 %v3912, %v3913
      %v3915 = vld [vmem:[%s3909] ss:$16 sm:$0xc0]
      %v3916 = vor.u32 %v3914, %v3915
      %v3917 = vpack.c.bf16 %v3916, %v3908
      %v3919 = vunpack.c.l.b16 %v3917
      %v3920 = vunpack.c.h.b16 %v3917
      %v3921 = vpack.c.b16 %v3919, %v3919
      %v3922 = vpack.c.b16 %v3920, %v3920
      %3923 = vrot.lane.b32.xlu0 %v3921, 120
      %v3924 = vpop.permute.xlu0 %3923
      %3925 = vrot.lane.b32.xlu0 %v3922, 120
      %v3926 = vpop.permute.xlu0 %3925
      %vm3929 = vcmask 1044416
      %3930 = vst.msk [vmem:[%s278] sm:$0xf] %vm3929, %v3924
      %3931 = vst.msk [vmem:[%s278 + $0x4] sm:$0xf] %vm3929, %v3926
      %p3932 = scmp.lt.s32.totalorder %s18, 1
      %s3933 = scalar_select %p3932, %s18, 1
      %s3934 = smul.addr %s3933, 2
      %s3935 = smul.addr %s3934, 4
      %s3936 = scalar_lea.vmem %s7, %s3935
      // Predicated region
      $region49: #{resnet_forward.3} parent=47 // pred_check
        %p3937 = pneg %p188
      $region50: #{resnet_forward.3} parent=47 // pred_check_branch
        %3939 = sbr.rel (%p3937) target = $region52
      $region51: #{resnet_forward.3} parent=47 // pred_region
        _
      $region52: #{resnet_forward.3} parent=47 // pred_fallthru
        _
    $region48: #{resnet_forward.3} parent=5 // pred_fallthru
      _
    %p3940 = scmp.le.s32.totalorder 2, %s13
    // Predicated region
    $region53: #{resnet_forward.3} parent=5 // pred_check
      %p3941 = pneg %p3940
    $region54: #{resnet_forward.3} parent=5 // pred_check_branch
      %3943 = sbr.rel (%p3941) target = $region56
    $region55: #{resnet_forward.3} parent=5 // pred_region
      %s3944 = ssub.s32 %s13, 2
      // Predicated region
      $region57: #{resnet_forward.3} parent=55 // pred_check
        %p3945 = pneg %p194
      $region58: #{resnet_forward.3} parent=55 // pred_check_branch
        %3947 = sbr.rel (%p3945) target = $region60
      $region59: #{resnet_forward.3} parent=55 // pred_region
        %p3948 = scmp.lt.s32.totalorder %s19, 1
        %s3949 = scalar_select %p3948, %s19, 1
        %s3950 = smul.addr %s3949, 2
        %s3951 = smul.addr %s3950, 4
        %s3952 = scalar_lea.vmem %s7, %s3951
      $region60: #{resnet_forward.3} parent=55 // pred_fallthru
        _
    $region56: #{resnet_forward.3} parent=5 // pred_fallthru
      _
  $region6: #{resnet_forward.3} parent=0 // loop_footer
    %s17 = sadd.s32 1, %s13
  $region7: #{resnet_forward.3} parent=0 // loop_footer_branch
    %12 = sbr.rel target = $region3
  $region8: #{resnet_forward.3} parent=0 // loop_exit
    _

</llo_original>
